<compile_context>
chip_gen: v7x
topology: tpu7x:2x2x1
jax: 0.10.0
libtpu: 0.0.40
codegen_flags: <defaults>
</compile_context>

<pallas_src>
import math

import jax
import jax.numpy as jnp
from jax.experimental import pallas as pl
from jax.experimental.pallas import tpu as pltpu

LANE = 128


def _round_up(v, m):
    return ((v + m - 1) // m) * m


# ----------------------------------------------------------------------------
# Fused Pallas kernel
# ----------------------------------------------------------------------------

def _build_kernel(n_bn, H, W, n_params, add_shortcut):
    """Builds the fused C3_Bottle_CA kernel (one grid step == one image)."""
    HW = H * W

    def _sigmoid_fast(v):                  # EUP approx reciprocal (SiLU only)
        return pl.reciprocal(1.0 + jnp.exp(-v), approx=True)

    def _sigmoid_exact(v):                 # exact: attention gates
        return 1.0 / (1.0 + jnp.exp(-v))

    def _silu(v):
        return v * _sigmoid_fast(v)

    def _hardswish(v):
        return v * jnp.clip(v + 3.0, 0.0, 6.0) * (1.0 / 6.0)

    def _mm(a_bf16, w_bf16):               # bf16 MXU matmul, f32 accumulate
        return jnp.dot(a_bf16, w_bf16, preferred_element_type=jnp.float32)

    def kernel(*args):
        # args = x_ref, <n_params param refs>, out_ref, pad_scratch, col_scratch
        x_ref = args[0]
        out_ref = args[1 + n_params]
        pad_ref = args[2 + n_params]       # (H+2, W+2, Cp) bf16 3x3 halo
        col_ref = args[3 + n_params]       # (HW, 9*Cp)     bf16 im2col
        it = iter(args[1:1 + n_params])
        nxt = lambda: next(it)[...]

        Cp = pad_ref.shape[-1]
        bf = jnp.bfloat16

        # Zero only the halo border strips; the interior is fully overwritten
        # before every use.  Per-step (not program_id-gated) so both
        # TensorCores see a zero border under "parallel" semantics.
        pad_ref[0:1, :, :] = jnp.zeros((1, W + 2, Cp), bf)
        pad_ref[H + 1:H + 2, :, :] = jnp.zeros((1, W + 2, Cp), bf)
        pad_ref[:, 0:1, :] = jnp.zeros((H + 2, 1, Cp), bf)
        pad_ref[:, W + 1:W + 2, :] = jnp.zeros((H + 2, 1, Cp), bf)

        x_bf = x_ref[0].astype(bf)                            # (HW, C1)

        # ---- C3 outer convs (BN scale pre-folded into weights) ------------
        w_cv1, b_cv1 = nxt(), nxt()
        w_cv2, b_cv2 = nxt(), nxt()
        w3_top, w3_bot, b3 = nxt(), nxt(), nxt()

        y1 = _silu(_mm(x_bf, w_cv1) + b_cv1)                  # (HW, Cp) f32
        y2_bf = _silu(_mm(x_bf, w_cv2) + b_cv2).astype(bf)    # (HW, Cp) bf16

        # ---- Bottleneck_CA chain (static unroll, all VMEM-resident) -------
        for _ in range(n_bn):
            wb1, bb1 = nxt(), nxt()
            w9, bb2 = nxt(), nxt()          # (9*Cp, Cp) im2col-order weight
            wc1, bc1 = nxt(), nxt()
            wch, bch = nxt(), nxt()
            wcw, bcw = nxt(), nxt()

            # Bottleneck cv1: 1x1 + BN + SiLU; bf16 into the halo scratch.
            t = _silu(_mm(y1.astype(bf), wb1) + bb1)          # (HW, Cp)
            # TODO(perf): handle the W halo with pltpu.roll + edge masks so
            # this interior store becomes sublane-aligned.
            pad_ref[1:H + 1, 1:W + 1, :] = t.astype(bf).reshape(H, W, Cp)

            # Bottleneck cv2: 3x3 "same" conv as ONE im2col matmul; the
            # 9-tap accumulation happens inside the MXU.
            for idx in range(9):
                ky, kx = idx // 3, idx % 3
                tap = pad_ref[ky:ky + H, kx:kx + W, :]        # (H, W, Cp)
                col_ref[:, idx * Cp:(idx + 1) * Cp] = tap.reshape(HW, Cp)
            y = _silu(_mm(col_ref[...], w9) + bb2)            # (HW, Cp) f32

            # CoordAtt: H/W pooling + shared 1x1 + gates, fully in VMEM.
            # (1x1 conv distributes over the (H+W) concat, so apply per half.)
            y3 = y.reshape(H, W, Cp)
            xh_bf = jnp.mean(y3, axis=1).astype(bf)           # (H, Cp)
            xw_bf = jnp.mean(y3, axis=0).astype(bf)           # (W, Cp)
            zh = _hardswish(_mm(xh_bf, wc1) + bc1).astype(bf) # (H, Mp)
            zw = _hardswish(_mm(xw_bf, wc1) + bc1).astype(bf) # (W, Mp)
            a_h = _sigmoid_exact(_mm(zh, wch) + bch)          # (H, Cp)
            a_w = _sigmoid_exact(_mm(zw, wcw) + bcw)          # (W, Cp)

            gated = (y3 * a_h[:, None, :] * a_w[None, :, :]).reshape(HW, Cp)
            y1 = (y1 + gated) if add_shortcut else gated

        # ---- cv3 over the virtual concat(y1, y2): split-weight accumulate -
        out = _silu(_mm(y1.astype(bf), w3_top) + _mm(y2_bf, w3_bot) + b3)
        out_ref[0] = out                                      # (HW, c2)

    return kernel


# ----------------------------------------------------------------------------
# Host-side parameter preparation (fold BN scale, zero-pad to lane width)
# ----------------------------------------------------------------------------

def _fold_pad(p, rows_pad, cols_pad):
    """Fold BN scale into the weight, zero-pad to (rows_pad, cols_pad), cast
    the weight to bf16.  Returns (w_bf16, shift_f32[1, cols_pad])."""
    w = p["w"] * p["scale"][None, :]
    cin, cout = w.shape
    w = jnp.pad(w, ((0, rows_pad - cin), (0, cols_pad - cout)))
    sh = jnp.pad(p["shift"], (0, cols_pad - cout)).reshape(1, cols_pad)
    return w.astype(jnp.bfloat16), sh.astype(jnp.float32)


def _kernel_operands(params, Cp, Mp):
    """Flatten folded/padded parameters in the positional order the kernel
    expects.  Padded weight rows/cols and shifts are exact zeros so padded
    lanes stay exactly zero through the whole block."""
    c1 = params["cv1"]["w"].shape[0]
    c_ = params["cv1"]["w"].shape[1]
    c2 = params["cv3"]["w"].shape[1]

    ops = []
    for name in ("cv1", "cv2"):
        w, sh = _fold_pad(params[name], c1, Cp)
        ops.extend([w, sh])

    # cv3 over the virtual concat(y1, y2): split the (2*c_, c2) weight.
    p3 = params["cv3"]
    w3 = p3["w"] * p3["scale"][None, :]
    top = jnp.pad(w3[:c_], ((0, Cp - c_), (0, 0))).astype(jnp.bfloat16)
    bot = jnp.pad(w3[c_:2 * c_], ((0, Cp - c_), (0, 0))).astype(jnp.bfloat16)
    ops.extend([top, bot, p3["shift"].reshape(1, c2).astype(jnp.float32)])

    for bp in params["m"]:
        w, sh = _fold_pad(bp["cv1"], Cp, Cp)
        ops.extend([w, sh])

        # 3x3 weight: fold scale, pad PER TAP, lay out as (9*Cp, Cp) matching
        # the kernel's im2col column order (ky-major, kx-minor).
        p2 = bp["cv2"]
        w9 = (p2["w"] * p2["scale"][None, :]).reshape(9, c_, c_)
        w9 = jnp.pad(w9, ((0, 0), (0, Cp - c_), (0, Cp - c_)))
        ops.append(w9.reshape(9 * Cp, Cp).astype(jnp.bfloat16))
        ops.append(jnp.pad(p2["shift"], (0, Cp - c_)).reshape(1, Cp)
                   .astype(jnp.float32))

        cpar = bp["coord"]
        w, sh = _fold_pad(cpar["conv1"], Cp, Mp)
        ops.extend([w, sh])
        w, sh = _fold_pad(cpar["conv_h"], Mp, Cp)
        ops.extend([w, sh])
        w, sh = _fold_pad(cpar["conv_w"], Mp, Cp)
        ops.extend([w, sh])
    return ops


def _cost_estimate(N, H, W, c1, Cp, Mp, c2, n_bn, ops):
    HW = H * W
    per_img = 2 * HW * c1 * Cp * 2 + 2 * HW * (2 * Cp) * c2
    per_bn = (2 * HW * Cp * Cp + 2 * HW * 9 * Cp * Cp
              + 2 * (H + W) * Cp * Mp + 2 * (H + W) * Mp * Cp
              + 4 * HW * Cp)
    flops = N * (per_img + n_bn * per_bn)
    trans = N * (HW * (2 * Cp + c2) + n_bn * (HW * 2 * Cp + (H + W) * Cp))
    bytes_accessed = (4 * N * HW * (c1 + c2)
                      + sum(int(a.size) * a.dtype.itemsize for a in ops))
    return pl.CostEstimate(flops=int(flops), transcendentals=int(trans),
                           bytes_accessed=int(bytes_accessed))


def c3_bottle_ca_forward(x_nhwc, params, *, shortcut=True):
    """Fused C3_Bottle_CA forward: one pallas_call, grid over batch."""
    N, H, W, C1 = x_nhwc.shape
    HW = H * W
    c_ = params["cv1"]["w"].shape[1]
    c2 = params["cv3"]["w"].shape[1]
    n_bn = len(params["m"])
    mip = params["m"][0]["coord"]["conv1"]["w"].shape[1] if n_bn else 8

    Cp = _round_up(c_, LANE)            # lane-dense internal channel width
    Mp = _round_up(mip, LANE)

    ops = _kernel_operands(params, Cp, Mp)
    n_params = len(ops)

    in_specs = [pl.BlockSpec((1, HW, C1), lambda b: (b, 0, 0))]
    in_specs += [pl.BlockSpec(a.shape, lambda b, _n=a.ndim: (0,) * _n)
                 for a in ops]

    # Inside Bottleneck_CA: add = shortcut and (c_in == c_out); here the C3
    # block always uses Bottleneck_CA(c_, c_, e=1.0) so add == shortcut.
    kernel = _build_kernel(n_bn, H, W, n_params, add_shortcut=shortcut)

    scratch = [pltpu.VMEM((H + 2, W + 2, Cp), jnp.bfloat16),   # 3x3 halo
               pltpu.VMEM((HW, 9 * Cp), jnp.bfloat16)]         # im2col

    # VMEM budget derived from the actual per-step working set (v7x: 64 MiB
    # physical).  TODO(perf): for real YOLO resolutions add an H-tile grid
    # axis (rows a multiple of 256 on v6e/v7x) instead of whole-image tiles.
    param_bytes = sum(int(a.size) * a.dtype.itemsize for a in ops)
    scratch_bytes = 2 * ((H + 2) * (W + 2) * Cp + HW * 9 * Cp)
    io_bytes = 2 * 4 * HW * (C1 + c2)           # double-buffered in/out blocks
    live_bytes = 8 * 4 * HW * Cp                # resident f32 intermediates
    need = 2 * param_bytes + scratch_bytes + io_bytes + live_bytes
    vmem_limit = int(min(100 * 2 ** 20, max(16 * 2 ** 20, 2 * need)))

    out_flat = pl.pallas_call(
        kernel,
        out_shape=jax.ShapeDtypeStruct((N, HW, c2), jnp.float32),
        grid=(N,),
        in_specs=in_specs,
        out_specs=pl.BlockSpec((1, HW, c2), lambda b: (b, 0, 0)),
        scratch_shapes=scratch,
        compiler_params=pltpu.CompilerParams(
            dimension_semantics=("parallel",),        # megacore sharding
            vmem_limit_bytes=vmem_limit),
        cost_estimate=_cost_estimate(N, H, W, C1, Cp, Mp, c2, n_bn, ops),
    )(x_nhwc.reshape(N, HW, C1), *ops)

    return out_flat.reshape(N, H, W, c2)


# ----------------------------------------------------------------------------
# Parameter construction (deterministic synthetic weights; eval-mode BN folded)
# ----------------------------------------------------------------------------

def make_conv_params(key, cin, cout, k=1, conv_bias=False, batch_norm=True,
                     eps=1e-5):
    k0, k1, k2, k3, k4, k5 = jax.random.split(key, 6)
    fan_in = k * k * cin
    w = jax.random.normal(k0, (fan_in, cout), jnp.float32) / math.sqrt(fan_in)
    bias = (0.1 * jax.random.normal(k1, (cout,), jnp.float32)
            if conv_bias else jnp.zeros((cout,), jnp.float32))
    if batch_norm:
        gamma = 1.0 + 0.1 * jax.random.normal(k2, (cout,), jnp.float32)
        beta = 0.1 * jax.random.normal(k3, (cout,), jnp.float32)
        r_mean = 0.1 * jax.random.normal(k4, (cout,), jnp.float32)
        r_var = 0.9 + 0.2 * jax.random.uniform(k5, (cout,), jnp.float32)
        scale = gamma / jnp.sqrt(r_var + eps)
        shift = beta + (bias - r_mean) * scale
    else:
        scale = jnp.ones((cout,), jnp.float32)
        shift = bias
    return {"w": w, "scale": scale, "shift": shift}


def init_c3_bottle_ca(key, c1, c2, n=1, e=0.5, reduction=32):
    c_ = int(c2 * e)
    keys = jax.random.split(key, 3 + n)
    params = {
        "cv1": make_conv_params(keys[0], c1, c_, 1),
        "cv2": make_conv_params(keys[1], c1, c_, 1),
        "cv3": make_conv_params(keys[2], 2 * c_, c2, 1),
        "m": [],
    }
    for i in range(n):
        bk = jax.random.split(keys[3 + i], 5)
        mip = max(8, c_ // reduction)      # Bottleneck_CA(c_, c_, e=1.0)
        params["m"].append({
            "cv1": make_conv_params(bk[0], c_, c_, 1),
            "cv2": make_conv_params(bk[1], c_, c_, 3),
            "coord": {
                "conv1": make_conv_params(bk[2], c_, mip, 1,
                                          conv_bias=True, batch_norm=True),
                "conv_h": make_conv_params(bk[3], mip, c_, 1,
                                           conv_bias=True, batch_norm=False),
                "conv_w": make_conv_params(bk[4], mip, c_, 1,
                                           conv_bias=True, batch_norm=False),
            },
        })
    return params


# ----------------------------------------------------------------------------
# Pure-JAX f32 reference (mirrors the PyTorch module with the same folded BN)
# ----------------------------------------------------------------------------

def _silu_ref(v):
    return v * jax.nn.sigmoid(v)


def _hswish_ref(v):
    return v * jnp.clip(v + 3.0, 0.0, 6.0) / 6.0


def _conv_ref(x, p, act, k=1):
    n, h, w, c = x.shape
    cout = p["w"].shape[1]
    if k == 1:
        cols = x.reshape(n * h * w, c)
    else:
        pad = k // 2
        xp = jnp.pad(x, ((0, 0), (pad, pad), (pad, pad), (0, 0)))
        cols = jnp.concatenate(
            [xp[:, ky:ky + h, kx:kx + w, :].reshape(n * h * w, c)
             for ky in range(k) for kx in range(k)], axis=1)
    y = cols @ p["w"] * p["scale"] + p["shift"]
    if act == "silu":
        y = _silu_ref(y)
    elif act == "hardswish":
        y = _hswish_ref(y)
    elif act == "sigmoid":
        y = jax.nn.sigmoid(y)
    return y.reshape(n, h, w, cout)


def _reference_forward(x, params):
    y1 = _conv_ref(x, params["cv1"], "silu", 1)
    for bp in params["m"]:
        t = _conv_ref(y1, bp["cv1"], "silu", 1)
        t = _conv_ref(t, bp["cv2"], "silu", 3)
        cp = bp["coord"]
        xh = jnp.mean(t, axis=2)                           # (n, h, c)
        xw = jnp.mean(t, axis=1)                           # (n, w, c)
        # 1x1 conv distributes over the (H+W) concat -> apply to each half
        zh = _hswish_ref(xh @ cp["conv1"]["w"] * cp["conv1"]["scale"]
                         + cp["conv1"]["shift"])
        zw = _hswish_ref(xw @ cp["conv1"]["w"] * cp["conv1"]["scale"]
                         + cp["conv1"]["shift"])
        a_h = jax.nn.sigmoid(zh @ cp["conv_h"]["w"] * cp["conv_h"]["scale"]
                             + cp["conv_h"]["shift"])
        a_w = jax.nn.sigmoid(zw @ cp["conv_w"]["w"] * cp["conv_w"]["scale"]
                             + cp["conv_w"]["shift"])
        y1 = y1 + t * a_h[:, :, None, :] * a_w[:, None, :, :]
    y2 = _conv_ref(x, params["cv2"], "silu", 1)
    ycat = jnp.concatenate([y1, y2], axis=-1)
    return _conv_ref(ycat, params["cv3"], "silu", 1)


# ----------------------------------------------------------------------------
# Driver
# ----------------------------------------------------------------------------

if __name__ == "__main__":
    key = jax.random.PRNGKey(0)
    k_x, k_p = jax.random.split(key)

    # Module-consistent small shapes: batch=2, c1=c2=16, spatial 16x16
    # (c_ = 8, mip = 8 inside the bottleneck), layout NHWC.
    N, C1, C2, H, W = 2, 16, 16, 16, 16
    x = jax.random.normal(k_x, (N, H, W, C1), jnp.float32)

    params = init_c3_bottle_ca(k_p, C1, C2, n=1, e=0.5)

    fwd = jax.jit(c3_bottle_ca_forward)
    out = fwd(x, params)
    jax.block_until_ready(out)

    assert out.shape == (N, H, W, C2), out.shape
    assert bool(jnp.all(jnp.isfinite(out)))

    # Correctness vs. pure-JAX f32 reference (kernel uses bf16 MXU operands
    # with the BN scale folded in, plus approx EUP reciprocals in SiLU ->
    # loose tolerance).
    ref = jax.jit(_reference_forward)(x, params)
    max_err = float(jnp.max(jnp.abs(out - ref)))
    mean_err = float(jnp.mean(jnp.abs(out - ref)))
    assert max_err < 0.3 and mean_err < 0.04, (max_err, mean_err)

    print("KERNEL_OK")
</pallas_src>

<mosaic_0001>
module attributes {stable_mosaic.version = 11 : i64} {
  func.func @kernel(%arg0: i32, %arg1: memref<1x256x16xf32, #tpu.memory_space<vmem>>, %arg2: memref<16x128xbf16, #tpu.memory_space<vmem>>, %arg3: memref<1x128xf32, #tpu.memory_space<vmem>>, %arg4: memref<16x128xbf16, #tpu.memory_space<vmem>>, %arg5: memref<1x128xf32, #tpu.memory_space<vmem>>, %arg6: memref<128x16xbf16, #tpu.memory_space<vmem>>, %arg7: memref<128x16xbf16, #tpu.memory_space<vmem>>, %arg8: memref<1x16xf32, #tpu.memory_space<vmem>>, %arg9: memref<128x128xbf16, #tpu.memory_space<vmem>>, %arg10: memref<1x128xf32, #tpu.memory_space<vmem>>, %arg11: memref<1152x128xbf16, #tpu.memory_space<vmem>>, %arg12: memref<1x128xf32, #tpu.memory_space<vmem>>, %arg13: memref<128x128xbf16, #tpu.memory_space<vmem>>, %arg14: memref<1x128xf32, #tpu.memory_space<vmem>>, %arg15: memref<128x128xbf16, #tpu.memory_space<vmem>>, %arg16: memref<1x128xf32, #tpu.memory_space<vmem>>, %arg17: memref<128x128xbf16, #tpu.memory_space<vmem>>, %arg18: memref<1x128xf32, #tpu.memory_space<vmem>>, %arg19: memref<1x256x16xf32, #tpu.memory_space<vmem>>, %arg20: memref<18x18x128xbf16, #tpu.memory_space<vmem>>, %arg21: memref<256x1152xbf16, #tpu.memory_space<vmem>>) attributes {dimension_semantics = [#tpu.dimension_semantics<parallel>], iteration_bounds = array<i64: 2>, scalar_prefetch = 0 : i64, scratch_operands = 2 : i64, tpu.core_type = #tpu.core_type<tc>, window_params = [{transform_indices = @transform_0, window_bounds = array<i64: 1, 256, 16>}, {pipeline_mode = #tpu.pipeline_mode<synchronous>, transform_indices = @transform_1, window_bounds = array<i64: 16, 128>}, {pipeline_mode = #tpu.pipeline_mode<synchronous>, transform_indices = @transform_2, window_bounds = array<i64: 1, 128>}, {pipeline_mode = #tpu.pipeline_mode<synchronous>, transform_indices = @transform_3, window_bounds = array<i64: 16, 128>}, {pipeline_mode = #tpu.pipeline_mode<synchronous>, transform_indices = @transform_4, window_bounds = array<i64: 1, 128>}, {pipeline_mode = #tpu.pipeline_mode<synchronous>, transform_indices = @transform_5, window_bounds = array<i64: 128, 16>}, {pipeline_mode = #tpu.pipeline_mode<synchronous>, transform_indices = @transform_6, window_bounds = array<i64: 128, 16>}, {pipeline_mode = #tpu.pipeline_mode<synchronous>, transform_indices = @transform_7, window_bounds = array<i64: 1, 16>}, {pipeline_mode = #tpu.pipeline_mode<synchronous>, transform_indices = @transform_8, window_bounds = array<i64: 128, 128>}, {pipeline_mode = #tpu.pipeline_mode<synchronous>, transform_indices = @transform_9, window_bounds = array<i64: 1, 128>}, {pipeline_mode = #tpu.pipeline_mode<synchronous>, transform_indices = @transform_10, window_bounds = array<i64: 1152, 128>}, {pipeline_mode = #tpu.pipeline_mode<synchronous>, transform_indices = @transform_11, window_bounds = array<i64: 1, 128>}, {pipeline_mode = #tpu.pipeline_mode<synchronous>, transform_indices = @transform_12, window_bounds = array<i64: 128, 128>}, {pipeline_mode = #tpu.pipeline_mode<synchronous>, transform_indices = @transform_13, window_bounds = array<i64: 1, 128>}, {pipeline_mode = #tpu.pipeline_mode<synchronous>, transform_indices = @transform_14, window_bounds = array<i64: 128, 128>}, {pipeline_mode = #tpu.pipeline_mode<synchronous>, transform_indices = @transform_15, window_bounds = array<i64: 1, 128>}, {pipeline_mode = #tpu.pipeline_mode<synchronous>, transform_indices = @transform_16, window_bounds = array<i64: 128, 128>}, {pipeline_mode = #tpu.pipeline_mode<synchronous>, transform_indices = @transform_17, window_bounds = array<i64: 1, 128>}, {transform_indices = @transform_18, window_bounds = array<i64: 1, 256, 16>}]} {
    %cst = arith.constant 0.000000e+00 : bf16
    %0 = vector.broadcast %cst : bf16 to vector<1x18x128xbf16>
    %c0 = arith.constant 0 : index
    %c0_0 = arith.constant 0 : index
    %c0_1 = arith.constant 0 : index
    %1 = vector.load %arg20[%c0, %c0_0, %c0_1] : memref<18x18x128xbf16, #tpu.memory_space<vmem>>, vector<1x18x128xbf16>
    tpu.vector_store %arg20[%c0, %c0_0, %c0_1], %0 {strides = array<i32>} : memref<18x18x128xbf16, #tpu.memory_space<vmem>>, vector<1x18x128xbf16>,
    %cst_2 = arith.constant 0.000000e+00 : bf16
    %2 = vector.broadcast %cst_2 : bf16 to vector<1x18x128xbf16>
    %c17 = arith.constant 17 : index
    %c0_3 = arith.constant 0 : index
    %c0_4 = arith.constant 0 : index
    %3 = vector.load %arg20[%c17, %c0_3, %c0_4] : memref<18x18x128xbf16, #tpu.memory_space<vmem>>, vector<1x18x128xbf16>
    tpu.vector_store %arg20[%c17, %c0_3, %c0_4], %2 {strides = array<i32>} : memref<18x18x128xbf16, #tpu.memory_space<vmem>>, vector<1x18x128xbf16>,
    %cst_5 = arith.constant 0.000000e+00 : bf16
    %4 = vector.broadcast %cst_5 : bf16 to vector<18x1x128xbf16>
    %c0_6 = arith.constant 0 : index
    %c0_7 = arith.constant 0 : index
    %c0_8 = arith.constant 0 : index
    %5 = vector.load %arg20[%c0_6, %c0_7, %c0_8] : memref<18x18x128xbf16, #tpu.memory_space<vmem>>, vector<18x1x128xbf16>
    tpu.vector_store %arg20[%c0_6, %c0_7, %c0_8], %4 {strides = array<i32>} : memref<18x18x128xbf16, #tpu.memory_space<vmem>>, vector<18x1x128xbf16>,
    %cst_9 = arith.constant 0.000000e+00 : bf16
    %6 = vector.broadcast %cst_9 : bf16 to vector<18x1x128xbf16>
    %c0_10 = arith.constant 0 : index
    %c17_11 = arith.constant 17 : index
    %c0_12 = arith.constant 0 : index
    %7 = vector.load %arg20[%c0_10, %c17_11, %c0_12] : memref<18x18x128xbf16, #tpu.memory_space<vmem>>, vector<18x1x128xbf16>
    tpu.vector_store %arg20[%c0_10, %c17_11, %c0_12], %6 {strides = array<i32>} : memref<18x18x128xbf16, #tpu.memory_space<vmem>>, vector<18x1x128xbf16>,
    %c0_13 = arith.constant 0 : index
    %c0_14 = arith.constant 0 : index
    %c0_15 = arith.constant 0 : index
    %8 = vector.load %arg1[%c0_13, %c0_14, %c0_15] : memref<1x256x16xf32, #tpu.memory_space<vmem>>, vector<1x256x16xf32>
    %9 = vector.shape_cast %8 : vector<1x256x16xf32> to vector<256x16xf32>
    %10 = arith.truncf %9 : vector<256x16xf32> to vector<256x16xbf16>
    %c0_16 = arith.constant 0 : index
    %c0_17 = arith.constant 0 : index
    %11 = vector.load %arg2[%c0_16, %c0_17] : memref<16x128xbf16, #tpu.memory_space<vmem>>, vector<16x128xbf16>
    %c0_18 = arith.constant 0 : index
    %c0_19 = arith.constant 0 : index
    %12 = vector.load %arg3[%c0_18, %c0_19] : memref<1x128xf32, #tpu.memory_space<vmem>>, vector<1x128xf32>
    %c0_20 = arith.constant 0 : index
    %c0_21 = arith.constant 0 : index
    %13 = vector.load %arg4[%c0_20, %c0_21] : memref<16x128xbf16, #tpu.memory_space<vmem>>, vector<16x128xbf16>
    %c0_22 = arith.constant 0 : index
    %c0_23 = arith.constant 0 : index
    %14 = vector.load %arg5[%c0_22, %c0_23] : memref<1x128xf32, #tpu.memory_space<vmem>>, vector<1x128xf32>
    %c0_24 = arith.constant 0 : index
    %c0_25 = arith.constant 0 : index
    %15 = vector.load %arg6[%c0_24, %c0_25] : memref<128x16xbf16, #tpu.memory_space<vmem>>, vector<128x16xbf16>
    %c0_26 = arith.constant 0 : index
    %c0_27 = arith.constant 0 : index
    %16 = vector.load %arg7[%c0_26, %c0_27] : memref<128x16xbf16, #tpu.memory_space<vmem>>, vector<128x16xbf16>
    %c0_28 = arith.constant 0 : index
    %c0_29 = arith.constant 0 : index
    %17 = vector.load %arg8[%c0_28, %c0_29] : memref<1x16xf32, #tpu.memory_space<vmem>>, vector<1x16xf32>
    %cst_30 = arith.constant dense<0.000000e+00> : vector<256x128xf32>
    %18 = tpu.matmul %10, %11, %cst_30 {dimension_numbers = #tpu.dot_dimension_numbers<[1], [0], [0], [1], [0, 0, 1, 1], [], []>} : vector<256x16xbf16>, vector<16x128xbf16>, vector<256x128xf32> -> vector<256x128xf32>
    %19 = vector.broadcast %12 : vector<1x128xf32> to vector<256x128xf32>
    %20 = arith.addf %18, %19 : vector<256x128xf32>
    %cst_31 = arith.constant 0.000000e+00 : f32
    %21 = vector.broadcast %cst_31 : f32 to vector<256x128xf32>
    %22 = arith.subf %21, %20 : vector<256x128xf32>
    %23 = math.exp %22 : vector<256x128xf32>
    %cst_32 = arith.constant 1.000000e+00 : f32
    %24 = vector.broadcast %cst_32 : f32 to vector<256x128xf32>
    %25 = arith.addf %24, %23 : vector<256x128xf32>
    %26 = tpu.reciprocal %25 {approx = true} : vector<256x128xf32> -> vector<256x128xf32>
    %27 = arith.mulf %20, %26 : vector<256x128xf32>
    %cst_33 = arith.constant dense<0.000000e+00> : vector<256x128xf32>
    %28 = tpu.matmul %10, %13, %cst_33 {dimension_numbers = #tpu.dot_dimension_numbers<[1], [0], [0], [1], [0, 0, 1, 1], [], []>} : vector<256x16xbf16>, vector<16x128xbf16>, vector<256x128xf32> -> vector<256x128xf32>
    %29 = vector.broadcast %14 : vector<1x128xf32> to vector<256x128xf32>
    %30 = arith.addf %28, %29 : vector<256x128xf32>
    %cst_34 = arith.constant 0.000000e+00 : f32
    %31 = vector.broadcast %cst_34 : f32 to vector<256x128xf32>
    %32 = arith.subf %31, %30 : vector<256x128xf32>
    %33 = math.exp %32 : vector<256x128xf32>
    %cst_35 = arith.constant 1.000000e+00 : f32
    %34 = vector.broadcast %cst_35 : f32 to vector<256x128xf32>
    %35 = arith.addf %34, %33 : vector<256x128xf32>
    %36 = tpu.reciprocal %35 {approx = true} : vector<256x128xf32> -> vector<256x128xf32>
    %37 = arith.mulf %30, %36 : vector<256x128xf32>
    %38 = arith.truncf %37 : vector<256x128xf32> to vector<256x128xbf16>
    %c0_36 = arith.constant 0 : index
    %c0_37 = arith.constant 0 : index
    %39 = vector.load %arg9[%c0_36, %c0_37] : memref<128x128xbf16, #tpu.memory_space<vmem>>, vector<128x128xbf16>
    %c0_38 = arith.constant 0 : index
    %c0_39 = arith.constant 0 : index
    %40 = vector.load %arg10[%c0_38, %c0_39] : memref<1x128xf32, #tpu.memory_space<vmem>>, vector<1x128xf32>
    %c0_40 = arith.constant 0 : index
    %c0_41 = arith.constant 0 : index
    %41 = vector.load %arg11[%c0_40, %c0_41] : memref<1152x128xbf16, #tpu.memory_space<vmem>>, vector<1152x128xbf16>
    %c0_42 = arith.constant 0 : index
    %c0_43 = arith.constant 0 : index
    %42 = vector.load %arg12[%c0_42, %c0_43] : memref<1x128xf32, #tpu.memory_space<vmem>>, vector<1x128xf32>
    %c0_44 = arith.constant 0 : index
    %c0_45 = arith.constant 0 : index
    %43 = vector.load %arg13[%c0_44, %c0_45] : memref<128x128xbf16, #tpu.memory_space<vmem>>, vector<128x128xbf16>
    %c0_46 = arith.constant 0 : index
    %c0_47 = arith.constant 0 : index
    %44 = vector.load %arg14[%c0_46, %c0_47] : memref<1x128xf32, #tpu.memory_space<vmem>>, vector<1x128xf32>
    %c0_48 = arith.constant 0 : index
    %c0_49 = arith.constant 0 : index
    %45 = vector.load %arg15[%c0_48, %c0_49] : memref<128x128xbf16, #tpu.memory_space<vmem>>, vector<128x128xbf16>
    %c0_50 = arith.constant 0 : index
    %c0_51 = arith.constant 0 : index
    %46 = vector.load %arg16[%c0_50, %c0_51] : memref<1x128xf32, #tpu.memory_space<vmem>>, vector<1x128xf32>
    %c0_52 = arith.constant 0 : index
    %c0_53 = arith.constant 0 : index
    %47 = vector.load %arg17[%c0_52, %c0_53] : memref<128x128xbf16, #tpu.memory_space<vmem>>, vector<128x128xbf16>
    %c0_54 = arith.constant 0 : index
    %c0_55 = arith.constant 0 : index
    %48 = vector.load %arg18[%c0_54, %c0_55] : memref<1x128xf32, #tpu.memory_space<vmem>>, vector<1x128xf32>
    %49 = arith.truncf %27 : vector<256x128xf32> to vector<256x128xbf16>
    %cst_56 = arith.constant dense<0.000000e+00> : vector<256x128xf32>
    %50 = tpu.matmul %49, %39, %cst_56 {dimension_numbers = #tpu.dot_dimension_numbers<[1], [0], [0], [1], [0, 0, 1, 1], [], []>} : vector<256x128xbf16>, vector<128x128xbf16>, vector<256x128xf32> -> vector<256x128xf32>
    %51 = vector.broadcast %40 : vector<1x128xf32> to vector<256x128xf32>
    %52 = arith.addf %50, %51 : vector<256x128xf32>
    %cst_57 = arith.constant 0.000000e+00 : f32
    %53 = vector.broadcast %cst_57 : f32 to vector<256x128xf32>
    %54 = arith.subf %53, %52 : vector<256x128xf32>
    %55 = math.exp %54 : vector<256x128xf32>
    %cst_58 = arith.constant 1.000000e+00 : f32
    %56 = vector.broadcast %cst_58 : f32 to vector<256x128xf32>
    %57 = arith.addf %56, %55 : vector<256x128xf32>
    %58 = tpu.reciprocal %57 {approx = true} : vector<256x128xf32> -> vector<256x128xf32>
    %59 = arith.mulf %52, %58 : vector<256x128xf32>
    %60 = arith.truncf %59 : vector<256x128xf32> to vector<256x128xbf16>
    %61 = vector.shape_cast %60 : vector<256x128xbf16> to vector<16x16x128xbf16>
    %c1 = arith.constant 1 : index
    %c1_59 = arith.constant 1 : index
    %c0_60 = arith.constant 0 : index
    %62 = vector.load %arg20[%c1, %c1_59, %c0_60] : memref<18x18x128xbf16, #tpu.memory_space<vmem>>, vector<16x16x128xbf16>
    tpu.vector_store %arg20[%c1, %c1_59, %c0_60], %61 {strides = array<i32>} : memref<18x18x128xbf16, #tpu.memory_space<vmem>>, vector<16x16x128xbf16>,
    %c0_61 = arith.constant 0 : index
    %c0_62 = arith.constant 0 : index
    %c0_63 = arith.constant 0 : index
    %63 = vector.load %arg20[%c0_61, %c0_62, %c0_63] : memref<18x18x128xbf16, #tpu.memory_space<vmem>>, vector<16x16x128xbf16>
    %64 = vector.shape_cast %63 : vector<16x16x128xbf16> to vector<256x128xbf16>
    %c0_64 = arith.constant 0 : index
    %c0_65 = arith.constant 0 : index
    %65 = vector.load %arg21[%c0_64, %c0_65] : memref<256x1152xbf16, #tpu.memory_space<vmem>>, vector<256x128xbf16>
    tpu.vector_store %arg21[%c0_64, %c0_65], %64 {strides = array<i32>} : memref<256x1152xbf16, #tpu.memory_space<vmem>>, vector<256x128xbf16>,
    %c0_66 = arith.constant 0 : index
    %c1_67 = arith.constant 1 : index
    %c0_68 = arith.constant 0 : index
    %66 = vector.load %arg20[%c0_66, %c1_67, %c0_68] : memref<18x18x128xbf16, #tpu.memory_space<vmem>>, vector<16x16x128xbf16>
    %67 = vector.shape_cast %66 : vector<16x16x128xbf16> to vector<256x128xbf16>
    %c0_69 = arith.constant 0 : index
    %c128 = arith.constant 128 : index
    %68 = vector.load %arg21[%c0_69, %c128] : memref<256x1152xbf16, #tpu.memory_space<vmem>>, vector<256x128xbf16>
    tpu.vector_store %arg21[%c0_69, %c128], %67 {strides = array<i32>} : memref<256x1152xbf16, #tpu.memory_space<vmem>>, vector<256x128xbf16>,
    %c0_70 = arith.constant 0 : index
    %c2 = arith.constant 2 : index
    %c0_71 = arith.constant 0 : index
    %69 = vector.load %arg20[%c0_70, %c2, %c0_71] : memref<18x18x128xbf16, #tpu.memory_space<vmem>>, vector<16x16x128xbf16>
    %70 = vector.shape_cast %69 : vector<16x16x128xbf16> to vector<256x128xbf16>
    %c0_72 = arith.constant 0 : index
    %c256 = arith.constant 256 : index
    %71 = vector.load %arg21[%c0_72, %c256] : memref<256x1152xbf16, #tpu.memory_space<vmem>>, vector<256x128xbf16>
    tpu.vector_store %arg21[%c0_72, %c256], %70 {strides = array<i32>} : memref<256x1152xbf16, #tpu.memory_space<vmem>>, vector<256x128xbf16>,
    %c1_73 = arith.constant 1 : index
    %c0_74 = arith.constant 0 : index
    %c0_75 = arith.constant 0 : index
    %72 = vector.load %arg20[%c1_73, %c0_74, %c0_75] : memref<18x18x128xbf16, #tpu.memory_space<vmem>>, vector<16x16x128xbf16>
    %73 = vector.shape_cast %72 : vector<16x16x128xbf16> to vector<256x128xbf16>
    %c0_76 = arith.constant 0 : index
    %c384 = arith.constant 384 : index
    %74 = vector.load %arg21[%c0_76, %c384] : memref<256x1152xbf16, #tpu.memory_space<vmem>>, vector<256x128xbf16>
    tpu.vector_store %arg21[%c0_76, %c384], %73 {strides = array<i32>} : memref<256x1152xbf16, #tpu.memory_space<vmem>>, vector<256x128xbf16>,
    %c1_77 = arith.constant 1 : index
    %c1_78 = arith.constant 1 : index
    %c0_79 = arith.constant 0 : index
    %75 = vector.load %arg20[%c1_77, %c1_78, %c0_79] : memref<18x18x128xbf16, #tpu.memory_space<vmem>>, vector<16x16x128xbf16>
    %76 = vector.shape_cast %75 : vector<16x16x128xbf16> to vector<256x128xbf16>
    %c0_80 = arith.constant 0 : index
    %c512 = arith.constant 512 : index
    %77 = vector.load %arg21[%c0_80, %c512] : memref<256x1152xbf16, #tpu.memory_space<vmem>>, vector<256x128xbf16>
    tpu.vector_store %arg21[%c0_80, %c512], %76 {strides = array<i32>} : memref<256x1152xbf16, #tpu.memory_space<vmem>>, vector<256x128xbf16>,
    %c1_81 = arith.constant 1 : index
    %c2_82 = arith.constant 2 : index
    %c0_83 = arith.constant 0 : index
    %78 = vector.load %arg20[%c1_81, %c2_82, %c0_83] : memref<18x18x128xbf16, #tpu.memory_space<vmem>>, vector<16x16x128xbf16>
    %79 = vector.shape_cast %78 : vector<16x16x128xbf16> to vector<256x128xbf16>
    %c0_84 = arith.constant 0 : index
    %c640 = arith.constant 640 : index
    %80 = vector.load %arg21[%c0_84, %c640] : memref<256x1152xbf16, #tpu.memory_space<vmem>>, vector<256x128xbf16>
    tpu.vector_store %arg21[%c0_84, %c640], %79 {strides = array<i32>} : memref<256x1152xbf16, #tpu.memory_space<vmem>>, vector<256x128xbf16>,
    %c2_85 = arith.constant 2 : index
    %c0_86 = arith.constant 0 : index
    %c0_87 = arith.constant 0 : index
    %81 = vector.load %arg20[%c2_85, %c0_86, %c0_87] : memref<18x18x128xbf16, #tpu.memory_space<vmem>>, vector<16x16x128xbf16>
    %82 = vector.shape_cast %81 : vector<16x16x128xbf16> to vector<256x128xbf16>
    %c0_88 = arith.constant 0 : index
    %c768 = arith.constant 768 : index
    %83 = vector.load %arg21[%c0_88, %c768] : memref<256x1152xbf16, #tpu.memory_space<vmem>>, vector<256x128xbf16>
    tpu.vector_store %arg21[%c0_88, %c768], %82 {strides = array<i32>} : memref<256x1152xbf16, #tpu.memory_space<vmem>>, vector<256x128xbf16>,
    %c2_89 = arith.constant 2 : index
    %c1_90 = arith.constant 1 : index
    %c0_91 = arith.constant 0 : index
    %84 = vector.load %arg20[%c2_89, %c1_90, %c0_91] : memref<18x18x128xbf16, #tpu.memory_space<vmem>>, vector<16x16x128xbf16>
    %85 = vector.shape_cast %84 : vector<16x16x128xbf16> to vector<256x128xbf16>
    %c0_92 = arith.constant 0 : index
    %c896 = arith.constant 896 : index
    %86 = vector.load %arg21[%c0_92, %c896] : memref<256x1152xbf16, #tpu.memory_space<vmem>>, vector<256x128xbf16>
    tpu.vector_store %arg21[%c0_92, %c896], %85 {strides = array<i32>} : memref<256x1152xbf16, #tpu.memory_space<vmem>>, vector<256x128xbf16>,
    %c2_93 = arith.constant 2 : index
    %c2_94 = arith.constant 2 : index
    %c0_95 = arith.constant 0 : index
    %87 = vector.load %arg20[%c2_93, %c2_94, %c0_95] : memref<18x18x128xbf16, #tpu.memory_space<vmem>>, vector<16x16x128xbf16>
    %88 = vector.shape_cast %87 : vector<16x16x128xbf16> to vector<256x128xbf16>
    %c0_96 = arith.constant 0 : index
    %c1024 = arith.constant 1024 : index
    %89 = vector.load %arg21[%c0_96, %c1024] : memref<256x1152xbf16, #tpu.memory_space<vmem>>, vector<256x128xbf16>
    tpu.vector_store %arg21[%c0_96, %c1024], %88 {strides = array<i32>} : memref<256x1152xbf16, #tpu.memory_space<vmem>>, vector<256x128xbf16>,
    %c0_97 = arith.constant 0 : index
    %c0_98 = arith.constant 0 : index
    %90 = vector.load %arg21[%c0_97, %c0_98] : memref<256x1152xbf16, #tpu.memory_space<vmem>>, vector<256x1152xbf16>
    %cst_99 = arith.constant dense<0.000000e+00> : vector<256x128xf32>
    %91 = tpu.matmul %90, %41, %cst_99 {dimension_numbers = #tpu.dot_dimension_numbers<[1], [0], [0], [1], [0, 0, 1, 1], [], []>} : vector<256x1152xbf16>, vector<1152x128xbf16>, vector<256x128xf32> -> vector<256x128xf32>
    %92 = vector.broadcast %42 : vector<1x128xf32> to vector<256x128xf32>
    %93 = arith.addf %91, %92 : vector<256x128xf32>
    %cst_100 = arith.constant 0.000000e+00 : f32
    %94 = vector.broadcast %cst_100 : f32 to vector<256x128xf32>
    %95 = arith.subf %94, %93 : vector<256x128xf32>
    %96 = math.exp %95 : vector<256x128xf32>
    %cst_101 = arith.constant 1.000000e+00 : f32
    %97 = vector.broadcast %cst_101 : f32 to vector<256x128xf32>
    %98 = arith.addf %97, %96 : vector<256x128xf32>
    %99 = tpu.reciprocal %98 {approx = true} : vector<256x128xf32> -> vector<256x128xf32>
    %100 = arith.mulf %93, %99 : vector<256x128xf32>
    %101 = vector.shape_cast %100 : vector<256x128xf32> to vector<16x16x128xf32>
    %cst_102 = arith.constant dense<0.000000e+00> : vector<16x128xf32>
    %102 = vector.multi_reduction <add>, %101, %cst_102 [1] : vector<16x16x128xf32> to vector<16x128xf32>
    %cst_103 = arith.constant 1.600000e+01 : f32
    %103 = vector.broadcast %cst_103 : f32 to vector<16x128xf32>
    %104 = arith.divf %102, %103 : vector<16x128xf32>
    %105 = arith.truncf %104 : vector<16x128xf32> to vector<16x128xbf16>
    %cst_104 = arith.constant dense<0.000000e+00> : vector<16x128xf32>
    %106 = vector.multi_reduction <add>, %101, %cst_104 [0] : vector<16x16x128xf32> to vector<16x128xf32>
    %cst_105 = arith.constant 1.600000e+01 : f32
    %107 = vector.broadcast %cst_105 : f32 to vector<16x128xf32>
    %108 = arith.divf %106, %107 : vector<16x128xf32>
    %109 = arith.truncf %108 : vector<16x128xf32> to vector<16x128xbf16>
    %cst_106 = arith.constant dense<0.000000e+00> : vector<16x128xf32>
    %110 = tpu.matmul %105, %43, %cst_106 {dimension_numbers = #tpu.dot_dimension_numbers<[1], [0], [0], [1], [0, 0, 1, 1], [], []>} : vector<16x128xbf16>, vector<128x128xbf16>, vector<16x128xf32> -> vector<16x128xf32>
    %111 = vector.broadcast %44 : vector<1x128xf32> to vector<16x128xf32>
    %112 = arith.addf %110, %111 : vector<16x128xf32>
    %cst_107 = arith.constant 3.000000e+00 : f32
    %113 = vector.broadcast %cst_107 : f32 to vector<16x128xf32>
    %114 = arith.addf %112, %113 : vector<16x128xf32>
    %cst_108 = arith.constant 0.000000e+00 : f32
    %cst_109 = arith.constant 6.000000e+00 : f32
    %115 = vector.broadcast %cst_108 : f32 to vector<16x128xf32>
    %116 = arith.maximumf %115, %114 : vector<16x128xf32>
    %117 = vector.broadcast %cst_109 : f32 to vector<16x128xf32>
    %118 = arith.minimumf %117, %116 : vector<16x128xf32>
    %119 = arith.mulf %112, %118 : vector<16x128xf32>
    %cst_110 = arith.constant 0.166666672 : f32
    %120 = vector.broadcast %cst_110 : f32 to vector<16x128xf32>
    %121 = arith.mulf %119, %120 : vector<16x128xf32>
    %122 = arith.truncf %121 : vector<16x128xf32> to vector<16x128xbf16>
    %cst_111 = arith.constant dense<0.000000e+00> : vector<16x128xf32>
    %123 = tpu.matmul %109, %43, %cst_111 {dimension_numbers = #tpu.dot_dimension_numbers<[1], [0], [0], [1], [0, 0, 1, 1], [], []>} : vector<16x128xbf16>, vector<128x128xbf16>, vector<16x128xf32> -> vector<16x128xf32>
    %124 = vector.broadcast %44 : vector<1x128xf32> to vector<16x128xf32>
    %125 = arith.addf %123, %124 : vector<16x128xf32>
    %cst_112 = arith.constant 3.000000e+00 : f32
    %126 = vector.broadcast %cst_112 : f32 to vector<16x128xf32>
    %127 = arith.addf %125, %126 : vector<16x128xf32>
    %cst_113 = arith.constant 0.000000e+00 : f32
    %cst_114 = arith.constant 6.000000e+00 : f32
    %128 = vector.broadcast %cst_113 : f32 to vector<16x128xf32>
    %129 = arith.maximumf %128, %127 : vector<16x128xf32>
    %130 = vector.broadcast %cst_114 : f32 to vector<16x128xf32>
    %131 = arith.minimumf %130, %129 : vector<16x128xf32>
    %132 = arith.mulf %125, %131 : vector<16x128xf32>
    %cst_115 = arith.constant 0.166666672 : f32
    %133 = vector.broadcast %cst_115 : f32 to vector<16x128xf32>
    %134 = arith.mulf %132, %133 : vector<16x128xf32>
    %135 = arith.truncf %134 : vector<16x128xf32> to vector<16x128xbf16>
    %cst_116 = arith.constant dense<0.000000e+00> : vector<16x128xf32>
    %136 = tpu.matmul %122, %45, %cst_116 {dimension_numbers = #tpu.dot_dimension_numbers<[1], [0], [0], [1], [0, 0, 1, 1], [], []>} : vector<16x128xbf16>, vector<128x128xbf16>, vector<16x128xf32> -> vector<16x128xf32>
    %137 = vector.broadcast %46 : vector<1x128xf32> to vector<16x128xf32>
    %138 = arith.addf %136, %137 : vector<16x128xf32>
    %cst_117 = arith.constant 0.000000e+00 : f32
    %139 = vector.broadcast %cst_117 : f32 to vector<16x128xf32>
    %140 = arith.subf %139, %138 : vector<16x128xf32>
    %141 = math.exp %140 : vector<16x128xf32>
    %cst_118 = arith.constant 1.000000e+00 : f32
    %142 = vector.broadcast %cst_118 : f32 to vector<16x128xf32>
    %143 = arith.addf %142, %141 : vector<16x128xf32>
    %cst_119 = arith.constant 1.000000e+00 : f32
    %144 = vector.broadcast %cst_119 : f32 to vector<16x128xf32>
    %145 = arith.divf %144, %143 : vector<16x128xf32>
    %cst_120 = arith.constant dense<0.000000e+00> : vector<16x128xf32>
    %146 = tpu.matmul %135, %47, %cst_120 {dimension_numbers = #tpu.dot_dimension_numbers<[1], [0], [0], [1], [0, 0, 1, 1], [], []>} : vector<16x128xbf16>, vector<128x128xbf16>, vector<16x128xf32> -> vector<16x128xf32>
    %147 = vector.broadcast %48 : vector<1x128xf32> to vector<16x128xf32>
    %148 = arith.addf %146, %147 : vector<16x128xf32>
    %cst_121 = arith.constant 0.000000e+00 : f32
    %149 = vector.broadcast %cst_121 : f32 to vector<16x128xf32>
    %150 = arith.subf %149, %148 : vector<16x128xf32>
    %151 = math.exp %150 : vector<16x128xf32>
    %cst_122 = arith.constant 1.000000e+00 : f32
    %152 = vector.broadcast %cst_122 : f32 to vector<16x128xf32>
    %153 = arith.addf %152, %151 : vector<16x128xf32>
    %cst_123 = arith.constant 1.000000e+00 : f32
    %154 = vector.broadcast %cst_123 : f32 to vector<16x128xf32>
    %155 = arith.divf %154, %153 : vector<16x128xf32>
    %156 = vector.shape_cast %145 : vector<16x128xf32> to vector<16x1x128xf32>
    %157 = vector.broadcast %156 : vector<16x1x128xf32> to vector<16x16x128xf32>
    %158 = arith.mulf %101, %157 : vector<16x16x128xf32>
    %159 = vector.shape_cast %155 : vector<16x128xf32> to vector<1x16x128xf32>
    %160 = vector.broadcast %159 : vector<1x16x128xf32> to vector<16x16x128xf32>
    %161 = arith.mulf %158, %160 : vector<16x16x128xf32>
    %162 = vector.shape_cast %161 : vector<16x16x128xf32> to vector<256x128xf32>
    %163 = arith.addf %27, %162 : vector<256x128xf32>
    %164 = arith.truncf %163 : vector<256x128xf32> to vector<256x128xbf16>
    %cst_124 = arith.constant dense<0.000000e+00> : vector<256x16xf32>
    %165 = tpu.matmul %164, %15, %cst_124 {dimension_numbers = #tpu.dot_dimension_numbers<[1], [0], [0], [1], [0, 0, 1, 1], [], []>} : vector<256x128xbf16>, vector<128x16xbf16>, vector<256x16xf32> -> vector<256x16xf32>
    %cst_125 = arith.constant dense<0.000000e+00> : vector<256x16xf32>
    %166 = tpu.matmul %38, %16, %cst_125 {dimension_numbers = #tpu.dot_dimension_numbers<[1], [0], [0], [1], [0, 0, 1, 1], [], []>} : vector<256x128xbf16>, vector<128x16xbf16>, vector<256x16xf32> -> vector<256x16xf32>
    %167 = arith.addf %165, %166 : vector<256x16xf32>
    %168 = vector.broadcast %17 : vector<1x16xf32> to vector<256x16xf32>
    %169 = arith.addf %167, %168 : vector<256x16xf32>
    %cst_126 = arith.constant 0.000000e+00 : f32
    %170 = vector.broadcast %cst_126 : f32 to vector<256x16xf32>
    %171 = arith.subf %170, %169 : vector<256x16xf32>
    %172 = math.exp %171 : vector<256x16xf32>
    %cst_127 = arith.constant 1.000000e+00 : f32
    %173 = vector.broadcast %cst_127 : f32 to vector<256x16xf32>
    %174 = arith.addf %173, %172 : vector<256x16xf32>
    %175 = tpu.reciprocal %174 {approx = true} : vector<256x16xf32> -> vector<256x16xf32>
    %176 = arith.mulf %169, %175 : vector<256x16xf32>
    %c0_128 = arith.constant 0 : index
    %c0_129 = arith.constant 0 : index
    %c0_130 = arith.constant 0 : index
    %177 = vector.load %arg19[%c0_128, %c0_129, %c0_130] : memref<1x256x16xf32, #tpu.memory_space<vmem>>, vector<1x256x16xf32>
    %178 = vector.shape_cast %177 : vector<1x256x16xf32> to vector<256x16xf32>
    %179 = vector.shape_cast %176 : vector<256x16xf32> to vector<1x256x16xf32>
    tpu.vector_store %arg19[%c0_128, %c0_129, %c0_130], %179 {strides = array<i32>} : memref<1x256x16xf32, #tpu.memory_space<vmem>>, vector<1x256x16xf32>,
    return
  }
  func.func @transform_0(%arg0: i32) -> (i32, i32, i32) {
    %c0_i32 = arith.constant 0 : i32
    %c0_i32_0 = arith.constant 0 : i32
    %c0_i32_1 = arith.constant 0 : i32
    return %arg0, %c0_i32, %c0_i32_0 : i32, i32, i32
  }
  func.func @transform_1(%arg0: i32) -> (i32, i32) {
    %c0_i32 = arith.constant 0 : i32
    %c0_i32_0 = arith.constant 0 : i32
    %c0_i32_1 = arith.constant 0 : i32
    return %c0_i32, %c0_i32_0 : i32, i32
  }
  func.func @transform_2(%arg0: i32) -> (i32, i32) {
    %c0_i32 = arith.constant 0 : i32
    %c0_i32_0 = arith.constant 0 : i32
    %c0_i32_1 = arith.constant 0 : i32
    return %c0_i32, %c0_i32_0 : i32, i32
  }
  func.func @transform_3(%arg0: i32) -> (i32, i32) {
    %c0_i32 = arith.constant 0 : i32
    %c0_i32_0 = arith.constant 0 : i32
    %c0_i32_1 = arith.constant 0 : i32
    return %c0_i32, %c0_i32_0 : i32, i32
  }
  func.func @transform_4(%arg0: i32) -> (i32, i32) {
    %c0_i32 = arith.constant 0 : i32
    %c0_i32_0 = arith.constant 0 : i32
    %c0_i32_1 = arith.constant 0 : i32
    return %c0_i32, %c0_i32_0 : i32, i32
  }
  func.func @transform_5(%arg0: i32) -> (i32, i32) {
    %c0_i32 = arith.constant 0 : i32
    %c0_i32_0 = arith.constant 0 : i32
    %c0_i32_1 = arith.constant 0 : i32
    return %c0_i32, %c0_i32_0 : i32, i32
  }
  func.func @transform_6(%arg0: i32) -> (i32, i32) {
    %c0_i32 = arith.constant 0 : i32
    %c0_i32_0 = arith.constant 0 : i32
    %c0_i32_1 = arith.constant 0 : i32
    return %c0_i32, %c0_i32_0 : i32, i32
  }
  func.func @transform_7(%arg0: i32) -> (i32, i32) {
    %c0_i32 = arith.constant 0 : i32
    %c0_i32_0 = arith.constant 0 : i32
    %c0_i32_1 = arith.constant 0 : i32
    return %c0_i32, %c0_i32_0 : i32, i32
  }
  func.func @transform_8(%arg0: i32) -> (i32, i32) {
    %c0_i32 = arith.constant 0 : i32
    %c0_i32_0 = arith.constant 0 : i32
    %c0_i32_1 = arith.constant 0 : i32
    return %c0_i32, %c0_i32_0 : i32, i32
  }
  func.func @transform_9(%arg0: i32) -> (i32, i32) {
    %c0_i32 = arith.constant 0 : i32
    %c0_i32_0 = arith.constant 0 : i32
    %c0_i32_1 = arith.constant 0 : i32
    return %c0_i32, %c0_i32_0 : i32, i32
  }
  func.func @transform_10(%arg0: i32) -> (i32, i32) {
    %c0_i32 = arith.constant 0 : i32
    %c0_i32_0 = arith.constant 0 : i32
    %c0_i32_1 = arith.constant 0 : i32
    return %c0_i32, %c0_i32_0 : i32, i32
  }
  func.func @transform_11(%arg0: i32) -> (i32, i32) {
    %c0_i32 = arith.constant 0 : i32
    %c0_i32_0 = arith.constant 0 : i32
    %c0_i32_1 = arith.constant 0 : i32
    return %c0_i32, %c0_i32_0 : i32, i32
  }
  func.func @transform_12(%arg0: i32) -> (i32, i32) {
    %c0_i32 = arith.constant 0 : i32
    %c0_i32_0 = arith.constant 0 : i32
    %c0_i32_1 = arith.constant 0 : i32
    return %c0_i32, %c0_i32_0 : i32, i32
  }
  func.func @transform_13(%arg0: i32) -> (i32, i32) {
    %c0_i32 = arith.constant 0 : i32
    %c0_i32_0 = arith.constant 0 : i32
    %c0_i32_1 = arith.constant 0 : i32
    return %c0_i32, %c0_i32_0 : i32, i32
  }
  func.func @transform_14(%arg0: i32) -> (i32, i32) {
    %c0_i32 = arith.constant 0 : i32
    %c0_i32_0 = arith.constant 0 : i32
    %c0_i32_1 = arith.constant 0 : i32
    return %c0_i32, %c0_i32_0 : i32, i32
  }
  func.func @transform_15(%arg0: i32) -> (i32, i32) {
    %c0_i32 = arith.constant 0 : i32
    %c0_i32_0 = arith.constant 0 : i32
    %c0_i32_1 = arith.constant 0 : i32
    return %c0_i32, %c0_i32_0 : i32, i32
  }
  func.func @transform_16(%arg0: i32) -> (i32, i32) {
    %c0_i32 = arith.constant 0 : i32
    %c0_i32_0 = arith.constant 0 : i32
    %c0_i32_1 = arith.constant 0 : i32
    return %c0_i32, %c0_i32_0 : i32, i32
  }
  func.func @transform_17(%arg0: i32) -> (i32, i32) {
    %c0_i32 = arith.constant 0 : i32
    %c0_i32_0 = arith.constant 0 : i32
    %c0_i32_1 = arith.constant 0 : i32
    return %c0_i32, %c0_i32_0 : i32, i32
  }
  func.func @transform_18(%arg0: i32) -> (i32, i32, i32) {
    %c0_i32 = arith.constant 0 : i32
    %c0_i32_0 = arith.constant 0 : i32
    %c0_i32_1 = arith.constant 0 : i32
    return %arg0, %c0_i32, %c0_i32_0 : i32, i32, i32
  }
}

</mosaic_0001>

<llo_original>
// kernel: c3_bottle_ca_forward.1
$region0: #{c3_bottle_ca_forward.1}
  #allocation0 [shape = 'u32[]', space=smem, size = 0x4, offset = 0x4, fixed_abs, tag = 'smem constant byte address 0x4 - core index']
  #allocation1 [shape = 'u32[144,128]{1,0:T(1,128)}', space=vmem, size = 0x12000, scoped, tag = 'internal scratch']
  #allocation2 [shape = 'bf16[18,18,128]{2,1,0:T(8,128)(2,1)}', space=vmem, size = 0x1b000, scoped, tag = 'scratch operand']
  #allocation3 [shape = 'bf16[256,1152]{1,0:T(16,128)(2,1)}', space=vmem, size = 0x90000, scoped, tag = 'scratch operand']
  %s0 = inlined_call_operand.vmem [shape: f32[2,256,16], index: 0, kind: input, shape index: {}]
  %s1 = inlined_call_operand.vmem [shape: bf16[16,128], index: 1, kind: input, shape index: {}]
  %s2 = inlined_call_operand.vmem [shape: f32[1,128], index: 2, kind: input, shape index: {}]
  %s3 = inlined_call_operand.vmem [shape: bf16[16,128], index: 3, kind: input, shape index: {}]
  %s4 = inlined_call_operand.vmem [shape: f32[1,128], index: 4, kind: input, shape index: {}]
  %s5 = inlined_call_operand.vmem [shape: bf16[128,16], index: 5, kind: input, shape index: {}]
  %s6 = inlined_call_operand.vmem [shape: bf16[128,16], index: 6, kind: input, shape index: {}]
  %s7 = inlined_call_operand.vmem [shape: f32[1,16], index: 7, kind: input, shape index: {}]
  %s8 = inlined_call_operand.vmem [shape: bf16[128,128], index: 8, kind: input, shape index: {}]
  %s9 = inlined_call_operand.vmem [shape: f32[1,128], index: 9, kind: input, shape index: {}]
  %s10 = inlined_call_operand.vmem [shape: bf16[1152,128], index: 10, kind: input, shape index: {}]
  %s11 = inlined_call_operand.vmem [shape: f32[1,128], index: 11, kind: input, shape index: {}]
  %s12 = inlined_call_operand.vmem [shape: bf16[128,128], index: 12, kind: input, shape index: {}]
  %s13 = inlined_call_operand.vmem [shape: f32[1,128], index: 13, kind: input, shape index: {}]
  %s14 = inlined_call_operand.vmem [shape: bf16[128,128], index: 14, kind: input, shape index: {}]
  %s15 = inlined_call_operand.vmem [shape: f32[1,128], index: 15, kind: input, shape index: {}]
  %s16 = inlined_call_operand.vmem [shape: bf16[128,128], index: 16, kind: input, shape index: {}]
  %s17 = inlined_call_operand.vmem [shape: f32[1,128], index: 17, kind: input, shape index: {}]
  %s18 = inlined_call_operand.hbm [shape: f32[2,256,16], index: 18, kind: output, shape index: {}]
  %s19 = sld [smem:[#allocation0]]
  $region105: #{c3_bottle_ca_forward.1} parent=0
    _
  %s21 = ssub.s32 1, %s19
  %s22 = scalar_select 0, %s21, %s19
  $region1: #{c3_bottle_ca_forward.1} parent=0
    #allocation4 [shape = 'u8[262144]{0}', space=vmem, size = 0x40000, scoped, tag = 'output window, operand 0']
    #allocation5 [shape = 's32[2]{0}', space=sflag, size = 0x8, scoped, tag = 'scoped memory for c3_bottle_ca_forward.1']
    %23 = vsyncpa [#allocation5], 0
    %s24 = scalar_lea.sflag [#allocation5], 1
    %25 = vsyncpa %s24, 0
    loop: start=0, step=1, limit=4
    $region2: #{c3_bottle_ca_forward.1} parent=1 // loop_pre_header
      _
    $region3: #{c3_bottle_ca_forward.1} parent=1 // loop_header
      %s27 = sphi 0, %s31
      %p28 = scmp.ge.s32.totalorder %s27, 4
      %s37 = sphi 0, %s39
      %s40 = sphi 0, %s37
      %s41 = sphi 0, %s40
      %s57 = sphi 0, %s41
      %s61 = sphi 0, %s61
      %s63 = sphi 0, %s61
      %s64 = sphi 0, %s63
      %s78 = sphi 0, %s64
      %s82 = sphi 0, %s82
      %s84 = sphi 0, %s82
      %s85 = sphi 0, %s84
      %s99 = sphi 0, %s85
      %s103 = sphi 0, %s103
      %s105 = sphi 0, %s103
      %s106 = sphi 0, %s105
      %s120 = sphi 0, %s106
      %s124 = sphi 0, %s124
      %s126 = sphi 0, %s124
      %s127 = sphi 0, %s126
      %s141 = sphi 0, %s127
      %s145 = sphi 0, %s145
      %s147 = sphi 0, %s145
      %s148 = sphi 0, %s147
      %s162 = sphi 0, %s148
      %s166 = sphi 0, %s166
      %s168 = sphi 0, %s166
      %s169 = sphi 0, %s168
      %s183 = sphi 0, %s169
      %s187 = sphi 0, %s187
      %s189 = sphi 0, %s187
      %s190 = sphi 0, %s189
      %s204 = sphi 0, %s190
      %s208 = sphi 0, %s208
      %s210 = sphi 0, %s208
      %s211 = sphi 0, %s210
      %s225 = sphi 0, %s211
      %s229 = sphi 0, %s229
      %s231 = sphi 0, %s229
      %s232 = sphi 0, %s231
      %s246 = sphi 0, %s232
      %s250 = sphi 0, %s250
      %s252 = sphi 0, %s250
      %s253 = sphi 0, %s252
      %s267 = sphi 0, %s253
      %s271 = sphi 0, %s271
      %s273 = sphi 0, %s271
      %s274 = sphi 0, %s273
      %s288 = sphi 0, %s274
      %s292 = sphi 0, %s292
      %s294 = sphi 0, %s292
      %s295 = sphi 0, %s294
      %s309 = sphi 0, %s295
      %s313 = sphi 0, %s313
      %s315 = sphi 0, %s313
      %s316 = sphi 0, %s315
      %s330 = sphi 0, %s316
      %s334 = sphi 0, %s334
      %s336 = sphi 0, %s334
      %s337 = sphi 0, %s336
      %s351 = sphi 0, %s337
      %s355 = sphi 0, %s355
      %s357 = sphi 0, %s355
      %s358 = sphi 0, %s357
      %s372 = sphi 0, %s358
      %s376 = sphi 0, %s376
      %s378 = sphi 0, %s376
      %s379 = sphi 0, %s378
      %s393 = sphi 0, %s379
      %s397 = sphi 0, %s397
      %s399 = sphi 0, %s397
      %s400 = sphi 0, %s399
      %s414 = sphi 0, %s400
      %s420 = sphi 0, %s422
      %s423 = sphi 0, %s420
      %s424 = sphi 0, %s423
      %s440 = sphi 0, %s424
    $region4: #{c3_bottle_ca_forward.1} parent=1 // loop_header_branch
      %30 = sbr.rel (%p28) target = $region8
    $region5: #{c3_bottle_ca_forward.1} parent=1 // loop_body
      %s32 = ssub.s32 %s27, 1
      %s33 = ssub.s32 %s27, 2
      %s34 = sadd.s32 %s27, 1
      %s35 = ssub.s32 %s27, %s34
      %p36 = scmp.eq.s32.totalorder %s35, 0
      %s38 = sadd.s32 %s37, 1
      %s39 = scalar_select %p36, %s37, %s38
      %p42 = pneg %p36
      %p43 = scmp.eq.s32.totalorder %s27, 1
      %p44 = por %p42, %p43
      %p45 = scmp.ne.s32.totalorder %s37, %s40
      %p46 = scmp.eq.s32.totalorder %s27, 0
      %p47 = por %p45, %p46
      %p48 = scmp.ne.s32.totalorder %s37, %s40
      %p49 = scmp.eq.s32.totalorder %s32, 1
      %p50 = por %p48, %p49
      %p51 = scmp.ne.s32.totalorder %s40, %s41
      %p52 = scmp.eq.s32.totalorder %s32, 0
      %p53 = por %p51, %p52
      %p54 = scmp.ne.s32.totalorder %s40, %s41
      %p55 = scmp.eq.s32.totalorder %s33, 1
      %p56 = por %p54, %p55
      %p58 = scmp.ne.s32.totalorder %s41, %s57
      %p59 = scmp.eq.s32.totalorder %s33, 0
      %p60 = por %p58, %p59
      %s62 = sadd.s32 %s61, 1
      %p65 = scmp.eq.s32.totalorder %s27, 1
      %p66 = scmp.ne.s32.totalorder %s61, %s63
      %p67 = scmp.eq.s32.totalorder %s27, 0
      %p68 = por %p66, %p67
      %p69 = scmp.ne.s32.totalorder %s61, %s63
      %p70 = scmp.eq.s32.totalorder %s32, 1
      %p71 = por %p69, %p70
      %p72 = scmp.ne.s32.totalorder %s63, %s64
      %p73 = scmp.eq.s32.totalorder %s32, 0
      %p74 = por %p72, %p73
      %p75 = scmp.ne.s32.totalorder %s63, %s64
      %p76 = scmp.eq.s32.totalorder %s33, 1
      %p77 = por %p75, %p76
      %p79 = scmp.ne.s32.totalorder %s64, %s78
      %p80 = scmp.eq.s32.totalorder %s33, 0
      %p81 = por %p79, %p80
      %s83 = sadd.s32 %s82, 1
      %p86 = scmp.eq.s32.totalorder %s27, 1
      %p87 = scmp.ne.s32.totalorder %s82, %s84
      %p88 = scmp.eq.s32.totalorder %s27, 0
      %p89 = por %p87, %p88
      %p90 = scmp.ne.s32.totalorder %s82, %s84
      %p91 = scmp.eq.s32.totalorder %s32, 1
      %p92 = por %p90, %p91
      %p93 = scmp.ne.s32.totalorder %s84, %s85
      %p94 = scmp.eq.s32.totalorder %s32, 0
      %p95 = por %p93, %p94
      %p96 = scmp.ne.s32.totalorder %s84, %s85
      %p97 = scmp.eq.s32.totalorder %s33, 1
      %p98 = por %p96, %p97
      %p100 = scmp.ne.s32.totalorder %s85, %s99
      %p101 = scmp.eq.s32.totalorder %s33, 0
      %p102 = por %p100, %p101
      %s104 = sadd.s32 %s103, 1
      %p107 = scmp.eq.s32.totalorder %s27, 1
      %p108 = scmp.ne.s32.totalorder %s103, %s105
      %p109 = scmp.eq.s32.totalorder %s27, 0
      %p110 = por %p108, %p109
      %p111 = scmp.ne.s32.totalorder %s103, %s105
      %p112 = scmp.eq.s32.totalorder %s32, 1
      %p113 = por %p111, %p112
      %p114 = scmp.ne.s32.totalorder %s105, %s106
      %p115 = scmp.eq.s32.totalorder %s32, 0
      %p116 = por %p114, %p115
      %p117 = scmp.ne.s32.totalorder %s105, %s106
      %p118 = scmp.eq.s32.totalorder %s33, 1
      %p119 = por %p117, %p118
      %p121 = scmp.ne.s32.totalorder %s106, %s120
      %p122 = scmp.eq.s32.totalorder %s33, 0
      %p123 = por %p121, %p122
      %s125 = sadd.s32 %s124, 1
      %p128 = scmp.eq.s32.totalorder %s27, 1
      %p129 = scmp.ne.s32.totalorder %s124, %s126
      %p130 = scmp.eq.s32.totalorder %s27, 0
      %p131 = por %p129, %p130
      %p132 = scmp.ne.s32.totalorder %s124, %s126
      %p133 = scmp.eq.s32.totalorder %s32, 1
      %p134 = por %p132, %p133
      %p135 = scmp.ne.s32.totalorder %s126, %s127
      %p136 = scmp.eq.s32.totalorder %s32, 0
      %p137 = por %p135, %p136
      %p138 = scmp.ne.s32.totalorder %s126, %s127
      %p139 = scmp.eq.s32.totalorder %s33, 1
      %p140 = por %p138, %p139
      %p142 = scmp.ne.s32.totalorder %s127, %s141
      %p143 = scmp.eq.s32.totalorder %s33, 0
      %p144 = por %p142, %p143
      %s146 = sadd.s32 %s145, 1
      %p149 = scmp.eq.s32.totalorder %s27, 1
      %p150 = scmp.ne.s32.totalorder %s145, %s147
      %p151 = scmp.eq.s32.totalorder %s27, 0
      %p152 = por %p150, %p151
      %p153 = scmp.ne.s32.totalorder %s145, %s147
      %p154 = scmp.eq.s32.totalorder %s32, 1
      %p155 = por %p153, %p154
      %p156 = scmp.ne.s32.totalorder %s147, %s148
      %p157 = scmp.eq.s32.totalorder %s32, 0
      %p158 = por %p156, %p157
      %p159 = scmp.ne.s32.totalorder %s147, %s148
      %p160 = scmp.eq.s32.totalorder %s33, 1
      %p161 = por %p159, %p160
      %p163 = scmp.ne.s32.totalorder %s148, %s162
      %p164 = scmp.eq.s32.totalorder %s33, 0
      %p165 = por %p163, %p164
      %s167 = sadd.s32 %s166, 1
      %p170 = scmp.eq.s32.totalorder %s27, 1
      %p171 = scmp.ne.s32.totalorder %s166, %s168
      %p172 = scmp.eq.s32.totalorder %s27, 0
      %p173 = por %p171, %p172
      %p174 = scmp.ne.s32.totalorder %s166, %s168
      %p175 = scmp.eq.s32.totalorder %s32, 1
      %p176 = por %p174, %p175
      %p177 = scmp.ne.s32.totalorder %s168, %s169
      %p178 = scmp.eq.s32.totalorder %s32, 0
      %p179 = por %p177, %p178
      %p180 = scmp.ne.s32.totalorder %s168, %s169
      %p181 = scmp.eq.s32.totalorder %s33, 1
      %p182 = por %p180, %p181
      %p184 = scmp.ne.s32.totalorder %s169, %s183
      %p185 = scmp.eq.s32.totalorder %s33, 0
      %p186 = por %p184, %p185
      %s188 = sadd.s32 %s187, 1
      %p191 = scmp.eq.s32.totalorder %s27, 1
      %p192 = scmp.ne.s32.totalorder %s187, %s189
      %p193 = scmp.eq.s32.totalorder %s27, 0
      %p194 = por %p192, %p193
      %p195 = scmp.ne.s32.totalorder %s187, %s189
      %p196 = scmp.eq.s32.totalorder %s32, 1
      %p197 = por %p195, %p196
      %p198 = scmp.ne.s32.totalorder %s189, %s190
      %p199 = scmp.eq.s32.totalorder %s32, 0
      %p200 = por %p198, %p199
      %p201 = scmp.ne.s32.totalorder %s189, %s190
      %p202 = scmp.eq.s32.totalorder %s33, 1
      %p203 = por %p201, %p202
      %p205 = scmp.ne.s32.totalorder %s190, %s204
      %p206 = scmp.eq.s32.totalorder %s33, 0
      %p207 = por %p205, %p206
      %s209 = sadd.s32 %s208, 1
      %p212 = scmp.eq.s32.totalorder %s27, 1
      %p213 = scmp.ne.s32.totalorder %s208, %s210
      %p214 = scmp.eq.s32.totalorder %s27, 0
      %p215 = por %p213, %p214
      %p216 = scmp.ne.s32.totalorder %s208, %s210
      %p217 = scmp.eq.s32.totalorder %s32, 1
      %p218 = por %p216, %p217
      %p219 = scmp.ne.s32.totalorder %s210, %s211
      %p220 = scmp.eq.s32.totalorder %s32, 0
      %p221 = por %p219, %p220
      %p222 = scmp.ne.s32.totalorder %s210, %s211
      %p223 = scmp.eq.s32.totalorder %s33, 1
      %p224 = por %p222, %p223
      %p226 = scmp.ne.s32.totalorder %s211, %s225
      %p227 = scmp.eq.s32.totalorder %s33, 0
      %p228 = por %p226, %p227
      %s230 = sadd.s32 %s229, 1
      %p233 = scmp.eq.s32.totalorder %s27, 1
      %p234 = scmp.ne.s32.totalorder %s229, %s231
      %p235 = scmp.eq.s32.totalorder %s27, 0
      %p236 = por %p234, %p235
      %p237 = scmp.ne.s32.totalorder %s229, %s231
      %p238 = scmp.eq.s32.totalorder %s32, 1
      %p239 = por %p237, %p238
      %p240 = scmp.ne.s32.totalorder %s231, %s232
      %p241 = scmp.eq.s32.totalorder %s32, 0
      %p242 = por %p240, %p241
      %p243 = scmp.ne.s32.totalorder %s231, %s232
      %p244 = scmp.eq.s32.totalorder %s33, 1
      %p245 = por %p243, %p244
      %p247 = scmp.ne.s32.totalorder %s232, %s246
      %p248 = scmp.eq.s32.totalorder %s33, 0
      %p249 = por %p247, %p248
      %s251 = sadd.s32 %s250, 1
      %p254 = scmp.eq.s32.totalorder %s27, 1
      %p255 = scmp.ne.s32.totalorder %s250, %s252
      %p256 = scmp.eq.s32.totalorder %s27, 0
      %p257 = por %p255, %p256
      %p258 = scmp.ne.s32.totalorder %s250, %s252
      %p259 = scmp.eq.s32.totalorder %s32, 1
      %p260 = por %p258, %p259
      %p261 = scmp.ne.s32.totalorder %s252, %s253
      %p262 = scmp.eq.s32.totalorder %s32, 0
      %p263 = por %p261, %p262
      %p264 = scmp.ne.s32.totalorder %s252, %s253
      %p265 = scmp.eq.s32.totalorder %s33, 1
      %p266 = por %p264, %p265
      %p268 = scmp.ne.s32.totalorder %s253, %s267
      %p269 = scmp.eq.s32.totalorder %s33, 0
      %p270 = por %p268, %p269
      %s272 = sadd.s32 %s271, 1
      %p275 = scmp.eq.s32.totalorder %s27, 1
      %p276 = scmp.ne.s32.totalorder %s271, %s273
      %p277 = scmp.eq.s32.totalorder %s27, 0
      %p278 = por %p276, %p277
      %p279 = scmp.ne.s32.totalorder %s271, %s273
      %p280 = scmp.eq.s32.totalorder %s32, 1
      %p281 = por %p279, %p280
      %p282 = scmp.ne.s32.totalorder %s273, %s274
      %p283 = scmp.eq.s32.totalorder %s32, 0
      %p284 = por %p282, %p283
      %p285 = scmp.ne.s32.totalorder %s273, %s274
      %p286 = scmp.eq.s32.totalorder %s33, 1
      %p287 = por %p285, %p286
      %p289 = scmp.ne.s32.totalorder %s274, %s288
      %p290 = scmp.eq.s32.totalorder %s33, 0
      %p291 = por %p289, %p290
      %s293 = sadd.s32 %s292, 1
      %p296 = scmp.eq.s32.totalorder %s27, 1
      %p297 = scmp.ne.s32.totalorder %s292, %s294
      %p298 = scmp.eq.s32.totalorder %s27, 0
      %p299 = por %p297, %p298
      %p300 = scmp.ne.s32.totalorder %s292, %s294
      %p301 = scmp.eq.s32.totalorder %s32, 1
      %p302 = por %p300, %p301
      %p303 = scmp.ne.s32.totalorder %s294, %s295
      %p304 = scmp.eq.s32.totalorder %s32, 0
      %p305 = por %p303, %p304
      %p306 = scmp.ne.s32.totalorder %s294, %s295
      %p307 = scmp.eq.s32.totalorder %s33, 1
      %p308 = por %p306, %p307
      %p310 = scmp.ne.s32.totalorder %s295, %s309
      %p311 = scmp.eq.s32.totalorder %s33, 0
      %p312 = por %p310, %p311
      %s314 = sadd.s32 %s313, 1
      %p317 = scmp.eq.s32.totalorder %s27, 1
      %p318 = scmp.ne.s32.totalorder %s313, %s315
      %p319 = scmp.eq.s32.totalorder %s27, 0
      %p320 = por %p318, %p319
      %p321 = scmp.ne.s32.totalorder %s313, %s315
      %p322 = scmp.eq.s32.totalorder %s32, 1
      %p323 = por %p321, %p322
      %p324 = scmp.ne.s32.totalorder %s315, %s316
      %p325 = scmp.eq.s32.totalorder %s32, 0
      %p326 = por %p324, %p325
      %p327 = scmp.ne.s32.totalorder %s315, %s316
      %p328 = scmp.eq.s32.totalorder %s33, 1
      %p329 = por %p327, %p328
      %p331 = scmp.ne.s32.totalorder %s316, %s330
      %p332 = scmp.eq.s32.totalorder %s33, 0
      %p333 = por %p331, %p332
      %s335 = sadd.s32 %s334, 1
      %p338 = scmp.eq.s32.totalorder %s27, 1
      %p339 = scmp.ne.s32.totalorder %s334, %s336
      %p340 = scmp.eq.s32.totalorder %s27, 0
      %p341 = por %p339, %p340
      %p342 = scmp.ne.s32.totalorder %s334, %s336
      %p343 = scmp.eq.s32.totalorder %s32, 1
      %p344 = por %p342, %p343
      %p345 = scmp.ne.s32.totalorder %s336, %s337
      %p346 = scmp.eq.s32.totalorder %s32, 0
      %p347 = por %p345, %p346
      %p348 = scmp.ne.s32.totalorder %s336, %s337
      %p349 = scmp.eq.s32.totalorder %s33, 1
      %p350 = por %p348, %p349
      %p352 = scmp.ne.s32.totalorder %s337, %s351
      %p353 = scmp.eq.s32.totalorder %s33, 0
      %p354 = por %p352, %p353
      %s356 = sadd.s32 %s355, 1
      %p359 = scmp.eq.s32.totalorder %s27, 1
      %p360 = scmp.ne.s32.totalorder %s355, %s357
      %p361 = scmp.eq.s32.totalorder %s27, 0
      %p362 = por %p360, %p361
      %p363 = scmp.ne.s32.totalorder %s355, %s357
      %p364 = scmp.eq.s32.totalorder %s32, 1
      %p365 = por %p363, %p364
      %p366 = scmp.ne.s32.totalorder %s357, %s358
      %p367 = scmp.eq.s32.totalorder %s32, 0
      %p368 = por %p366, %p367
      %p369 = scmp.ne.s32.totalorder %s357, %s358
      %p370 = scmp.eq.s32.totalorder %s33, 1
      %p371 = por %p369, %p370
      %p373 = scmp.ne.s32.totalorder %s358, %s372
      %p374 = scmp.eq.s32.totalorder %s33, 0
      %p375 = por %p373, %p374
      %s377 = sadd.s32 %s376, 1
      %p380 = scmp.eq.s32.totalorder %s27, 1
      %p381 = scmp.ne.s32.totalorder %s376, %s378
      %p382 = scmp.eq.s32.totalorder %s27, 0
      %p383 = por %p381, %p382
      %p384 = scmp.ne.s32.totalorder %s376, %s378
      %p385 = scmp.eq.s32.totalorder %s32, 1
      %p386 = por %p384, %p385
      %p387 = scmp.ne.s32.totalorder %s378, %s379
      %p388 = scmp.eq.s32.totalorder %s32, 0
      %p389 = por %p387, %p388
      %p390 = scmp.ne.s32.totalorder %s378, %s379
      %p391 = scmp.eq.s32.totalorder %s33, 1
      %p392 = por %p390, %p391
      %p394 = scmp.ne.s32.totalorder %s379, %s393
      %p395 = scmp.eq.s32.totalorder %s33, 0
      %p396 = por %p394, %p395
      %s398 = sadd.s32 %s397, 1
      %p401 = scmp.eq.s32.totalorder %s27, 1
      %p402 = scmp.ne.s32.totalorder %s397, %s399
      %p403 = scmp.eq.s32.totalorder %s27, 0
      %p404 = por %p402, %p403
      %p405 = scmp.ne.s32.totalorder %s397, %s399
      %p406 = scmp.eq.s32.totalorder %s32, 1
      %p407 = por %p405, %p406
      %p408 = scmp.ne.s32.totalorder %s399, %s400
      %p409 = scmp.eq.s32.totalorder %s32, 0
      %p410 = por %p408, %p409
      %p411 = scmp.ne.s32.totalorder %s399, %s400
      %p412 = scmp.eq.s32.totalorder %s33, 1
      %p413 = por %p411, %p412
      %p415 = scmp.ne.s32.totalorder %s400, %s414
      %p416 = scmp.eq.s32.totalorder %s33, 0
      %p417 = por %p415, %p416
      %s418 = ssub.s32 %s27, %s34
      %p419 = scmp.eq.s32.totalorder %s418, 0
      %s421 = sadd.s32 %s420, 1
      %s422 = scalar_select %p419, %s420, %s421
      %p425 = pneg %p419
      %p426 = scmp.eq.s32.totalorder %s27, 1
      %p427 = por %p425, %p426
      %p428 = scmp.ne.s32.totalorder %s420, %s423
      %p429 = scmp.eq.s32.totalorder %s27, 0
      %p430 = por %p428, %p429
      %p431 = scmp.ne.s32.totalorder %s420, %s423
      %p432 = scmp.eq.s32.totalorder %s32, 1
      %p433 = por %p431, %p432
      %p434 = scmp.ne.s32.totalorder %s423, %s424
      %p435 = scmp.eq.s32.totalorder %s32, 0
      %p436 = por %p434, %p435
      %p437 = scmp.ne.s32.totalorder %s423, %s424
      %p438 = scmp.eq.s32.totalorder %s33, 1
      %p439 = por %p437, %p438
      %p441 = scmp.ne.s32.totalorder %s424, %s440
      %p442 = scmp.eq.s32.totalorder %s33, 0
      %p443 = por %p441, %p442
      %p444 = scmp.le.s32.totalorder 1, %s27
      %p445 = scmp.lt.s32.totalorder %s27, 3
      %p446 = pnand %p444, %p445
      %p447 = pneg %p446
      // Predicated region
      $region9: #{c3_bottle_ca_forward.1} parent=5 // pred_check
        _
      $region10: #{c3_bottle_ca_forward.1} parent=5 // pred_check_branch
        %449 = sbr.rel (%p446) target = $region12
      $region11: #{c3_bottle_ca_forward.1} parent=5 // pred_region
        %s450 = ssub.s32 %s27, 1
        // Predicated region
        $region13: #{c3_bottle_ca_forward.1} parent=11 // pred_check
          %p451 = pneg %p74
        $region14: #{c3_bottle_ca_forward.1} parent=11 // pred_check_branch
          %453 = sbr.rel (%p451) target = $region16
        $region15: #{c3_bottle_ca_forward.1} parent=11 // pred_region
          _
        $region16: #{c3_bottle_ca_forward.1} parent=11 // pred_fallthru
          _
        // Predicated region
        $region17: #{c3_bottle_ca_forward.1} parent=11 // pred_check
          %p454 = pneg %p95
        $region18: #{c3_bottle_ca_forward.1} parent=11 // pred_check_branch
          %456 = sbr.rel (%p454) target = $region20
        $region19: #{c3_bottle_ca_forward.1} parent=11 // pred_region
          _
        $region20: #{c3_bottle_ca_forward.1} parent=11 // pred_fallthru
          _
        // Predicated region
        $region21: #{c3_bottle_ca_forward.1} parent=11 // pred_check
          %p457 = pneg %p116
        $region22: #{c3_bottle_ca_forward.1} parent=11 // pred_check_branch
          %459 = sbr.rel (%p457) target = $region24
        $region23: #{c3_bottle_ca_forward.1} parent=11 // pred_region
          _
        $region24: #{c3_bottle_ca_forward.1} parent=11 // pred_fallthru
          _
        // Predicated region
        $region25: #{c3_bottle_ca_forward.1} parent=11 // pred_check
          %p460 = pneg %p137
        $region26: #{c3_bottle_ca_forward.1} parent=11 // pred_check_branch
          %462 = sbr.rel (%p460) target = $region28
        $region27: #{c3_bottle_ca_forward.1} parent=11 // pred_region
          _
        $region28: #{c3_bottle_ca_forward.1} parent=11 // pred_fallthru
          _
        // Predicated region
        $region29: #{c3_bottle_ca_forward.1} parent=11 // pred_check
          %p463 = pneg %p158
        $region30: #{c3_bottle_ca_forward.1} parent=11 // pred_check_branch
          %465 = sbr.rel (%p463) target = $region32
        $region31: #{c3_bottle_ca_forward.1} parent=11 // pred_region
          _
        $region32: #{c3_bottle_ca_forward.1} parent=11 // pred_fallthru
          _
        // Predicated region
        $region33: #{c3_bottle_ca_forward.1} parent=11 // pred_check
          %p466 = pneg %p179
        $region34: #{c3_bottle_ca_forward.1} parent=11 // pred_check_branch
          %468 = sbr.rel (%p466) target = $region36
        $region35: #{c3_bottle_ca_forward.1} parent=11 // pred_region
          _
        $region36: #{c3_bottle_ca_forward.1} parent=11 // pred_fallthru
          _
        // Predicated region
        $region37: #{c3_bottle_ca_forward.1} parent=11 // pred_check
          %p469 = pneg %p200
        $region38: #{c3_bottle_ca_forward.1} parent=11 // pred_check_branch
          %471 = sbr.rel (%p469) target = $region40
        $region39: #{c3_bottle_ca_forward.1} parent=11 // pred_region
          _
        $region40: #{c3_bottle_ca_forward.1} parent=11 // pred_fallthru
          _
        // Predicated region
        $region41: #{c3_bottle_ca_forward.1} parent=11 // pred_check
          %p472 = pneg %p221
        $region42: #{c3_bottle_ca_forward.1} parent=11 // pred_check_branch
          %474 = sbr.rel (%p472) target = $region44
        $region43: #{c3_bottle_ca_forward.1} parent=11 // pred_region
          _
        $region44: #{c3_bottle_ca_forward.1} parent=11 // pred_fallthru
          _
        // Predicated region
        $region45: #{c3_bottle_ca_forward.1} parent=11 // pred_check
          %p475 = pneg %p242
        $region46: #{c3_bottle_ca_forward.1} parent=11 // pred_check_branch
          %477 = sbr.rel (%p475) target = $region48
        $region47: #{c3_bottle_ca_forward.1} parent=11 // pred_region
          _
        $region48: #{c3_bottle_ca_forward.1} parent=11 // pred_fallthru
          _
        // Predicated region
        $region49: #{c3_bottle_ca_forward.1} parent=11 // pred_check
          %p478 = pneg %p263
        $region50: #{c3_bottle_ca_forward.1} parent=11 // pred_check_branch
          %480 = sbr.rel (%p478) target = $region52
        $region51: #{c3_bottle_ca_forward.1} parent=11 // pred_region
          _
        $region52: #{c3_bottle_ca_forward.1} parent=11 // pred_fallthru
          _
        // Predicated region
        $region53: #{c3_bottle_ca_forward.1} parent=11 // pred_check
          %p481 = pneg %p284
        $region54: #{c3_bottle_ca_forward.1} parent=11 // pred_check_branch
          %483 = sbr.rel (%p481) target = $region56
        $region55: #{c3_bottle_ca_forward.1} parent=11 // pred_region
          _
        $region56: #{c3_bottle_ca_forward.1} parent=11 // pred_fallthru
          _
        // Predicated region
        $region57: #{c3_bottle_ca_forward.1} parent=11 // pred_check
          %p484 = pneg %p305
        $region58: #{c3_bottle_ca_forward.1} parent=11 // pred_check_branch
          %486 = sbr.rel (%p484) target = $region60
        $region59: #{c3_bottle_ca_forward.1} parent=11 // pred_region
          _
        $region60: #{c3_bottle_ca_forward.1} parent=11 // pred_fallthru
          _
        // Predicated region
        $region61: #{c3_bottle_ca_forward.1} parent=11 // pred_check
          %p487 = pneg %p326
        $region62: #{c3_bottle_ca_forward.1} parent=11 // pred_check_branch
          %489 = sbr.rel (%p487) target = $region64
        $region63: #{c3_bottle_ca_forward.1} parent=11 // pred_region
          _
        $region64: #{c3_bottle_ca_forward.1} parent=11 // pred_fallthru
          _
        // Predicated region
        $region65: #{c3_bottle_ca_forward.1} parent=11 // pred_check
          %p490 = pneg %p347
        $region66: #{c3_bottle_ca_forward.1} parent=11 // pred_check_branch
          %492 = sbr.rel (%p490) target = $region68
        $region67: #{c3_bottle_ca_forward.1} parent=11 // pred_region
          _
        $region68: #{c3_bottle_ca_forward.1} parent=11 // pred_fallthru
          _
        // Predicated region
        $region69: #{c3_bottle_ca_forward.1} parent=11 // pred_check
          %p493 = pneg %p368
        $region70: #{c3_bottle_ca_forward.1} parent=11 // pred_check_branch
          %495 = sbr.rel (%p493) target = $region72
        $region71: #{c3_bottle_ca_forward.1} parent=11 // pred_region
          _
        $region72: #{c3_bottle_ca_forward.1} parent=11 // pred_fallthru
          _
        // Predicated region
        $region73: #{c3_bottle_ca_forward.1} parent=11 // pred_check
          %p496 = pneg %p389
        $region74: #{c3_bottle_ca_forward.1} parent=11 // pred_check_branch
          %498 = sbr.rel (%p496) target = $region76
        $region75: #{c3_bottle_ca_forward.1} parent=11 // pred_region
          _
        $region76: #{c3_bottle_ca_forward.1} parent=11 // pred_fallthru
          _
        // Predicated region
        $region77: #{c3_bottle_ca_forward.1} parent=11 // pred_check
          %p499 = pneg %p410
        $region78: #{c3_bottle_ca_forward.1} parent=11 // pred_check_branch
          %501 = sbr.rel (%p499) target = $region80
        $region79: #{c3_bottle_ca_forward.1} parent=11 // pred_region
          _
        $region80: #{c3_bottle_ca_forward.1} parent=11 // pred_fallthru
          _
      $region12: #{c3_bottle_ca_forward.1} parent=5 // pred_fallthru
        _
      %p502 = scmp.lt.s32.totalorder %s27, 2
      // Predicated region
      $region81: #{c3_bottle_ca_forward.1} parent=5 // pred_check
        %p503 = pneg %p502
      $region82: #{c3_bottle_ca_forward.1} parent=5 // pred_check_branch
        %505 = sbr.rel (%p503) target = $region84
      $region83: #{c3_bottle_ca_forward.1} parent=5 // pred_region
        // Predicated region
        $region85: #{c3_bottle_ca_forward.1} parent=83 // pred_check
          %p506 = pneg %p47
        $region86: #{c3_bottle_ca_forward.1} parent=83 // pred_check_branch
          %508 = sbr.rel (%p506) target = $region88
        $region87: #{c3_bottle_ca_forward.1} parent=83 // pred_region
          %p509 = scmp.lt.s32.totalorder %s27, 1
          %s510 = scalar_select %p509, %s27, 1
          %s511 = smul.addr %s510, 32
          %s512 = smul.addr %s511, 8
          %s513 = scalar_lea.vmem %s0, %s512
        $region88: #{c3_bottle_ca_forward.1} parent=83 // pred_fallthru
          _
      $region84: #{c3_bottle_ca_forward.1} parent=5 // pred_fallthru
        _
      %p514 = scmp.le.s32.totalorder 1, %s27
      %p515 = scmp.lt.s32.totalorder %s27, 3
      %p516 = pnand %p514, %p515
      %p517 = pneg %p516
      // Predicated region
      $region89: #{c3_bottle_ca_forward.1} parent=5 // pred_check
        _
      $region90: #{c3_bottle_ca_forward.1} parent=5 // pred_check_branch
        %519 = sbr.rel (%p516) target = $region92
      $region91: #{c3_bottle_ca_forward.1} parent=5 // pred_region
        %s520 = ssub.s32 %s27, 1
        %p521 = scmp.lt.s32.totalorder %s32, 1
        %s522 = scalar_select %p521, %s32, 1
        %s523 = smul.addr %s522, 32
        %s524 = smul.addr %s523, 8
        %s525 = scalar_lea.vmem %s0, %s524
        %p526 = pneg %p53
        %p527 = pneg %p50
        %p528 = pneg %p74
        %p529 = pneg %p71
        %p530 = pneg %p95
        %p531 = pneg %p92
        %p532 = pneg %p116
        %p533 = pneg %p113
        %p534 = pneg %p137
        %p535 = pneg %p134
        %p536 = pneg %p158
        %p537 = pneg %p155
        %p538 = pneg %p179
        %p539 = pneg %p176
        %p540 = pneg %p200
        %p541 = pneg %p197
        %p542 = pneg %p221
        %p543 = pneg %p218
        %p544 = pneg %p242
        %p545 = pneg %p239
        %p546 = pneg %p263
        %p547 = pneg %p260
        %p548 = pneg %p284
        %p549 = pneg %p281
        %p550 = pneg %p305
        %p551 = pneg %p302
        %p552 = pneg %p326
        %p553 = pneg %p323
        %p554 = pneg %p347
        %p555 = pneg %p344
        %p556 = pneg %p368
        %p557 = pneg %p365
        %p558 = pneg %p389
        %p559 = pneg %p386
        %p560 = pneg %p410
        %p561 = pneg %p407
        %p562 = pneg %p436
        %p563 = pneg %p433
        %s564 = sand.u32 %s423, 1
        %s565 = scalar_lea.sflag [#allocation5], %s564
        %s566 = sand.u32 %s423, 1
        %s567 = smul.addr %s566, 256
        %s568 = scalar_lea.vmem [#allocation4], %s567
        %p569 = scmp.lt.s32.totalorder %s32, 1
        %s570 = scalar_select %p569, %s32, 1
        %s571 = smul.addr %s570, 32
        %s572 = smul.addr %s571, 8
        %s573 = scalar_lea.vmem %s0, %s572
        %575 = vst [vmem:[#allocation2] sm:$0xf] 0
        %576 = vst [vmem:[#allocation2 + $0x4] sm:$0xf] 0
        %577 = vst [vmem:[#allocation2 + $0x8] sm:$0x1] 0
        %s578 = scalar_lea.vmem [#allocation2], 204
        %579 = vst [vmem:[%s578] sm:$0xf] 0
        %580 = vst [vmem:[%s578 + $0x4] sm:$0xf] 0
        %581 = vst [vmem:[%s578 + $0x8] sm:$0x1] 0
        %vm582 = vcmask 1040384
        %vm583 = vsmask.f32 256
        %vm584 = vmand %vm582, %vm583
        %v585 = vld [vmem:[#allocation2] sm:$0x1]
        %v586 = vsel %vm584, 0, %v585
        %587 = vst [vmem:[#allocation2] sm:$0x1] %v586
        %v588 = vld [vmem:[#allocation2 + $0xc] sm:$0x1]
        %v589 = vsel %vm584, 0, %v588
        %590 = vst [vmem:[#allocation2 + $0xc] sm:$0x1] %v589
        %v591 = vld [vmem:[#allocation2 + $0x18] sm:$0x1]
        %v592 = vsel %vm584, 0, %v591
        %593 = vst [vmem:[#allocation2 + $0x18] sm:$0x1] %v592
        %v594 = vld [vmem:[#allocation2 + $0x24] sm:$0x1]
        %v595 = vsel %vm584, 0, %v594
        %596 = vst [vmem:[#allocation2 + $0x24] sm:$0x1] %v595
        %v597 = vld [vmem:[#allocation2 + $0x30] sm:$0x1]
        %v598 = vsel %vm584, 0, %v597
        %599 = vst [vmem:[#allocation2 + $0x30] sm:$0x1] %v598
        %v600 = vld [vmem:[#allocation2 + $0x3c] sm:$0x1]
        %v601 = vsel %vm584, 0, %v600
        %602 = vst [vmem:[#allocation2 + $0x3c] sm:$0x1] %v601
        %v603 = vld [vmem:[#allocation2 + $0x48] sm:$0x1]
        %v604 = vsel %vm584, 0, %v603
        %605 = vst [vmem:[#allocation2 + $0x48] sm:$0x1] %v604
        %v606 = vld [vmem:[#allocation2 + $0x54] sm:$0x1]
        %v607 = vsel %vm584, 0, %v606
        %608 = vst [vmem:[#allocation2 + $0x54] sm:$0x1] %v607
        %v609 = vld [vmem:[#allocation2 + $0x60] sm:$0x1]
        %v610 = vsel %vm584, 0, %v609
        %611 = vst [vmem:[#allocation2 + $0x60] sm:$0x1] %v610
        %v612 = vld [vmem:[#allocation2 + $0x6c] sm:$0x1]
        %v613 = vsel %vm584, 0, %v612
        %614 = vst [vmem:[#allocation2 + $0x6c] sm:$0x1] %v613
        %v615 = vld [vmem:[#allocation2 + $0x78] sm:$0x1]
        %v616 = vsel %vm584, 0, %v615
        %617 = vst [vmem:[#allocation2 + $0x78] sm:$0x1] %v616
        %v618 = vld [vmem:[#allocation2 + $0x84] sm:$0x1]
        %v619 = vsel %vm584, 0, %v618
        %620 = vst [vmem:[#allocation2 + $0x84] sm:$0x1] %v619
        %v621 = vld [vmem:[#allocation2 + $0x90] sm:$0x1]
        %v622 = vsel %vm584, 0, %v621
        %623 = vst [vmem:[#allocation2 + $0x90] sm:$0x1] %v622
        %v624 = vld [vmem:[#allocation2 + $0x9c] sm:$0x1]
        %v625 = vsel %vm584, 0, %v624
        %626 = vst [vmem:[#allocation2 + $0x9c] sm:$0x1] %v625
        %v627 = vld [vmem:[#allocation2 + $0xa8] sm:$0x1]
        %v628 = vsel %vm584, 0, %v627
        %629 = vst [vmem:[#allocation2 + $0xa8] sm:$0x1] %v628
        %v630 = vld [vmem:[#allocation2 + $0xb4] sm:$0x1]
        %v631 = vsel %vm584, 0, %v630
        %632 = vst [vmem:[#allocation2 + $0xb4] sm:$0x1] %v631
        %v633 = vld [vmem:[#allocation2 + $0xc0] sm:$0x1]
        %v634 = vsel %vm584, 0, %v633
        %635 = vst [vmem:[#allocation2 + $0xc0] sm:$0x1] %v634
        %v636 = vld [vmem:[#allocation2 + $0xcc] sm:$0x1]
        %v637 = vsel %vm584, 0, %v636
        %638 = vst [vmem:[#allocation2 + $0xcc] sm:$0x1] %v637
        %vm639 = vsmask.f32 7938
        %vm640 = vmand %vm582, %vm639
        %v641 = vld [vmem:[#allocation2 + $0x8] sm:$0x1]
        %v642 = vsel %vm640, 0, %v641
        %643 = vst [vmem:[#allocation2 + $0x8] sm:$0x1] %v642
        %v644 = vld [vmem:[#allocation2 + $0x14] sm:$0x1]
        %v645 = vsel %vm640, 0, %v644
        %646 = vst [vmem:[#allocation2 + $0x14] sm:$0x1] %v645
        %v647 = vld [vmem:[#allocation2 + $0x20] sm:$0x1]
        %v648 = vsel %vm640, 0, %v647
        %649 = vst [vmem:[#allocation2 + $0x20] sm:$0x1] %v648
        %v650 = vld [vmem:[#allocation2 + $0x2c] sm:$0x1]
        %v651 = vsel %vm640, 0, %v650
        %652 = vst [vmem:[#allocation2 + $0x2c] sm:$0x1] %v651
        %v653 = vld [vmem:[#allocation2 + $0x38] sm:$0x1]
        %v654 = vsel %vm640, 0, %v653
        %655 = vst [vmem:[#allocation2 + $0x38] sm:$0x1] %v654
        %v656 = vld [vmem:[#allocation2 + $0x44] sm:$0x1]
        %v657 = vsel %vm640, 0, %v656
        %658 = vst [vmem:[#allocation2 + $0x44] sm:$0x1] %v657
        %v659 = vld [vmem:[#allocation2 + $0x50] sm:$0x1]
        %v660 = vsel %vm640, 0, %v659
        %661 = vst [vmem:[#allocation2 + $0x50] sm:$0x1] %v660
        %v662 = vld [vmem:[#allocation2 + $0x5c] sm:$0x1]
        %v663 = vsel %vm640, 0, %v662
        %664 = vst [vmem:[#allocation2 + $0x5c] sm:$0x1] %v663
        %v665 = vld [vmem:[#allocation2 + $0x68] sm:$0x1]
        %v666 = vsel %vm640, 0, %v665
        %667 = vst [vmem:[#allocation2 + $0x68] sm:$0x1] %v666
        %v668 = vld [vmem:[#allocation2 + $0x74] sm:$0x1]
        %v669 = vsel %vm640, 0, %v668
        %670 = vst [vmem:[#allocation2 + $0x74] sm:$0x1] %v669
        %v671 = vld [vmem:[#allocation2 + $0x80] sm:$0x1]
        %v672 = vsel %vm640, 0, %v671
        %673 = vst [vmem:[#allocation2 + $0x80] sm:$0x1] %v672
        %v674 = vld [vmem:[#allocation2 + $0x8c] sm:$0x1]
        %v675 = vsel %vm640, 0, %v674
        %676 = vst [vmem:[#allocation2 + $0x8c] sm:$0x1] %v675
        %v677 = vld [vmem:[#allocation2 + $0x98] sm:$0x1]
        %v678 = vsel %vm640, 0, %v677
        %679 = vst [vmem:[#allocation2 + $0x98] sm:$0x1] %v678
        %v680 = vld [vmem:[#allocation2 + $0xa4] sm:$0x1]
        %v681 = vsel %vm640, 0, %v680
        %682 = vst [vmem:[#allocation2 + $0xa4] sm:$0x1] %v681
        %v683 = vld [vmem:[#allocation2 + $0xb0] sm:$0x1]
        %v684 = vsel %vm640, 0, %v683
        %685 = vst [vmem:[#allocation2 + $0xb0] sm:$0x1] %v684
        %v686 = vld [vmem:[#allocation2 + $0xbc] sm:$0x1]
        %v687 = vsel %vm640, 0, %v686
        %688 = vst [vmem:[#allocation2 + $0xbc] sm:$0x1] %v687
        %v689 = vld [vmem:[#allocation2 + $0xc8] sm:$0x1]
        %v690 = vsel %vm640, 0, %v689
        %691 = vst [vmem:[#allocation2 + $0xc8] sm:$0x1] %v690
        %v692 = vld [vmem:[#allocation2 + $0xd4] sm:$0x1]
        %v693 = vsel %vm640, 0, %v692
        %694 = vst [vmem:[#allocation2 + $0xd4] sm:$0x1] %v693
        %v695 = vld [vmem:[%s573] sm:$0xff]
        %v696 = vld [vmem:[%s573 + $0x8] sm:$0xff]
        %v697 = vld [vmem:[%s573 + $0x10] sm:$0xff]
        %v698 = vld [vmem:[%s573 + $0x18] sm:$0xff]
        %v699 = vld [vmem:[%s573 + $0x20] sm:$0xff]
        %v700 = vld [vmem:[%s573 + $0x28] sm:$0xff]
        %v701 = vld [vmem:[%s573 + $0x30] sm:$0xff]
        %v702 = vld [vmem:[%s573 + $0x38] sm:$0xff]
        %v703 = vld [vmem:[%s573 + $0x40] sm:$0xff]
        %v704 = vld [vmem:[%s573 + $0x48] sm:$0xff]
        %v705 = vld [vmem:[%s573 + $0x50] sm:$0xff]
        %v706 = vld [vmem:[%s573 + $0x58] sm:$0xff]
        %v707 = vld [vmem:[%s573 + $0x60] sm:$0xff]
        %v708 = vld [vmem:[%s573 + $0x68] sm:$0xff]
        %v709 = vld [vmem:[%s573 + $0x70] sm:$0xff]
        %v710 = vld [vmem:[%s573 + $0x78] sm:$0xff]
        %v711 = vld [vmem:[%s573 + $0x80] sm:$0xff]
        %v712 = vld [vmem:[%s573 + $0x88] sm:$0xff]
        %v713 = vld [vmem:[%s573 + $0x90] sm:$0xff]
        %v714 = vld [vmem:[%s573 + $0x98] sm:$0xff]
        %v715 = vld [vmem:[%s573 + $0xa0] sm:$0xff]
        %v716 = vld [vmem:[%s573 + $0xa8] sm:$0xff]
        %v717 = vld [vmem:[%s573 + $0xb0] sm:$0xff]
        %v718 = vld [vmem:[%s573 + $0xb8] sm:$0xff]
        %v719 = vld [vmem:[%s573 + $0xc0] sm:$0xff]
        %v720 = vld [vmem:[%s573 + $0xc8] sm:$0xff]
        %v721 = vld [vmem:[%s573 + $0xd0] sm:$0xff]
        %v722 = vld [vmem:[%s573 + $0xd8] sm:$0xff]
        %v723 = vld [vmem:[%s573 + $0xe0] sm:$0xff]
        %v724 = vld [vmem:[%s573 + $0xe8] sm:$0xff]
        %v725 = vld [vmem:[%s573 + $0xf0] sm:$0xff]
        %v726 = vld [vmem:[%s573 + $0xf8] sm:$0xff]
        %v727 = vpack.c.bf16 %v696, %v695
        %v728 = vpack.c.bf16 %v698, %v697
        %v729 = vpack.c.bf16 %v700, %v699
        %v730 = vpack.c.bf16 %v702, %v701
        %v731 = vpack.c.bf16 %v704, %v703
        %v732 = vpack.c.bf16 %v706, %v705
        %v733 = vpack.c.bf16 %v708, %v707
        %v734 = vpack.c.bf16 %v710, %v709
        %v735 = vpack.c.bf16 %v712, %v711
        %v736 = vpack.c.bf16 %v714, %v713
        %v737 = vpack.c.bf16 %v716, %v715
        %v738 = vpack.c.bf16 %v718, %v717
        %v739 = vpack.c.bf16 %v720, %v719
        %v740 = vpack.c.bf16 %v722, %v721
        %v741 = vpack.c.bf16 %v724, %v723
        %v742 = vpack.c.bf16 %v726, %v725
        %v743 = vld [vmem:[%s1] sm:$0xf]
        %v744 = vld [vmem:[%s1 + $0x4] sm:$0xf]
        %v745 = vld [vmem:[%s2] sm:$0x1]
        %v746 = vld [vmem:[%s3] sm:$0xf]
        %v747 = vld [vmem:[%s3 + $0x4] sm:$0xf]
        %v748 = vld [vmem:[%s4] sm:$0x1]
        %v749 = vld [vmem:[%s5] sm:$0xf]
        %v750 = vld [vmem:[%s5 + $0x4] sm:$0xf]
        %v751 = vld [vmem:[%s5 + $0x8] sm:$0xf]
        %v752 = vld [vmem:[%s5 + $0xc] sm:$0xf]
        %v753 = vld [vmem:[%s5 + $0x10] sm:$0xf]
        %v754 = vld [vmem:[%s5 + $0x14] sm:$0xf]
        %v755 = vld [vmem:[%s5 + $0x18] sm:$0xf]
        %v756 = vld [vmem:[%s5 + $0x1c] sm:$0xf]
        %v757 = vld [vmem:[%s5 + $0x20] sm:$0xf]
        %v758 = vld [vmem:[%s5 + $0x24] sm:$0xf]
        %v759 = vld [vmem:[%s5 + $0x28] sm:$0xf]
        %v760 = vld [vmem:[%s5 + $0x2c] sm:$0xf]
        %v761 = vld [vmem:[%s5 + $0x30] sm:$0xf]
        %v762 = vld [vmem:[%s5 + $0x34] sm:$0xf]
        %v763 = vld [vmem:[%s5 + $0x38] sm:$0xf]
        %v764 = vld [vmem:[%s5 + $0x3c] sm:$0xf]
        %v765 = vld [vmem:[%s6] sm:$0xf]
        %v766 = vld [vmem:[%s6 + $0x4] sm:$0xf]
        %v767 = vld [vmem:[%s6 + $0x8] sm:$0xf]
        %v768 = vld [vmem:[%s6 + $0xc] sm:$0xf]
        %v769 = vld [vmem:[%s6 + $0x10] sm:$0xf]
        %v770 = vld [vmem:[%s6 + $0x14] sm:$0xf]
        %v771 = vld [vmem:[%s6 + $0x18] sm:$0xf]
        %v772 = vld [vmem:[%s6 + $0x1c] sm:$0xf]
        %v773 = vld [vmem:[%s6 + $0x20] sm:$0xf]
        %v774 = vld [vmem:[%s6 + $0x24] sm:$0xf]
        %v775 = vld [vmem:[%s6 + $0x28] sm:$0xf]
        %v776 = vld [vmem:[%s6 + $0x2c] sm:$0xf]
        %v777 = vld [vmem:[%s6 + $0x30] sm:$0xf]
        %v778 = vld [vmem:[%s6 + $0x34] sm:$0xf]
        %v779 = vld [vmem:[%s6 + $0x38] sm:$0xf]
        %v780 = vld [vmem:[%s6 + $0x3c] sm:$0xf]
        %v781 = vld [vmem:[%s7] sm:$0x1]
        %v783 = vlaneseq
        %v784 = vshrl.u32 %v783, 7
        %v785 = vsub.s32 0, %v784
        %v786 = vrot.slane %v745, %v785
        %v790 = vunpack.c.l.b16 %v743
        %v791 = vunpack.c.l.b16 %v744
        %v792 = vpack.c.b16 %v791, %v790
        %vm794 = vcmask 130048
        %v796 = vsel %vm794, %v727, 0
        %v799 = vsel %vm794, %v728, 0
        %v802 = vsel %vm794, %v729, 0
        %v805 = vsel %vm794, %v730, 0
        %v808 = vsel %vm794, %v731, 0
        %v811 = vsel %vm794, %v732, 0
        %v814 = vsel %vm794, %v733, 0
        %v817 = vsel %vm794, %v734, 0
        %v820 = vsel %vm794, %v735, 0
        %v823 = vsel %vm794, %v736, 0
        %v826 = vsel %vm794, %v737, 0
        %v829 = vsel %vm794, %v738, 0
        %v832 = vsel %vm794, %v739, 0
        %v835 = vsel %vm794, %v740, 0
        %v838 = vsel %vm794, %v741, 0
        %v841 = vsel %vm794, %v742, 0
        %843 = vmatprep.subr.bf16.mxu0 0
        %844 = vmatpush1.bf16.msra.mxu0 %v792
        %845 = vmatprep.subr.bf16.mxu0 0
        %846 = vmatpush1.bf16.msra.mxu0 0
        %847 = vmatprep.subr.bf16.mxu0 0
        %848 = vmatpush1.bf16.msra.mxu0 0
        %849 = vmatprep.subr.bf16.mxu0 0
        %850 = vmatpush1.bf16.msra.mxu0 0
        %851 = vmatprep.subr.bf16.mxu0 0
        %852 = vmatpush1.bf16.msra.mxu0 0
        %853 = vmatprep.subr.bf16.mxu0 0
        %854 = vmatpush1.bf16.msra.mxu0 0
        %855 = vmatprep.subr.bf16.mxu0 0
        %856 = vmatpush1.bf16.msra.mxu0 0
        %857 = vmatprep.subr.bf16.mxu0 0
        %858 = vmatpush1.bf16.msra.mxu0 0
        %859 = vmatprep.subr.bf16.mxu0 0
        %860 = vmatpush1.bf16.msra.mxu0 0
        %861 = vmatprep.subr.bf16.mxu0 0
        %862 = vmatpush1.bf16.msra.mxu0 0
        %863 = vmatprep.subr.bf16.mxu0 0
        %864 = vmatpush1.bf16.msra.mxu0 0
        %865 = vmatprep.subr.bf16.mxu0 0
        %866 = vmatpush1.bf16.msra.mxu0 0
        %867 = vmatprep.subr.bf16.mxu0 0
        %868 = vmatpush1.bf16.msra.mxu0 0
        %869 = vmatprep.subr.bf16.mxu0 0
        %870 = vmatpush1.bf16.msra.mxu0 0
        %871 = vmatprep.subr.bf16.mxu0 0
        %872 = vmatpush1.bf16.msra.mxu0 0
        %873 = vmatprep.subr.bf16.mxu0 0
        %874 = vmatpush1.bf16.msra.mxu0 0
        %875 = vmatprep.mubr.bf16.mxu0 0
        %876 = vmatmul.mubr.bf16.gmra.mrb[0].mxu0 %v796
        %v877 = vpop.f32.mrb[0].mxu0
        %v878 = vadd.f32 %v786, %v877
        %v879 = vpop.f32.mrb[0].mxu0
        %v880 = vpop.f32.mrb[0].mxu0
        %v881 = vadd.f32 %v786, %v880
        %v882 = vpop.f32.mrb[0].mxu0
        %883 = vmatprep.mubr.bf16.mxu0 0
        %884 = vmatmul.mubr.bf16.gmra.mrb[0].mxu0 %v799
        %v885 = vpop.f32.mrb[0].mxu0
        %v886 = vadd.f32 %v786, %v885
        %v887 = vpop.f32.mrb[0].mxu0
        %v888 = vpop.f32.mrb[0].mxu0
        %v889 = vadd.f32 %v786, %v888
        %v890 = vpop.f32.mrb[0].mxu0
        %891 = vmatprep.mubr.bf16.mxu0 0
        %892 = vmatmul.mubr.bf16.gmra.mrb[0].mxu0 %v802
        %v893 = vpop.f32.mrb[0].mxu0
        %v894 = vadd.f32 %v786, %v893
        %v895 = vpop.f32.mrb[0].mxu0
        %v896 = vpop.f32.mrb[0].mxu0
        %v897 = vadd.f32 %v786, %v896
        %v898 = vpop.f32.mrb[0].mxu0
        %899 = vmatprep.mubr.bf16.mxu0 0
        %900 = vmatmul.mubr.bf16.gmra.mrb[0].mxu0 %v805
        %v901 = vpop.f32.mrb[0].mxu0
        %v902 = vadd.f32 %v786, %v901
        %v903 = vpop.f32.mrb[0].mxu0
        %v904 = vpop.f32.mrb[0].mxu0
        %v905 = vadd.f32 %v786, %v904
        %v906 = vpop.f32.mrb[0].mxu0
        %907 = vmatprep.mubr.bf16.mxu0 0
        %908 = vmatmul.mubr.bf16.gmra.mrb[0].mxu0 %v808
        %v909 = vpop.f32.mrb[0].mxu0
        %v910 = vadd.f32 %v786, %v909
        %v911 = vpop.f32.mrb[0].mxu0
        %v912 = vpop.f32.mrb[0].mxu0
        %v913 = vadd.f32 %v786, %v912
        %v914 = vpop.f32.mrb[0].mxu0
        %915 = vmatprep.mubr.bf16.mxu0 0
        %916 = vmatmul.mubr.bf16.gmra.mrb[0].mxu0 %v811
        %v917 = vpop.f32.mrb[0].mxu0
        %v918 = vadd.f32 %v786, %v917
        %v919 = vpop.f32.mrb[0].mxu0
        %v920 = vpop.f32.mrb[0].mxu0
        %v921 = vadd.f32 %v786, %v920
        %v922 = vpop.f32.mrb[0].mxu0
        %923 = vmatprep.mubr.bf16.mxu0 0
        %924 = vmatmul.mubr.bf16.gmra.mrb[0].mxu0 %v814
        %v925 = vpop.f32.mrb[0].mxu0
        %v926 = vadd.f32 %v786, %v925
        %v927 = vpop.f32.mrb[0].mxu0
        %v928 = vpop.f32.mrb[0].mxu0
        %v929 = vadd.f32 %v786, %v928
        %v930 = vpop.f32.mrb[0].mxu0
        %931 = vmatprep.mubr.bf16.mxu0 0
        %932 = vmatmul.mubr.bf16.gmra.mrb[0].mxu0 %v817
        %v933 = vpop.f32.mrb[0].mxu0
        %v934 = vadd.f32 %v786, %v933
        %v935 = vpop.f32.mrb[0].mxu0
        %v936 = vpop.f32.mrb[0].mxu0
        %v937 = vadd.f32 %v786, %v936
        %v938 = vpop.f32.mrb[0].mxu0
        %939 = vmatprep.mubr.bf16.mxu0 0
        %940 = vmatmul.mubr.bf16.gmra.mrb[0].mxu0 %v820
        %v941 = vpop.f32.mrb[0].mxu0
        %v942 = vadd.f32 %v786, %v941
        %v943 = vpop.f32.mrb[0].mxu0
        %v944 = vpop.f32.mrb[0].mxu0
        %v945 = vadd.f32 %v786, %v944
        %v946 = vpop.f32.mrb[0].mxu0
        %947 = vmatprep.mubr.bf16.mxu0 0
        %948 = vmatmul.mubr.bf16.gmra.mrb[0].mxu0 %v823
        %v949 = vpop.f32.mrb[0].mxu0
        %v950 = vadd.f32 %v786, %v949
        %v951 = vpop.f32.mrb[0].mxu0
        %v952 = vpop.f32.mrb[0].mxu0
        %v953 = vadd.f32 %v786, %v952
        %v954 = vpop.f32.mrb[0].mxu0
        %955 = vmatprep.mubr.bf16.mxu0 0
        %956 = vmatmul.mubr.bf16.gmra.mrb[0].mxu0 %v826
        %v957 = vpop.f32.mrb[0].mxu0
        %v958 = vadd.f32 %v786, %v957
        %v959 = vpop.f32.mrb[0].mxu0
        %v960 = vpop.f32.mrb[0].mxu0
        %v961 = vadd.f32 %v786, %v960
        %v962 = vpop.f32.mrb[0].mxu0
        %963 = vmatprep.mubr.bf16.mxu0 0
        %964 = vmatmul.mubr.bf16.gmra.mrb[0].mxu0 %v829
        %v965 = vpop.f32.mrb[0].mxu0
        %v966 = vadd.f32 %v786, %v965
        %v967 = vpop.f32.mrb[0].mxu0
        %v968 = vpop.f32.mrb[0].mxu0
        %v969 = vadd.f32 %v786, %v968
        %v970 = vpop.f32.mrb[0].mxu0
        %971 = vmatprep.mubr.bf16.mxu0 0
        %972 = vmatmul.mubr.bf16.gmra.mrb[0].mxu0 %v832
        %v973 = vpop.f32.mrb[0].mxu0
        %v974 = vadd.f32 %v786, %v973
        %v975 = vpop.f32.mrb[0].mxu0
        %v976 = vpop.f32.mrb[0].mxu0
        %v977 = vadd.f32 %v786, %v976
        %v978 = vpop.f32.mrb[0].mxu0
        %979 = vmatprep.mubr.bf16.mxu0 0
        %980 = vmatmul.mubr.bf16.gmra.mrb[0].mxu0 %v835
        %v981 = vpop.f32.mrb[0].mxu0
        %v982 = vadd.f32 %v786, %v981
        %v983 = vpop.f32.mrb[0].mxu0
        %v984 = vpop.f32.mrb[0].mxu0
        %v985 = vadd.f32 %v786, %v984
        %v986 = vpop.f32.mrb[0].mxu0
        %987 = vmatprep.mubr.bf16.mxu0 0
        %988 = vmatmul.mubr.bf16.gmra.mrb[0].mxu0 %v838
        %v989 = vpop.f32.mrb[0].mxu0
        %v990 = vadd.f32 %v786, %v989
        %v991 = vpop.f32.mrb[0].mxu0
        %v992 = vpop.f32.mrb[0].mxu0
        %v993 = vadd.f32 %v786, %v992
        %v994 = vpop.f32.mrb[0].mxu0
        %995 = vmatprep.mubr.bf16.mxu0 0
        %996 = vmatmul.mubr.bf16.gmra.mrb[0].mxu0 %v841
        %v997 = vpop.f32.mrb[0].mxu0
        %v998 = vadd.f32 %v786, %v997
        %v999 = vpop.f32.mrb[0].mxu0
        %v1000 = vpop.f32.mrb[0].mxu0
        %v1001 = vadd.f32 %v786, %v1000
        %v1002 = vpop.f32.mrb[0].mxu0
        %1003 = vdwg.mxu0
        %v1004 = vsub.f32 0.0, %v878
        %v1005 = vsub.f32 0.0, %v881
        %v1006 = vsub.f32 0.0, %v886
        %v1007 = vsub.f32 0.0, %v889
        %v1008 = vsub.f32 0.0, %v894
        %v1009 = vsub.f32 0.0, %v897
        %v1010 = vsub.f32 0.0, %v902
        %v1011 = vsub.f32 0.0, %v905
        %v1012 = vsub.f32 0.0, %v910
        %v1013 = vsub.f32 0.0, %v913
        %v1014 = vsub.f32 0.0, %v918
        %v1015 = vsub.f32 0.0, %v921
        %v1016 = vsub.f32 0.0, %v926
        %v1017 = vsub.f32 0.0, %v929
        %v1018 = vsub.f32 0.0, %v934
        %v1019 = vsub.f32 0.0, %v937
        %v1020 = vsub.f32 0.0, %v942
        %v1021 = vsub.f32 0.0, %v945
        %v1022 = vsub.f32 0.0, %v950
        %v1023 = vsub.f32 0.0, %v953
        %v1024 = vsub.f32 0.0, %v958
        %v1025 = vsub.f32 0.0, %v961
        %v1026 = vsub.f32 0.0, %v966
        %v1027 = vsub.f32 0.0, %v969
        %v1028 = vsub.f32 0.0, %v974
        %v1029 = vsub.f32 0.0, %v977
        %v1030 = vsub.f32 0.0, %v982
        %v1031 = vsub.f32 0.0, %v985
        %v1032 = vsub.f32 0.0, %v990
        %v1033 = vsub.f32 0.0, %v993
        %v1034 = vsub.f32 0.0, %v998
        %v1035 = vsub.f32 0.0, %v1001
        %v1036 = vmul.f32 %v1004, 1.442695
        %v1037 = vpow.pop %v1036
        %v1038 = vmul.f32 %v1005, 1.442695
        %v1039 = vpow.pop %v1038
        %v1040 = vmul.f32 %v1006, 1.442695
        %v1041 = vpow.pop %v1040
        %v1042 = vmul.f32 %v1007, 1.442695
        %v1043 = vpow.pop %v1042
        %v1044 = vmul.f32 %v1008, 1.442695
        %v1045 = vpow.pop %v1044
        %v1046 = vmul.f32 %v1009, 1.442695
        %v1047 = vpow.pop %v1046
        %v1048 = vmul.f32 %v1010, 1.442695
        %v1049 = vpow.pop %v1048
        %v1050 = vmul.f32 %v1011, 1.442695
        %v1051 = vpow.pop %v1050
        %v1052 = vmul.f32 %v1012, 1.442695
        %v1053 = vpow.pop %v1052
        %v1054 = vmul.f32 %v1013, 1.442695
        %v1055 = vpow.pop %v1054
        %v1056 = vmul.f32 %v1014, 1.442695
        %v1057 = vpow.pop %v1056
        %v1058 = vmul.f32 %v1015, 1.442695
        %v1059 = vpow.pop %v1058
        %v1060 = vmul.f32 %v1016, 1.442695
        %v1061 = vpow.pop %v1060
        %v1062 = vmul.f32 %v1017, 1.442695
        %v1063 = vpow.pop %v1062
        %v1064 = vmul.f32 %v1018, 1.442695
        %v1065 = vpow.pop %v1064
        %v1066 = vmul.f32 %v1019, 1.442695
        %v1067 = vpow.pop %v1066
        %v1068 = vmul.f32 %v1020, 1.442695
        %v1069 = vpow.pop %v1068
        %v1070 = vmul.f32 %v1021, 1.442695
        %v1071 = vpow.pop %v1070
        %v1072 = vmul.f32 %v1022, 1.442695
        %v1073 = vpow.pop %v1072
        %v1074 = vmul.f32 %v1023, 1.442695
        %v1075 = vpow.pop %v1074
        %v1076 = vmul.f32 %v1024, 1.442695
        %v1077 = vpow.pop %v1076
        %v1078 = vmul.f32 %v1025, 1.442695
        %v1079 = vpow.pop %v1078
        %v1080 = vmul.f32 %v1026, 1.442695
        %v1081 = vpow.pop %v1080
        %v1082 = vmul.f32 %v1027, 1.442695
        %v1083 = vpow.pop %v1082
        %v1084 = vmul.f32 %v1028, 1.442695
        %v1085 = vpow.pop %v1084
        %v1086 = vmul.f32 %v1029, 1.442695
        %v1087 = vpow.pop %v1086
        %v1088 = vmul.f32 %v1030, 1.442695
        %v1089 = vpow.pop %v1088
        %v1090 = vmul.f32 %v1031, 1.442695
        %v1091 = vpow.pop %v1090
        %v1092 = vmul.f32 %v1032, 1.442695
        %v1093 = vpow.pop %v1092
        %v1094 = vmul.f32 %v1033, 1.442695
        %v1095 = vpow.pop %v1094
        %v1096 = vmul.f32 %v1034, 1.442695
        %v1097 = vpow.pop %v1096
        %v1098 = vmul.f32 %v1035, 1.442695
        %v1099 = vpow.pop %v1098
        %v1100 = vadd.f32 %v1037, 1.0
        %v1101 = vadd.f32 %v1039, 1.0
        %v1102 = vadd.f32 %v1041, 1.0
        %v1103 = vadd.f32 %v1043, 1.0
        %v1104 = vadd.f32 %v1045, 1.0
        %v1105 = vadd.f32 %v1047, 1.0
        %v1106 = vadd.f32 %v1049, 1.0
        %v1107 = vadd.f32 %v1051, 1.0
        %v1108 = vadd.f32 %v1053, 1.0
        %v1109 = vadd.f32 %v1055, 1.0
        %v1110 = vadd.f32 %v1057, 1.0
        %v1111 = vadd.f32 %v1059, 1.0
        %v1112 = vadd.f32 %v1061, 1.0
        %v1113 = vadd.f32 %v1063, 1.0
        %v1114 = vadd.f32 %v1065, 1.0
        %v1115 = vadd.f32 %v1067, 1.0
        %v1116 = vadd.f32 %v1069, 1.0
        %v1117 = vadd.f32 %v1071, 1.0
        %v1118 = vadd.f32 %v1073, 1.0
        %v1119 = vadd.f32 %v1075, 1.0
        %v1120 = vadd.f32 %v1077, 1.0
        %v1121 = vadd.f32 %v1079, 1.0
        %v1122 = vadd.f32 %v1081, 1.0
        %v1123 = vadd.f32 %v1083, 1.0
        %v1124 = vadd.f32 %v1085, 1.0
        %v1125 = vadd.f32 %v1087, 1.0
        %v1126 = vadd.f32 %v1089, 1.0
        %v1127 = vadd.f32 %v1091, 1.0
        %v1128 = vadd.f32 %v1093, 1.0
        %v1129 = vadd.f32 %v1095, 1.0
        %v1130 = vadd.f32 %v1097, 1.0
        %v1131 = vadd.f32 %v1099, 1.0
        %v1132 = vrcp.pop %v1100
        %v1133 = vrcp.pop %v1101
        %v1134 = vrcp.pop %v1102
        %v1135 = vrcp.pop %v1103
        %v1136 = vrcp.pop %v1104
        %v1137 = vrcp.pop %v1105
        %v1138 = vrcp.pop %v1106
        %v1139 = vrcp.pop %v1107
        %v1140 = vrcp.pop %v1108
        %v1141 = vrcp.pop %v1109
        %v1142 = vrcp.pop %v1110
        %v1143 = vrcp.pop %v1111
        %v1144 = vrcp.pop %v1112
        %v1145 = vrcp.pop %v1113
        %v1146 = vrcp.pop %v1114
        %v1147 = vrcp.pop %v1115
        %v1148 = vrcp.pop %v1116
        %v1149 = vrcp.pop %v1117
        %v1150 = vrcp.pop %v1118
        %v1151 = vrcp.pop %v1119
        %v1152 = vrcp.pop %v1120
        %v1153 = vrcp.pop %v1121
        %v1154 = vrcp.pop %v1122
        %v1155 = vrcp.pop %v1123
        %v1156 = vrcp.pop %v1124
        %v1157 = vrcp.pop %v1125
        %v1158 = vrcp.pop %v1126
        %v1159 = vrcp.pop %v1127
        %v1160 = vrcp.pop %v1128
        %v1161 = vrcp.pop %v1129
        %v1162 = vrcp.pop %v1130
        %v1163 = vrcp.pop %v1131
        %v1164 = vmul.f32 %v878, %v1132
        %v1165 = vmul.f32 %v881, %v1133
        %v1166 = vmul.f32 %v886, %v1134
        %v1167 = vmul.f32 %v889, %v1135
        %v1168 = vmul.f32 %v894, %v1136
        %v1169 = vmul.f32 %v897, %v1137
        %v1170 = vmul.f32 %v902, %v1138
        %v1171 = vmul.f32 %v905, %v1139
        %v1172 = vmul.f32 %v910, %v1140
        %v1173 = vmul.f32 %v913, %v1141
        %v1174 = vmul.f32 %v918, %v1142
        %v1175 = vmul.f32 %v921, %v1143
        %v1176 = vmul.f32 %v926, %v1144
        %v1177 = vmul.f32 %v929, %v1145
        %v1178 = vmul.f32 %v934, %v1146
        %v1179 = vmul.f32 %v937, %v1147
        %v1180 = vmul.f32 %v942, %v1148
        %v1181 = vmul.f32 %v945, %v1149
        %v1182 = vmul.f32 %v950, %v1150
        %v1183 = vmul.f32 %v953, %v1151
        %v1184 = vmul.f32 %v958, %v1152
        %v1185 = vmul.f32 %v961, %v1153
        %v1186 = vmul.f32 %v966, %v1154
        %v1187 = vmul.f32 %v969, %v1155
        %v1188 = vmul.f32 %v974, %v1156
        %v1189 = vmul.f32 %v977, %v1157
        %v1190 = vmul.f32 %v982, %v1158
        %v1191 = vmul.f32 %v985, %v1159
        %v1192 = vmul.f32 %v990, %v1160
        %v1193 = vmul.f32 %v993, %v1161
        %v1194 = vmul.f32 %v998, %v1162
        %v1195 = vmul.f32 %v1001, %v1163
        %v1197 = vlaneseq
        %v1198 = vshrl.u32 %v1197, 7
        %v1199 = vsub.s32 0, %v1198
        %v1200 = vrot.slane %v748, %v1199
        %v1204 = vunpack.c.l.b16 %v746
        %v1205 = vunpack.c.l.b16 %v747
        %v1206 = vpack.c.b16 %v1205, %v1204
        %1208 = vmatprep.subr.bf16.mxu0 0
        %1209 = vmatpush1.bf16.msra.mxu0 %v1206
        %1210 = vmatprep.subr.bf16.mxu0 0
        %1211 = vmatpush1.bf16.msra.mxu0 0
        %1212 = vmatprep.subr.bf16.mxu0 0
        %1213 = vmatpush1.bf16.msra.mxu0 0
        %1214 = vmatprep.subr.bf16.mxu0 0
        %1215 = vmatpush1.bf16.msra.mxu0 0
        %1216 = vmatprep.subr.bf16.mxu0 0
        %1217 = vmatpush1.bf16.msra.mxu0 0
        %1218 = vmatprep.subr.bf16.mxu0 0
        %1219 = vmatpush1.bf16.msra.mxu0 0
        %1220 = vmatprep.subr.bf16.mxu0 0
        %1221 = vmatpush1.bf16.msra.mxu0 0
        %1222 = vmatprep.subr.bf16.mxu0 0
        %1223 = vmatpush1.bf16.msra.mxu0 0
        %1224 = vmatprep.subr.bf16.mxu0 0
        %1225 = vmatpush1.bf16.msra.mxu0 0
        %1226 = vmatprep.subr.bf16.mxu0 0
        %1227 = vmatpush1.bf16.msra.mxu0 0
        %1228 = vmatprep.subr.bf16.mxu0 0
        %1229 = vmatpush1.bf16.msra.mxu0 0
        %1230 = vmatprep.subr.bf16.mxu0 0
        %1231 = vmatpush1.bf16.msra.mxu0 0
        %1232 = vmatprep.subr.bf16.mxu0 0
        %1233 = vmatpush1.bf16.msra.mxu0 0
        %1234 = vmatprep.subr.bf16.mxu0 0
        %1235 = vmatpush1.bf16.msra.mxu0 0
        %1236 = vmatprep.subr.bf16.mxu0 0
        %1237 = vmatpush1.bf16.msra.mxu0 0
        %1238 = vmatprep.subr.bf16.mxu0 0
        %1239 = vmatpush1.bf16.msra.mxu0 0
        %1240 = vmatprep.mubr.bf16.mxu0 0
        %1241 = vmatmul.mubr.bf16.gmra.mrb[0].mxu0 %v796
        %v1242 = vpop.f32.mrb[0].mxu0
        %v1243 = vadd.f32 %v1200, %v1242
        %v1244 = vpop.f32.mrb[0].mxu0
        %v1245 = vpop.f32.mrb[0].mxu0
        %v1246 = vadd.f32 %v1200, %v1245
        %v1247 = vpop.f32.mrb[0].mxu0
        %1248 = vmatprep.mubr.bf16.mxu0 0
        %1249 = vmatmul.mubr.bf16.gmra.mrb[0].mxu0 %v799
        %v1250 = vpop.f32.mrb[0].mxu0
        %v1251 = vadd.f32 %v1200, %v1250
        %v1252 = vpop.f32.mrb[0].mxu0
        %v1253 = vpop.f32.mrb[0].mxu0
        %v1254 = vadd.f32 %v1200, %v1253
        %v1255 = vpop.f32.mrb[0].mxu0
        %1256 = vmatprep.mubr.bf16.mxu0 0
        %1257 = vmatmul.mubr.bf16.gmra.mrb[0].mxu0 %v802
        %v1258 = vpop.f32.mrb[0].mxu0
        %v1259 = vadd.f32 %v1200, %v1258
        %v1260 = vpop.f32.mrb[0].mxu0
        %v1261 = vpop.f32.mrb[0].mxu0
        %v1262 = vadd.f32 %v1200, %v1261
        %v1263 = vpop.f32.mrb[0].mxu0
        %1264 = vmatprep.mubr.bf16.mxu0 0
        %1265 = vmatmul.mubr.bf16.gmra.mrb[0].mxu0 %v805
        %v1266 = vpop.f32.mrb[0].mxu0
        %v1267 = vadd.f32 %v1200, %v1266
        %v1268 = vpop.f32.mrb[0].mxu0
        %v1269 = vpop.f32.mrb[0].mxu0
        %v1270 = vadd.f32 %v1200, %v1269
        %v1271 = vpop.f32.mrb[0].mxu0
        %1272 = vmatprep.mubr.bf16.mxu0 0
        %1273 = vmatmul.mubr.bf16.gmra.mrb[0].mxu0 %v808
        %v1274 = vpop.f32.mrb[0].mxu0
        %v1275 = vadd.f32 %v1200, %v1274
        %v1276 = vpop.f32.mrb[0].mxu0
        %v1277 = vpop.f32.mrb[0].mxu0
        %v1278 = vadd.f32 %v1200, %v1277
        %v1279 = vpop.f32.mrb[0].mxu0
        %1280 = vmatprep.mubr.bf16.mxu0 0
        %1281 = vmatmul.mubr.bf16.gmra.mrb[0].mxu0 %v811
        %v1282 = vpop.f32.mrb[0].mxu0
        %v1283 = vadd.f32 %v1200, %v1282
        %v1284 = vpop.f32.mrb[0].mxu0
        %v1285 = vpop.f32.mrb[0].mxu0
        %v1286 = vadd.f32 %v1200, %v1285
        %v1287 = vpop.f32.mrb[0].mxu0
        %1288 = vmatprep.mubr.bf16.mxu0 0
        %1289 = vmatmul.mubr.bf16.gmra.mrb[0].mxu0 %v814
        %v1290 = vpop.f32.mrb[0].mxu0
        %v1291 = vadd.f32 %v1200, %v1290
        %v1292 = vpop.f32.mrb[0].mxu0
        %v1293 = vpop.f32.mrb[0].mxu0
        %v1294 = vadd.f32 %v1200, %v1293
        %v1295 = vpop.f32.mrb[0].mxu0
        %1296 = vmatprep.mubr.bf16.mxu0 0
        %1297 = vmatmul.mubr.bf16.gmra.mrb[0].mxu0 %v817
        %v1298 = vpop.f32.mrb[0].mxu0
        %v1299 = vadd.f32 %v1200, %v1298
        %v1300 = vpop.f32.mrb[0].mxu0
        %v1301 = vpop.f32.mrb[0].mxu0
        %v1302 = vadd.f32 %v1200, %v1301
        %v1303 = vpop.f32.mrb[0].mxu0
        %1304 = vmatprep.mubr.bf16.mxu0 0
        %1305 = vmatmul.mubr.bf16.gmra.mrb[0].mxu0 %v820
        %v1306 = vpop.f32.mrb[0].mxu0
        %v1307 = vadd.f32 %v1200, %v1306
        %v1308 = vpop.f32.mrb[0].mxu0
        %v1309 = vpop.f32.mrb[0].mxu0
        %v1310 = vadd.f32 %v1200, %v1309
        %v1311 = vpop.f32.mrb[0].mxu0
        %1312 = vmatprep.mubr.bf16.mxu0 0
        %1313 = vmatmul.mubr.bf16.gmra.mrb[0].mxu0 %v823
        %v1314 = vpop.f32.mrb[0].mxu0
        %v1315 = vadd.f32 %v1200, %v1314
        %v1316 = vpop.f32.mrb[0].mxu0
        %v1317 = vpop.f32.mrb[0].mxu0
        %v1318 = vadd.f32 %v1200, %v1317
        %v1319 = vpop.f32.mrb[0].mxu0
        %1320 = vmatprep.mubr.bf16.mxu0 0
        %1321 = vmatmul.mubr.bf16.gmra.mrb[0].mxu0 %v826
        %v1322 = vpop.f32.mrb[0].mxu0
        %v1323 = vadd.f32 %v1200, %v1322
        %v1324 = vpop.f32.mrb[0].mxu0
        %v1325 = vpop.f32.mrb[0].mxu0
        %v1326 = vadd.f32 %v1200, %v1325
        %v1327 = vpop.f32.mrb[0].mxu0
        %1328 = vmatprep.mubr.bf16.mxu0 0
        %1329 = vmatmul.mubr.bf16.gmra.mrb[0].mxu0 %v829
        %v1330 = vpop.f32.mrb[0].mxu0
        %v1331 = vadd.f32 %v1200, %v1330
        %v1332 = vpop.f32.mrb[0].mxu0
        %v1333 = vpop.f32.mrb[0].mxu0
        %v1334 = vadd.f32 %v1200, %v1333
        %v1335 = vpop.f32.mrb[0].mxu0
        %1336 = vmatprep.mubr.bf16.mxu0 0
        %1337 = vmatmul.mubr.bf16.gmra.mrb[0].mxu0 %v832
        %v1338 = vpop.f32.mrb[0].mxu0
        %v1339 = vadd.f32 %v1200, %v1338
        %v1340 = vpop.f32.mrb[0].mxu0
        %v1341 = vpop.f32.mrb[0].mxu0
        %v1342 = vadd.f32 %v1200, %v1341
        %v1343 = vpop.f32.mrb[0].mxu0
        %1344 = vmatprep.mubr.bf16.mxu0 0
        %1345 = vmatmul.mubr.bf16.gmra.mrb[0].mxu0 %v835
        %v1346 = vpop.f32.mrb[0].mxu0
        %v1347 = vadd.f32 %v1200, %v1346
        %v1348 = vpop.f32.mrb[0].mxu0
        %v1349 = vpop.f32.mrb[0].mxu0
        %v1350 = vadd.f32 %v1200, %v1349
        %v1351 = vpop.f32.mrb[0].mxu0
        %1352 = vmatprep.mubr.bf16.mxu0 0
        %1353 = vmatmul.mubr.bf16.gmra.mrb[0].mxu0 %v838
        %v1354 = vpop.f32.mrb[0].mxu0
        %v1355 = vadd.f32 %v1200, %v1354
        %v1356 = vpop.f32.mrb[0].mxu0
        %v1357 = vpop.f32.mrb[0].mxu0
        %v1358 = vadd.f32 %v1200, %v1357
        %v1359 = vpop.f32.mrb[0].mxu0
        %1360 = vmatprep.mubr.bf16.mxu0 0
        %1361 = vmatmul.mubr.bf16.gmra.mrb[0].mxu0 %v841
        %v1362 = vpop.f32.mrb[0].mxu0
        %v1363 = vadd.f32 %v1200, %v1362
        %v1364 = vpop.f32.mrb[0].mxu0
        %v1365 = vpop.f32.mrb[0].mxu0
        %v1366 = vadd.f32 %v1200, %v1365
        %v1367 = vpop.f32.mrb[0].mxu0
        %1368 = vdwg.mxu0
        %v1369 = vsub.f32 0.0, %v1243
        %v1370 = vsub.f32 0.0, %v1246
        %v1371 = vsub.f32 0.0, %v1251
        %v1372 = vsub.f32 0.0, %v1254
        %v1373 = vsub.f32 0.0, %v1259
        %v1374 = vsub.f32 0.0, %v1262
        %v1375 = vsub.f32 0.0, %v1267
        %v1376 = vsub.f32 0.0, %v1270
        %v1377 = vsub.f32 0.0, %v1275
        %v1378 = vsub.f32 0.0, %v1278
        %v1379 = vsub.f32 0.0, %v1283
        %v1380 = vsub.f32 0.0, %v1286
        %v1381 = vsub.f32 0.0, %v1291
        %v1382 = vsub.f32 0.0, %v1294
        %v1383 = vsub.f32 0.0, %v1299
        %v1384 = vsub.f32 0.0, %v1302
        %v1385 = vsub.f32 0.0, %v1307
        %v1386 = vsub.f32 0.0, %v1310
        %v1387 = vsub.f32 0.0, %v1315
        %v1388 = vsub.f32 0.0, %v1318
        %v1389 = vsub.f32 0.0, %v1323
        %v1390 = vsub.f32 0.0, %v1326
        %v1391 = vsub.f32 0.0, %v1331
        %v1392 = vsub.f32 0.0, %v1334
        %v1393 = vsub.f32 0.0, %v1339
        %v1394 = vsub.f32 0.0, %v1342
        %v1395 = vsub.f32 0.0, %v1347
        %v1396 = vsub.f32 0.0, %v1350
        %v1397 = vsub.f32 0.0, %v1355
        %v1398 = vsub.f32 0.0, %v1358
        %v1399 = vsub.f32 0.0, %v1363
        %v1400 = vsub.f32 0.0, %v1366
        %v1401 = vmul.f32 %v1369, 1.442695
        %v1402 = vpow.pop %v1401
        %v1403 = vmul.f32 %v1370, 1.442695
        %v1404 = vpow.pop %v1403
        %v1405 = vmul.f32 %v1371, 1.442695
        %v1406 = vpow.pop %v1405
        %v1407 = vmul.f32 %v1372, 1.442695
        %v1408 = vpow.pop %v1407
        %v1409 = vmul.f32 %v1373, 1.442695
        %v1410 = vpow.pop %v1409
        %v1411 = vmul.f32 %v1374, 1.442695
        %v1412 = vpow.pop %v1411
        %v1413 = vmul.f32 %v1375, 1.442695
        %v1414 = vpow.pop %v1413
        %v1415 = vmul.f32 %v1376, 1.442695
        %v1416 = vpow.pop %v1415
        %v1417 = vmul.f32 %v1377, 1.442695
        %v1418 = vpow.pop %v1417
        %v1419 = vmul.f32 %v1378, 1.442695
        %v1420 = vpow.pop %v1419
        %v1421 = vmul.f32 %v1379, 1.442695
        %v1422 = vpow.pop %v1421
        %v1423 = vmul.f32 %v1380, 1.442695
        %v1424 = vpow.pop %v1423
        %v1425 = vmul.f32 %v1381, 1.442695
        %v1426 = vpow.pop %v1425
        %v1427 = vmul.f32 %v1382, 1.442695
        %v1428 = vpow.pop %v1427
        %v1429 = vmul.f32 %v1383, 1.442695
        %v1430 = vpow.pop %v1429
        %v1431 = vmul.f32 %v1384, 1.442695
        %v1432 = vpow.pop %v1431
        %v1433 = vmul.f32 %v1385, 1.442695
        %v1434 = vpow.pop %v1433
        %v1435 = vmul.f32 %v1386, 1.442695
        %v1436 = vpow.pop %v1435
        %v1437 = vmul.f32 %v1387, 1.442695
        %v1438 = vpow.pop %v1437
        %v1439 = vmul.f32 %v1388, 1.442695
        %v1440 = vpow.pop %v1439
        %v1441 = vmul.f32 %v1389, 1.442695
        %v1442 = vpow.pop %v1441
        %v1443 = vmul.f32 %v1390, 1.442695
        %v1444 = vpow.pop %v1443
        %v1445 = vmul.f32 %v1391, 1.442695
        %v1446 = vpow.pop %v1445
        %v1447 = vmul.f32 %v1392, 1.442695
        %v1448 = vpow.pop %v1447
        %v1449 = vmul.f32 %v1393, 1.442695
        %v1450 = vpow.pop %v1449
        %v1451 = vmul.f32 %v1394, 1.442695
        %v1452 = vpow.pop %v1451
        %v1453 = vmul.f32 %v1395, 1.442695
        %v1454 = vpow.pop %v1453
        %v1455 = vmul.f32 %v1396, 1.442695
        %v1456 = vpow.pop %v1455
        %v1457 = vmul.f32 %v1397, 1.442695
        %v1458 = vpow.pop %v1457
        %v1459 = vmul.f32 %v1398, 1.442695
        %v1460 = vpow.pop %v1459
        %v1461 = vmul.f32 %v1399, 1.442695
        %v1462 = vpow.pop %v1461
        %v1463 = vmul.f32 %v1400, 1.442695
        %v1464 = vpow.pop %v1463
        %v1465 = vadd.f32 %v1402, 1.0
        %v1466 = vadd.f32 %v1404, 1.0
        %v1467 = vadd.f32 %v1406, 1.0
        %v1468 = vadd.f32 %v1408, 1.0
        %v1469 = vadd.f32 %v1410, 1.0
        %v1470 = vadd.f32 %v1412, 1.0
        %v1471 = vadd.f32 %v1414, 1.0
        %v1472 = vadd.f32 %v1416, 1.0
        %v1473 = vadd.f32 %v1418, 1.0
        %v1474 = vadd.f32 %v1420, 1.0
        %v1475 = vadd.f32 %v1422, 1.0
        %v1476 = vadd.f32 %v1424, 1.0
        %v1477 = vadd.f32 %v1426, 1.0
        %v1478 = vadd.f32 %v1428, 1.0
        %v1479 = vadd.f32 %v1430, 1.0
        %v1480 = vadd.f32 %v1432, 1.0
        %v1481 = vadd.f32 %v1434, 1.0
        %v1482 = vadd.f32 %v1436, 1.0
        %v1483 = vadd.f32 %v1438, 1.0
        %v1484 = vadd.f32 %v1440, 1.0
        %v1485 = vadd.f32 %v1442, 1.0
        %v1486 = vadd.f32 %v1444, 1.0
        %v1487 = vadd.f32 %v1446, 1.0
        %v1488 = vadd.f32 %v1448, 1.0
        %v1489 = vadd.f32 %v1450, 1.0
        %v1490 = vadd.f32 %v1452, 1.0
        %v1491 = vadd.f32 %v1454, 1.0
        %v1492 = vadd.f32 %v1456, 1.0
        %v1493 = vadd.f32 %v1458, 1.0
        %v1494 = vadd.f32 %v1460, 1.0
        %v1495 = vadd.f32 %v1462, 1.0
        %v1496 = vadd.f32 %v1464, 1.0
        %v1497 = vrcp.pop %v1465
        %v1498 = vrcp.pop %v1466
        %v1499 = vrcp.pop %v1467
        %v1500 = vrcp.pop %v1468
        %v1501 = vrcp.pop %v1469
        %v1502 = vrcp.pop %v1470
        %v1503 = vrcp.pop %v1471
        %v1504 = vrcp.pop %v1472
        %v1505 = vrcp.pop %v1473
        %v1506 = vrcp.pop %v1474
        %v1507 = vrcp.pop %v1475
        %v1508 = vrcp.pop %v1476
        %v1509 = vrcp.pop %v1477
        %v1510 = vrcp.pop %v1478
        %v1511 = vrcp.pop %v1479
        %v1512 = vrcp.pop %v1480
        %v1513 = vrcp.pop %v1481
        %v1514 = vrcp.pop %v1482
        %v1515 = vrcp.pop %v1483
        %v1516 = vrcp.pop %v1484
        %v1517 = vrcp.pop %v1485
        %v1518 = vrcp.pop %v1486
        %v1519 = vrcp.pop %v1487
        %v1520 = vrcp.pop %v1488
        %v1521 = vrcp.pop %v1489
        %v1522 = vrcp.pop %v1490
        %v1523 = vrcp.pop %v1491
        %v1524 = vrcp.pop %v1492
        %v1525 = vrcp.pop %v1493
        %v1526 = vrcp.pop %v1494
        %v1527 = vrcp.pop %v1495
        %v1528 = vrcp.pop %v1496
        %v1529 = vmul.f32 %v1243, %v1497
        %v1530 = vmul.f32 %v1246, %v1498
        %v1531 = vmul.f32 %v1251, %v1499
        %v1532 = vmul.f32 %v1254, %v1500
        %v1533 = vmul.f32 %v1259, %v1501
        %v1534 = vmul.f32 %v1262, %v1502
        %v1535 = vmul.f32 %v1267, %v1503
        %v1536 = vmul.f32 %v1270, %v1504
        %v1537 = vmul.f32 %v1275, %v1505
        %v1538 = vmul.f32 %v1278, %v1506
        %v1539 = vmul.f32 %v1283, %v1507
        %v1540 = vmul.f32 %v1286, %v1508
        %v1541 = vmul.f32 %v1291, %v1509
        %v1542 = vmul.f32 %v1294, %v1510
        %v1543 = vmul.f32 %v1299, %v1511
        %v1544 = vmul.f32 %v1302, %v1512
        %v1545 = vmul.f32 %v1307, %v1513
        %v1546 = vmul.f32 %v1310, %v1514
        %v1547 = vmul.f32 %v1315, %v1515
        %v1548 = vmul.f32 %v1318, %v1516
        %v1549 = vmul.f32 %v1323, %v1517
        %v1550 = vmul.f32 %v1326, %v1518
        %v1551 = vmul.f32 %v1331, %v1519
        %v1552 = vmul.f32 %v1334, %v1520
        %v1553 = vmul.f32 %v1339, %v1521
        %v1554 = vmul.f32 %v1342, %v1522
        %v1555 = vmul.f32 %v1347, %v1523
        %v1556 = vmul.f32 %v1350, %v1524
        %v1557 = vmul.f32 %v1355, %v1525
        %v1558 = vmul.f32 %v1358, %v1526
        %v1559 = vmul.f32 %v1363, %v1527
        %v1560 = vmul.f32 %v1366, %v1528
        %v1561 = vpack.c.bf16 %v1530, %v1529
        %v1562 = vpack.c.bf16 %v1532, %v1531
        %v1563 = vpack.c.bf16 %v1534, %v1533
        %v1564 = vpack.c.bf16 %v1536, %v1535
        %v1565 = vpack.c.bf16 %v1538, %v1537
        %v1566 = vpack.c.bf16 %v1540, %v1539
        %v1567 = vpack.c.bf16 %v1542, %v1541
        %v1568 = vpack.c.bf16 %v1544, %v1543
        %v1569 = vpack.c.bf16 %v1546, %v1545
        %v1570 = vpack.c.bf16 %v1548, %v1547
        %v1571 = vpack.c.bf16 %v1550, %v1549
        %v1572 = vpack.c.bf16 %v1552, %v1551
        %v1573 = vpack.c.bf16 %v1554, %v1553
        %v1574 = vpack.c.bf16 %v1556, %v1555
        %v1575 = vpack.c.bf16 %v1558, %v1557
        %v1576 = vpack.c.bf16 %v1560, %v1559
        %v1577 = vld [vmem:[%s8] sm:$0xf]
        %v1578 = vld [vmem:[%s8 + $0x4] sm:$0xf]
        %v1579 = vld [vmem:[%s8 + $0x8] sm:$0xf]
        %v1580 = vld [vmem:[%s8 + $0xc] sm:$0xf]
        %v1581 = vld [vmem:[%s8 + $0x10] sm:$0xf]
        %v1582 = vld [vmem:[%s8 + $0x14] sm:$0xf]
        %v1583 = vld [vmem:[%s8 + $0x18] sm:$0xf]
        %v1584 = vld [vmem:[%s8 + $0x1c] sm:$0xf]
        %v1585 = vld [vmem:[%s8 + $0x20] sm:$0xf]
        %v1586 = vld [vmem:[%s8 + $0x24] sm:$0xf]
        %v1587 = vld [vmem:[%s8 + $0x28] sm:$0xf]
        %v1588 = vld [vmem:[%s8 + $0x2c] sm:$0xf]
        %v1589 = vld [vmem:[%s8 + $0x30] sm:$0xf]
        %v1590 = vld [vmem:[%s8 + $0x34] sm:$0xf]
        %v1591 = vld [vmem:[%s8 + $0x38] sm:$0xf]
        %v1592 = vld [vmem:[%s8 + $0x3c] sm:$0xf]
        %v1593 = vld [vmem:[%s9] sm:$0x1]
        %v1594 = vld [vmem:[%s10] sm:$0xf]
        %v1595 = vld [vmem:[%s10 + $0x4] sm:$0xf]
        %v1596 = vld [vmem:[%s10 + $0x8] sm:$0xf]
        %v1597 = vld [vmem:[%s10 + $0xc] sm:$0xf]
        %v1598 = vld [vmem:[%s10 + $0x10] sm:$0xf]
        %v1599 = vld [vmem:[%s10 + $0x14] sm:$0xf]
        %v1600 = vld [vmem:[%s10 + $0x18] sm:$0xf]
        %v1601 = vld [vmem:[%s10 + $0x1c] sm:$0xf]
        %v1602 = vld [vmem:[%s10 + $0x20] sm:$0xf]
        %v1603 = vld [vmem:[%s10 + $0x24] sm:$0xf]
        %v1604 = vld [vmem:[%s10 + $0x28] sm:$0xf]
        %v1605 = vld [vmem:[%s10 + $0x2c] sm:$0xf]
        %v1606 = vld [vmem:[%s10 + $0x30] sm:$0xf]
        %v1607 = vld [vmem:[%s10 + $0x34] sm:$0xf]
        %v1608 = vld [vmem:[%s10 + $0x38] sm:$0xf]
        %v1609 = vld [vmem:[%s10 + $0x3c] sm:$0xf]
        %v1610 = vld [vmem:[%s10 + $0x40] sm:$0xf]
        %v1611 = vld [vmem:[%s10 + $0x44] sm:$0xf]
        %v1612 = vld [vmem:[%s10 + $0x48] sm:$0xf]
        %v1613 = vld [vmem:[%s10 + $0x4c] sm:$0xf]
        %v1614 = vld [vmem:[%s10 + $0x50] sm:$0xf]
        %v1615 = vld [vmem:[%s10 + $0x54] sm:$0xf]
        %v1616 = vld [vmem:[%s10 + $0x58] sm:$0xf]
        %v1617 = vld [vmem:[%s10 + $0x5c] sm:$0xf]
        %v1618 = vld [vmem:[%s10 + $0x60] sm:$0xf]
        %v1619 = vld [vmem:[%s10 + $0x64] sm:$0xf]
        %v1620 = vld [vmem:[%s10 + $0x68] sm:$0xf]
        %v1621 = vld [vmem:[%s10 + $0x6c] sm:$0xf]
        %v1622 = vld [vmem:[%s10 + $0x70] sm:$0xf]
        %v1623 = vld [vmem:[%s10 + $0x74] sm:$0xf]
        %v1624 = vld [vmem:[%s10 + $0x78] sm:$0xf]
        %v1625 = vld [vmem:[%s10 + $0x7c] sm:$0xf]
        %v1626 = vld [vmem:[%s10 + $0x80] sm:$0xf]
        %v1627 = vld [vmem:[%s10 + $0x84] sm:$0xf]
        %v1628 = vld [vmem:[%s10 + $0x88] sm:$0xf]
        %v1629 = vld [vmem:[%s10 + $0x8c] sm:$0xf]
        %v1630 = vld [vmem:[%s10 + $0x90] sm:$0xf]
        %v1631 = vld [vmem:[%s10 + $0x94] sm:$0xf]
        %v1632 = vld [vmem:[%s10 + $0x98] sm:$0xf]
        %v1633 = vld [vmem:[%s10 + $0x9c] sm:$0xf]
        %v1634 = vld [vmem:[%s10 + $0xa0] sm:$0xf]
        %v1635 = vld [vmem:[%s10 + $0xa4] sm:$0xf]
        %v1636 = vld [vmem:[%s10 + $0xa8] sm:$0xf]
        %v1637 = vld [vmem:[%s10 + $0xac] sm:$0xf]
        %v1638 = vld [vmem:[%s10 + $0xb0] sm:$0xf]
        %v1639 = vld [vmem:[%s10 + $0xb4] sm:$0xf]
        %v1640 = vld [vmem:[%s10 + $0xb8] sm:$0xf]
        %v1641 = vld [vmem:[%s10 + $0xbc] sm:$0xf]
        %v1642 = vld [vmem:[%s10 + $0xc0] sm:$0xf]
        %v1643 = vld [vmem:[%s10 + $0xc4] sm:$0xf]
        %v1644 = vld [vmem:[%s10 + $0xc8] sm:$0xf]
        %v1645 = vld [vmem:[%s10 + $0xcc] sm:$0xf]
        %v1646 = vld [vmem:[%s10 + $0xd0] sm:$0xf]
        %v1647 = vld [vmem:[%s10 + $0xd4] sm:$0xf]
        %v1648 = vld [vmem:[%s10 + $0xd8] sm:$0xf]
        %v1649 = vld [vmem:[%s10 + $0xdc] sm:$0xf]
        %v1650 = vld [vmem:[%s10 + $0xe0] sm:$0xf]
        %v1651 = vld [vmem:[%s10 + $0xe4] sm:$0xf]
        %v1652 = vld [vmem:[%s10 + $0xe8] sm:$0xf]
        %v1653 = vld [vmem:[%s10 + $0xec] sm:$0xf]
        %v1654 = vld [vmem:[%s10 + $0xf0] sm:$0xf]
        %v1655 = vld [vmem:[%s10 + $0xf4] sm:$0xf]
        %v1656 = vld [vmem:[%s10 + $0xf8] sm:$0xf]
        %v1657 = vld [vmem:[%s10 + $0xfc] sm:$0xf]
        %v1658 = vld [vmem:[%s10 + $0x100] sm:$0xf]
        %v1659 = vld [vmem:[%s10 + $0x104] sm:$0xf]
        %v1660 = vld [vmem:[%s10 + $0x108] sm:$0xf]
        %v1661 = vld [vmem:[%s10 + $0x10c] sm:$0xf]
        %v1662 = vld [vmem:[%s10 + $0x110] sm:$0xf]
        %v1663 = vld [vmem:[%s10 + $0x114] sm:$0xf]
        %v1664 = vld [vmem:[%s10 + $0x118] sm:$0xf]
        %v1665 = vld [vmem:[%s10 + $0x11c] sm:$0xf]
        %v1666 = vld [vmem:[%s10 + $0x120] sm:$0xf]
        %v1667 = vld [vmem:[%s10 + $0x124] sm:$0xf]
        %v1668 = vld [vmem:[%s10 + $0x128] sm:$0xf]
        %v1669 = vld [vmem:[%s10 + $0x12c] sm:$0xf]
        %v1670 = vld [vmem:[%s10 + $0x130] sm:$0xf]
        %v1671 = vld [vmem:[%s10 + $0x134] sm:$0xf]
        %v1672 = vld [vmem:[%s10 + $0x138] sm:$0xf]
        %v1673 = vld [vmem:[%s10 + $0x13c] sm:$0xf]
        %v1674 = vld [vmem:[%s10 + $0x140] sm:$0xf]
        %v1675 = vld [vmem:[%s10 + $0x144] sm:$0xf]
        %v1676 = vld [vmem:[%s10 + $0x148] sm:$0xf]
        %v1677 = vld [vmem:[%s10 + $0x14c] sm:$0xf]
        %v1678 = vld [vmem:[%s10 + $0x150] sm:$0xf]
        %v1679 = vld [vmem:[%s10 + $0x154] sm:$0xf]
        %v1680 = vld [vmem:[%s10 + $0x158] sm:$0xf]
        %v1681 = vld [vmem:[%s10 + $0x15c] sm:$0xf]
        %v1682 = vld [vmem:[%s10 + $0x160] sm:$0xf]
        %v1683 = vld [vmem:[%s10 + $0x164] sm:$0xf]
        %v1684 = vld [vmem:[%s10 + $0x168] sm:$0xf]
        %v1685 = vld [vmem:[%s10 + $0x16c] sm:$0xf]
        %v1686 = vld [vmem:[%s10 + $0x170] sm:$0xf]
        %v1687 = vld [vmem:[%s10 + $0x174] sm:$0xf]
        %v1688 = vld [vmem:[%s10 + $0x178] sm:$0xf]
        %v1689 = vld [vmem:[%s10 + $0x17c] sm:$0xf]
        %v1690 = vld [vmem:[%s10 + $0x180] sm:$0xf]
        %v1691 = vld [vmem:[%s10 + $0x184] sm:$0xf]
        %v1692 = vld [vmem:[%s10 + $0x188] sm:$0xf]
        %v1693 = vld [vmem:[%s10 + $0x18c] sm:$0xf]
        %v1694 = vld [vmem:[%s10 + $0x190] sm:$0xf]
        %v1695 = vld [vmem:[%s10 + $0x194] sm:$0xf]
        %v1696 = vld [vmem:[%s10 + $0x198] sm:$0xf]
        %v1697 = vld [vmem:[%s10 + $0x19c] sm:$0xf]
        %v1698 = vld [vmem:[%s10 + $0x1a0] sm:$0xf]
        %v1699 = vld [vmem:[%s10 + $0x1a4] sm:$0xf]
        %v1700 = vld [vmem:[%s10 + $0x1a8] sm:$0xf]
        %v1701 = vld [vmem:[%s10 + $0x1ac] sm:$0xf]
        %v1702 = vld [vmem:[%s10 + $0x1b0] sm:$0xf]
        %v1703 = vld [vmem:[%s10 + $0x1b4] sm:$0xf]
        %v1704 = vld [vmem:[%s10 + $0x1b8] sm:$0xf]
        %v1705 = vld [vmem:[%s10 + $0x1bc] sm:$0xf]
        %v1706 = vld [vmem:[%s10 + $0x1c0] sm:$0xf]
        %v1707 = vld [vmem:[%s10 + $0x1c4] sm:$0xf]
        %v1708 = vld [vmem:[%s10 + $0x1c8] sm:$0xf]
        %v1709 = vld [vmem:[%s10 + $0x1cc] sm:$0xf]
        %v1710 = vld [vmem:[%s10 + $0x1d0] sm:$0xf]
        %v1711 = vld [vmem:[%s10 + $0x1d4] sm:$0xf]
        %v1712 = vld [vmem:[%s10 + $0x1d8] sm:$0xf]
        %v1713 = vld [vmem:[%s10 + $0x1dc] sm:$0xf]
        %v1714 = vld [vmem:[%s10 + $0x1e0] sm:$0xf]
        %v1715 = vld [vmem:[%s10 + $0x1e4] sm:$0xf]
        %v1716 = vld [vmem:[%s10 + $0x1e8] sm:$0xf]
        %v1717 = vld [vmem:[%s10 + $0x1ec] sm:$0xf]
        %v1718 = vld [vmem:[%s10 + $0x1f0] sm:$0xf]
        %v1719 = vld [vmem:[%s10 + $0x1f4] sm:$0xf]
        %v1720 = vld [vmem:[%s10 + $0x1f8] sm:$0xf]
        %v1721 = vld [vmem:[%s10 + $0x1fc] sm:$0xf]
        %v1722 = vld [vmem:[%s10 + $0x200] sm:$0xf]
        %v1723 = vld [vmem:[%s10 + $0x204] sm:$0xf]
        %v1724 = vld [vmem:[%s10 + $0x208] sm:$0xf]
        %v1725 = vld [vmem:[%s10 + $0x20c] sm:$0xf]
        %v1726 = vld [vmem:[%s10 + $0x210] sm:$0xf]
        %v1727 = vld [vmem:[%s10 + $0x214] sm:$0xf]
        %v1728 = vld [vmem:[%s10 + $0x218] sm:$0xf]
        %v1729 = vld [vmem:[%s10 + $0x21c] sm:$0xf]
        %v1730 = vld [vmem:[%s10 + $0x220] sm:$0xf]
        %v1731 = vld [vmem:[%s10 + $0x224] sm:$0xf]
        %v1732 = vld [vmem:[%s10 + $0x228] sm:$0xf]
        %v1733 = vld [vmem:[%s10 + $0x22c] sm:$0xf]
        %v1734 = vld [vmem:[%s10 + $0x230] sm:$0xf]
        %v1735 = vld [vmem:[%s10 + $0x234] sm:$0xf]
        %v1736 = vld [vmem:[%s10 + $0x238] sm:$0xf]
        %v1737 = vld [vmem:[%s10 + $0x23c] sm:$0xf]
        %v1738 = vld [vmem:[%s11] sm:$0x1]
        %v1739 = vld [vmem:[%s12] sm:$0xf]
        %v1740 = vld [vmem:[%s12 + $0x4] sm:$0xf]
        %v1741 = vld [vmem:[%s12 + $0x8] sm:$0xf]
        %v1742 = vld [vmem:[%s12 + $0xc] sm:$0xf]
        %v1743 = vld [vmem:[%s12 + $0x10] sm:$0xf]
        %v1744 = vld [vmem:[%s12 + $0x14] sm:$0xf]
        %v1745 = vld [vmem:[%s12 + $0x18] sm:$0xf]
        %v1746 = vld [vmem:[%s12 + $0x1c] sm:$0xf]
        %v1747 = vld [vmem:[%s12 + $0x20] sm:$0xf]
        %v1748 = vld [vmem:[%s12 + $0x24] sm:$0xf]
        %v1749 = vld [vmem:[%s12 + $0x28] sm:$0xf]
        %v1750 = vld [vmem:[%s12 + $0x2c] sm:$0xf]
        %v1751 = vld [vmem:[%s12 + $0x30] sm:$0xf]
        %v1752 = vld [vmem:[%s12 + $0x34] sm:$0xf]
        %v1753 = vld [vmem:[%s12 + $0x38] sm:$0xf]
        %v1754 = vld [vmem:[%s12 + $0x3c] sm:$0xf]
        %v1755 = vld [vmem:[%s13] sm:$0x1]
        %v1756 = vld [vmem:[%s14] sm:$0xf]
        %v1757 = vld [vmem:[%s14 + $0x4] sm:$0xf]
        %v1758 = vld [vmem:[%s14 + $0x8] sm:$0xf]
        %v1759 = vld [vmem:[%s14 + $0xc] sm:$0xf]
        %v1760 = vld [vmem:[%s14 + $0x10] sm:$0xf]
        %v1761 = vld [vmem:[%s14 + $0x14] sm:$0xf]
        %v1762 = vld [vmem:[%s14 + $0x18] sm:$0xf]
        %v1763 = vld [vmem:[%s14 + $0x1c] sm:$0xf]
        %v1764 = vld [vmem:[%s14 + $0x20] sm:$0xf]
        %v1765 = vld [vmem:[%s14 + $0x24] sm:$0xf]
        %v1766 = vld [vmem:[%s14 + $0x28] sm:$0xf]
        %v1767 = vld [vmem:[%s14 + $0x2c] sm:$0xf]
        %v1768 = vld [vmem:[%s14 + $0x30] sm:$0xf]
        %v1769 = vld [vmem:[%s14 + $0x34] sm:$0xf]
        %v1770 = vld [vmem:[%s14 + $0x38] sm:$0xf]
        %v1771 = vld [vmem:[%s14 + $0x3c] sm:$0xf]
        %v1772 = vld [vmem:[%s15] sm:$0x1]
        %v1773 = vld [vmem:[%s16] sm:$0xf]
        %v1774 = vld [vmem:[%s16 + $0x4] sm:$0xf]
        %v1775 = vld [vmem:[%s16 + $0x8] sm:$0xf]
        %v1776 = vld [vmem:[%s16 + $0xc] sm:$0xf]
        %v1777 = vld [vmem:[%s16 + $0x10] sm:$0xf]
        %v1778 = vld [vmem:[%s16 + $0x14] sm:$0xf]
        %v1779 = vld [vmem:[%s16 + $0x18] sm:$0xf]
        %v1780 = vld [vmem:[%s16 + $0x1c] sm:$0xf]
        %v1781 = vld [vmem:[%s16 + $0x20] sm:$0xf]
        %v1782 = vld [vmem:[%s16 + $0x24] sm:$0xf]
        %v1783 = vld [vmem:[%s16 + $0x28] sm:$0xf]
        %v1784 = vld [vmem:[%s16 + $0x2c] sm:$0xf]
        %v1785 = vld [vmem:[%s16 + $0x30] sm:$0xf]
        %v1786 = vld [vmem:[%s16 + $0x34] sm:$0xf]
        %v1787 = vld [vmem:[%s16 + $0x38] sm:$0xf]
        %v1788 = vld [vmem:[%s16 + $0x3c] sm:$0xf]
        %v1789 = vld [vmem:[%s17] sm:$0x1]
        %v1790 = vpack.c.bf16 %v1165, %v1164
        %v1791 = vpack.c.bf16 %v1167, %v1166
        %v1792 = vpack.c.bf16 %v1169, %v1168
        %v1793 = vpack.c.bf16 %v1171, %v1170
        %v1794 = vpack.c.bf16 %v1173, %v1172
        %v1795 = vpack.c.bf16 %v1175, %v1174
        %v1796 = vpack.c.bf16 %v1177, %v1176
        %v1797 = vpack.c.bf16 %v1179, %v1178
        %v1798 = vpack.c.bf16 %v1181, %v1180
        %v1799 = vpack.c.bf16 %v1183, %v1182
        %v1800 = vpack.c.bf16 %v1185, %v1184
        %v1801 = vpack.c.bf16 %v1187, %v1186
        %v1802 = vpack.c.bf16 %v1189, %v1188
        %v1803 = vpack.c.bf16 %v1191, %v1190
        %v1804 = vpack.c.bf16 %v1193, %v1192
        %v1805 = vpack.c.bf16 %v1195, %v1194
        %v1807 = vlaneseq
        %v1808 = vshrl.u32 %v1807, 7
        %v1809 = vsub.s32 0, %v1808
        %v1810 = vrot.slane %v1593, %v1809
        %v1828 = vunpack.c.l.b16 %v1577
        %v1829 = vunpack.c.l.b16 %v1578
        %v1830 = vunpack.c.l.b16 %v1579
        %v1831 = vunpack.c.l.b16 %v1580
        %v1832 = vunpack.c.l.b16 %v1581
        %v1833 = vunpack.c.l.b16 %v1582
        %v1834 = vunpack.c.l.b16 %v1583
        %v1835 = vunpack.c.l.b16 %v1584
        %v1836 = vunpack.c.l.b16 %v1585
        %v1837 = vunpack.c.l.b16 %v1586
        %v1838 = vunpack.c.l.b16 %v1587
        %v1839 = vunpack.c.l.b16 %v1588
        %v1840 = vunpack.c.l.b16 %v1589
        %v1841 = vunpack.c.l.b16 %v1590
        %v1842 = vunpack.c.l.b16 %v1591
        %v1843 = vunpack.c.l.b16 %v1592
        %v1844 = vpack.c.b16 %v1829, %v1828
        %v1845 = vpack.c.b16 %v1831, %v1830
        %v1846 = vpack.c.b16 %v1833, %v1832
        %v1847 = vpack.c.b16 %v1835, %v1834
        %v1848 = vpack.c.b16 %v1837, %v1836
        %v1849 = vpack.c.b16 %v1839, %v1838
        %v1850 = vpack.c.b16 %v1841, %v1840
        %v1851 = vpack.c.b16 %v1843, %v1842
        %1860 = vmatprep.subr.bf16.mxu0 0
        %1861 = vmatpush1.bf16.msra.mxu0 %v1844
        %1862 = vmatprep.subr.bf16.mxu0 0
        %1863 = vmatpush1.bf16.msra.mxu0 %v1845
        %1864 = vmatprep.subr.bf16.mxu0 0
        %1865 = vmatpush1.bf16.msra.mxu0 %v1846
        %1866 = vmatprep.subr.bf16.mxu0 0
        %1867 = vmatpush1.bf16.msra.mxu0 %v1847
        %1868 = vmatprep.subr.bf16.mxu0 0
        %1869 = vmatpush1.bf16.msra.mxu0 %v1848
        %1870 = vmatprep.subr.bf16.mxu0 0
        %1871 = vmatpush1.bf16.msra.mxu0 %v1849
        %1872 = vmatprep.subr.bf16.mxu0 0
        %1873 = vmatpush1.bf16.msra.mxu0 %v1850
        %1874 = vmatprep.subr.bf16.mxu0 0
        %1875 = vmatpush1.bf16.msra.mxu0 %v1851
        %1876 = vmatprep.subr.bf16.mxu0 0
        %1877 = vmatpush1.bf16.msra.mxu0 0
        %1878 = vmatprep.subr.bf16.mxu0 0
        %1879 = vmatpush1.bf16.msra.mxu0 0
        %1880 = vmatprep.subr.bf16.mxu0 0
        %1881 = vmatpush1.bf16.msra.mxu0 0
        %1882 = vmatprep.subr.bf16.mxu0 0
        %1883 = vmatpush1.bf16.msra.mxu0 0
        %1884 = vmatprep.subr.bf16.mxu0 0
        %1885 = vmatpush1.bf16.msra.mxu0 0
        %1886 = vmatprep.subr.bf16.mxu0 0
        %1887 = vmatpush1.bf16.msra.mxu0 0
        %1888 = vmatprep.subr.bf16.mxu0 0
        %1889 = vmatpush1.bf16.msra.mxu0 0
        %1890 = vmatprep.subr.bf16.mxu0 0
        %1891 = vmatpush1.bf16.msra.mxu0 0
        %1892 = vmatprep.mubr.bf16.mxu0 0
        %1893 = vmatmul.mubr.bf16.gmra.mrb[0].mxu0 %v1790
        %v1894 = vpop.f32.mrb[0].mxu0
        %v1895 = vadd.f32 %v1810, %v1894
        %v1896 = vpop.f32.mrb[0].mxu0
        %v1897 = vpop.f32.mrb[0].mxu0
        %v1898 = vadd.f32 %v1810, %v1897
        %v1899 = vpop.f32.mrb[0].mxu0
        %1900 = vmatprep.mubr.bf16.mxu0 0
        %1901 = vmatmul.mubr.bf16.gmra.mrb[0].mxu0 %v1791
        %v1902 = vpop.f32.mrb[0].mxu0
        %v1903 = vadd.f32 %v1810, %v1902
        %v1904 = vpop.f32.mrb[0].mxu0
        %v1905 = vpop.f32.mrb[0].mxu0
        %v1906 = vadd.f32 %v1810, %v1905
        %v1907 = vpop.f32.mrb[0].mxu0
        %1908 = vmatprep.mubr.bf16.mxu0 0
        %1909 = vmatmul.mubr.bf16.gmra.mrb[0].mxu0 %v1792
        %v1910 = vpop.f32.mrb[0].mxu0
        %v1911 = vadd.f32 %v1810, %v1910
        %v1912 = vpop.f32.mrb[0].mxu0
        %v1913 = vpop.f32.mrb[0].mxu0
        %v1914 = vadd.f32 %v1810, %v1913
        %v1915 = vpop.f32.mrb[0].mxu0
        %1916 = vmatprep.mubr.bf16.mxu0 0
        %1917 = vmatmul.mubr.bf16.gmra.mrb[0].mxu0 %v1793
        %v1918 = vpop.f32.mrb[0].mxu0
        %v1919 = vadd.f32 %v1810, %v1918
        %v1920 = vpop.f32.mrb[0].mxu0
        %v1921 = vpop.f32.mrb[0].mxu0
        %v1922 = vadd.f32 %v1810, %v1921
        %v1923 = vpop.f32.mrb[0].mxu0
        %1924 = vmatprep.mubr.bf16.mxu0 0
        %1925 = vmatmul.mubr.bf16.gmra.mrb[0].mxu0 %v1794
        %v1926 = vpop.f32.mrb[0].mxu0
        %v1927 = vadd.f32 %v1810, %v1926
        %v1928 = vpop.f32.mrb[0].mxu0
        %v1929 = vpop.f32.mrb[0].mxu0
        %v1930 = vadd.f32 %v1810, %v1929
        %v1931 = vpop.f32.mrb[0].mxu0
        %1932 = vmatprep.mubr.bf16.mxu0 0
        %1933 = vmatmul.mubr.bf16.gmra.mrb[0].mxu0 %v1795
        %v1934 = vpop.f32.mrb[0].mxu0
        %v1935 = vadd.f32 %v1810, %v1934
        %v1936 = vpop.f32.mrb[0].mxu0
        %v1937 = vpop.f32.mrb[0].mxu0
        %v1938 = vadd.f32 %v1810, %v1937
        %v1939 = vpop.f32.mrb[0].mxu0
        %1940 = vmatprep.mubr.bf16.mxu0 0
        %1941 = vmatmul.mubr.bf16.gmra.mrb[0].mxu0 %v1796
        %v1942 = vpop.f32.mrb[0].mxu0
        %v1943 = vadd.f32 %v1810, %v1942
        %v1944 = vpop.f32.mrb[0].mxu0
        %v1945 = vpop.f32.mrb[0].mxu0
        %v1946 = vadd.f32 %v1810, %v1945
        %v1947 = vpop.f32.mrb[0].mxu0
        %1948 = vmatprep.mubr.bf16.mxu0 0
        %1949 = vmatmul.mubr.bf16.gmra.mrb[0].mxu0 %v1797
        %v1950 = vpop.f32.mrb[0].mxu0
        %v1951 = vadd.f32 %v1810, %v1950
        %v1952 = vpop.f32.mrb[0].mxu0
        %v1953 = vpop.f32.mrb[0].mxu0
        %v1954 = vadd.f32 %v1810, %v1953
        %v1955 = vpop.f32.mrb[0].mxu0
        %1956 = vmatprep.mubr.bf16.mxu0 0
        %1957 = vmatmul.mubr.bf16.gmra.mrb[0].mxu0 %v1798
        %v1958 = vpop.f32.mrb[0].mxu0
        %v1959 = vadd.f32 %v1810, %v1958
        %v1960 = vpop.f32.mrb[0].mxu0
        %v1961 = vpop.f32.mrb[0].mxu0
        %v1962 = vadd.f32 %v1810, %v1961
        %v1963 = vpop.f32.mrb[0].mxu0
        %1964 = vmatprep.mubr.bf16.mxu0 0
        %1965 = vmatmul.mubr.bf16.gmra.mrb[0].mxu0 %v1799
        %v1966 = vpop.f32.mrb[0].mxu0
        %v1967 = vadd.f32 %v1810, %v1966
        %v1968 = vpop.f32.mrb[0].mxu0
        %v1969 = vpop.f32.mrb[0].mxu0
        %v1970 = vadd.f32 %v1810, %v1969
        %v1971 = vpop.f32.mrb[0].mxu0
        %1972 = vmatprep.mubr.bf16.mxu0 0
        %1973 = vmatmul.mubr.bf16.gmra.mrb[0].mxu0 %v1800
        %v1974 = vpop.f32.mrb[0].mxu0
        %v1975 = vadd.f32 %v1810, %v1974
        %v1976 = vpop.f32.mrb[0].mxu0
        %v1977 = vpop.f32.mrb[0].mxu0
        %v1978 = vadd.f32 %v1810, %v1977
        %v1979 = vpop.f32.mrb[0].mxu0
        %1980 = vmatprep.mubr.bf16.mxu0 0
        %1981 = vmatmul.mubr.bf16.gmra.mrb[0].mxu0 %v1801
        %v1982 = vpop.f32.mrb[0].mxu0
        %v1983 = vadd.f32 %v1810, %v1982
        %v1984 = vpop.f32.mrb[0].mxu0
        %v1985 = vpop.f32.mrb[0].mxu0
        %v1986 = vadd.f32 %v1810, %v1985
        %v1987 = vpop.f32.mrb[0].mxu0
        %1988 = vmatprep.mubr.bf16.mxu0 0
        %1989 = vmatmul.mubr.bf16.gmra.mrb[0].mxu0 %v1802
        %v1990 = vpop.f32.mrb[0].mxu0
        %v1991 = vadd.f32 %v1810, %v1990
        %v1992 = vpop.f32.mrb[0].mxu0
        %v1993 = vpop.f32.mrb[0].mxu0
        %v1994 = vadd.f32 %v1810, %v1993
        %v1995 = vpop.f32.mrb[0].mxu0
        %1996 = vmatprep.mubr.bf16.mxu0 0
        %1997 = vmatmul.mubr.bf16.gmra.mrb[0].mxu0 %v1803
        %v1998 = vpop.f32.mrb[0].mxu0
        %v1999 = vadd.f32 %v1810, %v1998
        %v2000 = vpop.f32.mrb[0].mxu0
        %v2001 = vpop.f32.mrb[0].mxu0
        %v2002 = vadd.f32 %v1810, %v2001
        %v2003 = vpop.f32.mrb[0].mxu0
        %2004 = vmatprep.mubr.bf16.mxu0 0
        %2005 = vmatmul.mubr.bf16.gmra.mrb[0].mxu0 %v1804
        %v2006 = vpop.f32.mrb[0].mxu0
        %v2007 = vadd.f32 %v1810, %v2006
        %v2008 = vpop.f32.mrb[0].mxu0
        %v2009 = vpop.f32.mrb[0].mxu0
        %v2010 = vadd.f32 %v1810, %v2009
        %v2011 = vpop.f32.mrb[0].mxu0
        %2012 = vmatprep.mubr.bf16.mxu0 0
        %2013 = vmatmul.mubr.bf16.gmra.mrb[0].mxu0 %v1805
        %v2014 = vpop.f32.mrb[0].mxu0
        %v2015 = vadd.f32 %v1810, %v2014
        %v2016 = vpop.f32.mrb[0].mxu0
        %v2017 = vpop.f32.mrb[0].mxu0
        %v2018 = vadd.f32 %v1810, %v2017
        %v2019 = vpop.f32.mrb[0].mxu0
        %2020 = vdwg.mxu0
        %v2021 = vsub.f32 0.0, %v1895
        %v2022 = vsub.f32 0.0, %v1898
        %v2023 = vsub.f32 0.0, %v1903
        %v2024 = vsub.f32 0.0, %v1906
        %v2025 = vsub.f32 0.0, %v1911
        %v2026 = vsub.f32 0.0, %v1914
        %v2027 = vsub.f32 0.0, %v1919
        %v2028 = vsub.f32 0.0, %v1922
        %v2029 = vsub.f32 0.0, %v1927
        %v2030 = vsub.f32 0.0, %v1930
        %v2031 = vsub.f32 0.0, %v1935
        %v2032 = vsub.f32 0.0, %v1938
        %v2033 = vsub.f32 0.0, %v1943
        %v2034 = vsub.f32 0.0, %v1946
        %v2035 = vsub.f32 0.0, %v1951
        %v2036 = vsub.f32 0.0, %v1954
        %v2037 = vsub.f32 0.0, %v1959
        %v2038 = vsub.f32 0.0, %v1962
        %v2039 = vsub.f32 0.0, %v1967
        %v2040 = vsub.f32 0.0, %v1970
        %v2041 = vsub.f32 0.0, %v1975
        %v2042 = vsub.f32 0.0, %v1978
        %v2043 = vsub.f32 0.0, %v1983
        %v2044 = vsub.f32 0.0, %v1986
        %v2045 = vsub.f32 0.0, %v1991
        %v2046 = vsub.f32 0.0, %v1994
        %v2047 = vsub.f32 0.0, %v1999
        %v2048 = vsub.f32 0.0, %v2002
        %v2049 = vsub.f32 0.0, %v2007
        %v2050 = vsub.f32 0.0, %v2010
        %v2051 = vsub.f32 0.0, %v2015
        %v2052 = vsub.f32 0.0, %v2018
        %v2053 = vmul.f32 %v2021, 1.442695
        %v2054 = vpow.pop %v2053
        %v2055 = vmul.f32 %v2022, 1.442695
        %v2056 = vpow.pop %v2055
        %v2057 = vmul.f32 %v2023, 1.442695
        %v2058 = vpow.pop %v2057
        %v2059 = vmul.f32 %v2024, 1.442695
        %v2060 = vpow.pop %v2059
        %v2061 = vmul.f32 %v2025, 1.442695
        %v2062 = vpow.pop %v2061
        %v2063 = vmul.f32 %v2026, 1.442695
        %v2064 = vpow.pop %v2063
        %v2065 = vmul.f32 %v2027, 1.442695
        %v2066 = vpow.pop %v2065
        %v2067 = vmul.f32 %v2028, 1.442695
        %v2068 = vpow.pop %v2067
        %v2069 = vmul.f32 %v2029, 1.442695
        %v2070 = vpow.pop %v2069
        %v2071 = vmul.f32 %v2030, 1.442695
        %v2072 = vpow.pop %v2071
        %v2073 = vmul.f32 %v2031, 1.442695
        %v2074 = vpow.pop %v2073
        %v2075 = vmul.f32 %v2032, 1.442695
        %v2076 = vpow.pop %v2075
        %v2077 = vmul.f32 %v2033, 1.442695
        %v2078 = vpow.pop %v2077
        %v2079 = vmul.f32 %v2034, 1.442695
        %v2080 = vpow.pop %v2079
        %v2081 = vmul.f32 %v2035, 1.442695
        %v2082 = vpow.pop %v2081
        %v2083 = vmul.f32 %v2036, 1.442695
        %v2084 = vpow.pop %v2083
        %v2085 = vmul.f32 %v2037, 1.442695
        %v2086 = vpow.pop %v2085
        %v2087 = vmul.f32 %v2038, 1.442695
        %v2088 = vpow.pop %v2087
        %v2089 = vmul.f32 %v2039, 1.442695
        %v2090 = vpow.pop %v2089
        %v2091 = vmul.f32 %v2040, 1.442695
        %v2092 = vpow.pop %v2091
        %v2093 = vmul.f32 %v2041, 1.442695
        %v2094 = vpow.pop %v2093
        %v2095 = vmul.f32 %v2042, 1.442695
        %v2096 = vpow.pop %v2095
        %v2097 = vmul.f32 %v2043, 1.442695
        %v2098 = vpow.pop %v2097
        %v2099 = vmul.f32 %v2044, 1.442695
        %v2100 = vpow.pop %v2099
        %v2101 = vmul.f32 %v2045, 1.442695
        %v2102 = vpow.pop %v2101
        %v2103 = vmul.f32 %v2046, 1.442695
        %v2104 = vpow.pop %v2103
        %v2105 = vmul.f32 %v2047, 1.442695
        %v2106 = vpow.pop %v2105
        %v2107 = vmul.f32 %v2048, 1.442695
        %v2108 = vpow.pop %v2107
        %v2109 = vmul.f32 %v2049, 1.442695
        %v2110 = vpow.pop %v2109
        %v2111 = vmul.f32 %v2050, 1.442695
        %v2112 = vpow.pop %v2111
        %v2113 = vmul.f32 %v2051, 1.442695
        %v2114 = vpow.pop %v2113
        %v2115 = vmul.f32 %v2052, 1.442695
        %v2116 = vpow.pop %v2115
        %v2117 = vadd.f32 %v2054, 1.0
        %v2118 = vadd.f32 %v2056, 1.0
        %v2119 = vadd.f32 %v2058, 1.0
        %v2120 = vadd.f32 %v2060, 1.0
        %v2121 = vadd.f32 %v2062, 1.0
        %v2122 = vadd.f32 %v2064, 1.0
        %v2123 = vadd.f32 %v2066, 1.0
        %v2124 = vadd.f32 %v2068, 1.0
        %v2125 = vadd.f32 %v2070, 1.0
        %v2126 = vadd.f32 %v2072, 1.0
        %v2127 = vadd.f32 %v2074, 1.0
        %v2128 = vadd.f32 %v2076, 1.0
        %v2129 = vadd.f32 %v2078, 1.0
        %v2130 = vadd.f32 %v2080, 1.0
        %v2131 = vadd.f32 %v2082, 1.0
        %v2132 = vadd.f32 %v2084, 1.0
        %v2133 = vadd.f32 %v2086, 1.0
        %v2134 = vadd.f32 %v2088, 1.0
        %v2135 = vadd.f32 %v2090, 1.0
        %v2136 = vadd.f32 %v2092, 1.0
        %v2137 = vadd.f32 %v2094, 1.0
        %v2138 = vadd.f32 %v2096, 1.0
        %v2139 = vadd.f32 %v2098, 1.0
        %v2140 = vadd.f32 %v2100, 1.0
        %v2141 = vadd.f32 %v2102, 1.0
        %v2142 = vadd.f32 %v2104, 1.0
        %v2143 = vadd.f32 %v2106, 1.0
        %v2144 = vadd.f32 %v2108, 1.0
        %v2145 = vadd.f32 %v2110, 1.0
        %v2146 = vadd.f32 %v2112, 1.0
        %v2147 = vadd.f32 %v2114, 1.0
        %v2148 = vadd.f32 %v2116, 1.0
        %v2149 = vrcp.pop %v2117
        %v2150 = vrcp.pop %v2118
        %v2151 = vrcp.pop %v2119
        %v2152 = vrcp.pop %v2120
        %v2153 = vrcp.pop %v2121
        %v2154 = vrcp.pop %v2122
        %v2155 = vrcp.pop %v2123
        %v2156 = vrcp.pop %v2124
        %v2157 = vrcp.pop %v2125
        %v2158 = vrcp.pop %v2126
        %v2159 = vrcp.pop %v2127
        %v2160 = vrcp.pop %v2128
        %v2161 = vrcp.pop %v2129
        %v2162 = vrcp.pop %v2130
        %v2163 = vrcp.pop %v2131
        %v2164 = vrcp.pop %v2132
        %v2165 = vrcp.pop %v2133
        %v2166 = vrcp.pop %v2134
        %v2167 = vrcp.pop %v2135
        %v2168 = vrcp.pop %v2136
        %v2169 = vrcp.pop %v2137
        %v2170 = vrcp.pop %v2138
        %v2171 = vrcp.pop %v2139
        %v2172 = vrcp.pop %v2140
        %v2173 = vrcp.pop %v2141
        %v2174 = vrcp.pop %v2142
        %v2175 = vrcp.pop %v2143
        %v2176 = vrcp.pop %v2144
        %v2177 = vrcp.pop %v2145
        %v2178 = vrcp.pop %v2146
        %v2179 = vrcp.pop %v2147
        %v2180 = vrcp.pop %v2148
        %v2181 = vmul.f32 %v1895, %v2149
        %v2182 = vmul.f32 %v1898, %v2150
        %v2183 = vmul.f32 %v1903, %v2151
        %v2184 = vmul.f32 %v1906, %v2152
        %v2185 = vmul.f32 %v1911, %v2153
        %v2186 = vmul.f32 %v1914, %v2154
        %v2187 = vmul.f32 %v1919, %v2155
        %v2188 = vmul.f32 %v1922, %v2156
        %v2189 = vmul.f32 %v1927, %v2157
        %v2190 = vmul.f32 %v1930, %v2158
        %v2191 = vmul.f32 %v1935, %v2159
        %v2192 = vmul.f32 %v1938, %v2160
        %v2193 = vmul.f32 %v1943, %v2161
        %v2194 = vmul.f32 %v1946, %v2162
        %v2195 = vmul.f32 %v1951, %v2163
        %v2196 = vmul.f32 %v1954, %v2164
        %v2197 = vmul.f32 %v1959, %v2165
        %v2198 = vmul.f32 %v1962, %v2166
        %v2199 = vmul.f32 %v1967, %v2167
        %v2200 = vmul.f32 %v1970, %v2168
        %v2201 = vmul.f32 %v1975, %v2169
        %v2202 = vmul.f32 %v1978, %v2170
        %v2203 = vmul.f32 %v1983, %v2171
        %v2204 = vmul.f32 %v1986, %v2172
        %v2205 = vmul.f32 %v1991, %v2173
        %v2206 = vmul.f32 %v1994, %v2174
        %v2207 = vmul.f32 %v1999, %v2175
        %v2208 = vmul.f32 %v2002, %v2176
        %v2209 = vmul.f32 %v2007, %v2177
        %v2210 = vmul.f32 %v2010, %v2178
        %v2211 = vmul.f32 %v2015, %v2179
        %v2212 = vmul.f32 %v2018, %v2180
        %v2213 = vpack.c.bf16 %v2182, %v2181
        %v2214 = vpack.c.bf16 %v2184, %v2183
        %v2215 = vpack.c.bf16 %v2186, %v2185
        %v2216 = vpack.c.bf16 %v2188, %v2187
        %v2217 = vpack.c.bf16 %v2190, %v2189
        %v2218 = vpack.c.bf16 %v2192, %v2191
        %v2219 = vpack.c.bf16 %v2194, %v2193
        %v2220 = vpack.c.bf16 %v2196, %v2195
        %v2221 = vpack.c.bf16 %v2198, %v2197
        %v2222 = vpack.c.bf16 %v2200, %v2199
        %v2223 = vpack.c.bf16 %v2202, %v2201
        %v2224 = vpack.c.bf16 %v2204, %v2203
        %v2225 = vpack.c.bf16 %v2206, %v2205
        %v2226 = vpack.c.bf16 %v2208, %v2207
        %v2227 = vpack.c.bf16 %v2210, %v2209
        %v2228 = vpack.c.bf16 %v2212, %v2211
        %v2245 = vunpack.c.l.b16 %v2213
        %v2246 = vunpack.c.h.b16 %v2213
        %v2247 = vunpack.c.l.b16 %v2214
        %v2248 = vunpack.c.h.b16 %v2214
        %v2249 = vunpack.c.l.b16 %v2215
        %v2250 = vunpack.c.h.b16 %v2215
        %v2251 = vunpack.c.l.b16 %v2216
        %v2252 = vunpack.c.h.b16 %v2216
        %v2253 = vunpack.c.l.b16 %v2217
        %v2254 = vunpack.c.h.b16 %v2217
        %v2255 = vunpack.c.l.b16 %v2218
        %v2256 = vunpack.c.h.b16 %v2218
        %v2257 = vunpack.c.l.b16 %v2219
        %v2258 = vunpack.c.h.b16 %v2219
        %v2259 = vunpack.c.l.b16 %v2220
        %v2260 = vunpack.c.h.b16 %v2220
        %v2261 = vunpack.c.l.b16 %v2221
        %v2262 = vunpack.c.h.b16 %v2221
        %v2263 = vunpack.c.l.b16 %v2222
        %v2264 = vunpack.c.h.b16 %v2222
        %v2265 = vunpack.c.l.b16 %v2223
        %v2266 = vunpack.c.h.b16 %v2223
        %v2267 = vunpack.c.l.b16 %v2224
        %v2268 = vunpack.c.h.b16 %v2224
        %v2269 = vunpack.c.l.b16 %v2225
        %v2270 = vunpack.c.h.b16 %v2225
        %v2271 = vunpack.c.l.b16 %v2226
        %v2272 = vunpack.c.h.b16 %v2226
        %v2273 = vunpack.c.l.b16 %v2227
        %v2274 = vunpack.c.h.b16 %v2227
        %v2275 = vunpack.c.l.b16 %v2228
        %v2276 = vunpack.c.h.b16 %v2228
        %v2277 = vpack.c.b16 %v2245, %v2245
        %v2278 = vpack.c.b16 %v2246, %v2246
        %v2279 = vpack.c.b16 %v2247, %v2247
        %v2280 = vpack.c.b16 %v2248, %v2248
        %v2281 = vpack.c.b16 %v2249, %v2249
        %v2282 = vpack.c.b16 %v2250, %v2250
        %v2283 = vpack.c.b16 %v2251, %v2251
        %v2284 = vpack.c.b16 %v2252, %v2252
        %v2285 = vpack.c.b16 %v2253, %v2253
        %v2286 = vpack.c.b16 %v2254, %v2254
        %v2287 = vpack.c.b16 %v2255, %v2255
        %v2288 = vpack.c.b16 %v2256, %v2256
        %v2289 = vpack.c.b16 %v2257, %v2257
        %v2290 = vpack.c.b16 %v2258, %v2258
        %v2291 = vpack.c.b16 %v2259, %v2259
        %v2292 = vpack.c.b16 %v2260, %v2260
        %v2293 = vpack.c.b16 %v2261, %v2261
        %v2294 = vpack.c.b16 %v2262, %v2262
        %v2295 = vpack.c.b16 %v2263, %v2263
        %v2296 = vpack.c.b16 %v2264, %v2264
        %v2297 = vpack.c.b16 %v2265, %v2265
        %v2298 = vpack.c.b16 %v2266, %v2266
        %v2299 = vpack.c.b16 %v2267, %v2267
        %v2300 = vpack.c.b16 %v2268, %v2268
        %v2301 = vpack.c.b16 %v2269, %v2269
        %v2302 = vpack.c.b16 %v2270, %v2270
        %v2303 = vpack.c.b16 %v2271, %v2271
        %v2304 = vpack.c.b16 %v2272, %v2272
        %v2305 = vpack.c.b16 %v2273, %v2273
        %v2306 = vpack.c.b16 %v2274, %v2274
        %v2307 = vpack.c.b16 %v2275, %v2275
        %v2308 = vpack.c.b16 %v2276, %v2276
        %vm2309 = vsmask.f32 4368
        %vm2310 = vmor %vm583, %vm2309
        %v2312 = vshrl.u32 %v2277, 16
        %v2314 = vrot.slane %v2312, 7
        %v2315 = vshll.u32 %v2277, 16
        %v2317 = vor.u32 %v2314, %v2315
        %v2318 = vrot.slane %v2314, 4
        %v2320 = vshrl.u32 %v2278, 16
        %v2322 = vrot.slane %v2320, 7
        %v2323 = vshll.u32 %v2278, 16
        %v2325 = vor.u32 %v2322, %v2323
        %v2326 = vsel %vm2310, %v2318, %v2325
        %v2327 = vrot.slane %v2322, 4
        %v2329 = vshrl.u32 %v2279, 16
        %v2331 = vrot.slane %v2329, 7
        %v2332 = vshll.u32 %v2279, 16
        %v2334 = vor.u32 %v2331, %v2332
        %v2335 = vrot.slane %v2331, 4
        %v2337 = vshrl.u32 %v2280, 16
        %v2339 = vrot.slane %v2337, 7
        %v2340 = vshll.u32 %v2280, 16
        %v2342 = vor.u32 %v2339, %v2340
        %v2343 = vsel %vm2310, %v2335, %v2342
        %v2344 = vrot.slane %v2339, 4
        %v2346 = vshrl.u32 %v2281, 16
        %v2348 = vrot.slane %v2346, 7
        %v2349 = vshll.u32 %v2281, 16
        %v2351 = vor.u32 %v2348, %v2349
        %v2352 = vrot.slane %v2348, 4
        %v2354 = vshrl.u32 %v2282, 16
        %v2356 = vrot.slane %v2354, 7
        %v2357 = vshll.u32 %v2282, 16
        %v2359 = vor.u32 %v2356, %v2357
        %v2360 = vsel %vm2310, %v2352, %v2359
        %v2361 = vrot.slane %v2356, 4
        %v2363 = vshrl.u32 %v2283, 16
        %v2365 = vrot.slane %v2363, 7
        %v2366 = vshll.u32 %v2283, 16
        %v2368 = vor.u32 %v2365, %v2366
        %v2369 = vrot.slane %v2365, 4
        %v2371 = vshrl.u32 %v2284, 16
        %v2373 = vrot.slane %v2371, 7
        %v2374 = vshll.u32 %v2284, 16
        %v2376 = vor.u32 %v2373, %v2374
        %v2377 = vsel %vm2310, %v2369, %v2376
        %v2378 = vrot.slane %v2373, 4
        %v2380 = vshrl.u32 %v2285, 16
        %v2382 = vrot.slane %v2380, 7
        %v2383 = vshll.u32 %v2285, 16
        %v2385 = vor.u32 %v2382, %v2383
        %v2386 = vrot.slane %v2382, 4
        %v2388 = vshrl.u32 %v2286, 16
        %v2390 = vrot.slane %v2388, 7
        %v2391 = vshll.u32 %v2286, 16
        %v2393 = vor.u32 %v2390, %v2391
        %v2394 = vsel %vm2310, %v2386, %v2393
        %v2395 = vrot.slane %v2390, 4
        %v2397 = vshrl.u32 %v2287, 16
        %v2399 = vrot.slane %v2397, 7
        %v2400 = vshll.u32 %v2287, 16
        %v2402 = vor.u32 %v2399, %v2400
        %v2403 = vrot.slane %v2399, 4
        %v2405 = vshrl.u32 %v2288, 16
        %v2407 = vrot.slane %v2405, 7
        %v2408 = vshll.u32 %v2288, 16
        %v2410 = vor.u32 %v2407, %v2408
        %v2411 = vsel %vm2310, %v2403, %v2410
        %v2412 = vrot.slane %v2407, 4
        %v2414 = vshrl.u32 %v2289, 16
        %v2416 = vrot.slane %v2414, 7
        %v2417 = vshll.u32 %v2289, 16
        %v2419 = vor.u32 %v2416, %v2417
        %v2420 = vrot.slane %v2416, 4
        %v2422 = vshrl.u32 %v2290, 16
        %v2424 = vrot.slane %v2422, 7
        %v2425 = vshll.u32 %v2290, 16
        %v2427 = vor.u32 %v2424, %v2425
        %v2428 = vsel %vm2310, %v2420, %v2427
        %v2429 = vrot.slane %v2424, 4
        %v2431 = vshrl.u32 %v2291, 16
        %v2433 = vrot.slane %v2431, 7
        %v2434 = vshll.u32 %v2291, 16
        %v2436 = vor.u32 %v2433, %v2434
        %v2437 = vrot.slane %v2433, 4
        %v2439 = vshrl.u32 %v2292, 16
        %v2441 = vrot.slane %v2439, 7
        %v2442 = vshll.u32 %v2292, 16
        %v2444 = vor.u32 %v2441, %v2442
        %v2445 = vsel %vm2310, %v2437, %v2444
        %v2446 = vrot.slane %v2441, 4
        %v2448 = vshrl.u32 %v2293, 16
        %v2450 = vrot.slane %v2448, 7
        %v2451 = vshll.u32 %v2293, 16
        %v2453 = vor.u32 %v2450, %v2451
        %v2454 = vrot.slane %v2450, 4
        %v2456 = vshrl.u32 %v2294, 16
        %v2458 = vrot.slane %v2456, 7
        %v2459 = vshll.u32 %v2294, 16
        %v2461 = vor.u32 %v2458, %v2459
        %v2462 = vsel %vm2310, %v2454, %v2461
        %v2463 = vrot.slane %v2458, 4
        %v2465 = vshrl.u32 %v2295, 16
        %v2467 = vrot.slane %v2465, 7
        %v2468 = vshll.u32 %v2295, 16
        %v2470 = vor.u32 %v2467, %v2468
        %v2471 = vrot.slane %v2467, 4
        %v2473 = vshrl.u32 %v2296, 16
        %v2475 = vrot.slane %v2473, 7
        %v2476 = vshll.u32 %v2296, 16
        %v2478 = vor.u32 %v2475, %v2476
        %v2479 = vsel %vm2310, %v2471, %v2478
        %v2480 = vrot.slane %v2475, 4
        %v2482 = vshrl.u32 %v2297, 16
        %v2484 = vrot.slane %v2482, 7
        %v2485 = vshll.u32 %v2297, 16
        %v2487 = vor.u32 %v2484, %v2485
        %v2488 = vrot.slane %v2484, 4
        %v2490 = vshrl.u32 %v2298, 16
        %v2492 = vrot.slane %v2490, 7
        %v2493 = vshll.u32 %v2298, 16
        %v2495 = vor.u32 %v2492, %v2493
        %v2496 = vsel %vm2310, %v2488, %v2495
        %v2497 = vrot.slane %v2492, 4
        %v2499 = vshrl.u32 %v2299, 16
        %v2501 = vrot.slane %v2499, 7
        %v2502 = vshll.u32 %v2299, 16
        %v2504 = vor.u32 %v2501, %v2502
        %v2505 = vrot.slane %v2501, 4
        %v2507 = vshrl.u32 %v2300, 16
        %v2509 = vrot.slane %v2507, 7
        %v2510 = vshll.u32 %v2300, 16
        %v2512 = vor.u32 %v2509, %v2510
        %v2513 = vsel %vm2310, %v2505, %v2512
        %v2514 = vrot.slane %v2509, 4
        %v2516 = vshrl.u32 %v2301, 16
        %v2518 = vrot.slane %v2516, 7
        %v2519 = vshll.u32 %v2301, 16
        %v2521 = vor.u32 %v2518, %v2519
        %v2522 = vrot.slane %v2518, 4
        %v2524 = vshrl.u32 %v2302, 16
        %v2526 = vrot.slane %v2524, 7
        %v2527 = vshll.u32 %v2302, 16
        %v2529 = vor.u32 %v2526, %v2527
        %v2530 = vsel %vm2310, %v2522, %v2529
        %v2531 = vrot.slane %v2526, 4
        %v2533 = vshrl.u32 %v2303, 16
        %v2535 = vrot.slane %v2533, 7
        %v2536 = vshll.u32 %v2303, 16
        %v2538 = vor.u32 %v2535, %v2536
        %v2539 = vrot.slane %v2535, 4
        %v2541 = vshrl.u32 %v2304, 16
        %v2543 = vrot.slane %v2541, 7
        %v2544 = vshll.u32 %v2304, 16
        %v2546 = vor.u32 %v2543, %v2544
        %v2547 = vsel %vm2310, %v2539, %v2546
        %v2548 = vrot.slane %v2543, 4
        %v2550 = vshrl.u32 %v2305, 16
        %v2552 = vrot.slane %v2550, 7
        %v2553 = vshll.u32 %v2305, 16
        %v2555 = vor.u32 %v2552, %v2553
        %v2556 = vrot.slane %v2552, 4
        %v2558 = vshrl.u32 %v2306, 16
        %v2560 = vrot.slane %v2558, 7
        %v2561 = vshll.u32 %v2306, 16
        %v2563 = vor.u32 %v2560, %v2561
        %v2564 = vsel %vm2310, %v2556, %v2563
        %v2565 = vrot.slane %v2560, 4
        %v2567 = vshrl.u32 %v2307, 16
        %v2569 = vrot.slane %v2567, 7
        %v2570 = vshll.u32 %v2307, 16
        %v2572 = vor.u32 %v2569, %v2570
        %v2573 = vrot.slane %v2569, 4
        %v2575 = vshrl.u32 %v2308, 16
        %v2577 = vrot.slane %v2575, 7
        %v2578 = vshll.u32 %v2308, 16
        %v2580 = vor.u32 %v2577, %v2578
        %v2581 = vsel %vm2310, %v2573, %v2580
        %v2582 = vrot.slane %v2577, 4
        %s2631 = scalar_lea.vmem [#allocation2], 12
        %vm2632 = vcmask 1043456
        %vm2633 = vmand %vm2632, %vm639
        %v2634 = vld [vmem:[%s2631] sm:$0xf]
        %v2635 = vsel %vm2633, %v2317, %v2634
        %2636 = vst [vmem:[%s2631] sm:$0xf] %v2635
        %2637 = vst [vmem:[%s2631 + $0x4] sm:$0xf] %v2326
        %v2638 = vld [vmem:[%s2631 + $0x8] sm:$0x1]
        %v2639 = vsel %vm584, %v2327, %v2638
        %2640 = vst [vmem:[%s2631 + $0x8] sm:$0x1] %v2639
        %v2641 = vld [vmem:[%s2631 + $0xc] sm:$0xf]
        %v2642 = vsel %vm2633, %v2334, %v2641
        %2643 = vst [vmem:[%s2631 + $0xc] sm:$0xf] %v2642
        %2644 = vst [vmem:[%s2631 + $0x10] sm:$0xf] %v2343
        %v2645 = vld [vmem:[%s2631 + $0x14] sm:$0x1]
        %v2646 = vsel %vm584, %v2344, %v2645
        %2647 = vst [vmem:[%s2631 + $0x14] sm:$0x1] %v2646
        %v2648 = vld [vmem:[%s2631 + $0x18] sm:$0xf]
        %v2649 = vsel %vm2633, %v2351, %v2648
        %2650 = vst [vmem:[%s2631 + $0x18] sm:$0xf] %v2649
        %2651 = vst [vmem:[%s2631 + $0x1c] sm:$0xf] %v2360
        %v2652 = vld [vmem:[%s2631 + $0x20] sm:$0x1]
        %v2653 = vsel %vm584, %v2361, %v2652
        %2654 = vst [vmem:[%s2631 + $0x20] sm:$0x1] %v2653
        %v2655 = vld [vmem:[%s2631 + $0x24] sm:$0xf]
        %v2656 = vsel %vm2633, %v2368, %v2655
        %2657 = vst [vmem:[%s2631 + $0x24] sm:$0xf] %v2656
        %2658 = vst [vmem:[%s2631 + $0x28] sm:$0xf] %v2377
        %v2659 = vld [vmem:[%s2631 + $0x2c] sm:$0x1]
        %v2660 = vsel %vm584, %v2378, %v2659
        %2661 = vst [vmem:[%s2631 + $0x2c] sm:$0x1] %v2660
        %v2662 = vld [vmem:[%s2631 + $0x30] sm:$0xf]
        %v2663 = vsel %vm2633, %v2385, %v2662
        %2664 = vst [vmem:[%s2631 + $0x30] sm:$0xf] %v2663
        %2665 = vst [vmem:[%s2631 + $0x34] sm:$0xf] %v2394
        %v2666 = vld [vmem:[%s2631 + $0x38] sm:$0x1]
        %v2667 = vsel %vm584, %v2395, %v2666
        %2668 = vst [vmem:[%s2631 + $0x38] sm:$0x1] %v2667
        %v2669 = vld [vmem:[%s2631 + $0x3c] sm:$0xf]
        %v2670 = vsel %vm2633, %v2402, %v2669
        %2671 = vst [vmem:[%s2631 + $0x3c] sm:$0xf] %v2670
        %2672 = vst [vmem:[%s2631 + $0x40] sm:$0xf] %v2411
        %v2673 = vld [vmem:[%s2631 + $0x44] sm:$0x1]
        %v2674 = vsel %vm584, %v2412, %v2673
        %2675 = vst [vmem:[%s2631 + $0x44] sm:$0x1] %v2674
        %v2676 = vld [vmem:[%s2631 + $0x48] sm:$0xf]
        %v2677 = vsel %vm2633, %v2419, %v2676
        %2678 = vst [vmem:[%s2631 + $0x48] sm:$0xf] %v2677
        %2679 = vst [vmem:[%s2631 + $0x4c] sm:$0xf] %v2428
        %v2680 = vld [vmem:[%s2631 + $0x50] sm:$0x1]
        %v2681 = vsel %vm584, %v2429, %v2680
        %2682 = vst [vmem:[%s2631 + $0x50] sm:$0x1] %v2681
        %v2683 = vld [vmem:[%s2631 + $0x54] sm:$0xf]
        %v2684 = vsel %vm2633, %v2436, %v2683
        %2685 = vst [vmem:[%s2631 + $0x54] sm:$0xf] %v2684
        %2686 = vst [vmem:[%s2631 + $0x58] sm:$0xf] %v2445
        %v2687 = vld [vmem:[%s2631 + $0x5c] sm:$0x1]
        %v2688 = vsel %vm584, %v2446, %v2687
        %2689 = vst [vmem:[%s2631 + $0x5c] sm:$0x1] %v2688
        %v2690 = vld [vmem:[%s2631 + $0x60] sm:$0xf]
        %v2691 = vsel %vm2633, %v2453, %v2690
        %2692 = vst [vmem:[%s2631 + $0x60] sm:$0xf] %v2691
        %2693 = vst [vmem:[%s2631 + $0x64] sm:$0xf] %v2462
        %v2694 = vld [vmem:[%s2631 + $0x68] sm:$0x1]
        %v2695 = vsel %vm584, %v2463, %v2694
        %2696 = vst [vmem:[%s2631 + $0x68] sm:$0x1] %v2695
        %v2697 = vld [vmem:[%s2631 + $0x6c] sm:$0xf]
        %v2698 = vsel %vm2633, %v2470, %v2697
        %2699 = vst [vmem:[%s2631 + $0x6c] sm:$0xf] %v2698
        %2700 = vst [vmem:[%s2631 + $0x70] sm:$0xf] %v2479
        %v2701 = vld [vmem:[%s2631 + $0x74] sm:$0x1]
        %v2702 = vsel %vm584, %v2480, %v2701
        %2703 = vst [vmem:[%s2631 + $0x74] sm:$0x1] %v2702
        %v2704 = vld [vmem:[%s2631 + $0x78] sm:$0xf]
        %v2705 = vsel %vm2633, %v2487, %v2704
        %2706 = vst [vmem:[%s2631 + $0x78] sm:$0xf] %v2705
        %2707 = vst [vmem:[%s2631 + $0x7c] sm:$0xf] %v2496
        %v2708 = vld [vmem:[%s2631 + $0x80] sm:$0x1]
        %v2709 = vsel %vm584, %v2497, %v2708
        %2710 = vst [vmem:[%s2631 + $0x80] sm:$0x1] %v2709
        %v2711 = vld [vmem:[%s2631 + $0x84] sm:$0xf]
        %v2712 = vsel %vm2633, %v2504, %v2711
        %2713 = vst [vmem:[%s2631 + $0x84] sm:$0xf] %v2712
        %2714 = vst [vmem:[%s2631 + $0x88] sm:$0xf] %v2513
        %v2715 = vld [vmem:[%s2631 + $0x8c] sm:$0x1]
        %v2716 = vsel %vm584, %v2514, %v2715
        %2717 = vst [vmem:[%s2631 + $0x8c] sm:$0x1] %v2716
        %v2718 = vld [vmem:[%s2631 + $0x90] sm:$0xf]
        %v2719 = vsel %vm2633, %v2521, %v2718
        %2720 = vst [vmem:[%s2631 + $0x90] sm:$0xf] %v2719
        %2721 = vst [vmem:[%s2631 + $0x94] sm:$0xf] %v2530
        %v2722 = vld [vmem:[%s2631 + $0x98] sm:$0x1]
        %v2723 = vsel %vm584, %v2531, %v2722
        %2724 = vst [vmem:[%s2631 + $0x98] sm:$0x1] %v2723
        %v2725 = vld [vmem:[%s2631 + $0x9c] sm:$0xf]
        %v2726 = vsel %vm2633, %v2538, %v2725
        %2727 = vst [vmem:[%s2631 + $0x9c] sm:$0xf] %v2726
        %2728 = vst [vmem:[%s2631 + $0xa0] sm:$0xf] %v2547
        %v2729 = vld [vmem:[%s2631 + $0xa4] sm:$0x1]
        %v2730 = vsel %vm584, %v2548, %v2729
        %2731 = vst [vmem:[%s2631 + $0xa4] sm:$0x1] %v2730
        %v2732 = vld [vmem:[%s2631 + $0xa8] sm:$0xf]
        %v2733 = vsel %vm2633, %v2555, %v2732
        %2734 = vst [vmem:[%s2631 + $0xa8] sm:$0xf] %v2733
        %2735 = vst [vmem:[%s2631 + $0xac] sm:$0xf] %v2564
        %v2736 = vld [vmem:[%s2631 + $0xb0] sm:$0x1]
        %v2737 = vsel %vm584, %v2565, %v2736
        %2738 = vst [vmem:[%s2631 + $0xb0] sm:$0x1] %v2737
        %v2739 = vld [vmem:[%s2631 + $0xb4] sm:$0xf]
        %v2740 = vsel %vm2633, %v2572, %v2739
        %2741 = vst [vmem:[%s2631 + $0xb4] sm:$0xf] %v2740
        %2742 = vst [vmem:[%s2631 + $0xb8] sm:$0xf] %v2581
        %v2743 = vld [vmem:[%s2631 + $0xbc] sm:$0x1]
        %v2744 = vsel %vm584, %v2582, %v2743
        %2745 = vst [vmem:[%s2631 + $0xbc] sm:$0x1] %v2744
        %v2746 = vld [vmem:[#allocation2] sm:$0xf]
        %v2747 = vld [vmem:[#allocation2 + $0x4] sm:$0xf]
        %v2748 = vld [vmem:[#allocation2 + $0xc] sm:$0xf]
        %v2749 = vld [vmem:[#allocation2 + $0x10] sm:$0xf]
        %v2750 = vld [vmem:[#allocation2 + $0x18] sm:$0xf]
        %v2751 = vld [vmem:[#allocation2 + $0x1c] sm:$0xf]
        %v2752 = vld [vmem:[#allocation2 + $0x24] sm:$0xf]
        %v2753 = vld [vmem:[#allocation2 + $0x28] sm:$0xf]
        %v2754 = vld [vmem:[#allocation2 + $0x30] sm:$0xf]
        %v2755 = vld [vmem:[#allocation2 + $0x34] sm:$0xf]
        %v2756 = vld [vmem:[#allocation2 + $0x3c] sm:$0xf]
        %v2757 = vld [vmem:[#allocation2 + $0x40] sm:$0xf]
        %v2758 = vld [vmem:[#allocation2 + $0x48] sm:$0xf]
        %v2759 = vld [vmem:[#allocation2 + $0x4c] sm:$0xf]
        %v2760 = vld [vmem:[#allocation2 + $0x54] sm:$0xf]
        %v2761 = vld [vmem:[#allocation2 + $0x58] sm:$0xf]
        %v2762 = vld [vmem:[#allocation2 + $0x60] sm:$0xf]
        %v2763 = vld [vmem:[#allocation2 + $0x64] sm:$0xf]
        %v2764 = vld [vmem:[#allocation2 + $0x6c] sm:$0xf]
        %v2765 = vld [vmem:[#allocation2 + $0x70] sm:$0xf]
        %v2766 = vld [vmem:[#allocation2 + $0x78] sm:$0xf]
        %v2767 = vld [vmem:[#allocation2 + $0x7c] sm:$0xf]
        %v2768 = vld [vmem:[#allocation2 + $0x84] sm:$0xf]
        %v2769 = vld [vmem:[#allocation2 + $0x88] sm:$0xf]
        %v2770 = vld [vmem:[#allocation2 + $0x90] sm:$0xf]
        %v2771 = vld [vmem:[#allocation2 + $0x94] sm:$0xf]
        %v2772 = vld [vmem:[#allocation2 + $0x9c] sm:$0xf]
        %v2773 = vld [vmem:[#allocation2 + $0xa0] sm:$0xf]
        %v2774 = vld [vmem:[#allocation2 + $0xa8] sm:$0xf]
        %v2775 = vld [vmem:[#allocation2 + $0xac] sm:$0xf]
        %v2776 = vld [vmem:[#allocation2 + $0xb4] sm:$0xf]
        %v2777 = vld [vmem:[#allocation2 + $0xb8] sm:$0xf]
        %v2810 = vunpack.c.l.b16 %v2746
        %v2811 = vunpack.c.l.b16 %v2747
        %v2812 = vunpack.c.l.b16 %v2748
        %v2813 = vunpack.c.l.b16 %v2749
        %v2814 = vunpack.c.l.b16 %v2750
        %v2815 = vunpack.c.l.b16 %v2751
        %v2816 = vunpack.c.l.b16 %v2752
        %v2817 = vunpack.c.l.b16 %v2753
        %v2818 = vunpack.c.l.b16 %v2754
        %v2819 = vunpack.c.l.b16 %v2755
        %v2820 = vunpack.c.l.b16 %v2756
        %v2821 = vunpack.c.l.b16 %v2757
        %v2822 = vunpack.c.l.b16 %v2758
        %v2823 = vunpack.c.l.b16 %v2759
        %v2824 = vunpack.c.l.b16 %v2760
        %v2825 = vunpack.c.l.b16 %v2761
        %v2826 = vunpack.c.l.b16 %v2762
        %v2827 = vunpack.c.l.b16 %v2763
        %v2828 = vunpack.c.l.b16 %v2764
        %v2829 = vunpack.c.l.b16 %v2765
        %v2830 = vunpack.c.l.b16 %v2766
        %v2831 = vunpack.c.l.b16 %v2767
        %v2832 = vunpack.c.l.b16 %v2768
        %v2833 = vunpack.c.l.b16 %v2769
        %v2834 = vunpack.c.l.b16 %v2770
        %v2835 = vunpack.c.l.b16 %v2771
        %v2836 = vunpack.c.l.b16 %v2772
        %v2837 = vunpack.c.l.b16 %v2773
        %v2838 = vunpack.c.l.b16 %v2774
        %v2839 = vunpack.c.l.b16 %v2775
        %v2840 = vunpack.c.l.b16 %v2776
        %v2841 = vunpack.c.l.b16 %v2777
        %v2842 = vpack.c.b16 %v2811, %v2810
        %v2843 = vpack.c.b16 %v2813, %v2812
        %v2844 = vpack.c.b16 %v2815, %v2814
        %v2845 = vpack.c.b16 %v2817, %v2816
        %v2846 = vpack.c.b16 %v2819, %v2818
        %v2847 = vpack.c.b16 %v2821, %v2820
        %v2848 = vpack.c.b16 %v2823, %v2822
        %v2849 = vpack.c.b16 %v2825, %v2824
        %v2850 = vpack.c.b16 %v2827, %v2826
        %v2851 = vpack.c.b16 %v2829, %v2828
        %v2852 = vpack.c.b16 %v2831, %v2830
        %v2853 = vpack.c.b16 %v2833, %v2832
        %v2854 = vpack.c.b16 %v2835, %v2834
        %v2855 = vpack.c.b16 %v2837, %v2836
        %v2856 = vpack.c.b16 %v2839, %v2838
        %v2857 = vpack.c.b16 %v2841, %v2840
        %2874 = vst [vmem:[#allocation3] sm:$0xff] %v2842
        %2875 = vst [vmem:[#allocation3 + $0x48] sm:$0xff] %v2843
        %2876 = vst [vmem:[#allocation3 + $0x90] sm:$0xff] %v2844
        %2877 = vst [vmem:[#allocation3 + $0xd8] sm:$0xff] %v2845
        %2878 = vst [vmem:[#allocation3 + $0x120] sm:$0xff] %v2846
        %2879 = vst [vmem:[#allocation3 + $0x168] sm:$0xff] %v2847
        %2880 = vst [vmem:[#allocation3 + $0x1b0] sm:$0xff] %v2848
        %2881 = vst [vmem:[#allocation3 + $0x1f8] sm:$0xff] %v2849
        %2882 = vst [vmem:[#allocation3 + $0x240] sm:$0xff] %v2850
        %2883 = vst [vmem:[#allocation3 + $0x288] sm:$0xff] %v2851
        %2884 = vst [vmem:[#allocation3 + $0x2d0] sm:$0xff] %v2852
        %2885 = vst [vmem:[#allocation3 + $0x318] sm:$0xff] %v2853
        %2886 = vst [vmem:[#allocation3 + $0x360] sm:$0xff] %v2854
        %2887 = vst [vmem:[#allocation3 + $0x3a8] sm:$0xff] %v2855
        %2888 = vst [vmem:[#allocation3 + $0x3f0] sm:$0xff] %v2856
        %2889 = vst [vmem:[#allocation3 + $0x438] sm:$0xff] %v2857
        %v2890 = vld [vmem:[#allocation2] sm:$0xf]
        %v2891 = vld [vmem:[#allocation2 + $0x4] sm:$0xf]
        %v2892 = vld [vmem:[#allocation2 + $0x8] sm:$0x1]
        %v2893 = vld [vmem:[#allocation2 + $0xc] sm:$0xf]
        %v2894 = vld [vmem:[#allocation2 + $0x10] sm:$0xf]
        %v2895 = vld [vmem:[#allocation2 + $0x14] sm:$0x1]
        %v2896 = vld [vmem:[#allocation2 + $0x18] sm:$0xf]
        %v2897 = vld [vmem:[#allocation2 + $0x1c] sm:$0xf]
        %v2898 = vld [vmem:[#allocation2 + $0x20] sm:$0x1]
        %v2899 = vld [vmem:[#allocation2 + $0x24] sm:$0xf]
        %v2900 = vld [vmem:[#allocation2 + $0x28] sm:$0xf]
        %v2901 = vld [vmem:[#allocation2 + $0x2c] sm:$0x1]
        %v2902 = vld [vmem:[#allocation2 + $0x30] sm:$0xf]
        %v2903 = vld [vmem:[#allocation2 + $0x34] sm:$0xf]
        %v2904 = vld [vmem:[#allocation2 + $0x38] sm:$0x1]
        %v2905 = vld [vmem:[#allocation2 + $0x3c] sm:$0xf]
        %v2906 = vld [vmem:[#allocation2 + $0x40] sm:$0xf]
        %v2907 = vld [vmem:[#allocation2 + $0x44] sm:$0x1]
        %v2908 = vld [vmem:[#allocation2 + $0x48] sm:$0xf]
        %v2909 = vld [vmem:[#allocation2 + $0x4c] sm:$0xf]
        %v2910 = vld [vmem:[#allocation2 + $0x50] sm:$0x1]
        %v2911 = vld [vmem:[#allocation2 + $0x54] sm:$0xf]
        %v2912 = vld [vmem:[#allocation2 + $0x58] sm:$0xf]
        %v2913 = vld [vmem:[#allocation2 + $0x5c] sm:$0x1]
        %v2914 = vld [vmem:[#allocation2 + $0x60] sm:$0xf]
        %v2915 = vld [vmem:[#allocation2 + $0x64] sm:$0xf]
        %v2916 = vld [vmem:[#allocation2 + $0x68] sm:$0x1]
        %v2917 = vld [vmem:[#allocation2 + $0x6c] sm:$0xf]
        %v2918 = vld [vmem:[#allocation2 + $0x70] sm:$0xf]
        %v2919 = vld [vmem:[#allocation2 + $0x74] sm:$0x1]
        %v2920 = vld [vmem:[#allocation2 + $0x78] sm:$0xf]
        %v2921 = vld [vmem:[#allocation2 + $0x7c] sm:$0xf]
        %v2922 = vld [vmem:[#allocation2 + $0x80] sm:$0x1]
        %v2923 = vld [vmem:[#allocation2 + $0x84] sm:$0xf]
        %v2924 = vld [vmem:[#allocation2 + $0x88] sm:$0xf]
        %v2925 = vld [vmem:[#allocation2 + $0x8c] sm:$0x1]
        %v2926 = vld [vmem:[#allocation2 + $0x90] sm:$0xf]
        %v2927 = vld [vmem:[#allocation2 + $0x94] sm:$0xf]
        %v2928 = vld [vmem:[#allocation2 + $0x98] sm:$0x1]
        %v2929 = vld [vmem:[#allocation2 + $0x9c] sm:$0xf]
        %v2930 = vld [vmem:[#allocation2 + $0xa0] sm:$0xf]
        %v2931 = vld [vmem:[#allocation2 + $0xa4] sm:$0x1]
        %v2932 = vld [vmem:[#allocation2 + $0xa8] sm:$0xf]
        %v2933 = vld [vmem:[#allocation2 + $0xac] sm:$0xf]
        %v2934 = vld [vmem:[#allocation2 + $0xb0] sm:$0x1]
        %v2935 = vld [vmem:[#allocation2 + $0xb4] sm:$0xf]
        %v2936 = vld [vmem:[#allocation2 + $0xb8] sm:$0xf]
        %v2937 = vld [vmem:[#allocation2 + $0xbc] sm:$0x1]
        %vm2938 = vsmask.f32 3328
        %vm2939 = vsmask.f32 7440
        %vm2940 = vmor %vm2938, %vm2939
        %v2942 = vshrl.u32 %v2890, 16
        %v2944 = vrot.slane %v2942, 4
        %v2945 = vshll.u32 %v2890, 16
        %v2947 = vrot.slane %v2945, 5
        %v2948 = vor.u32 %v2944, %v2947
        %v2949 = vrot.slane %v2948, 4
        %v2951 = vshll.u32 %v2891, 16
        %v2953 = vrot.slane %v2951, 5
        %v2954 = vsel %vm2940, %v2949, %v2953
        %v2955 = vshrl.u32 %v2891, 16
        %v2957 = vrot.slane %v2955, 4
        %v2958 = vor.u32 %v2957, %v2953
        %v2959 = vrot.slane %v2958, 4
        %v2961 = vshll.u32 %v2892, 16
        %v2963 = vrot.slane %v2961, 5
        %v2964 = vsel %vm2940, %v2959, %v2963
        %v2966 = vshrl.u32 %v2893, 16
        %v2968 = vrot.slane %v2966, 4
        %v2969 = vshll.u32 %v2893, 16
        %v2971 = vrot.slane %v2969, 5
        %v2972 = vor.u32 %v2968, %v2971
        %v2973 = vrot.slane %v2972, 4
        %v2975 = vshll.u32 %v2894, 16
        %v2977 = vrot.slane %v2975, 5
        %v2978 = vsel %vm2940, %v2973, %v2977
        %v2979 = vshrl.u32 %v2894, 16
        %v2981 = vrot.slane %v2979, 4
        %v2982 = vor.u32 %v2981, %v2977
        %v2983 = vrot.slane %v2982, 4
        %v2985 = vshll.u32 %v2895, 16
        %v2987 = vrot.slane %v2985, 5
        %v2988 = vsel %vm2940, %v2983, %v2987
        %v2990 = vshrl.u32 %v2896, 16
        %v2992 = vrot.slane %v2990, 4
        %v2993 = vshll.u32 %v2896, 16
        %v2995 = vrot.slane %v2993, 5
        %v2996 = vor.u32 %v2992, %v2995
        %v2997 = vrot.slane %v2996, 4
        %v2999 = vshll.u32 %v2897, 16
        %v3001 = vrot.slane %v2999, 5
        %v3002 = vsel %vm2940, %v2997, %v3001
        %v3003 = vshrl.u32 %v2897, 16
        %v3005 = vrot.slane %v3003, 4
        %v3006 = vor.u32 %v3005, %v3001
        %v3007 = vrot.slane %v3006, 4
        %v3009 = vshll.u32 %v2898, 16
        %v3011 = vrot.slane %v3009, 5
        %v3012 = vsel %vm2940, %v3007, %v3011
        %v3014 = vshrl.u32 %v2899, 16
        %v3016 = vrot.slane %v3014, 4
        %v3017 = vshll.u32 %v2899, 16
        %v3019 = vrot.slane %v3017, 5
        %v3020 = vor.u32 %v3016, %v3019
        %v3021 = vrot.slane %v3020, 4
        %v3023 = vshll.u32 %v2900, 16
        %v3025 = vrot.slane %v3023, 5
        %v3026 = vsel %vm2940, %v3021, %v3025
        %v3027 = vshrl.u32 %v2900, 16
        %v3029 = vrot.slane %v3027, 4
        %v3030 = vor.u32 %v3029, %v3025
        %v3031 = vrot.slane %v3030, 4
        %v3033 = vshll.u32 %v2901, 16
        %v3035 = vrot.slane %v3033, 5
        %v3036 = vsel %vm2940, %v3031, %v3035
        %v3038 = vshrl.u32 %v2902, 16
        %v3040 = vrot.slane %v3038, 4
        %v3041 = vshll.u32 %v2902, 16
        %v3043 = vrot.slane %v3041, 5
        %v3044 = vor.u32 %v3040, %v3043
        %v3045 = vrot.slane %v3044, 4
        %v3047 = vshll.u32 %v2903, 16
        %v3049 = vrot.slane %v3047, 5
        %v3050 = vsel %vm2940, %v3045, %v3049
        %v3051 = vshrl.u32 %v2903, 16
        %v3053 = vrot.slane %v3051, 4
        %v3054 = vor.u32 %v3053, %v3049
        %v3055 = vrot.slane %v3054, 4
        %v3057 = vshll.u32 %v2904, 16
        %v3059 = vrot.slane %v3057, 5
        %v3060 = vsel %vm2940, %v3055, %v3059
        %v3062 = vshrl.u32 %v2905, 16
        %v3064 = vrot.slane %v3062, 4
        %v3065 = vshll.u32 %v2905, 16
        %v3067 = vrot.slane %v3065, 5
        %v3068 = vor.u32 %v3064, %v3067
        %v3069 = vrot.slane %v3068, 4
        %v3071 = vshll.u32 %v2906, 16
        %v3073 = vrot.slane %v3071, 5
        %v3074 = vsel %vm2940, %v3069, %v3073
        %v3075 = vshrl.u32 %v2906, 16
        %v3077 = vrot.slane %v3075, 4
        %v3078 = vor.u32 %v3077, %v3073
        %v3079 = vrot.slane %v3078, 4
        %v3081 = vshll.u32 %v2907, 16
        %v3083 = vrot.slane %v3081, 5
        %v3084 = vsel %vm2940, %v3079, %v3083
        %v3086 = vshrl.u32 %v2908, 16
        %v3088 = vrot.slane %v3086, 4
        %v3089 = vshll.u32 %v2908, 16
        %v3091 = vrot.slane %v3089, 5
        %v3092 = vor.u32 %v3088, %v3091
        %v3093 = vrot.slane %v3092, 4
        %v3095 = vshll.u32 %v2909, 16
        %v3097 = vrot.slane %v3095, 5
        %v3098 = vsel %vm2940, %v3093, %v3097
        %v3099 = vshrl.u32 %v2909, 16
        %v3101 = vrot.slane %v3099, 4
        %v3102 = vor.u32 %v3101, %v3097
        %v3103 = vrot.slane %v3102, 4
        %v3105 = vshll.u32 %v2910, 16
        %v3107 = vrot.slane %v3105, 5
        %v3108 = vsel %vm2940, %v3103, %v3107
        %v3110 = vshrl.u32 %v2911, 16
        %v3112 = vrot.slane %v3110, 4
        %v3113 = vshll.u32 %v2911, 16
        %v3115 = vrot.slane %v3113, 5
        %v3116 = vor.u32 %v3112, %v3115
        %v3117 = vrot.slane %v3116, 4
        %v3119 = vshll.u32 %v2912, 16
        %v3121 = vrot.slane %v3119, 5
        %v3122 = vsel %vm2940, %v3117, %v3121
        %v3123 = vshrl.u32 %v2912, 16
        %v3125 = vrot.slane %v3123, 4
        %v3126 = vor.u32 %v3125, %v3121
        %v3127 = vrot.slane %v3126, 4
        %v3129 = vshll.u32 %v2913, 16
        %v3131 = vrot.slane %v3129, 5
        %v3132 = vsel %vm2940, %v3127, %v3131
        %v3134 = vshrl.u32 %v2914, 16
        %v3136 = vrot.slane %v3134, 4
        %v3137 = vshll.u32 %v2914, 16
        %v3139 = vrot.slane %v3137, 5
        %v3140 = vor.u32 %v3136, %v3139
        %v3141 = vrot.slane %v3140, 4
        %v3143 = vshll.u32 %v2915, 16
        %v3145 = vrot.slane %v3143, 5
        %v3146 = vsel %vm2940, %v3141, %v3145
        %v3147 = vshrl.u32 %v2915, 16
        %v3149 = vrot.slane %v3147, 4
        %v3150 = vor.u32 %v3149, %v3145
        %v3151 = vrot.slane %v3150, 4
        %v3153 = vshll.u32 %v2916, 16
        %v3155 = vrot.slane %v3153, 5
        %v3156 = vsel %vm2940, %v3151, %v3155
        %v3158 = vshrl.u32 %v2917, 16
        %v3160 = vrot.slane %v3158, 4
        %v3161 = vshll.u32 %v2917, 16
        %v3163 = vrot.slane %v3161, 5
        %v3164 = vor.u32 %v3160, %v3163
        %v3165 = vrot.slane %v3164, 4
        %v3167 = vshll.u32 %v2918, 16
        %v3169 = vrot.slane %v3167, 5
        %v3170 = vsel %vm2940, %v3165, %v3169
        %v3171 = vshrl.u32 %v2918, 16
        %v3173 = vrot.slane %v3171, 4
        %v3174 = vor.u32 %v3173, %v3169
        %v3175 = vrot.slane %v3174, 4
        %v3177 = vshll.u32 %v2919, 16
        %v3179 = vrot.slane %v3177, 5
        %v3180 = vsel %vm2940, %v3175, %v3179
        %v3182 = vshrl.u32 %v2920, 16
        %v3184 = vrot.slane %v3182, 4
        %v3185 = vshll.u32 %v2920, 16
        %v3187 = vrot.slane %v3185, 5
        %v3188 = vor.u32 %v3184, %v3187
        %v3189 = vrot.slane %v3188, 4
        %v3191 = vshll.u32 %v2921, 16
        %v3193 = vrot.slane %v3191, 5
        %v3194 = vsel %vm2940, %v3189, %v3193
        %v3195 = vshrl.u32 %v2921, 16
        %v3197 = vrot.slane %v3195, 4
        %v3198 = vor.u32 %v3197, %v3193
        %v3199 = vrot.slane %v3198, 4
        %v3201 = vshll.u32 %v2922, 16
        %v3203 = vrot.slane %v3201, 5
        %v3204 = vsel %vm2940, %v3199, %v3203
        %v3206 = vshrl.u32 %v2923, 16
        %v3208 = vrot.slane %v3206, 4
        %v3209 = vshll.u32 %v2923, 16
        %v3211 = vrot.slane %v3209, 5
        %v3212 = vor.u32 %v3208, %v3211
        %v3213 = vrot.slane %v3212, 4
        %v3215 = vshll.u32 %v2924, 16
        %v3217 = vrot.slane %v3215, 5
        %v3218 = vsel %vm2940, %v3213, %v3217
        %v3219 = vshrl.u32 %v2924, 16
        %v3221 = vrot.slane %v3219, 4
        %v3222 = vor.u32 %v3221, %v3217
        %v3223 = vrot.slane %v3222, 4
        %v3225 = vshll.u32 %v2925, 16
        %v3227 = vrot.slane %v3225, 5
        %v3228 = vsel %vm2940, %v3223, %v3227
        %v3230 = vshrl.u32 %v2926, 16
        %v3232 = vrot.slane %v3230, 4
        %v3233 = vshll.u32 %v2926, 16
        %v3235 = vrot.slane %v3233, 5
        %v3236 = vor.u32 %v3232, %v3235
        %v3237 = vrot.slane %v3236, 4
        %v3239 = vshll.u32 %v2927, 16
        %v3241 = vrot.slane %v3239, 5
        %v3242 = vsel %vm2940, %v3237, %v3241
        %v3243 = vshrl.u32 %v2927, 16
        %v3245 = vrot.slane %v3243, 4
        %v3246 = vor.u32 %v3245, %v3241
        %v3247 = vrot.slane %v3246, 4
        %v3249 = vshll.u32 %v2928, 16
        %v3251 = vrot.slane %v3249, 5
        %v3252 = vsel %vm2940, %v3247, %v3251
        %v3254 = vshrl.u32 %v2929, 16
        %v3256 = vrot.slane %v3254, 4
        %v3257 = vshll.u32 %v2929, 16
        %v3259 = vrot.slane %v3257, 5
        %v3260 = vor.u32 %v3256, %v3259
        %v3261 = vrot.slane %v3260, 4
        %v3263 = vshll.u32 %v2930, 16
        %v3265 = vrot.slane %v3263, 5
        %v3266 = vsel %vm2940, %v3261, %v3265
        %v3267 = vshrl.u32 %v2930, 16
        %v3269 = vrot.slane %v3267, 4
        %v3270 = vor.u32 %v3269, %v3265
        %v3271 = vrot.slane %v3270, 4
        %v3273 = vshll.u32 %v2931, 16
        %v3275 = vrot.slane %v3273, 5
        %v3276 = vsel %vm2940, %v3271, %v3275
        %v3278 = vshrl.u32 %v2932, 16
        %v3280 = vrot.slane %v3278, 4
        %v3281 = vshll.u32 %v2932, 16
        %v3283 = vrot.slane %v3281, 5
        %v3284 = vor.u32 %v3280, %v3283
        %v3285 = vrot.slane %v3284, 4
        %v3287 = vshll.u32 %v2933, 16
        %v3289 = vrot.slane %v3287, 5
        %v3290 = vsel %vm2940, %v3285, %v3289
        %v3291 = vshrl.u32 %v2933, 16
        %v3293 = vrot.slane %v3291, 4
        %v3294 = vor.u32 %v3293, %v3289
        %v3295 = vrot.slane %v3294, 4
        %v3297 = vshll.u32 %v2934, 16
        %v3299 = vrot.slane %v3297, 5
        %v3300 = vsel %vm2940, %v3295, %v3299
        %v3302 = vshrl.u32 %v2935, 16
        %v3304 = vrot.slane %v3302, 4
        %v3305 = vshll.u32 %v2935, 16
        %v3307 = vrot.slane %v3305, 5
        %v3308 = vor.u32 %v3304, %v3307
        %v3309 = vrot.slane %v3308, 4
        %v3311 = vshll.u32 %v2936, 16
        %v3313 = vrot.slane %v3311, 5
        %v3314 = vsel %vm2940, %v3309, %v3313
        %v3315 = vshrl.u32 %v2936, 16
        %v3317 = vrot.slane %v3315, 4
        %v3318 = vor.u32 %v3317, %v3313
        %v3319 = vrot.slane %v3318, 4
        %v3321 = vshll.u32 %v2937, 16
        %v3323 = vrot.slane %v3321, 5
        %v3324 = vsel %vm2940, %v3319, %v3323
        %v3325 = vunpack.c.l.b16 %v2954
        %v3326 = vunpack.c.l.b16 %v2964
        %v3327 = vunpack.c.l.b16 %v2978
        %v3328 = vunpack.c.l.b16 %v2988
        %v3329 = vunpack.c.l.b16 %v3002
        %v3330 = vunpack.c.l.b16 %v3012
        %v3331 = vunpack.c.l.b16 %v3026
        %v3332 = vunpack.c.l.b16 %v3036
        %v3333 = vunpack.c.l.b16 %v3050
        %v3334 = vunpack.c.l.b16 %v3060
        %v3335 = vunpack.c.l.b16 %v3074
        %v3336 = vunpack.c.l.b16 %v3084
        %v3337 = vunpack.c.l.b16 %v3098
        %v3338 = vunpack.c.l.b16 %v3108
        %v3339 = vunpack.c.l.b16 %v3122
        %v3340 = vunpack.c.l.b16 %v3132
        %v3341 = vunpack.c.l.b16 %v3146
        %v3342 = vunpack.c.l.b16 %v3156
        %v3343 = vunpack.c.l.b16 %v3170
        %v3344 = vunpack.c.l.b16 %v3180
        %v3345 = vunpack.c.l.b16 %v3194
        %v3346 = vunpack.c.l.b16 %v3204
        %v3347 = vunpack.c.l.b16 %v3218
        %v3348 = vunpack.c.l.b16 %v3228
        %v3349 = vunpack.c.l.b16 %v3242
        %v3350 = vunpack.c.l.b16 %v3252
        %v3351 = vunpack.c.l.b16 %v3266
        %v3352 = vunpack.c.l.b16 %v3276
        %v3353 = vunpack.c.l.b16 %v3290
        %v3354 = vunpack.c.l.b16 %v3300
        %v3355 = vunpack.c.l.b16 %v3314
        %v3356 = vunpack.c.l.b16 %v3324
        %v3357 = vpack.c.b16 %v3326, %v3325
        %v3358 = vpack.c.b16 %v3328, %v3327
        %v3359 = vpack.c.b16 %v3330, %v3329
        %v3360 = vpack.c.b16 %v3332, %v3331
        %v3361 = vpack.c.b16 %v3334, %v3333
        %v3362 = vpack.c.b16 %v3336, %v3335
        %v3363 = vpack.c.b16 %v3338, %v3337
        %v3364 = vpack.c.b16 %v3340, %v3339
        %v3365 = vpack.c.b16 %v3342, %v3341
        %v3366 = vpack.c.b16 %v3344, %v3343
        %v3367 = vpack.c.b16 %v3346, %v3345
        %v3368 = vpack.c.b16 %v3348, %v3347
        %v3369 = vpack.c.b16 %v3350, %v3349
        %v3370 = vpack.c.b16 %v3352, %v3351
        %v3371 = vpack.c.b16 %v3354, %v3353
        %v3372 = vpack.c.b16 %v3356, %v3355
        %3389 = vst [vmem:[#allocation3 + $0x8] sm:$0xff] %v3357
        %3390 = vst [vmem:[#allocation3 + $0x50] sm:$0xff] %v3358
        %3391 = vst [vmem:[#allocation3 + $0x98] sm:$0xff] %v3359
        %3392 = vst [vmem:[#allocation3 + $0xe0] sm:$0xff] %v3360
        %3393 = vst [vmem:[#allocation3 + $0x128] sm:$0xff] %v3361
        %3394 = vst [vmem:[#allocation3 + $0x170] sm:$0xff] %v3362
        %3395 = vst [vmem:[#allocation3 + $0x1b8] sm:$0xff] %v3363
        %3396 = vst [vmem:[#allocation3 + $0x200] sm:$0xff] %v3364
        %3397 = vst [vmem:[#allocation3 + $0x248] sm:$0xff] %v3365
        %3398 = vst [vmem:[#allocation3 + $0x290] sm:$0xff] %v3366
        %3399 = vst [vmem:[#allocation3 + $0x2d8] sm:$0xff] %v3367
        %3400 = vst [vmem:[#allocation3 + $0x320] sm:$0xff] %v3368
        %3401 = vst [vmem:[#allocation3 + $0x368] sm:$0xff] %v3369
        %3402 = vst [vmem:[#allocation3 + $0x3b0] sm:$0xff] %v3370
        %3403 = vst [vmem:[#allocation3 + $0x3f8] sm:$0xff] %v3371
        %3404 = vst [vmem:[#allocation3 + $0x440] sm:$0xff] %v3372
        %v3405 = vld [vmem:[#allocation2] sm:$0xe]
        %v3406 = vld [vmem:[#allocation2 + $0x4] sm:$0xf]
        %v3407 = vld [vmem:[#allocation2 + $0x8] sm:$0x1]
        %v3408 = vld [vmem:[#allocation2 + $0xc] sm:$0xe]
        %v3409 = vld [vmem:[#allocation2 + $0x10] sm:$0xf]
        %v3410 = vld [vmem:[#allocation2 + $0x14] sm:$0x1]
        %v3411 = vld [vmem:[#allocation2 + $0x18] sm:$0xe]
        %v3412 = vld [vmem:[#allocation2 + $0x1c] sm:$0xf]
        %v3413 = vld [vmem:[#allocation2 + $0x20] sm:$0x1]
        %v3414 = vld [vmem:[#allocation2 + $0x24] sm:$0xe]
        %v3415 = vld [vmem:[#allocation2 + $0x28] sm:$0xf]
        %v3416 = vld [vmem:[#allocation2 + $0x2c] sm:$0x1]
        %v3417 = vld [vmem:[#allocation2 + $0x30] sm:$0xe]
        %v3418 = vld [vmem:[#allocation2 + $0x34] sm:$0xf]
        %v3419 = vld [vmem:[#allocation2 + $0x38] sm:$0x1]
        %v3420 = vld [vmem:[#allocation2 + $0x3c] sm:$0xe]
        %v3421 = vld [vmem:[#allocation2 + $0x40] sm:$0xf]
        %v3422 = vld [vmem:[#allocation2 + $0x44] sm:$0x1]
        %v3423 = vld [vmem:[#allocation2 + $0x48] sm:$0xe]
        %v3424 = vld [vmem:[#allocation2 + $0x4c] sm:$0xf]
        %v3425 = vld [vmem:[#allocation2 + $0x50] sm:$0x1]
        %v3426 = vld [vmem:[#allocation2 + $0x54] sm:$0xe]
        %v3427 = vld [vmem:[#allocation2 + $0x58] sm:$0xf]
        %v3428 = vld [vmem:[#allocation2 + $0x5c] sm:$0x1]
        %v3429 = vld [vmem:[#allocation2 + $0x60] sm:$0xe]
        %v3430 = vld [vmem:[#allocation2 + $0x64] sm:$0xf]
        %v3431 = vld [vmem:[#allocation2 + $0x68] sm:$0x1]
        %v3432 = vld [vmem:[#allocation2 + $0x6c] sm:$0xe]
        %v3433 = vld [vmem:[#allocation2 + $0x70] sm:$0xf]
        %v3434 = vld [vmem:[#allocation2 + $0x74] sm:$0x1]
        %v3435 = vld [vmem:[#allocation2 + $0x78] sm:$0xe]
        %v3436 = vld [vmem:[#allocation2 + $0x7c] sm:$0xf]
        %v3437 = vld [vmem:[#allocation2 + $0x80] sm:$0x1]
        %v3438 = vld [vmem:[#allocation2 + $0x84] sm:$0xe]
        %v3439 = vld [vmem:[#allocation2 + $0x88] sm:$0xf]
        %v3440 = vld [vmem:[#allocation2 + $0x8c] sm:$0x1]
        %v3441 = vld [vmem:[#allocation2 + $0x90] sm:$0xe]
        %v3442 = vld [vmem:[#allocation2 + $0x94] sm:$0xf]
        %v3443 = vld [vmem:[#allocation2 + $0x98] sm:$0x1]
        %v3444 = vld [vmem:[#allocation2 + $0x9c] sm:$0xe]
        %v3445 = vld [vmem:[#allocation2 + $0xa0] sm:$0xf]
        %v3446 = vld [vmem:[#allocation2 + $0xa4] sm:$0x1]
        %v3447 = vld [vmem:[#allocation2 + $0xa8] sm:$0xe]
        %v3448 = vld [vmem:[#allocation2 + $0xac] sm:$0xf]
        %v3449 = vld [vmem:[#allocation2 + $0xb0] sm:$0x1]
        %v3450 = vld [vmem:[#allocation2 + $0xb4] sm:$0xe]
        %v3451 = vld [vmem:[#allocation2 + $0xb8] sm:$0xf]
        %v3452 = vld [vmem:[#allocation2 + $0xbc] sm:$0x1]
        %vm3501 = vcmask 1042432
        %vm3502 = vcmask 1046532
        %vm3503 = vmor %vm3501, %vm3502
        %v3504 = vrot.slane %v3405, 5
        %v3505 = vrot.slane %v3504, 4
        %v3506 = vrot.slane %v3406, 5
        %v3507 = vsel %vm3503, %v3505, %v3506
        %v3508 = vrot.slane %v3506, 4
        %v3509 = vrot.slane %v3407, 5
        %v3510 = vsel %vm3503, %v3508, %v3509
        %v3511 = vrot.slane %v3408, 5
        %v3512 = vrot.slane %v3511, 4
        %v3513 = vrot.slane %v3409, 5
        %v3514 = vsel %vm3503, %v3512, %v3513
        %v3515 = vrot.slane %v3513, 4
        %v3516 = vrot.slane %v3410, 5
        %v3517 = vsel %vm3503, %v3515, %v3516
        %v3518 = vrot.slane %v3411, 5
        %v3519 = vrot.slane %v3518, 4
        %v3520 = vrot.slane %v3412, 5
        %v3521 = vsel %vm3503, %v3519, %v3520
        %v3522 = vrot.slane %v3520, 4
        %v3523 = vrot.slane %v3413, 5
        %v3524 = vsel %vm3503, %v3522, %v3523
        %v3525 = vrot.slane %v3414, 5
        %v3526 = vrot.slane %v3525, 4
        %v3527 = vrot.slane %v3415, 5
        %v3528 = vsel %vm3503, %v3526, %v3527
        %v3529 = vrot.slane %v3527, 4
        %v3530 = vrot.slane %v3416, 5
        %v3531 = vsel %vm3503, %v3529, %v3530
        %v3532 = vrot.slane %v3417, 5
        %v3533 = vrot.slane %v3532, 4
        %v3534 = vrot.slane %v3418, 5
        %v3535 = vsel %vm3503, %v3533, %v3534
        %v3536 = vrot.slane %v3534, 4
        %v3537 = vrot.slane %v3419, 5
        %v3538 = vsel %vm3503, %v3536, %v3537
        %v3539 = vrot.slane %v3420, 5
        %v3540 = vrot.slane %v3539, 4
        %v3541 = vrot.slane %v3421, 5
        %v3542 = vsel %vm3503, %v3540, %v3541
        %v3543 = vrot.slane %v3541, 4
        %v3544 = vrot.slane %v3422, 5
        %v3545 = vsel %vm3503, %v3543, %v3544
        %v3546 = vrot.slane %v3423, 5
        %v3547 = vrot.slane %v3546, 4
        %v3548 = vrot.slane %v3424, 5
        %v3549 = vsel %vm3503, %v3547, %v3548
        %v3550 = vrot.slane %v3548, 4
        %v3551 = vrot.slane %v3425, 5
        %v3552 = vsel %vm3503, %v3550, %v3551
        %v3553 = vrot.slane %v3426, 5
        %v3554 = vrot.slane %v3553, 4
        %v3555 = vrot.slane %v3427, 5
        %v3556 = vsel %vm3503, %v3554, %v3555
        %v3557 = vrot.slane %v3555, 4
        %v3558 = vrot.slane %v3428, 5
        %v3559 = vsel %vm3503, %v3557, %v3558
        %v3560 = vrot.slane %v3429, 5
        %v3561 = vrot.slane %v3560, 4
        %v3562 = vrot.slane %v3430, 5
        %v3563 = vsel %vm3503, %v3561, %v3562
        %v3564 = vrot.slane %v3562, 4
        %v3565 = vrot.slane %v3431, 5
        %v3566 = vsel %vm3503, %v3564, %v3565
        %v3567 = vrot.slane %v3432, 5
        %v3568 = vrot.slane %v3567, 4
        %v3569 = vrot.slane %v3433, 5
        %v3570 = vsel %vm3503, %v3568, %v3569
        %v3571 = vrot.slane %v3569, 4
        %v3572 = vrot.slane %v3434, 5
        %v3573 = vsel %vm3503, %v3571, %v3572
        %v3574 = vrot.slane %v3435, 5
        %v3575 = vrot.slane %v3574, 4
        %v3576 = vrot.slane %v3436, 5
        %v3577 = vsel %vm3503, %v3575, %v3576
        %v3578 = vrot.slane %v3576, 4
        %v3579 = vrot.slane %v3437, 5
        %v3580 = vsel %vm3503, %v3578, %v3579
        %v3581 = vrot.slane %v3438, 5
        %v3582 = vrot.slane %v3581, 4
        %v3583 = vrot.slane %v3439, 5
        %v3584 = vsel %vm3503, %v3582, %v3583
        %v3585 = vrot.slane %v3583, 4
        %v3586 = vrot.slane %v3440, 5
        %v3587 = vsel %vm3503, %v3585, %v3586
        %v3588 = vrot.slane %v3441, 5
        %v3589 = vrot.slane %v3588, 4
        %v3590 = vrot.slane %v3442, 5
        %v3591 = vsel %vm3503, %v3589, %v3590
        %v3592 = vrot.slane %v3590, 4
        %v3593 = vrot.slane %v3443, 5
        %v3594 = vsel %vm3503, %v3592, %v3593
        %v3595 = vrot.slane %v3444, 5
        %v3596 = vrot.slane %v3595, 4
        %v3597 = vrot.slane %v3445, 5
        %v3598 = vsel %vm3503, %v3596, %v3597
        %v3599 = vrot.slane %v3597, 4
        %v3600 = vrot.slane %v3446, 5
        %v3601 = vsel %vm3503, %v3599, %v3600
        %v3602 = vrot.slane %v3447, 5
        %v3603 = vrot.slane %v3602, 4
        %v3604 = vrot.slane %v3448, 5
        %v3605 = vsel %vm3503, %v3603, %v3604
        %v3606 = vrot.slane %v3604, 4
        %v3607 = vrot.slane %v3449, 5
        %v3608 = vsel %vm3503, %v3606, %v3607
        %v3609 = vrot.slane %v3450, 5
        %v3610 = vrot.slane %v3609, 4
        %v3611 = vrot.slane %v3451, 5
        %v3612 = vsel %vm3503, %v3610, %v3611
        %v3613 = vrot.slane %v3611, 4
        %v3614 = vrot.slane %v3452, 5
        %v3615 = vsel %vm3503, %v3613, %v3614
        %v3616 = vunpack.c.l.b16 %v3507
        %v3617 = vunpack.c.l.b16 %v3510
        %v3618 = vunpack.c.l.b16 %v3514
        %v3619 = vunpack.c.l.b16 %v3517
        %v3620 = vunpack.c.l.b16 %v3521
        %v3621 = vunpack.c.l.b16 %v3524
        %v3622 = vunpack.c.l.b16 %v3528
        %v3623 = vunpack.c.l.b16 %v3531
        %v3624 = vunpack.c.l.b16 %v3535
        %v3625 = vunpack.c.l.b16 %v3538
        %v3626 = vunpack.c.l.b16 %v3542
        %v3627 = vunpack.c.l.b16 %v3545
        %v3628 = vunpack.c.l.b16 %v3549
        %v3629 = vunpack.c.l.b16 %v3552
        %v3630 = vunpack.c.l.b16 %v3556
        %v3631 = vunpack.c.l.b16 %v3559
        %v3632 = vunpack.c.l.b16 %v3563
        %v3633 = vunpack.c.l.b16 %v3566
        %v3634 = vunpack.c.l.b16 %v3570
        %v3635 = vunpack.c.l.b16 %v3573
        %v3636 = vunpack.c.l.b16 %v3577
        %v3637 = vunpack.c.l.b16 %v3580
        %v3638 = vunpack.c.l.b16 %v3584
        %v3639 = vunpack.c.l.b16 %v3587
        %v3640 = vunpack.c.l.b16 %v3591
        %v3641 = vunpack.c.l.b16 %v3594
        %v3642 = vunpack.c.l.b16 %v3598
        %v3643 = vunpack.c.l.b16 %v3601
        %v3644 = vunpack.c.l.b16 %v3605
        %v3645 = vunpack.c.l.b16 %v3608
        %v3646 = vunpack.c.l.b16 %v3612
        %v3647 = vunpack.c.l.b16 %v3615
        %v3648 = vpack.c.b16 %v3617, %v3616
        %v3649 = vpack.c.b16 %v3619, %v3618
        %v3650 = vpack.c.b16 %v3621, %v3620
        %v3651 = vpack.c.b16 %v3623, %v3622
        %v3652 = vpack.c.b16 %v3625, %v3624
        %v3653 = vpack.c.b16 %v3627, %v3626
        %v3654 = vpack.c.b16 %v3629, %v3628
        %v3655 = vpack.c.b16 %v3631, %v3630
        %v3656 = vpack.c.b16 %v3633, %v3632
        %v3657 = vpack.c.b16 %v3635, %v3634
        %v3658 = vpack.c.b16 %v3637, %v3636
        %v3659 = vpack.c.b16 %v3639, %v3638
        %v3660 = vpack.c.b16 %v3641, %v3640
        %v3661 = vpack.c.b16 %v3643, %v3642
        %v3662 = vpack.c.b16 %v3645, %v3644
        %v3663 = vpack.c.b16 %v3647, %v3646
        %3680 = vst [vmem:[#allocation3 + $0x10] sm:$0xff] %v3648
        %3681 = vst [vmem:[#allocation3 + $0x58] sm:$0xff] %v3649
        %3682 = vst [vmem:[#allocation3 + $0xa0] sm:$0xff] %v3650
        %3683 = vst [vmem:[#allocation3 + $0xe8] sm:$0xff] %v3651
        %3684 = vst [vmem:[#allocation3 + $0x130] sm:$0xff] %v3652
        %3685 = vst [vmem:[#allocation3 + $0x178] sm:$0xff] %v3653
        %3686 = vst [vmem:[#allocation3 + $0x1c0] sm:$0xff] %v3654
        %3687 = vst [vmem:[#allocation3 + $0x208] sm:$0xff] %v3655
        %3688 = vst [vmem:[#allocation3 + $0x250] sm:$0xff] %v3656
        %3689 = vst [vmem:[#allocation3 + $0x298] sm:$0xff] %v3657
        %3690 = vst [vmem:[#allocation3 + $0x2e0] sm:$0xff] %v3658
        %3691 = vst [vmem:[#allocation3 + $0x328] sm:$0xff] %v3659
        %3692 = vst [vmem:[#allocation3 + $0x370] sm:$0xff] %v3660
        %3693 = vst [vmem:[#allocation3 + $0x3b8] sm:$0xff] %v3661
        %3694 = vst [vmem:[#allocation3 + $0x400] sm:$0xff] %v3662
        %3695 = vst [vmem:[#allocation3 + $0x448] sm:$0xff] %v3663
        %v3696 = vld [vmem:[%s2631] sm:$0xf]
        %v3697 = vld [vmem:[%s2631 + $0x4] sm:$0xf]
        %v3698 = vld [vmem:[%s2631 + $0xc] sm:$0xf]
        %v3699 = vld [vmem:[%s2631 + $0x10] sm:$0xf]
        %v3700 = vld [vmem:[%s2631 + $0x18] sm:$0xf]
        %v3701 = vld [vmem:[%s2631 + $0x1c] sm:$0xf]
        %v3702 = vld [vmem:[%s2631 + $0x24] sm:$0xf]
        %v3703 = vld [vmem:[%s2631 + $0x28] sm:$0xf]
        %v3704 = vld [vmem:[%s2631 + $0x30] sm:$0xf]
        %v3705 = vld [vmem:[%s2631 + $0x34] sm:$0xf]
        %v3706 = vld [vmem:[%s2631 + $0x3c] sm:$0xf]
        %v3707 = vld [vmem:[%s2631 + $0x40] sm:$0xf]
        %v3708 = vld [vmem:[%s2631 + $0x48] sm:$0xf]
        %v3709 = vld [vmem:[%s2631 + $0x4c] sm:$0xf]
        %v3710 = vld [vmem:[%s2631 + $0x54] sm:$0xf]
        %v3711 = vld [vmem:[%s2631 + $0x58] sm:$0xf]
        %v3712 = vld [vmem:[%s2631 + $0x60] sm:$0xf]
        %v3713 = vld [vmem:[%s2631 + $0x64] sm:$0xf]
        %v3714 = vld [vmem:[%s2631 + $0x6c] sm:$0xf]
        %v3715 = vld [vmem:[%s2631 + $0x70] sm:$0xf]
        %v3716 = vld [vmem:[%s2631 + $0x78] sm:$0xf]
        %v3717 = vld [vmem:[%s2631 + $0x7c] sm:$0xf]
        %v3718 = vld [vmem:[%s2631 + $0x84] sm:$0xf]
        %v3719 = vld [vmem:[%s2631 + $0x88] sm:$0xf]
        %v3720 = vld [vmem:[%s2631 + $0x90] sm:$0xf]
        %v3721 = vld [vmem:[%s2631 + $0x94] sm:$0xf]
        %v3722 = vld [vmem:[%s2631 + $0x9c] sm:$0xf]
        %v3723 = vld [vmem:[%s2631 + $0xa0] sm:$0xf]
        %v3724 = vld [vmem:[%s2631 + $0xa8] sm:$0xf]
        %v3725 = vld [vmem:[%s2631 + $0xac] sm:$0xf]
        %v3726 = vld [vmem:[%s2631 + $0xb4] sm:$0xf]
        %v3727 = vld [vmem:[%s2631 + $0xb8] sm:$0xf]
        %v3760 = vunpack.c.l.b16 %v3696
        %v3761 = vunpack.c.l.b16 %v3697
        %v3762 = vunpack.c.l.b16 %v3698
        %v3763 = vunpack.c.l.b16 %v3699
        %v3764 = vunpack.c.l.b16 %v3700
        %v3765 = vunpack.c.l.b16 %v3701
        %v3766 = vunpack.c.l.b16 %v3702
        %v3767 = vunpack.c.l.b16 %v3703
        %v3768 = vunpack.c.l.b16 %v3704
        %v3769 = vunpack.c.l.b16 %v3705
        %v3770 = vunpack.c.l.b16 %v3706
        %v3771 = vunpack.c.l.b16 %v3707
        %v3772 = vunpack.c.l.b16 %v3708
        %v3773 = vunpack.c.l.b16 %v3709
        %v3774 = vunpack.c.l.b16 %v3710
        %v3775 = vunpack.c.l.b16 %v3711
        %v3776 = vunpack.c.l.b16 %v3712
        %v3777 = vunpack.c.l.b16 %v3713
        %v3778 = vunpack.c.l.b16 %v3714
        %v3779 = vunpack.c.l.b16 %v3715
        %v3780 = vunpack.c.l.b16 %v3716
        %v3781 = vunpack.c.l.b16 %v3717
        %v3782 = vunpack.c.l.b16 %v3718
        %v3783 = vunpack.c.l.b16 %v3719
        %v3784 = vunpack.c.l.b16 %v3720
        %v3785 = vunpack.c.l.b16 %v3721
        %v3786 = vunpack.c.l.b16 %v3722
        %v3787 = vunpack.c.l.b16 %v3723
        %v3788 = vunpack.c.l.b16 %v3724
        %v3789 = vunpack.c.l.b16 %v3725
        %v3790 = vunpack.c.l.b16 %v3726
        %v3791 = vunpack.c.l.b16 %v3727
        %v3792 = vpack.c.b16 %v3761, %v3760
        %v3793 = vpack.c.b16 %v3763, %v3762
        %v3794 = vpack.c.b16 %v3765, %v3764
        %v3795 = vpack.c.b16 %v3767, %v3766
        %v3796 = vpack.c.b16 %v3769, %v3768
        %v3797 = vpack.c.b16 %v3771, %v3770
        %v3798 = vpack.c.b16 %v3773, %v3772
        %v3799 = vpack.c.b16 %v3775, %v3774
        %v3800 = vpack.c.b16 %v3777, %v3776
        %v3801 = vpack.c.b16 %v3779, %v3778
        %v3802 = vpack.c.b16 %v3781, %v3780
        %v3803 = vpack.c.b16 %v3783, %v3782
        %v3804 = vpack.c.b16 %v3785, %v3784
        %v3805 = vpack.c.b16 %v3787, %v3786
        %v3806 = vpack.c.b16 %v3789, %v3788
        %v3807 = vpack.c.b16 %v3791, %v3790
        %3824 = vst [vmem:[#allocation3 + $0x18] sm:$0xff] %v3792
        %3825 = vst [vmem:[#allocation3 + $0x60] sm:$0xff] %v3793
        %3826 = vst [vmem:[#allocation3 + $0xa8] sm:$0xff] %v3794
        %3827 = vst [vmem:[#allocation3 + $0xf0] sm:$0xff] %v3795
        %3828 = vst [vmem:[#allocation3 + $0x138] sm:$0xff] %v3796
        %3829 = vst [vmem:[#allocation3 + $0x180] sm:$0xff] %v3797
        %3830 = vst [vmem:[#allocation3 + $0x1c8] sm:$0xff] %v3798
        %3831 = vst [vmem:[#allocation3 + $0x210] sm:$0xff] %v3799
        %3832 = vst [vmem:[#allocation3 + $0x258] sm:$0xff] %v3800
        %3833 = vst [vmem:[#allocation3 + $0x2a0] sm:$0xff] %v3801
        %3834 = vst [vmem:[#allocation3 + $0x2e8] sm:$0xff] %v3802
        %3835 = vst [vmem:[#allocation3 + $0x330] sm:$0xff] %v3803
        %3836 = vst [vmem:[#allocation3 + $0x378] sm:$0xff] %v3804
        %3837 = vst [vmem:[#allocation3 + $0x3c0] sm:$0xff] %v3805
        %3838 = vst [vmem:[#allocation3 + $0x408] sm:$0xff] %v3806
        %3839 = vst [vmem:[#allocation3 + $0x450] sm:$0xff] %v3807
        %v3840 = vld [vmem:[%s2631] sm:$0xf]
        %v3841 = vld [vmem:[%s2631 + $0x4] sm:$0xf]
        %v3842 = vld [vmem:[%s2631 + $0x8] sm:$0x1]
        %v3843 = vld [vmem:[%s2631 + $0xc] sm:$0xf]
        %v3844 = vld [vmem:[%s2631 + $0x10] sm:$0xf]
        %v3845 = vld [vmem:[%s2631 + $0x14] sm:$0x1]
        %v3846 = vld [vmem:[%s2631 + $0x18] sm:$0xf]
        %v3847 = vld [vmem:[%s2631 + $0x1c] sm:$0xf]
        %v3848 = vld [vmem:[%s2631 + $0x20] sm:$0x1]
        %v3849 = vld [vmem:[%s2631 + $0x24] sm:$0xf]
        %v3850 = vld [vmem:[%s2631 + $0x28] sm:$0xf]
        %v3851 = vld [vmem:[%s2631 + $0x2c] sm:$0x1]
        %v3852 = vld [vmem:[%s2631 + $0x30] sm:$0xf]
        %v3853 = vld [vmem:[%s2631 + $0x34] sm:$0xf]
        %v3854 = vld [vmem:[%s2631 + $0x38] sm:$0x1]
        %v3855 = vld [vmem:[%s2631 + $0x3c] sm:$0xf]
        %v3856 = vld [vmem:[%s2631 + $0x40] sm:$0xf]
        %v3857 = vld [vmem:[%s2631 + $0x44] sm:$0x1]
        %v3858 = vld [vmem:[%s2631 + $0x48] sm:$0xf]
        %v3859 = vld [vmem:[%s2631 + $0x4c] sm:$0xf]
        %v3860 = vld [vmem:[%s2631 + $0x50] sm:$0x1]
        %v3861 = vld [vmem:[%s2631 + $0x54] sm:$0xf]
        %v3862 = vld [vmem:[%s2631 + $0x58] sm:$0xf]
        %v3863 = vld [vmem:[%s2631 + $0x5c] sm:$0x1]
        %v3864 = vld [vmem:[%s2631 + $0x60] sm:$0xf]
        %v3865 = vld [vmem:[%s2631 + $0x64] sm:$0xf]
        %v3866 = vld [vmem:[%s2631 + $0x68] sm:$0x1]
        %v3867 = vld [vmem:[%s2631 + $0x6c] sm:$0xf]
        %v3868 = vld [vmem:[%s2631 + $0x70] sm:$0xf]
        %v3869 = vld [vmem:[%s2631 + $0x74] sm:$0x1]
        %v3870 = vld [vmem:[%s2631 + $0x78] sm:$0xf]
        %v3871 = vld [vmem:[%s2631 + $0x7c] sm:$0xf]
        %v3872 = vld [vmem:[%s2631 + $0x80] sm:$0x1]
        %v3873 = vld [vmem:[%s2631 + $0x84] sm:$0xf]
        %v3874 = vld [vmem:[%s2631 + $0x88] sm:$0xf]
        %v3875 = vld [vmem:[%s2631 + $0x8c] sm:$0x1]
        %v3876 = vld [vmem:[%s2631 + $0x90] sm:$0xf]
        %v3877 = vld [vmem:[%s2631 + $0x94] sm:$0xf]
        %v3878 = vld [vmem:[%s2631 + $0x98] sm:$0x1]
        %v3879 = vld [vmem:[%s2631 + $0x9c] sm:$0xf]
        %v3880 = vld [vmem:[%s2631 + $0xa0] sm:$0xf]
        %v3881 = vld [vmem:[%s2631 + $0xa4] sm:$0x1]
        %v3882 = vld [vmem:[%s2631 + $0xa8] sm:$0xf]
        %v3883 = vld [vmem:[%s2631 + $0xac] sm:$0xf]
        %v3884 = vld [vmem:[%s2631 + $0xb0] sm:$0x1]
        %v3885 = vld [vmem:[%s2631 + $0xb4] sm:$0xf]
        %v3886 = vld [vmem:[%s2631 + $0xb8] sm:$0xf]
        %v3887 = vld [vmem:[%s2631 + $0xbc] sm:$0x1]
        %v3889 = vshrl.u32 %v3840, 16
        %v3891 = vrot.slane %v3889, 4
        %v3892 = vshll.u32 %v3840, 16
        %v3894 = vrot.slane %v3892, 5
        %v3895 = vor.u32 %v3891, %v3894
        %v3896 = vrot.slane %v3895, 4
        %v3898 = vshll.u32 %v3841, 16
        %v3900 = vrot.slane %v3898, 5
        %v3901 = vsel %vm2940, %v3896, %v3900
        %v3902 = vshrl.u32 %v3841, 16
        %v3904 = vrot.slane %v3902, 4
        %v3905 = vor.u32 %v3904, %v3900
        %v3906 = vrot.slane %v3905, 4
        %v3908 = vshll.u32 %v3842, 16
        %v3910 = vrot.slane %v3908, 5
        %v3911 = vsel %vm2940, %v3906, %v3910
        %v3913 = vshrl.u32 %v3843, 16
        %v3915 = vrot.slane %v3913, 4
        %v3916 = vshll.u32 %v3843, 16
        %v3918 = vrot.slane %v3916, 5
        %v3919 = vor.u32 %v3915, %v3918
        %v3920 = vrot.slane %v3919, 4
        %v3922 = vshll.u32 %v3844, 16
        %v3924 = vrot.slane %v3922, 5
        %v3925 = vsel %vm2940, %v3920, %v3924
        %v3926 = vshrl.u32 %v3844, 16
        %v3928 = vrot.slane %v3926, 4
        %v3929 = vor.u32 %v3928, %v3924
        %v3930 = vrot.slane %v3929, 4
        %v3932 = vshll.u32 %v3845, 16
        %v3934 = vrot.slane %v3932, 5
        %v3935 = vsel %vm2940, %v3930, %v3934
        %v3937 = vshrl.u32 %v3846, 16
        %v3939 = vrot.slane %v3937, 4
        %v3940 = vshll.u32 %v3846, 16
        %v3942 = vrot.slane %v3940, 5
        %v3943 = vor.u32 %v3939, %v3942
        %v3944 = vrot.slane %v3943, 4
        %v3946 = vshll.u32 %v3847, 16
        %v3948 = vrot.slane %v3946, 5
        %v3949 = vsel %vm2940, %v3944, %v3948
        %v3950 = vshrl.u32 %v3847, 16
        %v3952 = vrot.slane %v3950, 4
        %v3953 = vor.u32 %v3952, %v3948
        %v3954 = vrot.slane %v3953, 4
        %v3956 = vshll.u32 %v3848, 16
        %v3958 = vrot.slane %v3956, 5
        %v3959 = vsel %vm2940, %v3954, %v3958
        %v3961 = vshrl.u32 %v3849, 16
        %v3963 = vrot.slane %v3961, 4
        %v3964 = vshll.u32 %v3849, 16
        %v3966 = vrot.slane %v3964, 5
        %v3967 = vor.u32 %v3963, %v3966
        %v3968 = vrot.slane %v3967, 4
        %v3970 = vshll.u32 %v3850, 16
        %v3972 = vrot.slane %v3970, 5
        %v3973 = vsel %vm2940, %v3968, %v3972
        %v3974 = vshrl.u32 %v3850, 16
        %v3976 = vrot.slane %v3974, 4
        %v3977 = vor.u32 %v3976, %v3972
        %v3978 = vrot.slane %v3977, 4
        %v3980 = vshll.u32 %v3851, 16
        %v3982 = vrot.slane %v3980, 5
        %v3983 = vsel %vm2940, %v3978, %v3982
        %v3985 = vshrl.u32 %v3852, 16
        %v3987 = vrot.slane %v3985, 4
        %v3988 = vshll.u32 %v3852, 16
        %v3990 = vrot.slane %v3988, 5
        %v3991 = vor.u32 %v3987, %v3990
        %v3992 = vrot.slane %v3991, 4
        %v3994 = vshll.u32 %v3853, 16
        %v3996 = vrot.slane %v3994, 5
        %v3997 = vsel %vm2940, %v3992, %v3996
        %v3998 = vshrl.u32 %v3853, 16
        %v4000 = vrot.slane %v3998, 4
        %v4001 = vor.u32 %v4000, %v3996
        %v4002 = vrot.slane %v4001, 4
        %v4004 = vshll.u32 %v3854, 16
        %v4006 = vrot.slane %v4004, 5
        %v4007 = vsel %vm2940, %v4002, %v4006
        %v4009 = vshrl.u32 %v3855, 16
        %v4011 = vrot.slane %v4009, 4
        %v4012 = vshll.u32 %v3855, 16
        %v4014 = vrot.slane %v4012, 5
        %v4015 = vor.u32 %v4011, %v4014
        %v4016 = vrot.slane %v4015, 4
        %v4018 = vshll.u32 %v3856, 16
        %v4020 = vrot.slane %v4018, 5
        %v4021 = vsel %vm2940, %v4016, %v4020
        %v4022 = vshrl.u32 %v3856, 16
        %v4024 = vrot.slane %v4022, 4
        %v4025 = vor.u32 %v4024, %v4020
        %v4026 = vrot.slane %v4025, 4
        %v4028 = vshll.u32 %v3857, 16
        %v4030 = vrot.slane %v4028, 5
        %v4031 = vsel %vm2940, %v4026, %v4030
        %v4033 = vshrl.u32 %v3858, 16
        %v4035 = vrot.slane %v4033, 4
        %v4036 = vshll.u32 %v3858, 16
        %v4038 = vrot.slane %v4036, 5
        %v4039 = vor.u32 %v4035, %v4038
        %v4040 = vrot.slane %v4039, 4
        %v4042 = vshll.u32 %v3859, 16
        %v4044 = vrot.slane %v4042, 5
        %v4045 = vsel %vm2940, %v4040, %v4044
        %v4046 = vshrl.u32 %v3859, 16
        %v4048 = vrot.slane %v4046, 4
        %v4049 = vor.u32 %v4048, %v4044
        %v4050 = vrot.slane %v4049, 4
        %v4052 = vshll.u32 %v3860, 16
        %v4054 = vrot.slane %v4052, 5
        %v4055 = vsel %vm2940, %v4050, %v4054
        %v4057 = vshrl.u32 %v3861, 16
        %v4059 = vrot.slane %v4057, 4
        %v4060 = vshll.u32 %v3861, 16
        %v4062 = vrot.slane %v4060, 5
        %v4063 = vor.u32 %v4059, %v4062
        %v4064 = vrot.slane %v4063, 4
        %v4066 = vshll.u32 %v3862, 16
        %v4068 = vrot.slane %v4066, 5
        %v4069 = vsel %vm2940, %v4064, %v4068
        %v4070 = vshrl.u32 %v3862, 16
        %v4072 = vrot.slane %v4070, 4
        %v4073 = vor.u32 %v4072, %v4068
        %v4074 = vrot.slane %v4073, 4
        %v4076 = vshll.u32 %v3863, 16
        %v4078 = vrot.slane %v4076, 5
        %v4079 = vsel %vm2940, %v4074, %v4078
        %v4081 = vshrl.u32 %v3864, 16
        %v4083 = vrot.slane %v4081, 4
        %v4084 = vshll.u32 %v3864, 16
        %v4086 = vrot.slane %v4084, 5
        %v4087 = vor.u32 %v4083, %v4086
        %v4088 = vrot.slane %v4087, 4
        %v4090 = vshll.u32 %v3865, 16
        %v4092 = vrot.slane %v4090, 5
        %v4093 = vsel %vm2940, %v4088, %v4092
        %v4094 = vshrl.u32 %v3865, 16
        %v4096 = vrot.slane %v4094, 4
        %v4097 = vor.u32 %v4096, %v4092
        %v4098 = vrot.slane %v4097, 4
        %v4100 = vshll.u32 %v3866, 16
        %v4102 = vrot.slane %v4100, 5
        %v4103 = vsel %vm2940, %v4098, %v4102
        %v4105 = vshrl.u32 %v3867, 16
        %v4107 = vrot.slane %v4105, 4
        %v4108 = vshll.u32 %v3867, 16
        %v4110 = vrot.slane %v4108, 5
        %v4111 = vor.u32 %v4107, %v4110
        %v4112 = vrot.slane %v4111, 4
        %v4114 = vshll.u32 %v3868, 16
        %v4116 = vrot.slane %v4114, 5
        %v4117 = vsel %vm2940, %v4112, %v4116
        %v4118 = vshrl.u32 %v3868, 16
        %v4120 = vrot.slane %v4118, 4
        %v4121 = vor.u32 %v4120, %v4116
        %v4122 = vrot.slane %v4121, 4
        %v4124 = vshll.u32 %v3869, 16
        %v4126 = vrot.slane %v4124, 5
        %v4127 = vsel %vm2940, %v4122, %v4126
        %v4129 = vshrl.u32 %v3870, 16
        %v4131 = vrot.slane %v4129, 4
        %v4132 = vshll.u32 %v3870, 16
        %v4134 = vrot.slane %v4132, 5
        %v4135 = vor.u32 %v4131, %v4134
        %v4136 = vrot.slane %v4135, 4
        %v4138 = vshll.u32 %v3871, 16
        %v4140 = vrot.slane %v4138, 5
        %v4141 = vsel %vm2940, %v4136, %v4140
        %v4142 = vshrl.u32 %v3871, 16
        %v4144 = vrot.slane %v4142, 4
        %v4145 = vor.u32 %v4144, %v4140
        %v4146 = vrot.slane %v4145, 4
        %v4148 = vshll.u32 %v3872, 16
        %v4150 = vrot.slane %v4148, 5
        %v4151 = vsel %vm2940, %v4146, %v4150
        %v4153 = vshrl.u32 %v3873, 16
        %v4155 = vrot.slane %v4153, 4
        %v4156 = vshll.u32 %v3873, 16
        %v4158 = vrot.slane %v4156, 5
        %v4159 = vor.u32 %v4155, %v4158
        %v4160 = vrot.slane %v4159, 4
        %v4162 = vshll.u32 %v3874, 16
        %v4164 = vrot.slane %v4162, 5
        %v4165 = vsel %vm2940, %v4160, %v4164
        %v4166 = vshrl.u32 %v3874, 16
        %v4168 = vrot.slane %v4166, 4
        %v4169 = vor.u32 %v4168, %v4164
        %v4170 = vrot.slane %v4169, 4
        %v4172 = vshll.u32 %v3875, 16
        %v4174 = vrot.slane %v4172, 5
        %v4175 = vsel %vm2940, %v4170, %v4174
        %v4177 = vshrl.u32 %v3876, 16
        %v4179 = vrot.slane %v4177, 4
        %v4180 = vshll.u32 %v3876, 16
        %v4182 = vrot.slane %v4180, 5
        %v4183 = vor.u32 %v4179, %v4182
        %v4184 = vrot.slane %v4183, 4
        %v4186 = vshll.u32 %v3877, 16
        %v4188 = vrot.slane %v4186, 5
        %v4189 = vsel %vm2940, %v4184, %v4188
        %v4190 = vshrl.u32 %v3877, 16
        %v4192 = vrot.slane %v4190, 4
        %v4193 = vor.u32 %v4192, %v4188
        %v4194 = vrot.slane %v4193, 4
        %v4196 = vshll.u32 %v3878, 16
        %v4198 = vrot.slane %v4196, 5
        %v4199 = vsel %vm2940, %v4194, %v4198
        %v4201 = vshrl.u32 %v3879, 16
        %v4203 = vrot.slane %v4201, 4
        %v4204 = vshll.u32 %v3879, 16
        %v4206 = vrot.slane %v4204, 5
        %v4207 = vor.u32 %v4203, %v4206
        %v4208 = vrot.slane %v4207, 4
        %v4210 = vshll.u32 %v3880, 16
        %v4212 = vrot.slane %v4210, 5
        %v4213 = vsel %vm2940, %v4208, %v4212
        %v4214 = vshrl.u32 %v3880, 16
        %v4216 = vrot.slane %v4214, 4
        %v4217 = vor.u32 %v4216, %v4212
        %v4218 = vrot.slane %v4217, 4
        %v4220 = vshll.u32 %v3881, 16
        %v4222 = vrot.slane %v4220, 5
        %v4223 = vsel %vm2940, %v4218, %v4222
        %v4225 = vshrl.u32 %v3882, 16
        %v4227 = vrot.slane %v4225, 4
        %v4228 = vshll.u32 %v3882, 16
        %v4230 = vrot.slane %v4228, 5
        %v4231 = vor.u32 %v4227, %v4230
        %v4232 = vrot.slane %v4231, 4
        %v4234 = vshll.u32 %v3883, 16
        %v4236 = vrot.slane %v4234, 5
        %v4237 = vsel %vm2940, %v4232, %v4236
        %v4238 = vshrl.u32 %v3883, 16
        %v4240 = vrot.slane %v4238, 4
        %v4241 = vor.u32 %v4240, %v4236
        %v4242 = vrot.slane %v4241, 4
        %v4244 = vshll.u32 %v3884, 16
        %v4246 = vrot.slane %v4244, 5
        %v4247 = vsel %vm2940, %v4242, %v4246
        %v4249 = vshrl.u32 %v3885, 16
        %v4251 = vrot.slane %v4249, 4
        %v4252 = vshll.u32 %v3885, 16
        %v4254 = vrot.slane %v4252, 5
        %v4255 = vor.u32 %v4251, %v4254
        %v4256 = vrot.slane %v4255, 4
        %v4258 = vshll.u32 %v3886, 16
        %v4260 = vrot.slane %v4258, 5
        %v4261 = vsel %vm2940, %v4256, %v4260
        %v4262 = vshrl.u32 %v3886, 16
        %v4264 = vrot.slane %v4262, 4
        %v4265 = vor.u32 %v4264, %v4260
        %v4266 = vrot.slane %v4265, 4
        %v4268 = vshll.u32 %v3887, 16
        %v4270 = vrot.slane %v4268, 5
        %v4271 = vsel %vm2940, %v4266, %v4270
        %v4272 = vunpack.c.l.b16 %v3901
        %v4273 = vunpack.c.l.b16 %v3911
        %v4274 = vunpack.c.l.b16 %v3925
        %v4275 = vunpack.c.l.b16 %v3935
        %v4276 = vunpack.c.l.b16 %v3949
        %v4277 = vunpack.c.l.b16 %v3959
        %v4278 = vunpack.c.l.b16 %v3973
        %v4279 = vunpack.c.l.b16 %v3983
        %v4280 = vunpack.c.l.b16 %v3997
        %v4281 = vunpack.c.l.b16 %v4007
        %v4282 = vunpack.c.l.b16 %v4021
        %v4283 = vunpack.c.l.b16 %v4031
        %v4284 = vunpack.c.l.b16 %v4045
        %v4285 = vunpack.c.l.b16 %v4055
        %v4286 = vunpack.c.l.b16 %v4069
        %v4287 = vunpack.c.l.b16 %v4079
        %v4288 = vunpack.c.l.b16 %v4093
        %v4289 = vunpack.c.l.b16 %v4103
        %v4290 = vunpack.c.l.b16 %v4117
        %v4291 = vunpack.c.l.b16 %v4127
        %v4292 = vunpack.c.l.b16 %v4141
        %v4293 = vunpack.c.l.b16 %v4151
        %v4294 = vunpack.c.l.b16 %v4165
        %v4295 = vunpack.c.l.b16 %v4175
        %v4296 = vunpack.c.l.b16 %v4189
        %v4297 = vunpack.c.l.b16 %v4199
        %v4298 = vunpack.c.l.b16 %v4213
        %v4299 = vunpack.c.l.b16 %v4223
        %v4300 = vunpack.c.l.b16 %v4237
        %v4301 = vunpack.c.l.b16 %v4247
        %v4302 = vunpack.c.l.b16 %v4261
        %v4303 = vunpack.c.l.b16 %v4271
        %v4304 = vpack.c.b16 %v4273, %v4272
        %v4305 = vpack.c.b16 %v4275, %v4274
        %v4306 = vpack.c.b16 %v4277, %v4276
        %v4307 = vpack.c.b16 %v4279, %v4278
        %v4308 = vpack.c.b16 %v4281, %v4280
        %v4309 = vpack.c.b16 %v4283, %v4282
        %v4310 = vpack.c.b16 %v4285, %v4284
        %v4311 = vpack.c.b16 %v4287, %v4286
        %v4312 = vpack.c.b16 %v4289, %v4288
        %v4313 = vpack.c.b16 %v4291, %v4290
        %v4314 = vpack.c.b16 %v4293, %v4292
        %v4315 = vpack.c.b16 %v4295, %v4294
        %v4316 = vpack.c.b16 %v4297, %v4296
        %v4317 = vpack.c.b16 %v4299, %v4298
        %v4318 = vpack.c.b16 %v4301, %v4300
        %v4319 = vpack.c.b16 %v4303, %v4302
        %4336 = vst [vmem:[#allocation3 + $0x20] sm:$0xff] %v4304
        %4337 = vst [vmem:[#allocation3 + $0x68] sm:$0xff] %v4305
        %4338 = vst [vmem:[#allocation3 + $0xb0] sm:$0xff] %v4306
        %4339 = vst [vmem:[#allocation3 + $0xf8] sm:$0xff] %v4307
        %4340 = vst [vmem:[#allocation3 + $0x140] sm:$0xff] %v4308
        %4341 = vst [vmem:[#allocation3 + $0x188] sm:$0xff] %v4309
        %4342 = vst [vmem:[#allocation3 + $0x1d0] sm:$0xff] %v4310
        %4343 = vst [vmem:[#allocation3 + $0x218] sm:$0xff] %v4311
        %4344 = vst [vmem:[#allocation3 + $0x260] sm:$0xff] %v4312
        %4345 = vst [vmem:[#allocation3 + $0x2a8] sm:$0xff] %v4313
        %4346 = vst [vmem:[#allocation3 + $0x2f0] sm:$0xff] %v4314
        %4347 = vst [vmem:[#allocation3 + $0x338] sm:$0xff] %v4315
        %4348 = vst [vmem:[#allocation3 + $0x380] sm:$0xff] %v4316
        %4349 = vst [vmem:[#allocation3 + $0x3c8] sm:$0xff] %v4317
        %4350 = vst [vmem:[#allocation3 + $0x410] sm:$0xff] %v4318
        %4351 = vst [vmem:[#allocation3 + $0x458] sm:$0xff] %v4319
        %v4352 = vld [vmem:[%s2631] sm:$0xe]
        %v4353 = vld [vmem:[%s2631 + $0x4] sm:$0xf]
        %v4354 = vld [vmem:[%s2631 + $0x8] sm:$0x1]
        %v4355 = vld [vmem:[%s2631 + $0xc] sm:$0xe]
        %v4356 = vld [vmem:[%s2631 + $0x10] sm:$0xf]
        %v4357 = vld [vmem:[%s2631 + $0x14] sm:$0x1]
        %v4358 = vld [vmem:[%s2631 + $0x18] sm:$0xe]
        %v4359 = vld [vmem:[%s2631 + $0x1c] sm:$0xf]
        %v4360 = vld [vmem:[%s2631 + $0x20] sm:$0x1]
        %v4361 = vld [vmem:[%s2631 + $0x24] sm:$0xe]
        %v4362 = vld [vmem:[%s2631 + $0x28] sm:$0xf]
        %v4363 = vld [vmem:[%s2631 + $0x2c] sm:$0x1]
        %v4364 = vld [vmem:[%s2631 + $0x30] sm:$0xe]
        %v4365 = vld [vmem:[%s2631 + $0x34] sm:$0xf]
        %v4366 = vld [vmem:[%s2631 + $0x38] sm:$0x1]
        %v4367 = vld [vmem:[%s2631 + $0x3c] sm:$0xe]
        %v4368 = vld [vmem:[%s2631 + $0x40] sm:$0xf]
        %v4369 = vld [vmem:[%s2631 + $0x44] sm:$0x1]
        %v4370 = vld [vmem:[%s2631 + $0x48] sm:$0xe]
        %v4371 = vld [vmem:[%s2631 + $0x4c] sm:$0xf]
        %v4372 = vld [vmem:[%s2631 + $0x50] sm:$0x1]
        %v4373 = vld [vmem:[%s2631 + $0x54] sm:$0xe]
        %v4374 = vld [vmem:[%s2631 + $0x58] sm:$0xf]
        %v4375 = vld [vmem:[%s2631 + $0x5c] sm:$0x1]
        %v4376 = vld [vmem:[%s2631 + $0x60] sm:$0xe]
        %v4377 = vld [vmem:[%s2631 + $0x64] sm:$0xf]
        %v4378 = vld [vmem:[%s2631 + $0x68] sm:$0x1]
        %v4379 = vld [vmem:[%s2631 + $0x6c] sm:$0xe]
        %v4380 = vld [vmem:[%s2631 + $0x70] sm:$0xf]
        %v4381 = vld [vmem:[%s2631 + $0x74] sm:$0x1]
        %v4382 = vld [vmem:[%s2631 + $0x78] sm:$0xe]
        %v4383 = vld [vmem:[%s2631 + $0x7c] sm:$0xf]
        %v4384 = vld [vmem:[%s2631 + $0x80] sm:$0x1]
        %v4385 = vld [vmem:[%s2631 + $0x84] sm:$0xe]
        %v4386 = vld [vmem:[%s2631 + $0x88] sm:$0xf]
        %v4387 = vld [vmem:[%s2631 + $0x8c] sm:$0x1]
        %v4388 = vld [vmem:[%s2631 + $0x90] sm:$0xe]
        %v4389 = vld [vmem:[%s2631 + $0x94] sm:$0xf]
        %v4390 = vld [vmem:[%s2631 + $0x98] sm:$0x1]
        %v4391 = vld [vmem:[%s2631 + $0x9c] sm:$0xe]
        %v4392 = vld [vmem:[%s2631 + $0xa0] sm:$0xf]
        %v4393 = vld [vmem:[%s2631 + $0xa4] sm:$0x1]
        %v4394 = vld [vmem:[%s2631 + $0xa8] sm:$0xe]
        %v4395 = vld [vmem:[%s2631 + $0xac] sm:$0xf]
        %v4396 = vld [vmem:[%s2631 + $0xb0] sm:$0x1]
        %v4397 = vld [vmem:[%s2631 + $0xb4] sm:$0xe]
        %v4398 = vld [vmem:[%s2631 + $0xb8] sm:$0xf]
        %v4399 = vld [vmem:[%s2631 + $0xbc] sm:$0x1]
        %v4448 = vrot.slane %v4352, 5
        %v4449 = vrot.slane %v4448, 4
        %v4450 = vrot.slane %v4353, 5
        %v4451 = vsel %vm3503, %v4449, %v4450
        %v4452 = vrot.slane %v4450, 4
        %v4453 = vrot.slane %v4354, 5
        %v4454 = vsel %vm3503, %v4452, %v4453
        %v4455 = vrot.slane %v4355, 5
        %v4456 = vrot.slane %v4455, 4
        %v4457 = vrot.slane %v4356, 5
        %v4458 = vsel %vm3503, %v4456, %v4457
        %v4459 = vrot.slane %v4457, 4
        %v4460 = vrot.slane %v4357, 5
        %v4461 = vsel %vm3503, %v4459, %v4460
        %v4462 = vrot.slane %v4358, 5
        %v4463 = vrot.slane %v4462, 4
        %v4464 = vrot.slane %v4359, 5
        %v4465 = vsel %vm3503, %v4463, %v4464
        %v4466 = vrot.slane %v4464, 4
        %v4467 = vrot.slane %v4360, 5
        %v4468 = vsel %vm3503, %v4466, %v4467
        %v4469 = vrot.slane %v4361, 5
        %v4470 = vrot.slane %v4469, 4
        %v4471 = vrot.slane %v4362, 5
        %v4472 = vsel %vm3503, %v4470, %v4471
        %v4473 = vrot.slane %v4471, 4
        %v4474 = vrot.slane %v4363, 5
        %v4475 = vsel %vm3503, %v4473, %v4474
        %v4476 = vrot.slane %v4364, 5
        %v4477 = vrot.slane %v4476, 4
        %v4478 = vrot.slane %v4365, 5
        %v4479 = vsel %vm3503, %v4477, %v4478
        %v4480 = vrot.slane %v4478, 4
        %v4481 = vrot.slane %v4366, 5
        %v4482 = vsel %vm3503, %v4480, %v4481
        %v4483 = vrot.slane %v4367, 5
        %v4484 = vrot.slane %v4483, 4
        %v4485 = vrot.slane %v4368, 5
        %v4486 = vsel %vm3503, %v4484, %v4485
        %v4487 = vrot.slane %v4485, 4
        %v4488 = vrot.slane %v4369, 5
        %v4489 = vsel %vm3503, %v4487, %v4488
        %v4490 = vrot.slane %v4370, 5
        %v4491 = vrot.slane %v4490, 4
        %v4492 = vrot.slane %v4371, 5
        %v4493 = vsel %vm3503, %v4491, %v4492
        %v4494 = vrot.slane %v4492, 4
        %v4495 = vrot.slane %v4372, 5
        %v4496 = vsel %vm3503, %v4494, %v4495
        %v4497 = vrot.slane %v4373, 5
        %v4498 = vrot.slane %v4497, 4
        %v4499 = vrot.slane %v4374, 5
        %v4500 = vsel %vm3503, %v4498, %v4499
        %v4501 = vrot.slane %v4499, 4
        %v4502 = vrot.slane %v4375, 5
        %v4503 = vsel %vm3503, %v4501, %v4502
        %v4504 = vrot.slane %v4376, 5
        %v4505 = vrot.slane %v4504, 4
        %v4506 = vrot.slane %v4377, 5
        %v4507 = vsel %vm3503, %v4505, %v4506
        %v4508 = vrot.slane %v4506, 4
        %v4509 = vrot.slane %v4378, 5
        %v4510 = vsel %vm3503, %v4508, %v4509
        %v4511 = vrot.slane %v4379, 5
        %v4512 = vrot.slane %v4511, 4
        %v4513 = vrot.slane %v4380, 5
        %v4514 = vsel %vm3503, %v4512, %v4513
        %v4515 = vrot.slane %v4513, 4
        %v4516 = vrot.slane %v4381, 5
        %v4517 = vsel %vm3503, %v4515, %v4516
        %v4518 = vrot.slane %v4382, 5
        %v4519 = vrot.slane %v4518, 4
        %v4520 = vrot.slane %v4383, 5
        %v4521 = vsel %vm3503, %v4519, %v4520
        %v4522 = vrot.slane %v4520, 4
        %v4523 = vrot.slane %v4384, 5
        %v4524 = vsel %vm3503, %v4522, %v4523
        %v4525 = vrot.slane %v4385, 5
        %v4526 = vrot.slane %v4525, 4
        %v4527 = vrot.slane %v4386, 5
        %v4528 = vsel %vm3503, %v4526, %v4527
        %v4529 = vrot.slane %v4527, 4
        %v4530 = vrot.slane %v4387, 5
        %v4531 = vsel %vm3503, %v4529, %v4530
        %v4532 = vrot.slane %v4388, 5
        %v4533 = vrot.slane %v4532, 4
        %v4534 = vrot.slane %v4389, 5
        %v4535 = vsel %vm3503, %v4533, %v4534
        %v4536 = vrot.slane %v4534, 4
        %v4537 = vrot.slane %v4390, 5
        %v4538 = vsel %vm3503, %v4536, %v4537
        %v4539 = vrot.slane %v4391, 5
        %v4540 = vrot.slane %v4539, 4
        %v4541 = vrot.slane %v4392, 5
        %v4542 = vsel %vm3503, %v4540, %v4541
        %v4543 = vrot.slane %v4541, 4
        %v4544 = vrot.slane %v4393, 5
        %v4545 = vsel %vm3503, %v4543, %v4544
        %v4546 = vrot.slane %v4394, 5
        %v4547 = vrot.slane %v4546, 4
        %v4548 = vrot.slane %v4395, 5
        %v4549 = vsel %vm3503, %v4547, %v4548
        %v4550 = vrot.slane %v4548, 4
        %v4551 = vrot.slane %v4396, 5
        %v4552 = vsel %vm3503, %v4550, %v4551
        %v4553 = vrot.slane %v4397, 5
        %v4554 = vrot.slane %v4553, 4
        %v4555 = vrot.slane %v4398, 5
        %v4556 = vsel %vm3503, %v4554, %v4555
        %v4557 = vrot.slane %v4555, 4
        %v4558 = vrot.slane %v4399, 5
        %v4559 = vsel %vm3503, %v4557, %v4558
        %v4560 = vunpack.c.l.b16 %v4451
        %v4561 = vunpack.c.l.b16 %v4454
        %v4562 = vunpack.c.l.b16 %v4458
        %v4563 = vunpack.c.l.b16 %v4461
        %v4564 = vunpack.c.l.b16 %v4465
        %v4565 = vunpack.c.l.b16 %v4468
        %v4566 = vunpack.c.l.b16 %v4472
        %v4567 = vunpack.c.l.b16 %v4475
        %v4568 = vunpack.c.l.b16 %v4479
        %v4569 = vunpack.c.l.b16 %v4482
        %v4570 = vunpack.c.l.b16 %v4486
        %v4571 = vunpack.c.l.b16 %v4489
        %v4572 = vunpack.c.l.b16 %v4493
        %v4573 = vunpack.c.l.b16 %v4496
        %v4574 = vunpack.c.l.b16 %v4500
        %v4575 = vunpack.c.l.b16 %v4503
        %v4576 = vunpack.c.l.b16 %v4507
        %v4577 = vunpack.c.l.b16 %v4510
        %v4578 = vunpack.c.l.b16 %v4514
        %v4579 = vunpack.c.l.b16 %v4517
        %v4580 = vunpack.c.l.b16 %v4521
        %v4581 = vunpack.c.l.b16 %v4524
        %v4582 = vunpack.c.l.b16 %v4528
        %v4583 = vunpack.c.l.b16 %v4531
        %v4584 = vunpack.c.l.b16 %v4535
        %v4585 = vunpack.c.l.b16 %v4538
        %v4586 = vunpack.c.l.b16 %v4542
        %v4587 = vunpack.c.l.b16 %v4545
        %v4588 = vunpack.c.l.b16 %v4549
        %v4589 = vunpack.c.l.b16 %v4552
        %v4590 = vunpack.c.l.b16 %v4556
        %v4591 = vunpack.c.l.b16 %v4559
        %v4592 = vpack.c.b16 %v4561, %v4560
        %v4593 = vpack.c.b16 %v4563, %v4562
        %v4594 = vpack.c.b16 %v4565, %v4564
        %v4595 = vpack.c.b16 %v4567, %v4566
        %v4596 = vpack.c.b16 %v4569, %v4568
        %v4597 = vpack.c.b16 %v4571, %v4570
        %v4598 = vpack.c.b16 %v4573, %v4572
        %v4599 = vpack.c.b16 %v4575, %v4574
        %v4600 = vpack.c.b16 %v4577, %v4576
        %v4601 = vpack.c.b16 %v4579, %v4578
        %v4602 = vpack.c.b16 %v4581, %v4580
        %v4603 = vpack.c.b16 %v4583, %v4582
        %v4604 = vpack.c.b16 %v4585, %v4584
        %v4605 = vpack.c.b16 %v4587, %v4586
        %v4606 = vpack.c.b16 %v4589, %v4588
        %v4607 = vpack.c.b16 %v4591, %v4590
        %4624 = vst [vmem:[#allocation3 + $0x28] sm:$0xff] %v4592
        %4625 = vst [vmem:[#allocation3 + $0x70] sm:$0xff] %v4593
        %4626 = vst [vmem:[#allocation3 + $0xb8] sm:$0xff] %v4594
        %4627 = vst [vmem:[#allocation3 + $0x100] sm:$0xff] %v4595
        %4628 = vst [vmem:[#allocation3 + $0x148] sm:$0xff] %v4596
        %4629 = vst [vmem:[#allocation3 + $0x190] sm:$0xff] %v4597
        %4630 = vst [vmem:[#allocation3 + $0x1d8] sm:$0xff] %v4598
        %4631 = vst [vmem:[#allocation3 + $0x220] sm:$0xff] %v4599
        %4632 = vst [vmem:[#allocation3 + $0x268] sm:$0xff] %v4600
        %4633 = vst [vmem:[#allocation3 + $0x2b0] sm:$0xff] %v4601
        %4634 = vst [vmem:[#allocation3 + $0x2f8] sm:$0xff] %v4602
        %4635 = vst [vmem:[#allocation3 + $0x340] sm:$0xff] %v4603
        %4636 = vst [vmem:[#allocation3 + $0x388] sm:$0xff] %v4604
        %4637 = vst [vmem:[#allocation3 + $0x3d0] sm:$0xff] %v4605
        %4638 = vst [vmem:[#allocation3 + $0x418] sm:$0xff] %v4606
        %4639 = vst [vmem:[#allocation3 + $0x460] sm:$0xff] %v4607
        %s4640 = scalar_lea.vmem [#allocation2], 24
        %v4641 = vld [vmem:[%s4640] sm:$0xf]
        %v4642 = vld [vmem:[%s4640 + $0x4] sm:$0xf]
        %v4643 = vld [vmem:[%s4640 + $0xc] sm:$0xf]
        %v4644 = vld [vmem:[%s4640 + $0x10] sm:$0xf]
        %v4645 = vld [vmem:[%s4640 + $0x18] sm:$0xf]
        %v4646 = vld [vmem:[%s4640 + $0x1c] sm:$0xf]
        %v4647 = vld [vmem:[%s4640 + $0x24] sm:$0xf]
        %v4648 = vld [vmem:[%s4640 + $0x28] sm:$0xf]
        %v4649 = vld [vmem:[%s4640 + $0x30] sm:$0xf]
        %v4650 = vld [vmem:[%s4640 + $0x34] sm:$0xf]
        %v4651 = vld [vmem:[%s4640 + $0x3c] sm:$0xf]
        %v4652 = vld [vmem:[%s4640 + $0x40] sm:$0xf]
        %v4653 = vld [vmem:[%s4640 + $0x48] sm:$0xf]
        %v4654 = vld [vmem:[%s4640 + $0x4c] sm:$0xf]
        %v4655 = vld [vmem:[%s4640 + $0x54] sm:$0xf]
        %v4656 = vld [vmem:[%s4640 + $0x58] sm:$0xf]
        %v4657 = vld [vmem:[%s4640 + $0x60] sm:$0xf]
        %v4658 = vld [vmem:[%s4640 + $0x64] sm:$0xf]
        %v4659 = vld [vmem:[%s4640 + $0x6c] sm:$0xf]
        %v4660 = vld [vmem:[%s4640 + $0x70] sm:$0xf]
        %v4661 = vld [vmem:[%s4640 + $0x78] sm:$0xf]
        %v4662 = vld [vmem:[%s4640 + $0x7c] sm:$0xf]
        %v4663 = vld [vmem:[%s4640 + $0x84] sm:$0xf]
        %v4664 = vld [vmem:[%s4640 + $0x88] sm:$0xf]
        %v4665 = vld [vmem:[%s4640 + $0x90] sm:$0xf]
        %v4666 = vld [vmem:[%s4640 + $0x94] sm:$0xf]
        %v4667 = vld [vmem:[%s4640 + $0x9c] sm:$0xf]
        %v4668 = vld [vmem:[%s4640 + $0xa0] sm:$0xf]
        %v4669 = vld [vmem:[%s4640 + $0xa8] sm:$0xf]
        %v4670 = vld [vmem:[%s4640 + $0xac] sm:$0xf]
        %v4671 = vld [vmem:[%s4640 + $0xb4] sm:$0xf]
        %v4672 = vld [vmem:[%s4640 + $0xb8] sm:$0xf]
        %v4705 = vunpack.c.l.b16 %v4641
        %v4706 = vunpack.c.l.b16 %v4642
        %v4707 = vunpack.c.l.b16 %v4643
        %v4708 = vunpack.c.l.b16 %v4644
        %v4709 = vunpack.c.l.b16 %v4645
        %v4710 = vunpack.c.l.b16 %v4646
        %v4711 = vunpack.c.l.b16 %v4647
        %v4712 = vunpack.c.l.b16 %v4648
        %v4713 = vunpack.c.l.b16 %v4649
        %v4714 = vunpack.c.l.b16 %v4650
        %v4715 = vunpack.c.l.b16 %v4651
        %v4716 = vunpack.c.l.b16 %v4652
        %v4717 = vunpack.c.l.b16 %v4653
        %v4718 = vunpack.c.l.b16 %v4654
        %v4719 = vunpack.c.l.b16 %v4655
        %v4720 = vunpack.c.l.b16 %v4656
        %v4721 = vunpack.c.l.b16 %v4657
        %v4722 = vunpack.c.l.b16 %v4658
        %v4723 = vunpack.c.l.b16 %v4659
        %v4724 = vunpack.c.l.b16 %v4660
        %v4725 = vunpack.c.l.b16 %v4661
        %v4726 = vunpack.c.l.b16 %v4662
        %v4727 = vunpack.c.l.b16 %v4663
        %v4728 = vunpack.c.l.b16 %v4664
        %v4729 = vunpack.c.l.b16 %v4665
        %v4730 = vunpack.c.l.b16 %v4666
        %v4731 = vunpack.c.l.b16 %v4667
        %v4732 = vunpack.c.l.b16 %v4668
        %v4733 = vunpack.c.l.b16 %v4669
        %v4734 = vunpack.c.l.b16 %v4670
        %v4735 = vunpack.c.l.b16 %v4671
        %v4736 = vunpack.c.l.b16 %v4672
        %v4737 = vpack.c.b16 %v4706, %v4705
        %v4738 = vpack.c.b16 %v4708, %v4707
        %v4739 = vpack.c.b16 %v4710, %v4709
        %v4740 = vpack.c.b16 %v4712, %v4711
        %v4741 = vpack.c.b16 %v4714, %v4713
        %v4742 = vpack.c.b16 %v4716, %v4715
        %v4743 = vpack.c.b16 %v4718, %v4717
        %v4744 = vpack.c.b16 %v4720, %v4719
        %v4745 = vpack.c.b16 %v4722, %v4721
        %v4746 = vpack.c.b16 %v4724, %v4723
        %v4747 = vpack.c.b16 %v4726, %v4725
        %v4748 = vpack.c.b16 %v4728, %v4727
        %v4749 = vpack.c.b16 %v4730, %v4729
        %v4750 = vpack.c.b16 %v4732, %v4731
        %v4751 = vpack.c.b16 %v4734, %v4733
        %v4752 = vpack.c.b16 %v4736, %v4735
        %4769 = vst [vmem:[#allocation3 + $0x30] sm:$0xff] %v4737
        %4770 = vst [vmem:[#allocation3 + $0x78] sm:$0xff] %v4738
        %4771 = vst [vmem:[#allocation3 + $0xc0] sm:$0xff] %v4739
        %4772 = vst [vmem:[#allocation3 + $0x108] sm:$0xff] %v4740
        %4773 = vst [vmem:[#allocation3 + $0x150] sm:$0xff] %v4741
        %4774 = vst [vmem:[#allocation3 + $0x198] sm:$0xff] %v4742
        %4775 = vst [vmem:[#allocation3 + $0x1e0] sm:$0xff] %v4743
        %4776 = vst [vmem:[#allocation3 + $0x228] sm:$0xff] %v4744
        %4777 = vst [vmem:[#allocation3 + $0x270] sm:$0xff] %v4745
        %4778 = vst [vmem:[#allocation3 + $0x2b8] sm:$0xff] %v4746
        %4779 = vst [vmem:[#allocation3 + $0x300] sm:$0xff] %v4747
        %4780 = vst [vmem:[#allocation3 + $0x348] sm:$0xff] %v4748
        %4781 = vst [vmem:[#allocation3 + $0x390] sm:$0xff] %v4749
        %4782 = vst [vmem:[#allocation3 + $0x3d8] sm:$0xff] %v4750
        %4783 = vst [vmem:[#allocation3 + $0x420] sm:$0xff] %v4751
        %4784 = vst [vmem:[#allocation3 + $0x468] sm:$0xff] %v4752
        %v4785 = vld [vmem:[%s4640] sm:$0xf]
        %v4786 = vld [vmem:[%s4640 + $0x4] sm:$0xf]
        %v4787 = vld [vmem:[%s4640 + $0x8] sm:$0x1]
        %v4788 = vld [vmem:[%s4640 + $0xc] sm:$0xf]
        %v4789 = vld [vmem:[%s4640 + $0x10] sm:$0xf]
        %v4790 = vld [vmem:[%s4640 + $0x14] sm:$0x1]
        %v4791 = vld [vmem:[%s4640 + $0x18] sm:$0xf]
        %v4792 = vld [vmem:[%s4640 + $0x1c] sm:$0xf]
        %v4793 = vld [vmem:[%s4640 + $0x20] sm:$0x1]
        %v4794 = vld [vmem:[%s4640 + $0x24] sm:$0xf]
        %v4795 = vld [vmem:[%s4640 + $0x28] sm:$0xf]
        %v4796 = vld [vmem:[%s4640 + $0x2c] sm:$0x1]
        %v4797 = vld [vmem:[%s4640 + $0x30] sm:$0xf]
        %v4798 = vld [vmem:[%s4640 + $0x34] sm:$0xf]
        %v4799 = vld [vmem:[%s4640 + $0x38] sm:$0x1]
        %v4800 = vld [vmem:[%s4640 + $0x3c] sm:$0xf]
        %v4801 = vld [vmem:[%s4640 + $0x40] sm:$0xf]
        %v4802 = vld [vmem:[%s4640 + $0x44] sm:$0x1]
        %v4803 = vld [vmem:[%s4640 + $0x48] sm:$0xf]
        %v4804 = vld [vmem:[%s4640 + $0x4c] sm:$0xf]
        %v4805 = vld [vmem:[%s4640 + $0x50] sm:$0x1]
        %v4806 = vld [vmem:[%s4640 + $0x54] sm:$0xf]
        %v4807 = vld [vmem:[%s4640 + $0x58] sm:$0xf]
        %v4808 = vld [vmem:[%s4640 + $0x5c] sm:$0x1]
        %v4809 = vld [vmem:[%s4640 + $0x60] sm:$0xf]
        %v4810 = vld [vmem:[%s4640 + $0x64] sm:$0xf]
        %v4811 = vld [vmem:[%s4640 + $0x68] sm:$0x1]
        %v4812 = vld [vmem:[%s4640 + $0x6c] sm:$0xf]
        %v4813 = vld [vmem:[%s4640 + $0x70] sm:$0xf]
        %v4814 = vld [vmem:[%s4640 + $0x74] sm:$0x1]
        %v4815 = vld [vmem:[%s4640 + $0x78] sm:$0xf]
        %v4816 = vld [vmem:[%s4640 + $0x7c] sm:$0xf]
        %v4817 = vld [vmem:[%s4640 + $0x80] sm:$0x1]
        %v4818 = vld [vmem:[%s4640 + $0x84] sm:$0xf]
        %v4819 = vld [vmem:[%s4640 + $0x88] sm:$0xf]
        %v4820 = vld [vmem:[%s4640 + $0x8c] sm:$0x1]
        %v4821 = vld [vmem:[%s4640 + $0x90] sm:$0xf]
        %v4822 = vld [vmem:[%s4640 + $0x94] sm:$0xf]
        %v4823 = vld [vmem:[%s4640 + $0x98] sm:$0x1]
        %v4824 = vld [vmem:[%s4640 + $0x9c] sm:$0xf]
        %v4825 = vld [vmem:[%s4640 + $0xa0] sm:$0xf]
        %v4826 = vld [vmem:[%s4640 + $0xa4] sm:$0x1]
        %v4827 = vld [vmem:[%s4640 + $0xa8] sm:$0xf]
        %v4828 = vld [vmem:[%s4640 + $0xac] sm:$0xf]
        %v4829 = vld [vmem:[%s4640 + $0xb0] sm:$0x1]
        %v4830 = vld [vmem:[%s4640 + $0xb4] sm:$0xf]
        %v4831 = vld [vmem:[%s4640 + $0xb8] sm:$0xf]
        %v4832 = vld [vmem:[%s4640 + $0xbc] sm:$0x1]
        %v4834 = vshrl.u32 %v4785, 16
        %v4836 = vrot.slane %v4834, 4
        %v4837 = vshll.u32 %v4785, 16
        %v4839 = vrot.slane %v4837, 5
        %v4840 = vor.u32 %v4836, %v4839
        %v4841 = vrot.slane %v4840, 4
        %v4843 = vshll.u32 %v4786, 16
        %v4845 = vrot.slane %v4843, 5
        %v4846 = vsel %vm2940, %v4841, %v4845
        %v4847 = vshrl.u32 %v4786, 16
        %v4849 = vrot.slane %v4847, 4
        %v4850 = vor.u32 %v4849, %v4845
        %v4851 = vrot.slane %v4850, 4
        %v4853 = vshll.u32 %v4787, 16
        %v4855 = vrot.slane %v4853, 5
        %v4856 = vsel %vm2940, %v4851, %v4855
        %v4858 = vshrl.u32 %v4788, 16
        %v4860 = vrot.slane %v4858, 4
        %v4861 = vshll.u32 %v4788, 16
        %v4863 = vrot.slane %v4861, 5
        %v4864 = vor.u32 %v4860, %v4863
        %v4865 = vrot.slane %v4864, 4
        %v4867 = vshll.u32 %v4789, 16
        %v4869 = vrot.slane %v4867, 5
        %v4870 = vsel %vm2940, %v4865, %v4869
        %v4871 = vshrl.u32 %v4789, 16
        %v4873 = vrot.slane %v4871, 4
        %v4874 = vor.u32 %v4873, %v4869
        %v4875 = vrot.slane %v4874, 4
        %v4877 = vshll.u32 %v4790, 16
        %v4879 = vrot.slane %v4877, 5
        %v4880 = vsel %vm2940, %v4875, %v4879
        %v4882 = vshrl.u32 %v4791, 16
        %v4884 = vrot.slane %v4882, 4
        %v4885 = vshll.u32 %v4791, 16
        %v4887 = vrot.slane %v4885, 5
        %v4888 = vor.u32 %v4884, %v4887
        %v4889 = vrot.slane %v4888, 4
        %v4891 = vshll.u32 %v4792, 16
        %v4893 = vrot.slane %v4891, 5
        %v4894 = vsel %vm2940, %v4889, %v4893
        %v4895 = vshrl.u32 %v4792, 16
        %v4897 = vrot.slane %v4895, 4
        %v4898 = vor.u32 %v4897, %v4893
        %v4899 = vrot.slane %v4898, 4
        %v4901 = vshll.u32 %v4793, 16
        %v4903 = vrot.slane %v4901, 5
        %v4904 = vsel %vm2940, %v4899, %v4903
        %v4906 = vshrl.u32 %v4794, 16
        %v4908 = vrot.slane %v4906, 4
        %v4909 = vshll.u32 %v4794, 16
        %v4911 = vrot.slane %v4909, 5
        %v4912 = vor.u32 %v4908, %v4911
        %v4913 = vrot.slane %v4912, 4
        %v4915 = vshll.u32 %v4795, 16
        %v4917 = vrot.slane %v4915, 5
        %v4918 = vsel %vm2940, %v4913, %v4917
        %v4919 = vshrl.u32 %v4795, 16
        %v4921 = vrot.slane %v4919, 4
        %v4922 = vor.u32 %v4921, %v4917
        %v4923 = vrot.slane %v4922, 4
        %v4925 = vshll.u32 %v4796, 16
        %v4927 = vrot.slane %v4925, 5
        %v4928 = vsel %vm2940, %v4923, %v4927
        %v4930 = vshrl.u32 %v4797, 16
        %v4932 = vrot.slane %v4930, 4
        %v4933 = vshll.u32 %v4797, 16
        %v4935 = vrot.slane %v4933, 5
        %v4936 = vor.u32 %v4932, %v4935
        %v4937 = vrot.slane %v4936, 4
        %v4939 = vshll.u32 %v4798, 16
        %v4941 = vrot.slane %v4939, 5
        %v4942 = vsel %vm2940, %v4937, %v4941
        %v4943 = vshrl.u32 %v4798, 16
        %v4945 = vrot.slane %v4943, 4
        %v4946 = vor.u32 %v4945, %v4941
        %v4947 = vrot.slane %v4946, 4
        %v4949 = vshll.u32 %v4799, 16
        %v4951 = vrot.slane %v4949, 5
        %v4952 = vsel %vm2940, %v4947, %v4951
        %v4954 = vshrl.u32 %v4800, 16
        %v4956 = vrot.slane %v4954, 4
        %v4957 = vshll.u32 %v4800, 16
        %v4959 = vrot.slane %v4957, 5
        %v4960 = vor.u32 %v4956, %v4959
        %v4961 = vrot.slane %v4960, 4
        %v4963 = vshll.u32 %v4801, 16
        %v4965 = vrot.slane %v4963, 5
        %v4966 = vsel %vm2940, %v4961, %v4965
        %v4967 = vshrl.u32 %v4801, 16
        %v4969 = vrot.slane %v4967, 4
        %v4970 = vor.u32 %v4969, %v4965
        %v4971 = vrot.slane %v4970, 4
        %v4973 = vshll.u32 %v4802, 16
        %v4975 = vrot.slane %v4973, 5
        %v4976 = vsel %vm2940, %v4971, %v4975
        %v4978 = vshrl.u32 %v4803, 16
        %v4980 = vrot.slane %v4978, 4
        %v4981 = vshll.u32 %v4803, 16
        %v4983 = vrot.slane %v4981, 5
        %v4984 = vor.u32 %v4980, %v4983
        %v4985 = vrot.slane %v4984, 4
        %v4987 = vshll.u32 %v4804, 16
        %v4989 = vrot.slane %v4987, 5
        %v4990 = vsel %vm2940, %v4985, %v4989
        %v4991 = vshrl.u32 %v4804, 16
        %v4993 = vrot.slane %v4991, 4
        %v4994 = vor.u32 %v4993, %v4989
        %v4995 = vrot.slane %v4994, 4
        %v4997 = vshll.u32 %v4805, 16
        %v4999 = vrot.slane %v4997, 5
        %v5000 = vsel %vm2940, %v4995, %v4999
        %v5002 = vshrl.u32 %v4806, 16
        %v5004 = vrot.slane %v5002, 4
        %v5005 = vshll.u32 %v4806, 16
        %v5007 = vrot.slane %v5005, 5
        %v5008 = vor.u32 %v5004, %v5007
        %v5009 = vrot.slane %v5008, 4
        %v5011 = vshll.u32 %v4807, 16
        %v5013 = vrot.slane %v5011, 5
        %v5014 = vsel %vm2940, %v5009, %v5013
        %v5015 = vshrl.u32 %v4807, 16
        %v5017 = vrot.slane %v5015, 4
        %v5018 = vor.u32 %v5017, %v5013
        %v5019 = vrot.slane %v5018, 4
        %v5021 = vshll.u32 %v4808, 16
        %v5023 = vrot.slane %v5021, 5
        %v5024 = vsel %vm2940, %v5019, %v5023
        %v5026 = vshrl.u32 %v4809, 16
        %v5028 = vrot.slane %v5026, 4
        %v5029 = vshll.u32 %v4809, 16
        %v5031 = vrot.slane %v5029, 5
        %v5032 = vor.u32 %v5028, %v5031
        %v5033 = vrot.slane %v5032, 4
        %v5035 = vshll.u32 %v4810, 16
        %v5037 = vrot.slane %v5035, 5
        %v5038 = vsel %vm2940, %v5033, %v5037
        %v5039 = vshrl.u32 %v4810, 16
        %v5041 = vrot.slane %v5039, 4
        %v5042 = vor.u32 %v5041, %v5037
        %v5043 = vrot.slane %v5042, 4
        %v5045 = vshll.u32 %v4811, 16
        %v5047 = vrot.slane %v5045, 5
        %v5048 = vsel %vm2940, %v5043, %v5047
        %v5050 = vshrl.u32 %v4812, 16
        %v5052 = vrot.slane %v5050, 4
        %v5053 = vshll.u32 %v4812, 16
        %v5055 = vrot.slane %v5053, 5
        %v5056 = vor.u32 %v5052, %v5055
        %v5057 = vrot.slane %v5056, 4
        %v5059 = vshll.u32 %v4813, 16
        %v5061 = vrot.slane %v5059, 5
        %v5062 = vsel %vm2940, %v5057, %v5061
        %v5063 = vshrl.u32 %v4813, 16
        %v5065 = vrot.slane %v5063, 4
        %v5066 = vor.u32 %v5065, %v5061
        %v5067 = vrot.slane %v5066, 4
        %v5069 = vshll.u32 %v4814, 16
        %v5071 = vrot.slane %v5069, 5
        %v5072 = vsel %vm2940, %v5067, %v5071
        %v5074 = vshrl.u32 %v4815, 16
        %v5076 = vrot.slane %v5074, 4
        %v5077 = vshll.u32 %v4815, 16
        %v5079 = vrot.slane %v5077, 5
        %v5080 = vor.u32 %v5076, %v5079
        %v5081 = vrot.slane %v5080, 4
        %v5083 = vshll.u32 %v4816, 16
        %v5085 = vrot.slane %v5083, 5
        %v5086 = vsel %vm2940, %v5081, %v5085
        %v5087 = vshrl.u32 %v4816, 16
        %v5089 = vrot.slane %v5087, 4
        %v5090 = vor.u32 %v5089, %v5085
        %v5091 = vrot.slane %v5090, 4
        %v5093 = vshll.u32 %v4817, 16
        %v5095 = vrot.slane %v5093, 5
        %v5096 = vsel %vm2940, %v5091, %v5095
        %v5098 = vshrl.u32 %v4818, 16
        %v5100 = vrot.slane %v5098, 4
        %v5101 = vshll.u32 %v4818, 16
        %v5103 = vrot.slane %v5101, 5
        %v5104 = vor.u32 %v5100, %v5103
        %v5105 = vrot.slane %v5104, 4
        %v5107 = vshll.u32 %v4819, 16
        %v5109 = vrot.slane %v5107, 5
        %v5110 = vsel %vm2940, %v5105, %v5109
        %v5111 = vshrl.u32 %v4819, 16
        %v5113 = vrot.slane %v5111, 4
        %v5114 = vor.u32 %v5113, %v5109
        %v5115 = vrot.slane %v5114, 4
        %v5117 = vshll.u32 %v4820, 16
        %v5119 = vrot.slane %v5117, 5
        %v5120 = vsel %vm2940, %v5115, %v5119
        %v5122 = vshrl.u32 %v4821, 16
        %v5124 = vrot.slane %v5122, 4
        %v5125 = vshll.u32 %v4821, 16
        %v5127 = vrot.slane %v5125, 5
        %v5128 = vor.u32 %v5124, %v5127
        %v5129 = vrot.slane %v5128, 4
        %v5131 = vshll.u32 %v4822, 16
        %v5133 = vrot.slane %v5131, 5
        %v5134 = vsel %vm2940, %v5129, %v5133
        %v5135 = vshrl.u32 %v4822, 16
        %v5137 = vrot.slane %v5135, 4
        %v5138 = vor.u32 %v5137, %v5133
        %v5139 = vrot.slane %v5138, 4
        %v5141 = vshll.u32 %v4823, 16
        %v5143 = vrot.slane %v5141, 5
        %v5144 = vsel %vm2940, %v5139, %v5143
        %v5146 = vshrl.u32 %v4824, 16
        %v5148 = vrot.slane %v5146, 4
        %v5149 = vshll.u32 %v4824, 16
        %v5151 = vrot.slane %v5149, 5
        %v5152 = vor.u32 %v5148, %v5151
        %v5153 = vrot.slane %v5152, 4
        %v5155 = vshll.u32 %v4825, 16
        %v5157 = vrot.slane %v5155, 5
        %v5158 = vsel %vm2940, %v5153, %v5157
        %v5159 = vshrl.u32 %v4825, 16
        %v5161 = vrot.slane %v5159, 4
        %v5162 = vor.u32 %v5161, %v5157
        %v5163 = vrot.slane %v5162, 4
        %v5165 = vshll.u32 %v4826, 16
        %v5167 = vrot.slane %v5165, 5
        %v5168 = vsel %vm2940, %v5163, %v5167
        %v5170 = vshrl.u32 %v4827, 16
        %v5172 = vrot.slane %v5170, 4
        %v5173 = vshll.u32 %v4827, 16
        %v5175 = vrot.slane %v5173, 5
        %v5176 = vor.u32 %v5172, %v5175
        %v5177 = vrot.slane %v5176, 4
        %v5179 = vshll.u32 %v4828, 16
        %v5181 = vrot.slane %v5179, 5
        %v5182 = vsel %vm2940, %v5177, %v5181
        %v5183 = vshrl.u32 %v4828, 16
        %v5185 = vrot.slane %v5183, 4
        %v5186 = vor.u32 %v5185, %v5181
        %v5187 = vrot.slane %v5186, 4
        %v5189 = vshll.u32 %v4829, 16
        %v5191 = vrot.slane %v5189, 5
        %v5192 = vsel %vm2940, %v5187, %v5191
        %v5194 = vshrl.u32 %v4830, 16
        %v5196 = vrot.slane %v5194, 4
        %v5197 = vshll.u32 %v4830, 16
        %v5199 = vrot.slane %v5197, 5
        %v5200 = vor.u32 %v5196, %v5199
        %v5201 = vrot.slane %v5200, 4
        %v5203 = vshll.u32 %v4831, 16
        %v5205 = vrot.slane %v5203, 5
        %v5206 = vsel %vm2940, %v5201, %v5205
        %v5207 = vshrl.u32 %v4831, 16
        %v5209 = vrot.slane %v5207, 4
        %v5210 = vor.u32 %v5209, %v5205
        %v5211 = vrot.slane %v5210, 4
        %v5213 = vshll.u32 %v4832, 16
        %v5215 = vrot.slane %v5213, 5
        %v5216 = vsel %vm2940, %v5211, %v5215
        %v5217 = vunpack.c.l.b16 %v4846
        %v5218 = vunpack.c.l.b16 %v4856
        %v5219 = vunpack.c.l.b16 %v4870
        %v5220 = vunpack.c.l.b16 %v4880
        %v5221 = vunpack.c.l.b16 %v4894
        %v5222 = vunpack.c.l.b16 %v4904
        %v5223 = vunpack.c.l.b16 %v4918
        %v5224 = vunpack.c.l.b16 %v4928
        %v5225 = vunpack.c.l.b16 %v4942
        %v5226 = vunpack.c.l.b16 %v4952
        %v5227 = vunpack.c.l.b16 %v4966
        %v5228 = vunpack.c.l.b16 %v4976
        %v5229 = vunpack.c.l.b16 %v4990
        %v5230 = vunpack.c.l.b16 %v5000
        %v5231 = vunpack.c.l.b16 %v5014
        %v5232 = vunpack.c.l.b16 %v5024
        %v5233 = vunpack.c.l.b16 %v5038
        %v5234 = vunpack.c.l.b16 %v5048
        %v5235 = vunpack.c.l.b16 %v5062
        %v5236 = vunpack.c.l.b16 %v5072
        %v5237 = vunpack.c.l.b16 %v5086
        %v5238 = vunpack.c.l.b16 %v5096
        %v5239 = vunpack.c.l.b16 %v5110
        %v5240 = vunpack.c.l.b16 %v5120
        %v5241 = vunpack.c.l.b16 %v5134
        %v5242 = vunpack.c.l.b16 %v5144
        %v5243 = vunpack.c.l.b16 %v5158
        %v5244 = vunpack.c.l.b16 %v5168
        %v5245 = vunpack.c.l.b16 %v5182
        %v5246 = vunpack.c.l.b16 %v5192
        %v5247 = vunpack.c.l.b16 %v5206
        %v5248 = vunpack.c.l.b16 %v5216
        %v5249 = vpack.c.b16 %v5218, %v5217
        %v5250 = vpack.c.b16 %v5220, %v5219
        %v5251 = vpack.c.b16 %v5222, %v5221
        %v5252 = vpack.c.b16 %v5224, %v5223
        %v5253 = vpack.c.b16 %v5226, %v5225
        %v5254 = vpack.c.b16 %v5228, %v5227
        %v5255 = vpack.c.b16 %v5230, %v5229
        %v5256 = vpack.c.b16 %v5232, %v5231
        %v5257 = vpack.c.b16 %v5234, %v5233
        %v5258 = vpack.c.b16 %v5236, %v5235
        %v5259 = vpack.c.b16 %v5238, %v5237
        %v5260 = vpack.c.b16 %v5240, %v5239
        %v5261 = vpack.c.b16 %v5242, %v5241
        %v5262 = vpack.c.b16 %v5244, %v5243
        %v5263 = vpack.c.b16 %v5246, %v5245
        %v5264 = vpack.c.b16 %v5248, %v5247
        %5281 = vst [vmem:[#allocation3 + $0x38] sm:$0xff] %v5249
        %5282 = vst [vmem:[#allocation3 + $0x80] sm:$0xff] %v5250
        %5283 = vst [vmem:[#allocation3 + $0xc8] sm:$0xff] %v5251
        %5284 = vst [vmem:[#allocation3 + $0x110] sm:$0xff] %v5252
        %5285 = vst [vmem:[#allocation3 + $0x158] sm:$0xff] %v5253
        %5286 = vst [vmem:[#allocation3 + $0x1a0] sm:$0xff] %v5254
        %5287 = vst [vmem:[#allocation3 + $0x1e8] sm:$0xff] %v5255
        %5288 = vst [vmem:[#allocation3 + $0x230] sm:$0xff] %v5256
        %5289 = vst [vmem:[#allocation3 + $0x278] sm:$0xff] %v5257
        %5290 = vst [vmem:[#allocation3 + $0x2c0] sm:$0xff] %v5258
        %5291 = vst [vmem:[#allocation3 + $0x308] sm:$0xff] %v5259
        %5292 = vst [vmem:[#allocation3 + $0x350] sm:$0xff] %v5260
        %5293 = vst [vmem:[#allocation3 + $0x398] sm:$0xff] %v5261
        %5294 = vst [vmem:[#allocation3 + $0x3e0] sm:$0xff] %v5262
        %5295 = vst [vmem:[#allocation3 + $0x428] sm:$0xff] %v5263
        %5296 = vst [vmem:[#allocation3 + $0x470] sm:$0xff] %v5264
        %v5297 = vld [vmem:[%s4640] sm:$0xe]
        %v5298 = vld [vmem:[%s4640 + $0x4] sm:$0xf]
        %v5299 = vld [vmem:[%s4640 + $0x8] sm:$0x1]
        %v5300 = vld [vmem:[%s4640 + $0xc] sm:$0xe]
        %v5301 = vld [vmem:[%s4640 + $0x10] sm:$0xf]
        %v5302 = vld [vmem:[%s4640 + $0x14] sm:$0x1]
        %v5303 = vld [vmem:[%s4640 + $0x18] sm:$0xe]
        %v5304 = vld [vmem:[%s4640 + $0x1c] sm:$0xf]
        %v5305 = vld [vmem:[%s4640 + $0x20] sm:$0x1]
        %v5306 = vld [vmem:[%s4640 + $0x24] sm:$0xe]
        %v5307 = vld [vmem:[%s4640 + $0x28] sm:$0xf]
        %v5308 = vld [vmem:[%s4640 + $0x2c] sm:$0x1]
        %v5309 = vld [vmem:[%s4640 + $0x30] sm:$0xe]
        %v5310 = vld [vmem:[%s4640 + $0x34] sm:$0xf]
        %v5311 = vld [vmem:[%s4640 + $0x38] sm:$0x1]
        %v5312 = vld [vmem:[%s4640 + $0x3c] sm:$0xe]
        %v5313 = vld [vmem:[%s4640 + $0x40] sm:$0xf]
        %v5314 = vld [vmem:[%s4640 + $0x44] sm:$0x1]
        %v5315 = vld [vmem:[%s4640 + $0x48] sm:$0xe]
        %v5316 = vld [vmem:[%s4640 + $0x4c] sm:$0xf]
        %v5317 = vld [vmem:[%s4640 + $0x50] sm:$0x1]
        %v5318 = vld [vmem:[%s4640 + $0x54] sm:$0xe]
        %v5319 = vld [vmem:[%s4640 + $0x58] sm:$0xf]
        %v5320 = vld [vmem:[%s4640 + $0x5c] sm:$0x1]
        %v5321 = vld [vmem:[%s4640 + $0x60] sm:$0xe]
        %v5322 = vld [vmem:[%s4640 + $0x64] sm:$0xf]
        %v5323 = vld [vmem:[%s4640 + $0x68] sm:$0x1]
        %v5324 = vld [vmem:[%s4640 + $0x6c] sm:$0xe]
        %v5325 = vld [vmem:[%s4640 + $0x70] sm:$0xf]
        %v5326 = vld [vmem:[%s4640 + $0x74] sm:$0x1]
        %v5327 = vld [vmem:[%s4640 + $0x78] sm:$0xe]
        %v5328 = vld [vmem:[%s4640 + $0x7c] sm:$0xf]
        %v5329 = vld [vmem:[%s4640 + $0x80] sm:$0x1]
        %v5330 = vld [vmem:[%s4640 + $0x84] sm:$0xe]
        %v5331 = vld [vmem:[%s4640 + $0x88] sm:$0xf]
        %v5332 = vld [vmem:[%s4640 + $0x8c] sm:$0x1]
        %v5333 = vld [vmem:[%s4640 + $0x90] sm:$0xe]
        %v5334 = vld [vmem:[%s4640 + $0x94] sm:$0xf]
        %v5335 = vld [vmem:[%s4640 + $0x98] sm:$0x1]
        %v5336 = vld [vmem:[%s4640 + $0x9c] sm:$0xe]
        %v5337 = vld [vmem:[%s4640 + $0xa0] sm:$0xf]
        %v5338 = vld [vmem:[%s4640 + $0xa4] sm:$0x1]
        %v5339 = vld [vmem:[%s4640 + $0xa8] sm:$0xe]
        %v5340 = vld [vmem:[%s4640 + $0xac] sm:$0xf]
        %v5341 = vld [vmem:[%s4640 + $0xb0] sm:$0x1]
        %v5342 = vld [vmem:[%s4640 + $0xb4] sm:$0xe]
        %v5343 = vld [vmem:[%s4640 + $0xb8] sm:$0xf]
        %v5344 = vld [vmem:[%s4640 + $0xbc] sm:$0x1]
        %v5393 = vrot.slane %v5297, 5
        %v5394 = vrot.slane %v5393, 4
        %v5395 = vrot.slane %v5298, 5
        %v5396 = vsel %vm3503, %v5394, %v5395
        %v5397 = vrot.slane %v5395, 4
        %v5398 = vrot.slane %v5299, 5
        %v5399 = vsel %vm3503, %v5397, %v5398
        %v5400 = vrot.slane %v5300, 5
        %v5401 = vrot.slane %v5400, 4
        %v5402 = vrot.slane %v5301, 5
        %v5403 = vsel %vm3503, %v5401, %v5402
        %v5404 = vrot.slane %v5402, 4
        %v5405 = vrot.slane %v5302, 5
        %v5406 = vsel %vm3503, %v5404, %v5405
        %v5407 = vrot.slane %v5303, 5
        %v5408 = vrot.slane %v5407, 4
        %v5409 = vrot.slane %v5304, 5
        %v5410 = vsel %vm3503, %v5408, %v5409
        %v5411 = vrot.slane %v5409, 4
        %v5412 = vrot.slane %v5305, 5
        %v5413 = vsel %vm3503, %v5411, %v5412
        %v5414 = vrot.slane %v5306, 5
        %v5415 = vrot.slane %v5414, 4
        %v5416 = vrot.slane %v5307, 5
        %v5417 = vsel %vm3503, %v5415, %v5416
        %v5418 = vrot.slane %v5416, 4
        %v5419 = vrot.slane %v5308, 5
        %v5420 = vsel %vm3503, %v5418, %v5419
        %v5421 = vrot.slane %v5309, 5
        %v5422 = vrot.slane %v5421, 4
        %v5423 = vrot.slane %v5310, 5
        %v5424 = vsel %vm3503, %v5422, %v5423
        %v5425 = vrot.slane %v5423, 4
        %v5426 = vrot.slane %v5311, 5
        %v5427 = vsel %vm3503, %v5425, %v5426
        %v5428 = vrot.slane %v5312, 5
        %v5429 = vrot.slane %v5428, 4
        %v5430 = vrot.slane %v5313, 5
        %v5431 = vsel %vm3503, %v5429, %v5430
        %v5432 = vrot.slane %v5430, 4
        %v5433 = vrot.slane %v5314, 5
        %v5434 = vsel %vm3503, %v5432, %v5433
        %v5435 = vrot.slane %v5315, 5
        %v5436 = vrot.slane %v5435, 4
        %v5437 = vrot.slane %v5316, 5
        %v5438 = vsel %vm3503, %v5436, %v5437
        %v5439 = vrot.slane %v5437, 4
        %v5440 = vrot.slane %v5317, 5
        %v5441 = vsel %vm3503, %v5439, %v5440
        %v5442 = vrot.slane %v5318, 5
        %v5443 = vrot.slane %v5442, 4
        %v5444 = vrot.slane %v5319, 5
        %v5445 = vsel %vm3503, %v5443, %v5444
        %v5446 = vrot.slane %v5444, 4
        %v5447 = vrot.slane %v5320, 5
        %v5448 = vsel %vm3503, %v5446, %v5447
        %v5449 = vrot.slane %v5321, 5
        %v5450 = vrot.slane %v5449, 4
        %v5451 = vrot.slane %v5322, 5
        %v5452 = vsel %vm3503, %v5450, %v5451
        %v5453 = vrot.slane %v5451, 4
        %v5454 = vrot.slane %v5323, 5
        %v5455 = vsel %vm3503, %v5453, %v5454
        %v5456 = vrot.slane %v5324, 5
        %v5457 = vrot.slane %v5456, 4
        %v5458 = vrot.slane %v5325, 5
        %v5459 = vsel %vm3503, %v5457, %v5458
        %v5460 = vrot.slane %v5458, 4
        %v5461 = vrot.slane %v5326, 5
        %v5462 = vsel %vm3503, %v5460, %v5461
        %v5463 = vrot.slane %v5327, 5
        %v5464 = vrot.slane %v5463, 4
        %v5465 = vrot.slane %v5328, 5
        %v5466 = vsel %vm3503, %v5464, %v5465
        %v5467 = vrot.slane %v5465, 4
        %v5468 = vrot.slane %v5329, 5
        %v5469 = vsel %vm3503, %v5467, %v5468
        %v5470 = vrot.slane %v5330, 5
        %v5471 = vrot.slane %v5470, 4
        %v5472 = vrot.slane %v5331, 5
        %v5473 = vsel %vm3503, %v5471, %v5472
        %v5474 = vrot.slane %v5472, 4
        %v5475 = vrot.slane %v5332, 5
        %v5476 = vsel %vm3503, %v5474, %v5475
        %v5477 = vrot.slane %v5333, 5
        %v5478 = vrot.slane %v5477, 4
        %v5479 = vrot.slane %v5334, 5
        %v5480 = vsel %vm3503, %v5478, %v5479
        %v5481 = vrot.slane %v5479, 4
        %v5482 = vrot.slane %v5335, 5
        %v5483 = vsel %vm3503, %v5481, %v5482
        %v5484 = vrot.slane %v5336, 5
        %v5485 = vrot.slane %v5484, 4
        %v5486 = vrot.slane %v5337, 5
        %v5487 = vsel %vm3503, %v5485, %v5486
        %v5488 = vrot.slane %v5486, 4
        %v5489 = vrot.slane %v5338, 5
        %v5490 = vsel %vm3503, %v5488, %v5489
        %v5491 = vrot.slane %v5339, 5
        %v5492 = vrot.slane %v5491, 4
        %v5493 = vrot.slane %v5340, 5
        %v5494 = vsel %vm3503, %v5492, %v5493
        %v5495 = vrot.slane %v5493, 4
        %v5496 = vrot.slane %v5341, 5
        %v5497 = vsel %vm3503, %v5495, %v5496
        %v5498 = vrot.slane %v5342, 5
        %v5499 = vrot.slane %v5498, 4
        %v5500 = vrot.slane %v5343, 5
        %v5501 = vsel %vm3503, %v5499, %v5500
        %v5502 = vrot.slane %v5500, 4
        %v5503 = vrot.slane %v5344, 5
        %v5504 = vsel %vm3503, %v5502, %v5503
        %v5505 = vunpack.c.l.b16 %v5396
        %v5506 = vunpack.c.l.b16 %v5399
        %v5507 = vunpack.c.l.b16 %v5403
        %v5508 = vunpack.c.l.b16 %v5406
        %v5509 = vunpack.c.l.b16 %v5410
        %v5510 = vunpack.c.l.b16 %v5413
        %v5511 = vunpack.c.l.b16 %v5417
        %v5512 = vunpack.c.l.b16 %v5420
        %v5513 = vunpack.c.l.b16 %v5424
        %v5514 = vunpack.c.l.b16 %v5427
        %v5515 = vunpack.c.l.b16 %v5431
        %v5516 = vunpack.c.l.b16 %v5434
        %v5517 = vunpack.c.l.b16 %v5438
        %v5518 = vunpack.c.l.b16 %v5441
        %v5519 = vunpack.c.l.b16 %v5445
        %v5520 = vunpack.c.l.b16 %v5448
        %v5521 = vunpack.c.l.b16 %v5452
        %v5522 = vunpack.c.l.b16 %v5455
        %v5523 = vunpack.c.l.b16 %v5459
        %v5524 = vunpack.c.l.b16 %v5462
        %v5525 = vunpack.c.l.b16 %v5466
        %v5526 = vunpack.c.l.b16 %v5469
        %v5527 = vunpack.c.l.b16 %v5473
        %v5528 = vunpack.c.l.b16 %v5476
        %v5529 = vunpack.c.l.b16 %v5480
        %v5530 = vunpack.c.l.b16 %v5483
        %v5531 = vunpack.c.l.b16 %v5487
        %v5532 = vunpack.c.l.b16 %v5490
        %v5533 = vunpack.c.l.b16 %v5494
        %v5534 = vunpack.c.l.b16 %v5497
        %v5535 = vunpack.c.l.b16 %v5501
        %v5536 = vunpack.c.l.b16 %v5504
        %v5537 = vpack.c.b16 %v5506, %v5505
        %v5538 = vpack.c.b16 %v5508, %v5507
        %v5539 = vpack.c.b16 %v5510, %v5509
        %v5540 = vpack.c.b16 %v5512, %v5511
        %v5541 = vpack.c.b16 %v5514, %v5513
        %v5542 = vpack.c.b16 %v5516, %v5515
        %v5543 = vpack.c.b16 %v5518, %v5517
        %v5544 = vpack.c.b16 %v5520, %v5519
        %v5545 = vpack.c.b16 %v5522, %v5521
        %v5546 = vpack.c.b16 %v5524, %v5523
        %v5547 = vpack.c.b16 %v5526, %v5525
        %v5548 = vpack.c.b16 %v5528, %v5527
        %v5549 = vpack.c.b16 %v5530, %v5529
        %v5550 = vpack.c.b16 %v5532, %v5531
        %v5551 = vpack.c.b16 %v5534, %v5533
        %v5552 = vpack.c.b16 %v5536, %v5535
        %5569 = vst [vmem:[#allocation3 + $0x40] sm:$0xff] %v5537
        %5570 = vst [vmem:[#allocation3 + $0x88] sm:$0xff] %v5538
        %5571 = vst [vmem:[#allocation3 + $0xd0] sm:$0xff] %v5539
        %5572 = vst [vmem:[#allocation3 + $0x118] sm:$0xff] %v5540
        %5573 = vst [vmem:[#allocation3 + $0x160] sm:$0xff] %v5541
        %5574 = vst [vmem:[#allocation3 + $0x1a8] sm:$0xff] %v5542
        %5575 = vst [vmem:[#allocation3 + $0x1f0] sm:$0xff] %v5543
        %5576 = vst [vmem:[#allocation3 + $0x238] sm:$0xff] %v5544
        %5577 = vst [vmem:[#allocation3 + $0x280] sm:$0xff] %v5545
        %5578 = vst [vmem:[#allocation3 + $0x2c8] sm:$0xff] %v5546
        %5579 = vst [vmem:[#allocation3 + $0x310] sm:$0xff] %v5547
        %5580 = vst [vmem:[#allocation3 + $0x358] sm:$0xff] %v5548
        %5581 = vst [vmem:[#allocation3 + $0x3a0] sm:$0xff] %v5549
        %5582 = vst [vmem:[#allocation3 + $0x3e8] sm:$0xff] %v5550
        %5583 = vst [vmem:[#allocation3 + $0x430] sm:$0xff] %v5551
        %5584 = vst [vmem:[#allocation3 + $0x478] sm:$0xff] %v5552
        %v5585 = vld [vmem:[#allocation3] sm:$0xff]
        %v5586 = vld [vmem:[#allocation3 + $0x8] sm:$0xff]
        %v5587 = vld [vmem:[#allocation3 + $0x10] sm:$0xff]
        %v5588 = vld [vmem:[#allocation3 + $0x18] sm:$0xff]
        %v5589 = vld [vmem:[#allocation3 + $0x20] sm:$0xff]
        %v5590 = vld [vmem:[#allocation3 + $0x28] sm:$0xff]
        %v5591 = vld [vmem:[#allocation3 + $0x30] sm:$0xff]
        %v5592 = vld [vmem:[#allocation3 + $0x38] sm:$0xff]
        %v5593 = vld [vmem:[#allocation3 + $0x40] sm:$0xff]
        %v5594 = vld [vmem:[#allocation3 + $0x48] sm:$0xff]
        %v5595 = vld [vmem:[#allocation3 + $0x50] sm:$0xff]
        %v5596 = vld [vmem:[#allocation3 + $0x58] sm:$0xff]
        %v5597 = vld [vmem:[#allocation3 + $0x60] sm:$0xff]
        %v5598 = vld [vmem:[#allocation3 + $0x68] sm:$0xff]
        %v5599 = vld [vmem:[#allocation3 + $0x70] sm:$0xff]
        %v5600 = vld [vmem:[#allocation3 + $0x78] sm:$0xff]
        %v5601 = vld [vmem:[#allocation3 + $0x80] sm:$0xff]
        %v5602 = vld [vmem:[#allocation3 + $0x88] sm:$0xff]
        %v5603 = vld [vmem:[#allocation3 + $0x90] sm:$0xff]
        %v5604 = vld [vmem:[#allocation3 + $0x98] sm:$0xff]
        %v5605 = vld [vmem:[#allocation3 + $0xa0] sm:$0xff]
        %v5606 = vld [vmem:[#allocation3 + $0xa8] sm:$0xff]
        %v5607 = vld [vmem:[#allocation3 + $0xb0] sm:$0xff]
        %v5608 = vld [vmem:[#allocation3 + $0xb8] sm:$0xff]
        %v5609 = vld [vmem:[#allocation3 + $0xc0] sm:$0xff]
        %v5610 = vld [vmem:[#allocation3 + $0xc8] sm:$0xff]
        %v5611 = vld [vmem:[#allocation3 + $0xd0] sm:$0xff]
        %v5612 = vld [vmem:[#allocation3 + $0xd8] sm:$0xff]
        %v5613 = vld [vmem:[#allocation3 + $0xe0] sm:$0xff]
        %v5614 = vld [vmem:[#allocation3 + $0xe8] sm:$0xff]
        %v5615 = vld [vmem:[#allocation3 + $0xf0] sm:$0xff]
        %v5616 = vld [vmem:[#allocation3 + $0xf8] sm:$0xff]
        %v5617 = vld [vmem:[#allocation3 + $0x100] sm:$0xff]
        %v5618 = vld [vmem:[#allocation3 + $0x108] sm:$0xff]
        %v5619 = vld [vmem:[#allocation3 + $0x110] sm:$0xff]
        %v5620 = vld [vmem:[#allocation3 + $0x118] sm:$0xff]
        %v5621 = vld [vmem:[#allocation3 + $0x120] sm:$0xff]
        %v5622 = vld [vmem:[#allocation3 + $0x128] sm:$0xff]
        %v5623 = vld [vmem:[#allocation3 + $0x130] sm:$0xff]
        %v5624 = vld [vmem:[#allocation3 + $0x138] sm:$0xff]
        %v5625 = vld [vmem:[#allocation3 + $0x140] sm:$0xff]
        %v5626 = vld [vmem:[#allocation3 + $0x148] sm:$0xff]
        %v5627 = vld [vmem:[#allocation3 + $0x150] sm:$0xff]
        %v5628 = vld [vmem:[#allocation3 + $0x158] sm:$0xff]
        %v5629 = vld [vmem:[#allocation3 + $0x160] sm:$0xff]
        %v5630 = vld [vmem:[#allocation3 + $0x168] sm:$0xff]
        %v5631 = vld [vmem:[#allocation3 + $0x170] sm:$0xff]
        %v5632 = vld [vmem:[#allocation3 + $0x178] sm:$0xff]
        %v5633 = vld [vmem:[#allocation3 + $0x180] sm:$0xff]
        %v5634 = vld [vmem:[#allocation3 + $0x188] sm:$0xff]
        %v5635 = vld [vmem:[#allocation3 + $0x190] sm:$0xff]
        %v5636 = vld [vmem:[#allocation3 + $0x198] sm:$0xff]
        %v5637 = vld [vmem:[#allocation3 + $0x1a0] sm:$0xff]
        %v5638 = vld [vmem:[#allocation3 + $0x1a8] sm:$0xff]
        %v5639 = vld [vmem:[#allocation3 + $0x1b0] sm:$0xff]
        %v5640 = vld [vmem:[#allocation3 + $0x1b8] sm:$0xff]
        %v5641 = vld [vmem:[#allocation3 + $0x1c0] sm:$0xff]
        %v5642 = vld [vmem:[#allocation3 + $0x1c8] sm:$0xff]
        %v5643 = vld [vmem:[#allocation3 + $0x1d0] sm:$0xff]
        %v5644 = vld [vmem:[#allocation3 + $0x1d8] sm:$0xff]
        %v5645 = vld [vmem:[#allocation3 + $0x1e0] sm:$0xff]
        %v5646 = vld [vmem:[#allocation3 + $0x1e8] sm:$0xff]
        %v5647 = vld [vmem:[#allocation3 + $0x1f0] sm:$0xff]
        %v5648 = vld [vmem:[#allocation3 + $0x1f8] sm:$0xff]
        %v5649 = vld [vmem:[#allocation3 + $0x200] sm:$0xff]
        %v5650 = vld [vmem:[#allocation3 + $0x208] sm:$0xff]
        %v5651 = vld [vmem:[#allocation3 + $0x210] sm:$0xff]
        %v5652 = vld [vmem:[#allocation3 + $0x218] sm:$0xff]
        %v5653 = vld [vmem:[#allocation3 + $0x220] sm:$0xff]
        %v5654 = vld [vmem:[#allocation3 + $0x228] sm:$0xff]
        %v5655 = vld [vmem:[#allocation3 + $0x230] sm:$0xff]
        %v5656 = vld [vmem:[#allocation3 + $0x238] sm:$0xff]
        %v5657 = vld [vmem:[#allocation3 + $0x240] sm:$0xff]
        %v5658 = vld [vmem:[#allocation3 + $0x248] sm:$0xff]
        %v5659 = vld [vmem:[#allocation3 + $0x250] sm:$0xff]
        %v5660 = vld [vmem:[#allocation3 + $0x258] sm:$0xff]
        %v5661 = vld [vmem:[#allocation3 + $0x260] sm:$0xff]
        %v5662 = vld [vmem:[#allocation3 + $0x268] sm:$0xff]
        %v5663 = vld [vmem:[#allocation3 + $0x270] sm:$0xff]
        %v5664 = vld [vmem:[#allocation3 + $0x278] sm:$0xff]
        %v5665 = vld [vmem:[#allocation3 + $0x280] sm:$0xff]
        %v5666 = vld [vmem:[#allocation3 + $0x288] sm:$0xff]
        %v5667 = vld [vmem:[#allocation3 + $0x290] sm:$0xff]
        %v5668 = vld [vmem:[#allocation3 + $0x298] sm:$0xff]
        %v5669 = vld [vmem:[#allocation3 + $0x2a0] sm:$0xff]
        %v5670 = vld [vmem:[#allocation3 + $0x2a8] sm:$0xff]
        %v5671 = vld [vmem:[#allocation3 + $0x2b0] sm:$0xff]
        %v5672 = vld [vmem:[#allocation3 + $0x2b8] sm:$0xff]
        %v5673 = vld [vmem:[#allocation3 + $0x2c0] sm:$0xff]
        %v5674 = vld [vmem:[#allocation3 + $0x2c8] sm:$0xff]
        %v5675 = vld [vmem:[#allocation3 + $0x2d0] sm:$0xff]
        %v5676 = vld [vmem:[#allocation3 + $0x2d8] sm:$0xff]
        %v5677 = vld [vmem:[#allocation3 + $0x2e0] sm:$0xff]
        %v5678 = vld [vmem:[#allocation3 + $0x2e8] sm:$0xff]
        %v5679 = vld [vmem:[#allocation3 + $0x2f0] sm:$0xff]
        %v5680 = vld [vmem:[#allocation3 + $0x2f8] sm:$0xff]
        %v5681 = vld [vmem:[#allocation3 + $0x300] sm:$0xff]
        %v5682 = vld [vmem:[#allocation3 + $0x308] sm:$0xff]
        %v5683 = vld [vmem:[#allocation3 + $0x310] sm:$0xff]
        %v5684 = vld [vmem:[#allocation3 + $0x318] sm:$0xff]
        %v5685 = vld [vmem:[#allocation3 + $0x320] sm:$0xff]
        %v5686 = vld [vmem:[#allocation3 + $0x328] sm:$0xff]
        %v5687 = vld [vmem:[#allocation3 + $0x330] sm:$0xff]
        %v5688 = vld [vmem:[#allocation3 + $0x338] sm:$0xff]
        %v5689 = vld [vmem:[#allocation3 + $0x340] sm:$0xff]
        %v5690 = vld [vmem:[#allocation3 + $0x348] sm:$0xff]
        %v5691 = vld [vmem:[#allocation3 + $0x350] sm:$0xff]
        %v5692 = vld [vmem:[#allocation3 + $0x358] sm:$0xff]
        %v5693 = vld [vmem:[#allocation3 + $0x360] sm:$0xff]
        %v5694 = vld [vmem:[#allocation3 + $0x368] sm:$0xff]
        %v5695 = vld [vmem:[#allocation3 + $0x370] sm:$0xff]
        %v5696 = vld [vmem:[#allocation3 + $0x378] sm:$0xff]
        %v5697 = vld [vmem:[#allocation3 + $0x380] sm:$0xff]
        %v5698 = vld [vmem:[#allocation3 + $0x388] sm:$0xff]
        %v5699 = vld [vmem:[#allocation3 + $0x390] sm:$0xff]
        %v5700 = vld [vmem:[#allocation3 + $0x398] sm:$0xff]
        %v5701 = vld [vmem:[#allocation3 + $0x3a0] sm:$0xff]
        %v5702 = vld [vmem:[#allocation3 + $0x3a8] sm:$0xff]
        %v5703 = vld [vmem:[#allocation3 + $0x3b0] sm:$0xff]
        %v5704 = vld [vmem:[#allocation3 + $0x3b8] sm:$0xff]
        %v5705 = vld [vmem:[#allocation3 + $0x3c0] sm:$0xff]
        %v5706 = vld [vmem:[#allocation3 + $0x3c8] sm:$0xff]
        %v5707 = vld [vmem:[#allocation3 + $0x3d0] sm:$0xff]
        %v5708 = vld [vmem:[#allocation3 + $0x3d8] sm:$0xff]
        %v5709 = vld [vmem:[#allocation3 + $0x3e0] sm:$0xff]
        %v5710 = vld [vmem:[#allocation3 + $0x3e8] sm:$0xff]
        %v5711 = vld [vmem:[#allocation3 + $0x3f0] sm:$0xff]
        %v5712 = vld [vmem:[#allocation3 + $0x3f8] sm:$0xff]
        %v5713 = vld [vmem:[#allocation3 + $0x400] sm:$0xff]
        %v5714 = vld [vmem:[#allocation3 + $0x408] sm:$0xff]
        %v5715 = vld [vmem:[#allocation3 + $0x410] sm:$0xff]
        %v5716 = vld [vmem:[#allocation3 + $0x418] sm:$0xff]
        %v5717 = vld [vmem:[#allocation3 + $0x420] sm:$0xff]
        %v5718 = vld [vmem:[#allocation3 + $0x428] sm:$0xff]
        %v5719 = vld [vmem:[#allocation3 + $0x430] sm:$0xff]
        %v5720 = vld [vmem:[#allocation3 + $0x438] sm:$0xff]
        %v5721 = vld [vmem:[#allocation3 + $0x440] sm:$0xff]
        %v5722 = vld [vmem:[#allocation3 + $0x448] sm:$0xff]
        %v5723 = vld [vmem:[#allocation3 + $0x450] sm:$0xff]
        %v5724 = vld [vmem:[#allocation3 + $0x458] sm:$0xff]
        %v5725 = vld [vmem:[#allocation3 + $0x460] sm:$0xff]
        %v5726 = vld [vmem:[#allocation3 + $0x468] sm:$0xff]
        %v5727 = vld [vmem:[#allocation3 + $0x470] sm:$0xff]
        %v5728 = vld [vmem:[#allocation3 + $0x478] sm:$0xff]
        %v5730 = vlaneseq
        %v5731 = vshrl.u32 %v5730, 7
        %v5732 = vsub.s32 0, %v5731
        %v5733 = vrot.slane %v1738, %v5732
        %v5879 = vunpack.c.l.b16 %v1594
        %v5880 = vunpack.c.l.b16 %v1595
        %v5881 = vunpack.c.l.b16 %v1596
        %v5882 = vunpack.c.l.b16 %v1597
        %v5883 = vunpack.c.l.b16 %v1598
        %v5884 = vunpack.c.l.b16 %v1599
        %v5885 = vunpack.c.l.b16 %v1600
        %v5886 = vunpack.c.l.b16 %v1601
        %v5887 = vunpack.c.l.b16 %v1602
        %v5888 = vunpack.c.l.b16 %v1603
        %v5889 = vunpack.c.l.b16 %v1604
        %v5890 = vunpack.c.l.b16 %v1605
        %v5891 = vunpack.c.l.b16 %v1606
        %v5892 = vunpack.c.l.b16 %v1607
        %v5893 = vunpack.c.l.b16 %v1608
        %v5894 = vunpack.c.l.b16 %v1609
        %v5895 = vunpack.c.l.b16 %v1610
        %v5896 = vunpack.c.l.b16 %v1611
        %v5897 = vunpack.c.l.b16 %v1612
        %v5898 = vunpack.c.l.b16 %v1613
        %v5899 = vunpack.c.l.b16 %v1614
        %v5900 = vunpack.c.l.b16 %v1615
        %v5901 = vunpack.c.l.b16 %v1616
        %v5902 = vunpack.c.l.b16 %v1617
        %v5903 = vunpack.c.l.b16 %v1618
        %v5904 = vunpack.c.l.b16 %v1619
        %v5905 = vunpack.c.l.b16 %v1620
        %v5906 = vunpack.c.l.b16 %v1621
        %v5907 = vunpack.c.l.b16 %v1622
        %v5908 = vunpack.c.l.b16 %v1623
        %v5909 = vunpack.c.l.b16 %v1624
        %v5910 = vunpack.c.l.b16 %v1625
        %v5911 = vunpack.c.l.b16 %v1626
        %v5912 = vunpack.c.l.b16 %v1627
        %v5913 = vunpack.c.l.b16 %v1628
        %v5914 = vunpack.c.l.b16 %v1629
        %v5915 = vunpack.c.l.b16 %v1630
        %v5916 = vunpack.c.l.b16 %v1631
        %v5917 = vunpack.c.l.b16 %v1632
        %v5918 = vunpack.c.l.b16 %v1633
        %v5919 = vunpack.c.l.b16 %v1634
        %v5920 = vunpack.c.l.b16 %v1635
        %v5921 = vunpack.c.l.b16 %v1636
        %v5922 = vunpack.c.l.b16 %v1637
        %v5923 = vunpack.c.l.b16 %v1638
        %v5924 = vunpack.c.l.b16 %v1639
        %v5925 = vunpack.c.l.b16 %v1640
        %v5926 = vunpack.c.l.b16 %v1641
        %v5927 = vunpack.c.l.b16 %v1642
        %v5928 = vunpack.c.l.b16 %v1643
        %v5929 = vunpack.c.l.b16 %v1644
        %v5930 = vunpack.c.l.b16 %v1645
        %v5931 = vunpack.c.l.b16 %v1646
        %v5932 = vunpack.c.l.b16 %v1647
        %v5933 = vunpack.c.l.b16 %v1648
        %v5934 = vunpack.c.l.b16 %v1649
        %v5935 = vunpack.c.l.b16 %v1650
        %v5936 = vunpack.c.l.b16 %v1651
        %v5937 = vunpack.c.l.b16 %v1652
        %v5938 = vunpack.c.l.b16 %v1653
        %v5939 = vunpack.c.l.b16 %v1654
        %v5940 = vunpack.c.l.b16 %v1655
        %v5941 = vunpack.c.l.b16 %v1656
        %v5942 = vunpack.c.l.b16 %v1657
        %v5943 = vunpack.c.l.b16 %v1658
        %v5944 = vunpack.c.l.b16 %v1659
        %v5945 = vunpack.c.l.b16 %v1660
        %v5946 = vunpack.c.l.b16 %v1661
        %v5947 = vunpack.c.l.b16 %v1662
        %v5948 = vunpack.c.l.b16 %v1663
        %v5949 = vunpack.c.l.b16 %v1664
        %v5950 = vunpack.c.l.b16 %v1665
        %v5951 = vunpack.c.l.b16 %v1666
        %v5952 = vunpack.c.l.b16 %v1667
        %v5953 = vunpack.c.l.b16 %v1668
        %v5954 = vunpack.c.l.b16 %v1669
        %v5955 = vunpack.c.l.b16 %v1670
        %v5956 = vunpack.c.l.b16 %v1671
        %v5957 = vunpack.c.l.b16 %v1672
        %v5958 = vunpack.c.l.b16 %v1673
        %v5959 = vunpack.c.l.b16 %v1674
        %v5960 = vunpack.c.l.b16 %v1675
        %v5961 = vunpack.c.l.b16 %v1676
        %v5962 = vunpack.c.l.b16 %v1677
        %v5963 = vunpack.c.l.b16 %v1678
        %v5964 = vunpack.c.l.b16 %v1679
        %v5965 = vunpack.c.l.b16 %v1680
        %v5966 = vunpack.c.l.b16 %v1681
        %v5967 = vunpack.c.l.b16 %v1682
        %v5968 = vunpack.c.l.b16 %v1683
        %v5969 = vunpack.c.l.b16 %v1684
        %v5970 = vunpack.c.l.b16 %v1685
        %v5971 = vunpack.c.l.b16 %v1686
        %v5972 = vunpack.c.l.b16 %v1687
        %v5973 = vunpack.c.l.b16 %v1688
        %v5974 = vunpack.c.l.b16 %v1689
        %v5975 = vunpack.c.l.b16 %v1690
        %v5976 = vunpack.c.l.b16 %v1691
        %v5977 = vunpack.c.l.b16 %v1692
        %v5978 = vunpack.c.l.b16 %v1693
        %v5979 = vunpack.c.l.b16 %v1694
        %v5980 = vunpack.c.l.b16 %v1695
        %v5981 = vunpack.c.l.b16 %v1696
        %v5982 = vunpack.c.l.b16 %v1697
        %v5983 = vunpack.c.l.b16 %v1698
        %v5984 = vunpack.c.l.b16 %v1699
        %v5985 = vunpack.c.l.b16 %v1700
        %v5986 = vunpack.c.l.b16 %v1701
        %v5987 = vunpack.c.l.b16 %v1702
        %v5988 = vunpack.c.l.b16 %v1703
        %v5989 = vunpack.c.l.b16 %v1704
        %v5990 = vunpack.c.l.b16 %v1705
        %v5991 = vunpack.c.l.b16 %v1706
        %v5992 = vunpack.c.l.b16 %v1707
        %v5993 = vunpack.c.l.b16 %v1708
        %v5994 = vunpack.c.l.b16 %v1709
        %v5995 = vunpack.c.l.b16 %v1710
        %v5996 = vunpack.c.l.b16 %v1711
        %v5997 = vunpack.c.l.b16 %v1712
        %v5998 = vunpack.c.l.b16 %v1713
        %v5999 = vunpack.c.l.b16 %v1714
        %v6000 = vunpack.c.l.b16 %v1715
        %v6001 = vunpack.c.l.b16 %v1716
        %v6002 = vunpack.c.l.b16 %v1717
        %v6003 = vunpack.c.l.b16 %v1718
        %v6004 = vunpack.c.l.b16 %v1719
        %v6005 = vunpack.c.l.b16 %v1720
        %v6006 = vunpack.c.l.b16 %v1721
        %v6007 = vunpack.c.l.b16 %v1722
        %v6008 = vunpack.c.l.b16 %v1723
        %v6009 = vunpack.c.l.b16 %v1724
        %v6010 = vunpack.c.l.b16 %v1725
        %v6011 = vunpack.c.l.b16 %v1726
        %v6012 = vunpack.c.l.b16 %v1727
        %v6013 = vunpack.c.l.b16 %v1728
        %v6014 = vunpack.c.l.b16 %v1729
        %v6015 = vunpack.c.l.b16 %v1730
        %v6016 = vunpack.c.l.b16 %v1731
        %v6017 = vunpack.c.l.b16 %v1732
        %v6018 = vunpack.c.l.b16 %v1733
        %v6019 = vunpack.c.l.b16 %v1734
        %v6020 = vunpack.c.l.b16 %v1735
        %v6021 = vunpack.c.l.b16 %v1736
        %v6022 = vunpack.c.l.b16 %v1737
        %v6023 = vpack.c.b16 %v5880, %v5879
        %v6024 = vpack.c.b16 %v5882, %v5881
        %v6025 = vpack.c.b16 %v5884, %v5883
        %v6026 = vpack.c.b16 %v5886, %v5885
        %v6027 = vpack.c.b16 %v5888, %v5887
        %v6028 = vpack.c.b16 %v5890, %v5889
        %v6029 = vpack.c.b16 %v5892, %v5891
        %v6030 = vpack.c.b16 %v5894, %v5893
        %v6031 = vpack.c.b16 %v5896, %v5895
        %v6032 = vpack.c.b16 %v5898, %v5897
        %v6033 = vpack.c.b16 %v5900, %v5899
        %v6034 = vpack.c.b16 %v5902, %v5901
        %v6035 = vpack.c.b16 %v5904, %v5903
        %v6036 = vpack.c.b16 %v5906, %v5905
        %v6037 = vpack.c.b16 %v5908, %v5907
        %v6038 = vpack.c.b16 %v5910, %v5909
        %v6039 = vpack.c.b16 %v5912, %v5911
        %v6040 = vpack.c.b16 %v5914, %v5913
        %v6041 = vpack.c.b16 %v5916, %v5915
        %v6042 = vpack.c.b16 %v5918, %v5917
        %v6043 = vpack.c.b16 %v5920, %v5919
        %v6044 = vpack.c.b16 %v5922, %v5921
        %v6045 = vpack.c.b16 %v5924, %v5923
        %v6046 = vpack.c.b16 %v5926, %v5925
        %v6047 = vpack.c.b16 %v5928, %v5927
        %v6048 = vpack.c.b16 %v5930, %v5929
        %v6049 = vpack.c.b16 %v5932, %v5931
        %v6050 = vpack.c.b16 %v5934, %v5933
        %v6051 = vpack.c.b16 %v5936, %v5935
        %v6052 = vpack.c.b16 %v5938, %v5937
        %v6053 = vpack.c.b16 %v5940, %v5939
        %v6054 = vpack.c.b16 %v5942, %v5941
        %v6055 = vpack.c.b16 %v5944, %v5943
        %v6056 = vpack.c.b16 %v5946, %v5945
        %v6057 = vpack.c.b16 %v5948, %v5947
        %v6058 = vpack.c.b16 %v5950, %v5949
        %v6059 = vpack.c.b16 %v5952, %v5951
        %v6060 = vpack.c.b16 %v5954, %v5953
        %v6061 = vpack.c.b16 %v5956, %v5955
        %v6062 = vpack.c.b16 %v5958, %v5957
        %v6063 = vpack.c.b16 %v5960, %v5959
        %v6064 = vpack.c.b16 %v5962, %v5961
        %v6065 = vpack.c.b16 %v5964, %v5963
        %v6066 = vpack.c.b16 %v5966, %v5965
        %v6067 = vpack.c.b16 %v5968, %v5967
        %v6068 = vpack.c.b16 %v5970, %v5969
        %v6069 = vpack.c.b16 %v5972, %v5971
        %v6070 = vpack.c.b16 %v5974, %v5973
        %v6071 = vpack.c.b16 %v5976, %v5975
        %v6072 = vpack.c.b16 %v5978, %v5977
        %v6073 = vpack.c.b16 %v5980, %v5979
        %v6074 = vpack.c.b16 %v5982, %v5981
        %v6075 = vpack.c.b16 %v5984, %v5983
        %v6076 = vpack.c.b16 %v5986, %v5985
        %v6077 = vpack.c.b16 %v5988, %v5987
        %v6078 = vpack.c.b16 %v5990, %v5989
        %v6079 = vpack.c.b16 %v5992, %v5991
        %v6080 = vpack.c.b16 %v5994, %v5993
        %v6081 = vpack.c.b16 %v5996, %v5995
        %v6082 = vpack.c.b16 %v5998, %v5997
        %v6083 = vpack.c.b16 %v6000, %v5999
        %v6084 = vpack.c.b16 %v6002, %v6001
        %v6085 = vpack.c.b16 %v6004, %v6003
        %v6086 = vpack.c.b16 %v6006, %v6005
        %v6087 = vpack.c.b16 %v6008, %v6007
        %v6088 = vpack.c.b16 %v6010, %v6009
        %v6089 = vpack.c.b16 %v6012, %v6011
        %v6090 = vpack.c.b16 %v6014, %v6013
        %v6091 = vpack.c.b16 %v6016, %v6015
        %v6092 = vpack.c.b16 %v6018, %v6017
        %v6093 = vpack.c.b16 %v6020, %v6019
        %v6094 = vpack.c.b16 %v6022, %v6021
        %6167 = vmatprep.subr.bf16.mxu0 0
        %6168 = vmatpush1.bf16.msra.mxu0 %v6023
        %6169 = vmatprep.subr.bf16.mxu0 0
        %6170 = vmatpush1.bf16.msra.mxu0 %v6024
        %6171 = vmatprep.subr.bf16.mxu0 0
        %6172 = vmatpush1.bf16.msra.mxu0 %v6025
        %6173 = vmatprep.subr.bf16.mxu0 0
        %6174 = vmatpush1.bf16.msra.mxu0 %v6026
        %6175 = vmatprep.subr.bf16.mxu0 0
        %6176 = vmatpush1.bf16.msra.mxu0 %v6027
        %6177 = vmatprep.subr.bf16.mxu0 0
        %6178 = vmatpush1.bf16.msra.mxu0 %v6028
        %6179 = vmatprep.subr.bf16.mxu0 0
        %6180 = vmatpush1.bf16.msra.mxu0 %v6029
        %6181 = vmatprep.subr.bf16.mxu0 0
        %6182 = vmatpush1.bf16.msra.mxu0 %v6030
        %6183 = vmatprep.subr.bf16.mxu0 0
        %6184 = vmatpush1.bf16.msra.mxu0 %v6031
        %6185 = vmatprep.subr.bf16.mxu0 0
        %6186 = vmatpush1.bf16.msra.mxu0 %v6032
        %6187 = vmatprep.subr.bf16.mxu0 0
        %6188 = vmatpush1.bf16.msra.mxu0 %v6033
        %6189 = vmatprep.subr.bf16.mxu0 0
        %6190 = vmatpush1.bf16.msra.mxu0 %v6034
        %6191 = vmatprep.subr.bf16.mxu0 0
        %6192 = vmatpush1.bf16.msra.mxu0 %v6035
        %6193 = vmatprep.subr.bf16.mxu0 0
        %6194 = vmatpush1.bf16.msra.mxu0 %v6036
        %6195 = vmatprep.subr.bf16.mxu0 0
        %6196 = vmatpush1.bf16.msra.mxu0 %v6037
        %6197 = vmatprep.subr.bf16.mxu0 0
        %6198 = vmatpush1.bf16.msra.mxu0 %v6038
        %6199 = vmatprep.mubr.bf16.mxu0 %v5586
        %6200 = vmatmul.mubr.bf16.gmra.mrb[0].mxu0 %v5585
        %v6201 = vpop.f32.mrb[0].mxu0
        %v6202 = vadd.f32 %v5733, %v6201
        %v6203 = vpop.f32.mrb[0].mxu0
        %v6204 = vpop.f32.mrb[0].mxu0
        %v6205 = vadd.f32 %v5733, %v6204
        %v6206 = vpop.f32.mrb[0].mxu0
        %6207 = vmatprep.mubr.bf16.mxu0 %v5595
        %6208 = vmatmul.mubr.bf16.gmra.mrb[0].mxu0 %v5594
        %v6209 = vpop.f32.mrb[0].mxu0
        %v6210 = vadd.f32 %v5733, %v6209
        %v6211 = vpop.f32.mrb[0].mxu0
        %v6212 = vpop.f32.mrb[0].mxu0
        %v6213 = vadd.f32 %v5733, %v6212
        %v6214 = vpop.f32.mrb[0].mxu0
        %6215 = vmatprep.mubr.bf16.mxu0 %v5604
        %6216 = vmatmul.mubr.bf16.gmra.mrb[0].mxu0 %v5603
        %v6217 = vpop.f32.mrb[0].mxu0
        %v6218 = vadd.f32 %v5733, %v6217
        %v6219 = vpop.f32.mrb[0].mxu0
        %v6220 = vpop.f32.mrb[0].mxu0
        %v6221 = vadd.f32 %v5733, %v6220
        %v6222 = vpop.f32.mrb[0].mxu0
        %6223 = vmatprep.mubr.bf16.mxu0 %v5613
        %6224 = vmatmul.mubr.bf16.gmra.mrb[0].mxu0 %v5612
        %v6225 = vpop.f32.mrb[0].mxu0
        %v6226 = vadd.f32 %v5733, %v6225
        %v6227 = vpop.f32.mrb[0].mxu0
        %v6228 = vpop.f32.mrb[0].mxu0
        %v6229 = vadd.f32 %v5733, %v6228
        %v6230 = vpop.f32.mrb[0].mxu0
        %6231 = vmatprep.mubr.bf16.mxu0 %v5622
        %6232 = vmatmul.mubr.bf16.gmra.mrb[0].mxu0 %v5621
        %v6233 = vpop.f32.mrb[0].mxu0
        %v6234 = vadd.f32 %v5733, %v6233
        %v6235 = vpop.f32.mrb[0].mxu0
        %v6236 = vpop.f32.mrb[0].mxu0
        %v6237 = vadd.f32 %v5733, %v6236
        %v6238 = vpop.f32.mrb[0].mxu0
        %6239 = vmatprep.mubr.bf16.mxu0 %v5631
        %6240 = vmatmul.mubr.bf16.gmra.mrb[0].mxu0 %v5630
        %v6241 = vpop.f32.mrb[0].mxu0
        %v6242 = vadd.f32 %v5733, %v6241
        %v6243 = vpop.f32.mrb[0].mxu0
        %v6244 = vpop.f32.mrb[0].mxu0
        %v6245 = vadd.f32 %v5733, %v6244
        %v6246 = vpop.f32.mrb[0].mxu0
        %6247 = vmatprep.mubr.bf16.mxu0 %v5640
        %6248 = vmatmul.mubr.bf16.gmra.mrb[0].mxu0 %v5639
        %v6249 = vpop.f32.mrb[0].mxu0
        %v6250 = vadd.f32 %v5733, %v6249
        %v6251 = vpop.f32.mrb[0].mxu0
        %v6252 = vpop.f32.mrb[0].mxu0
        %v6253 = vadd.f32 %v5733, %v6252
        %v6254 = vpop.f32.mrb[0].mxu0
        %6255 = vmatprep.mubr.bf16.mxu0 %v5649
        %6256 = vmatmul.mubr.bf16.gmra.mrb[0].mxu0 %v5648
        %v6257 = vpop.f32.mrb[0].mxu0
        %v6258 = vadd.f32 %v5733, %v6257
        %v6259 = vpop.f32.mrb[0].mxu0
        %v6260 = vpop.f32.mrb[0].mxu0
        %v6261 = vadd.f32 %v5733, %v6260
        %v6262 = vpop.f32.mrb[0].mxu0
        %6263 = vmatprep.mubr.bf16.mxu0 %v5658
        %6264 = vmatmul.mubr.bf16.gmra.mrb[0].mxu0 %v5657
        %v6265 = vpop.f32.mrb[0].mxu0
        %v6266 = vadd.f32 %v5733, %v6265
        %v6267 = vpop.f32.mrb[0].mxu0
        %v6268 = vpop.f32.mrb[0].mxu0
        %v6269 = vadd.f32 %v5733, %v6268
        %v6270 = vpop.f32.mrb[0].mxu0
        %6271 = vmatprep.mubr.bf16.mxu0 %v5667
        %6272 = vmatmul.mubr.bf16.gmra.mrb[0].mxu0 %v5666
        %v6273 = vpop.f32.mrb[0].mxu0
        %v6274 = vadd.f32 %v5733, %v6273
        %v6275 = vpop.f32.mrb[0].mxu0
        %v6276 = vpop.f32.mrb[0].mxu0
        %v6277 = vadd.f32 %v5733, %v6276
        %v6278 = vpop.f32.mrb[0].mxu0
        %6279 = vmatprep.mubr.bf16.mxu0 %v5676
        %6280 = vmatmul.mubr.bf16.gmra.mrb[0].mxu0 %v5675
        %v6281 = vpop.f32.mrb[0].mxu0
        %v6282 = vadd.f32 %v5733, %v6281
        %v6283 = vpop.f32.mrb[0].mxu0
        %v6284 = vpop.f32.mrb[0].mxu0
        %v6285 = vadd.f32 %v5733, %v6284
        %v6286 = vpop.f32.mrb[0].mxu0
        %6287 = vmatprep.mubr.bf16.mxu0 %v5685
        %6288 = vmatmul.mubr.bf16.gmra.mrb[0].mxu0 %v5684
        %v6289 = vpop.f32.mrb[0].mxu0
        %v6290 = vadd.f32 %v5733, %v6289
        %v6291 = vpop.f32.mrb[0].mxu0
        %v6292 = vpop.f32.mrb[0].mxu0
        %v6293 = vadd.f32 %v5733, %v6292
        %v6294 = vpop.f32.mrb[0].mxu0
        %6295 = vmatprep.mubr.bf16.mxu0 %v5694
        %6296 = vmatmul.mubr.bf16.gmra.mrb[0].mxu0 %v5693
        %v6297 = vpop.f32.mrb[0].mxu0
        %v6298 = vadd.f32 %v5733, %v6297
        %v6299 = vpop.f32.mrb[0].mxu0
        %v6300 = vpop.f32.mrb[0].mxu0
        %v6301 = vadd.f32 %v5733, %v6300
        %v6302 = vpop.f32.mrb[0].mxu0
        %6303 = vmatprep.mubr.bf16.mxu0 %v5703
        %6304 = vmatmul.mubr.bf16.gmra.mrb[0].mxu0 %v5702
        %v6305 = vpop.f32.mrb[0].mxu0
        %v6306 = vadd.f32 %v5733, %v6305
        %v6307 = vpop.f32.mrb[0].mxu0
        %v6308 = vpop.f32.mrb[0].mxu0
        %v6309 = vadd.f32 %v5733, %v6308
        %v6310 = vpop.f32.mrb[0].mxu0
        %6311 = vmatprep.mubr.bf16.mxu0 %v5712
        %6312 = vmatmul.mubr.bf16.gmra.mrb[0].mxu0 %v5711
        %v6313 = vpop.f32.mrb[0].mxu0
        %v6314 = vadd.f32 %v5733, %v6313
        %v6315 = vpop.f32.mrb[0].mxu0
        %v6316 = vpop.f32.mrb[0].mxu0
        %v6317 = vadd.f32 %v5733, %v6316
        %v6318 = vpop.f32.mrb[0].mxu0
        %6319 = vmatprep.mubr.bf16.mxu0 %v5721
        %6320 = vmatmul.mubr.bf16.gmra.mrb[0].mxu0 %v5720
        %v6321 = vpop.f32.mrb[0].mxu0
        %v6322 = vadd.f32 %v5733, %v6321
        %v6323 = vpop.f32.mrb[0].mxu0
        %v6324 = vpop.f32.mrb[0].mxu0
        %v6325 = vadd.f32 %v5733, %v6324
        %v6326 = vpop.f32.mrb[0].mxu0
        %6327 = vdwg.mxu0
        %6328 = vmatprep.subr.bf16.mxu0 0
        %6329 = vmatpush1.bf16.msra.mxu0 %v6039
        %6330 = vmatprep.subr.bf16.mxu0 0
        %6331 = vmatpush1.bf16.msra.mxu0 %v6040
        %6332 = vmatprep.subr.bf16.mxu0 0
        %6333 = vmatpush1.bf16.msra.mxu0 %v6041
        %6334 = vmatprep.subr.bf16.mxu0 0
        %6335 = vmatpush1.bf16.msra.mxu0 %v6042
        %6336 = vmatprep.subr.bf16.mxu0 0
        %6337 = vmatpush1.bf16.msra.mxu0 %v6043
        %6338 = vmatprep.subr.bf16.mxu0 0
        %6339 = vmatpush1.bf16.msra.mxu0 %v6044
        %6340 = vmatprep.subr.bf16.mxu0 0
        %6341 = vmatpush1.bf16.msra.mxu0 %v6045
        %6342 = vmatprep.subr.bf16.mxu0 0
        %6343 = vmatpush1.bf16.msra.mxu0 %v6046
        %6344 = vmatprep.subr.bf16.mxu0 0
        %6345 = vmatpush1.bf16.msra.mxu0 %v6047
        %6346 = vmatprep.subr.bf16.mxu0 0
        %6347 = vmatpush1.bf16.msra.mxu0 %v6048
        %6348 = vmatprep.subr.bf16.mxu0 0
        %6349 = vmatpush1.bf16.msra.mxu0 %v6049
        %6350 = vmatprep.subr.bf16.mxu0 0
        %6351 = vmatpush1.bf16.msra.mxu0 %v6050
        %6352 = vmatprep.subr.bf16.mxu0 0
        %6353 = vmatpush1.bf16.msra.mxu0 %v6051
        %6354 = vmatprep.subr.bf16.mxu0 0
        %6355 = vmatpush1.bf16.msra.mxu0 %v6052
        %6356 = vmatprep.subr.bf16.mxu0 0
        %6357 = vmatpush1.bf16.msra.mxu0 %v6053
        %6358 = vmatprep.subr.bf16.mxu0 0
        %6359 = vmatpush1.bf16.msra.mxu0 %v6054
        %6360 = vmatprep.mubr.bf16.mxu0 %v5588
        %6361 = vmatmul.mubr.bf16.gmra.mrb[0].mxu0 %v5587
        %v6362 = vpop.f32.mrb[0].mxu0
        %v6363 = vadd.f32 %v6202, %v6362
        %v6364 = vpop.f32.mrb[0].mxu0
        %v6365 = vpop.f32.mrb[0].mxu0
        %v6366 = vadd.f32 %v6205, %v6365
        %v6367 = vpop.f32.mrb[0].mxu0
        %6368 = vmatprep.mubr.bf16.mxu0 %v5597
        %6369 = vmatmul.mubr.bf16.gmra.mrb[0].mxu0 %v5596
        %v6370 = vpop.f32.mrb[0].mxu0
        %v6371 = vadd.f32 %v6210, %v6370
        %v6372 = vpop.f32.mrb[0].mxu0
        %v6373 = vpop.f32.mrb[0].mxu0
        %v6374 = vadd.f32 %v6213, %v6373
        %v6375 = vpop.f32.mrb[0].mxu0
        %6376 = vmatprep.mubr.bf16.mxu0 %v5606
        %6377 = vmatmul.mubr.bf16.gmra.mrb[0].mxu0 %v5605
        %v6378 = vpop.f32.mrb[0].mxu0
        %v6379 = vadd.f32 %v6218, %v6378
        %v6380 = vpop.f32.mrb[0].mxu0
        %v6381 = vpop.f32.mrb[0].mxu0
        %v6382 = vadd.f32 %v6221, %v6381
        %v6383 = vpop.f32.mrb[0].mxu0
        %6384 = vmatprep.mubr.bf16.mxu0 %v5615
        %6385 = vmatmul.mubr.bf16.gmra.mrb[0].mxu0 %v5614
        %v6386 = vpop.f32.mrb[0].mxu0
        %v6387 = vadd.f32 %v6226, %v6386
        %v6388 = vpop.f32.mrb[0].mxu0
        %v6389 = vpop.f32.mrb[0].mxu0
        %v6390 = vadd.f32 %v6229, %v6389
        %v6391 = vpop.f32.mrb[0].mxu0
        %6392 = vmatprep.mubr.bf16.mxu0 %v5624
        %6393 = vmatmul.mubr.bf16.gmra.mrb[0].mxu0 %v5623
        %v6394 = vpop.f32.mrb[0].mxu0
        %v6395 = vadd.f32 %v6234, %v6394
        %v6396 = vpop.f32.mrb[0].mxu0
        %v6397 = vpop.f32.mrb[0].mxu0
        %v6398 = vadd.f32 %v6237, %v6397
        %v6399 = vpop.f32.mrb[0].mxu0
        %6400 = vmatprep.mubr.bf16.mxu0 %v5633
        %6401 = vmatmul.mubr.bf16.gmra.mrb[0].mxu0 %v5632
        %v6402 = vpop.f32.mrb[0].mxu0
        %v6403 = vadd.f32 %v6242, %v6402
        %v6404 = vpop.f32.mrb[0].mxu0
        %v6405 = vpop.f32.mrb[0].mxu0
        %v6406 = vadd.f32 %v6245, %v6405
        %v6407 = vpop.f32.mrb[0].mxu0
        %6408 = vmatprep.mubr.bf16.mxu0 %v5642
        %6409 = vmatmul.mubr.bf16.gmra.mrb[0].mxu0 %v5641
        %v6410 = vpop.f32.mrb[0].mxu0
        %v6411 = vadd.f32 %v6250, %v6410
        %v6412 = vpop.f32.mrb[0].mxu0
        %v6413 = vpop.f32.mrb[0].mxu0
        %v6414 = vadd.f32 %v6253, %v6413
        %v6415 = vpop.f32.mrb[0].mxu0
        %6416 = vmatprep.mubr.bf16.mxu0 %v5651
        %6417 = vmatmul.mubr.bf16.gmra.mrb[0].mxu0 %v5650
        %v6418 = vpop.f32.mrb[0].mxu0
        %v6419 = vadd.f32 %v6258, %v6418
        %v6420 = vpop.f32.mrb[0].mxu0
        %v6421 = vpop.f32.mrb[0].mxu0
        %v6422 = vadd.f32 %v6261, %v6421
        %v6423 = vpop.f32.mrb[0].mxu0
        %6424 = vmatprep.mubr.bf16.mxu0 %v5660
        %6425 = vmatmul.mubr.bf16.gmra.mrb[0].mxu0 %v5659
        %v6426 = vpop.f32.mrb[0].mxu0
        %v6427 = vadd.f32 %v6266, %v6426
        %v6428 = vpop.f32.mrb[0].mxu0
        %v6429 = vpop.f32.mrb[0].mxu0
        %v6430 = vadd.f32 %v6269, %v6429
        %v6431 = vpop.f32.mrb[0].mxu0
        %6432 = vmatprep.mubr.bf16.mxu0 %v5669
        %6433 = vmatmul.mubr.bf16.gmra.mrb[0].mxu0 %v5668
        %v6434 = vpop.f32.mrb[0].mxu0
        %v6435 = vadd.f32 %v6274, %v6434
        %v6436 = vpop.f32.mrb[0].mxu0
        %v6437 = vpop.f32.mrb[0].mxu0
        %v6438 = vadd.f32 %v6277, %v6437
        %v6439 = vpop.f32.mrb[0].mxu0
        %6440 = vmatprep.mubr.bf16.mxu0 %v5678
        %6441 = vmatmul.mubr.bf16.gmra.mrb[0].mxu0 %v5677
        %v6442 = vpop.f32.mrb[0].mxu0
        %v6443 = vadd.f32 %v6282, %v6442
        %v6444 = vpop.f32.mrb[0].mxu0
        %v6445 = vpop.f32.mrb[0].mxu0
        %v6446 = vadd.f32 %v6285, %v6445
        %v6447 = vpop.f32.mrb[0].mxu0
        %6448 = vmatprep.mubr.bf16.mxu0 %v5687
        %6449 = vmatmul.mubr.bf16.gmra.mrb[0].mxu0 %v5686
        %v6450 = vpop.f32.mrb[0].mxu0
        %v6451 = vadd.f32 %v6290, %v6450
        %v6452 = vpop.f32.mrb[0].mxu0
        %v6453 = vpop.f32.mrb[0].mxu0
        %v6454 = vadd.f32 %v6293, %v6453
        %v6455 = vpop.f32.mrb[0].mxu0
        %6456 = vmatprep.mubr.bf16.mxu0 %v5696
        %6457 = vmatmul.mubr.bf16.gmra.mrb[0].mxu0 %v5695
        %v6458 = vpop.f32.mrb[0].mxu0
        %v6459 = vadd.f32 %v6298, %v6458
        %v6460 = vpop.f32.mrb[0].mxu0
        %v6461 = vpop.f32.mrb[0].mxu0
        %v6462 = vadd.f32 %v6301, %v6461
        %v6463 = vpop.f32.mrb[0].mxu0
        %6464 = vmatprep.mubr.bf16.mxu0 %v5705
        %6465 = vmatmul.mubr.bf16.gmra.mrb[0].mxu0 %v5704
        %v6466 = vpop.f32.mrb[0].mxu0
        %v6467 = vadd.f32 %v6306, %v6466
        %v6468 = vpop.f32.mrb[0].mxu0
        %v6469 = vpop.f32.mrb[0].mxu0
        %v6470 = vadd.f32 %v6309, %v6469
        %v6471 = vpop.f32.mrb[0].mxu0
        %6472 = vmatprep.mubr.bf16.mxu0 %v5714
        %6473 = vmatmul.mubr.bf16.gmra.mrb[0].mxu0 %v5713
        %v6474 = vpop.f32.mrb[0].mxu0
        %v6475 = vadd.f32 %v6314, %v6474
        %v6476 = vpop.f32.mrb[0].mxu0
        %v6477 = vpop.f32.mrb[0].mxu0
        %v6478 = vadd.f32 %v6317, %v6477
        %v6479 = vpop.f32.mrb[0].mxu0
        %6480 = vmatprep.mubr.bf16.mxu0 %v5723
        %6481 = vmatmul.mubr.bf16.gmra.mrb[0].mxu0 %v5722
        %v6482 = vpop.f32.mrb[0].mxu0
        %v6483 = vadd.f32 %v6322, %v6482
        %v6484 = vpop.f32.mrb[0].mxu0
        %v6485 = vpop.f32.mrb[0].mxu0
        %v6486 = vadd.f32 %v6325, %v6485
        %v6487 = vpop.f32.mrb[0].mxu0
        %6488 = vdwg.mxu0
        %6489 = vmatprep.subr.bf16.mxu0 0
        %6490 = vmatpush1.bf16.msra.mxu0 %v6055
        %6491 = vmatprep.subr.bf16.mxu0 0
        %6492 = vmatpush1.bf16.msra.mxu0 %v6056
        %6493 = vmatprep.subr.bf16.mxu0 0
        %6494 = vmatpush1.bf16.msra.mxu0 %v6057
        %6495 = vmatprep.subr.bf16.mxu0 0
        %6496 = vmatpush1.bf16.msra.mxu0 %v6058
        %6497 = vmatprep.subr.bf16.mxu0 0
        %6498 = vmatpush1.bf16.msra.mxu0 %v6059
        %6499 = vmatprep.subr.bf16.mxu0 0
        %6500 = vmatpush1.bf16.msra.mxu0 %v6060
        %6501 = vmatprep.subr.bf16.mxu0 0
        %6502 = vmatpush1.bf16.msra.mxu0 %v6061
        %6503 = vmatprep.subr.bf16.mxu0 0
        %6504 = vmatpush1.bf16.msra.mxu0 %v6062
        %6505 = vmatprep.subr.bf16.mxu0 0
        %6506 = vmatpush1.bf16.msra.mxu0 %v6063
        %6507 = vmatprep.subr.bf16.mxu0 0
        %6508 = vmatpush1.bf16.msra.mxu0 %v6064
        %6509 = vmatprep.subr.bf16.mxu0 0
        %6510 = vmatpush1.bf16.msra.mxu0 %v6065
        %6511 = vmatprep.subr.bf16.mxu0 0
        %6512 = vmatpush1.bf16.msra.mxu0 %v6066
        %6513 = vmatprep.subr.bf16.mxu0 0
        %6514 = vmatpush1.bf16.msra.mxu0 %v6067
        %6515 = vmatprep.subr.bf16.mxu0 0
        %6516 = vmatpush1.bf16.msra.mxu0 %v6068
        %6517 = vmatprep.subr.bf16.mxu0 0
        %6518 = vmatpush1.bf16.msra.mxu0 %v6069
        %6519 = vmatprep.subr.bf16.mxu0 0
        %6520 = vmatpush1.bf16.msra.mxu0 %v6070
        %6521 = vmatprep.mubr.bf16.mxu0 %v5590
        %6522 = vmatmul.mubr.bf16.gmra.mrb[0].mxu0 %v5589
        %v6523 = vpop.f32.mrb[0].mxu0
        %v6524 = vadd.f32 %v6363, %v6523
        %v6525 = vpop.f32.mrb[0].mxu0
        %v6526 = vpop.f32.mrb[0].mxu0
        %v6527 = vadd.f32 %v6366, %v6526
        %v6528 = vpop.f32.mrb[0].mxu0
        %6529 = vmatprep.mubr.bf16.mxu0 %v5599
        %6530 = vmatmul.mubr.bf16.gmra.mrb[0].mxu0 %v5598
        %v6531 = vpop.f32.mrb[0].mxu0
        %v6532 = vadd.f32 %v6371, %v6531
        %v6533 = vpop.f32.mrb[0].mxu0
        %v6534 = vpop.f32.mrb[0].mxu0
        %v6535 = vadd.f32 %v6374, %v6534
        %v6536 = vpop.f32.mrb[0].mxu0
        %6537 = vmatprep.mubr.bf16.mxu0 %v5608
        %6538 = vmatmul.mubr.bf16.gmra.mrb[0].mxu0 %v5607
        %v6539 = vpop.f32.mrb[0].mxu0
        %v6540 = vadd.f32 %v6379, %v6539
        %v6541 = vpop.f32.mrb[0].mxu0
        %v6542 = vpop.f32.mrb[0].mxu0
        %v6543 = vadd.f32 %v6382, %v6542
        %v6544 = vpop.f32.mrb[0].mxu0
        %6545 = vmatprep.mubr.bf16.mxu0 %v5617
        %6546 = vmatmul.mubr.bf16.gmra.mrb[0].mxu0 %v5616
        %v6547 = vpop.f32.mrb[0].mxu0
        %v6548 = vadd.f32 %v6387, %v6547
        %v6549 = vpop.f32.mrb[0].mxu0
        %v6550 = vpop.f32.mrb[0].mxu0
        %v6551 = vadd.f32 %v6390, %v6550
        %v6552 = vpop.f32.mrb[0].mxu0
        %6553 = vmatprep.mubr.bf16.mxu0 %v5626
        %6554 = vmatmul.mubr.bf16.gmra.mrb[0].mxu0 %v5625
        %v6555 = vpop.f32.mrb[0].mxu0
        %v6556 = vadd.f32 %v6395, %v6555
        %v6557 = vpop.f32.mrb[0].mxu0
        %v6558 = vpop.f32.mrb[0].mxu0
        %v6559 = vadd.f32 %v6398, %v6558
        %v6560 = vpop.f32.mrb[0].mxu0
        %6561 = vmatprep.mubr.bf16.mxu0 %v5635
        %6562 = vmatmul.mubr.bf16.gmra.mrb[0].mxu0 %v5634
        %v6563 = vpop.f32.mrb[0].mxu0
        %v6564 = vadd.f32 %v6403, %v6563
        %v6565 = vpop.f32.mrb[0].mxu0
        %v6566 = vpop.f32.mrb[0].mxu0
        %v6567 = vadd.f32 %v6406, %v6566
        %v6568 = vpop.f32.mrb[0].mxu0
        %6569 = vmatprep.mubr.bf16.mxu0 %v5644
        %6570 = vmatmul.mubr.bf16.gmra.mrb[0].mxu0 %v5643
        %v6571 = vpop.f32.mrb[0].mxu0
        %v6572 = vadd.f32 %v6411, %v6571
        %v6573 = vpop.f32.mrb[0].mxu0
        %v6574 = vpop.f32.mrb[0].mxu0
        %v6575 = vadd.f32 %v6414, %v6574
        %v6576 = vpop.f32.mrb[0].mxu0
        %6577 = vmatprep.mubr.bf16.mxu0 %v5653
        %6578 = vmatmul.mubr.bf16.gmra.mrb[0].mxu0 %v5652
        %v6579 = vpop.f32.mrb[0].mxu0
        %v6580 = vadd.f32 %v6419, %v6579
        %v6581 = vpop.f32.mrb[0].mxu0
        %v6582 = vpop.f32.mrb[0].mxu0
        %v6583 = vadd.f32 %v6422, %v6582
        %v6584 = vpop.f32.mrb[0].mxu0
        %6585 = vmatprep.mubr.bf16.mxu0 %v5662
        %6586 = vmatmul.mubr.bf16.gmra.mrb[0].mxu0 %v5661
        %v6587 = vpop.f32.mrb[0].mxu0
        %v6588 = vadd.f32 %v6427, %v6587
        %v6589 = vpop.f32.mrb[0].mxu0
        %v6590 = vpop.f32.mrb[0].mxu0
        %v6591 = vadd.f32 %v6430, %v6590
        %v6592 = vpop.f32.mrb[0].mxu0
        %6593 = vmatprep.mubr.bf16.mxu0 %v5671
        %6594 = vmatmul.mubr.bf16.gmra.mrb[0].mxu0 %v5670
        %v6595 = vpop.f32.mrb[0].mxu0
        %v6596 = vadd.f32 %v6435, %v6595
        %v6597 = vpop.f32.mrb[0].mxu0
        %v6598 = vpop.f32.mrb[0].mxu0
        %v6599 = vadd.f32 %v6438, %v6598
        %v6600 = vpop.f32.mrb[0].mxu0
        %6601 = vmatprep.mubr.bf16.mxu0 %v5680
        %6602 = vmatmul.mubr.bf16.gmra.mrb[0].mxu0 %v5679
        %v6603 = vpop.f32.mrb[0].mxu0
        %v6604 = vadd.f32 %v6443, %v6603
        %v6605 = vpop.f32.mrb[0].mxu0
        %v6606 = vpop.f32.mrb[0].mxu0
        %v6607 = vadd.f32 %v6446, %v6606
        %v6608 = vpop.f32.mrb[0].mxu0
        %6609 = vmatprep.mubr.bf16.mxu0 %v5689
        %6610 = vmatmul.mubr.bf16.gmra.mrb[0].mxu0 %v5688
        %v6611 = vpop.f32.mrb[0].mxu0
        %v6612 = vadd.f32 %v6451, %v6611
        %v6613 = vpop.f32.mrb[0].mxu0
        %v6614 = vpop.f32.mrb[0].mxu0
        %v6615 = vadd.f32 %v6454, %v6614
        %v6616 = vpop.f32.mrb[0].mxu0
        %6617 = vmatprep.mubr.bf16.mxu0 %v5698
        %6618 = vmatmul.mubr.bf16.gmra.mrb[0].mxu0 %v5697
        %v6619 = vpop.f32.mrb[0].mxu0
        %v6620 = vadd.f32 %v6459, %v6619
        %v6621 = vpop.f32.mrb[0].mxu0
        %v6622 = vpop.f32.mrb[0].mxu0
        %v6623 = vadd.f32 %v6462, %v6622
        %v6624 = vpop.f32.mrb[0].mxu0
        %6625 = vmatprep.mubr.bf16.mxu0 %v5707
        %6626 = vmatmul.mubr.bf16.gmra.mrb[0].mxu0 %v5706
        %v6627 = vpop.f32.mrb[0].mxu0
        %v6628 = vadd.f32 %v6467, %v6627
        %v6629 = vpop.f32.mrb[0].mxu0
        %v6630 = vpop.f32.mrb[0].mxu0
        %v6631 = vadd.f32 %v6470, %v6630
        %v6632 = vpop.f32.mrb[0].mxu0
        %6633 = vmatprep.mubr.bf16.mxu0 %v5716
        %6634 = vmatmul.mubr.bf16.gmra.mrb[0].mxu0 %v5715
        %v6635 = vpop.f32.mrb[0].mxu0
        %v6636 = vadd.f32 %v6475, %v6635
        %v6637 = vpop.f32.mrb[0].mxu0
        %v6638 = vpop.f32.mrb[0].mxu0
        %v6639 = vadd.f32 %v6478, %v6638
        %v6640 = vpop.f32.mrb[0].mxu0
        %6641 = vmatprep.mubr.bf16.mxu0 %v5725
        %6642 = vmatmul.mubr.bf16.gmra.mrb[0].mxu0 %v5724
        %v6643 = vpop.f32.mrb[0].mxu0
        %v6644 = vadd.f32 %v6483, %v6643
        %v6645 = vpop.f32.mrb[0].mxu0
        %v6646 = vpop.f32.mrb[0].mxu0
        %v6647 = vadd.f32 %v6486, %v6646
        %v6648 = vpop.f32.mrb[0].mxu0
        %6649 = vdwg.mxu0
        %6650 = vmatprep.subr.bf16.mxu0 0
        %6651 = vmatpush1.bf16.msra.mxu0 %v6071
        %6652 = vmatprep.subr.bf16.mxu0 0
        %6653 = vmatpush1.bf16.msra.mxu0 %v6072
        %6654 = vmatprep.subr.bf16.mxu0 0
        %6655 = vmatpush1.bf16.msra.mxu0 %v6073
        %6656 = vmatprep.subr.bf16.mxu0 0
        %6657 = vmatpush1.bf16.msra.mxu0 %v6074
        %6658 = vmatprep.subr.bf16.mxu0 0
        %6659 = vmatpush1.bf16.msra.mxu0 %v6075
        %6660 = vmatprep.subr.bf16.mxu0 0
        %6661 = vmatpush1.bf16.msra.mxu0 %v6076
        %6662 = vmatprep.subr.bf16.mxu0 0
        %6663 = vmatpush1.bf16.msra.mxu0 %v6077
        %6664 = vmatprep.subr.bf16.mxu0 0
        %6665 = vmatpush1.bf16.msra.mxu0 %v6078
        %6666 = vmatprep.subr.bf16.mxu0 0
        %6667 = vmatpush1.bf16.msra.mxu0 %v6079
        %6668 = vmatprep.subr.bf16.mxu0 0
        %6669 = vmatpush1.bf16.msra.mxu0 %v6080
        %6670 = vmatprep.subr.bf16.mxu0 0
        %6671 = vmatpush1.bf16.msra.mxu0 %v6081
        %6672 = vmatprep.subr.bf16.mxu0 0
        %6673 = vmatpush1.bf16.msra.mxu0 %v6082
        %6674 = vmatprep.subr.bf16.mxu0 0
        %6675 = vmatpush1.bf16.msra.mxu0 %v6083
        %6676 = vmatprep.subr.bf16.mxu0 0
        %6677 = vmatpush1.bf16.msra.mxu0 %v6084
        %6678 = vmatprep.subr.bf16.mxu0 0
        %6679 = vmatpush1.bf16.msra.mxu0 %v6085
        %6680 = vmatprep.subr.bf16.mxu0 0
        %6681 = vmatpush1.bf16.msra.mxu0 %v6086
        %6682 = vmatprep.mubr.bf16.mxu0 %v5592
        %6683 = vmatmul.mubr.bf16.gmra.mrb[0].mxu0 %v5591
        %v6684 = vpop.f32.mrb[0].mxu0
        %v6685 = vadd.f32 %v6524, %v6684
        %v6686 = vpop.f32.mrb[0].mxu0
        %v6687 = vpop.f32.mrb[0].mxu0
        %v6688 = vadd.f32 %v6527, %v6687
        %v6689 = vpop.f32.mrb[0].mxu0
        %6690 = vmatprep.mubr.bf16.mxu0 %v5601
        %6691 = vmatmul.mubr.bf16.gmra.mrb[0].mxu0 %v5600
        %v6692 = vpop.f32.mrb[0].mxu0
        %v6693 = vadd.f32 %v6532, %v6692
        %v6694 = vpop.f32.mrb[0].mxu0
        %v6695 = vpop.f32.mrb[0].mxu0
        %v6696 = vadd.f32 %v6535, %v6695
        %v6697 = vpop.f32.mrb[0].mxu0
        %6698 = vmatprep.mubr.bf16.mxu0 %v5610
        %6699 = vmatmul.mubr.bf16.gmra.mrb[0].mxu0 %v5609
        %v6700 = vpop.f32.mrb[0].mxu0
        %v6701 = vadd.f32 %v6540, %v6700
        %v6702 = vpop.f32.mrb[0].mxu0
        %v6703 = vpop.f32.mrb[0].mxu0
        %v6704 = vadd.f32 %v6543, %v6703
        %v6705 = vpop.f32.mrb[0].mxu0
        %6706 = vmatprep.mubr.bf16.mxu0 %v5619
        %6707 = vmatmul.mubr.bf16.gmra.mrb[0].mxu0 %v5618
        %v6708 = vpop.f32.mrb[0].mxu0
        %v6709 = vadd.f32 %v6548, %v6708
        %v6710 = vpop.f32.mrb[0].mxu0
        %v6711 = vpop.f32.mrb[0].mxu0
        %v6712 = vadd.f32 %v6551, %v6711
        %v6713 = vpop.f32.mrb[0].mxu0
        %6714 = vmatprep.mubr.bf16.mxu0 %v5628
        %6715 = vmatmul.mubr.bf16.gmra.mrb[0].mxu0 %v5627
        %v6716 = vpop.f32.mrb[0].mxu0
        %v6717 = vadd.f32 %v6556, %v6716
        %v6718 = vpop.f32.mrb[0].mxu0
        %v6719 = vpop.f32.mrb[0].mxu0
        %v6720 = vadd.f32 %v6559, %v6719
        %v6721 = vpop.f32.mrb[0].mxu0
        %6722 = vmatprep.mubr.bf16.mxu0 %v5637
        %6723 = vmatmul.mubr.bf16.gmra.mrb[0].mxu0 %v5636
        %v6724 = vpop.f32.mrb[0].mxu0
        %v6725 = vadd.f32 %v6564, %v6724
        %v6726 = vpop.f32.mrb[0].mxu0
        %v6727 = vpop.f32.mrb[0].mxu0
        %v6728 = vadd.f32 %v6567, %v6727
        %v6729 = vpop.f32.mrb[0].mxu0
        %6730 = vmatprep.mubr.bf16.mxu0 %v5646
        %6731 = vmatmul.mubr.bf16.gmra.mrb[0].mxu0 %v5645
        %v6732 = vpop.f32.mrb[0].mxu0
        %v6733 = vadd.f32 %v6572, %v6732
        %v6734 = vpop.f32.mrb[0].mxu0
        %v6735 = vpop.f32.mrb[0].mxu0
        %v6736 = vadd.f32 %v6575, %v6735
        %v6737 = vpop.f32.mrb[0].mxu0
        %6738 = vmatprep.mubr.bf16.mxu0 %v5655
        %6739 = vmatmul.mubr.bf16.gmra.mrb[0].mxu0 %v5654
        %v6740 = vpop.f32.mrb[0].mxu0
        %v6741 = vadd.f32 %v6580, %v6740
        %v6742 = vpop.f32.mrb[0].mxu0
        %v6743 = vpop.f32.mrb[0].mxu0
        %v6744 = vadd.f32 %v6583, %v6743
        %v6745 = vpop.f32.mrb[0].mxu0
        %6746 = vmatprep.mubr.bf16.mxu0 %v5664
        %6747 = vmatmul.mubr.bf16.gmra.mrb[0].mxu0 %v5663
        %v6748 = vpop.f32.mrb[0].mxu0
        %v6749 = vadd.f32 %v6588, %v6748
        %v6750 = vpop.f32.mrb[0].mxu0
        %v6751 = vpop.f32.mrb[0].mxu0
        %v6752 = vadd.f32 %v6591, %v6751
        %v6753 = vpop.f32.mrb[0].mxu0
        %6754 = vmatprep.mubr.bf16.mxu0 %v5673
        %6755 = vmatmul.mubr.bf16.gmra.mrb[0].mxu0 %v5672
        %v6756 = vpop.f32.mrb[0].mxu0
        %v6757 = vadd.f32 %v6596, %v6756
        %v6758 = vpop.f32.mrb[0].mxu0
        %v6759 = vpop.f32.mrb[0].mxu0
        %v6760 = vadd.f32 %v6599, %v6759
        %v6761 = vpop.f32.mrb[0].mxu0
        %6762 = vmatprep.mubr.bf16.mxu0 %v5682
        %6763 = vmatmul.mubr.bf16.gmra.mrb[0].mxu0 %v5681
        %v6764 = vpop.f32.mrb[0].mxu0
        %v6765 = vadd.f32 %v6604, %v6764
        %v6766 = vpop.f32.mrb[0].mxu0
        %v6767 = vpop.f32.mrb[0].mxu0
        %v6768 = vadd.f32 %v6607, %v6767
        %v6769 = vpop.f32.mrb[0].mxu0
        %6770 = vmatprep.mubr.bf16.mxu0 %v5691
        %6771 = vmatmul.mubr.bf16.gmra.mrb[0].mxu0 %v5690
        %v6772 = vpop.f32.mrb[0].mxu0
        %v6773 = vadd.f32 %v6612, %v6772
        %v6774 = vpop.f32.mrb[0].mxu0
        %v6775 = vpop.f32.mrb[0].mxu0
        %v6776 = vadd.f32 %v6615, %v6775
        %v6777 = vpop.f32.mrb[0].mxu0
        %6778 = vmatprep.mubr.bf16.mxu0 %v5700
        %6779 = vmatmul.mubr.bf16.gmra.mrb[0].mxu0 %v5699
        %v6780 = vpop.f32.mrb[0].mxu0
        %v6781 = vadd.f32 %v6620, %v6780
        %v6782 = vpop.f32.mrb[0].mxu0
        %v6783 = vpop.f32.mrb[0].mxu0
        %v6784 = vadd.f32 %v6623, %v6783
        %v6785 = vpop.f32.mrb[0].mxu0
        %6786 = vmatprep.mubr.bf16.mxu0 %v5709
        %6787 = vmatmul.mubr.bf16.gmra.mrb[0].mxu0 %v5708
        %v6788 = vpop.f32.mrb[0].mxu0
        %v6789 = vadd.f32 %v6628, %v6788
        %v6790 = vpop.f32.mrb[0].mxu0
        %v6791 = vpop.f32.mrb[0].mxu0
        %v6792 = vadd.f32 %v6631, %v6791
        %v6793 = vpop.f32.mrb[0].mxu0
        %6794 = vmatprep.mubr.bf16.mxu0 %v5718
        %6795 = vmatmul.mubr.bf16.gmra.mrb[0].mxu0 %v5717
        %v6796 = vpop.f32.mrb[0].mxu0
        %v6797 = vadd.f32 %v6636, %v6796
        %v6798 = vpop.f32.mrb[0].mxu0
        %v6799 = vpop.f32.mrb[0].mxu0
        %v6800 = vadd.f32 %v6639, %v6799
        %v6801 = vpop.f32.mrb[0].mxu0
        %6802 = vmatprep.mubr.bf16.mxu0 %v5727
        %6803 = vmatmul.mubr.bf16.gmra.mrb[0].mxu0 %v5726
        %v6804 = vpop.f32.mrb[0].mxu0
        %v6805 = vadd.f32 %v6644, %v6804
        %v6806 = vpop.f32.mrb[0].mxu0
        %v6807 = vpop.f32.mrb[0].mxu0
        %v6808 = vadd.f32 %v6647, %v6807
        %v6809 = vpop.f32.mrb[0].mxu0
        %6810 = vdwg.mxu0
        %6811 = vmatprep.subr.bf16.mxu0 0
        %6812 = vmatpush1.bf16.msra.mxu0 %v6087
        %6813 = vmatprep.subr.bf16.mxu0 0
        %6814 = vmatpush1.bf16.msra.mxu0 %v6088
        %6815 = vmatprep.subr.bf16.mxu0 0
        %6816 = vmatpush1.bf16.msra.mxu0 %v6089
        %6817 = vmatprep.subr.bf16.mxu0 0
        %6818 = vmatpush1.bf16.msra.mxu0 %v6090
        %6819 = vmatprep.subr.bf16.mxu0 0
        %6820 = vmatpush1.bf16.msra.mxu0 %v6091
        %6821 = vmatprep.subr.bf16.mxu0 0
        %6822 = vmatpush1.bf16.msra.mxu0 %v6092
        %6823 = vmatprep.subr.bf16.mxu0 0
        %6824 = vmatpush1.bf16.msra.mxu0 %v6093
        %6825 = vmatprep.subr.bf16.mxu0 0
        %6826 = vmatpush1.bf16.msra.mxu0 %v6094
        %6827 = vmatprep.subr.bf16.mxu0 0
        %6828 = vmatpush1.bf16.msra.mxu0 0
        %6829 = vmatprep.subr.bf16.mxu0 0
        %6830 = vmatpush1.bf16.msra.mxu0 0
        %6831 = vmatprep.subr.bf16.mxu0 0
        %6832 = vmatpush1.bf16.msra.mxu0 0
        %6833 = vmatprep.subr.bf16.mxu0 0
        %6834 = vmatpush1.bf16.msra.mxu0 0
        %6835 = vmatprep.subr.bf16.mxu0 0
        %6836 = vmatpush1.bf16.msra.mxu0 0
        %6837 = vmatprep.subr.bf16.mxu0 0
        %6838 = vmatpush1.bf16.msra.mxu0 0
        %6839 = vmatprep.subr.bf16.mxu0 0
        %6840 = vmatpush1.bf16.msra.mxu0 0
        %6841 = vmatprep.subr.bf16.mxu0 0
        %6842 = vmatpush1.bf16.msra.mxu0 0
        %6843 = vmatprep.mubr.bf16.mxu0 0
        %6844 = vmatmul.mubr.bf16.gmra.mrb[0].mxu0 %v5593
        %v6845 = vpop.f32.mrb[0].mxu0
        %v6846 = vadd.f32 %v6685, %v6845
        %v6847 = vpop.f32.mrb[0].mxu0
        %v6848 = vpop.f32.mrb[0].mxu0
        %v6849 = vadd.f32 %v6688, %v6848
        %v6850 = vpop.f32.mrb[0].mxu0
        %6851 = vmatprep.mubr.bf16.mxu0 0
        %6852 = vmatmul.mubr.bf16.gmra.mrb[0].mxu0 %v5602
        %v6853 = vpop.f32.mrb[0].mxu0
        %v6854 = vadd.f32 %v6693, %v6853
        %v6855 = vpop.f32.mrb[0].mxu0
        %v6856 = vpop.f32.mrb[0].mxu0
        %v6857 = vadd.f32 %v6696, %v6856
        %v6858 = vpop.f32.mrb[0].mxu0
        %6859 = vmatprep.mubr.bf16.mxu0 0
        %6860 = vmatmul.mubr.bf16.gmra.mrb[0].mxu0 %v5611
        %v6861 = vpop.f32.mrb[0].mxu0
        %v6862 = vadd.f32 %v6701, %v6861
        %v6863 = vpop.f32.mrb[0].mxu0
        %v6864 = vpop.f32.mrb[0].mxu0
        %v6865 = vadd.f32 %v6704, %v6864
        %v6866 = vpop.f32.mrb[0].mxu0
        %6867 = vmatprep.mubr.bf16.mxu0 0
        %6868 = vmatmul.mubr.bf16.gmra.mrb[0].mxu0 %v5620
        %v6869 = vpop.f32.mrb[0].mxu0
        %v6870 = vadd.f32 %v6709, %v6869
        %v6871 = vpop.f32.mrb[0].mxu0
        %v6872 = vpop.f32.mrb[0].mxu0
        %v6873 = vadd.f32 %v6712, %v6872
        %v6874 = vpop.f32.mrb[0].mxu0
        %6875 = vmatprep.mubr.bf16.mxu0 0
        %6876 = vmatmul.mubr.bf16.gmra.mrb[0].mxu0 %v5629
        %v6877 = vpop.f32.mrb[0].mxu0
        %v6878 = vadd.f32 %v6717, %v6877
        %v6879 = vpop.f32.mrb[0].mxu0
        %v6880 = vpop.f32.mrb[0].mxu0
        %v6881 = vadd.f32 %v6720, %v6880
        %v6882 = vpop.f32.mrb[0].mxu0
        %6883 = vmatprep.mubr.bf16.mxu0 0
        %6884 = vmatmul.mubr.bf16.gmra.mrb[0].mxu0 %v5638
        %v6885 = vpop.f32.mrb[0].mxu0
        %v6886 = vadd.f32 %v6725, %v6885
        %v6887 = vpop.f32.mrb[0].mxu0
        %v6888 = vpop.f32.mrb[0].mxu0
        %v6889 = vadd.f32 %v6728, %v6888
        %v6890 = vpop.f32.mrb[0].mxu0
        %6891 = vmatprep.mubr.bf16.mxu0 0
        %6892 = vmatmul.mubr.bf16.gmra.mrb[0].mxu0 %v5647
        %v6893 = vpop.f32.mrb[0].mxu0
        %v6894 = vadd.f32 %v6733, %v6893
        %v6895 = vpop.f32.mrb[0].mxu0
        %v6896 = vpop.f32.mrb[0].mxu0
        %v6897 = vadd.f32 %v6736, %v6896
        %v6898 = vpop.f32.mrb[0].mxu0
        %6899 = vmatprep.mubr.bf16.mxu0 0
        %6900 = vmatmul.mubr.bf16.gmra.mrb[0].mxu0 %v5656
        %v6901 = vpop.f32.mrb[0].mxu0
        %v6902 = vadd.f32 %v6741, %v6901
        %v6903 = vpop.f32.mrb[0].mxu0
        %v6904 = vpop.f32.mrb[0].mxu0
        %v6905 = vadd.f32 %v6744, %v6904
        %v6906 = vpop.f32.mrb[0].mxu0
        %6907 = vmatprep.mubr.bf16.mxu0 0
        %6908 = vmatmul.mubr.bf16.gmra.mrb[0].mxu0 %v5665
        %v6909 = vpop.f32.mrb[0].mxu0
        %v6910 = vadd.f32 %v6749, %v6909
        %v6911 = vpop.f32.mrb[0].mxu0
        %v6912 = vpop.f32.mrb[0].mxu0
        %v6913 = vadd.f32 %v6752, %v6912
        %v6914 = vpop.f32.mrb[0].mxu0
        %6915 = vmatprep.mubr.bf16.mxu0 0
        %6916 = vmatmul.mubr.bf16.gmra.mrb[0].mxu0 %v5674
        %v6917 = vpop.f32.mrb[0].mxu0
        %v6918 = vadd.f32 %v6757, %v6917
        %v6919 = vpop.f32.mrb[0].mxu0
        %v6920 = vpop.f32.mrb[0].mxu0
        %v6921 = vadd.f32 %v6760, %v6920
        %v6922 = vpop.f32.mrb[0].mxu0
        %6923 = vmatprep.mubr.bf16.mxu0 0
        %6924 = vmatmul.mubr.bf16.gmra.mrb[0].mxu0 %v5683
        %v6925 = vpop.f32.mrb[0].mxu0
        %v6926 = vadd.f32 %v6765, %v6925
        %v6927 = vpop.f32.mrb[0].mxu0
        %v6928 = vpop.f32.mrb[0].mxu0
        %v6929 = vadd.f32 %v6768, %v6928
        %v6930 = vpop.f32.mrb[0].mxu0
        %6931 = vmatprep.mubr.bf16.mxu0 0
        %6932 = vmatmul.mubr.bf16.gmra.mrb[0].mxu0 %v5692
        %v6933 = vpop.f32.mrb[0].mxu0
        %v6934 = vadd.f32 %v6773, %v6933
        %v6935 = vpop.f32.mrb[0].mxu0
        %v6936 = vpop.f32.mrb[0].mxu0
        %v6937 = vadd.f32 %v6776, %v6936
        %v6938 = vpop.f32.mrb[0].mxu0
        %6939 = vmatprep.mubr.bf16.mxu0 0
        %6940 = vmatmul.mubr.bf16.gmra.mrb[0].mxu0 %v5701
        %v6941 = vpop.f32.mrb[0].mxu0
        %v6942 = vadd.f32 %v6781, %v6941
        %v6943 = vpop.f32.mrb[0].mxu0
        %v6944 = vpop.f32.mrb[0].mxu0
        %v6945 = vadd.f32 %v6784, %v6944
        %v6946 = vpop.f32.mrb[0].mxu0
        %6947 = vmatprep.mubr.bf16.mxu0 0
        %6948 = vmatmul.mubr.bf16.gmra.mrb[0].mxu0 %v5710
        %v6949 = vpop.f32.mrb[0].mxu0
        %v6950 = vadd.f32 %v6789, %v6949
        %v6951 = vpop.f32.mrb[0].mxu0
        %v6952 = vpop.f32.mrb[0].mxu0
        %v6953 = vadd.f32 %v6792, %v6952
        %v6954 = vpop.f32.mrb[0].mxu0
        %6955 = vmatprep.mubr.bf16.mxu0 0
        %6956 = vmatmul.mubr.bf16.gmra.mrb[0].mxu0 %v5719
        %v6957 = vpop.f32.mrb[0].mxu0
        %v6958 = vadd.f32 %v6797, %v6957
        %v6959 = vpop.f32.mrb[0].mxu0
        %v6960 = vpop.f32.mrb[0].mxu0
        %v6961 = vadd.f32 %v6800, %v6960
        %v6962 = vpop.f32.mrb[0].mxu0
        %6963 = vmatprep.mubr.bf16.mxu0 0
        %6964 = vmatmul.mubr.bf16.gmra.mrb[0].mxu0 %v5728
        %v6965 = vpop.f32.mrb[0].mxu0
        %v6966 = vadd.f32 %v6805, %v6965
        %v6967 = vpop.f32.mrb[0].mxu0
        %v6968 = vpop.f32.mrb[0].mxu0
        %v6969 = vadd.f32 %v6808, %v6968
        %v6970 = vpop.f32.mrb[0].mxu0
        %6971 = vdwg.mxu0
        %v6972 = vsub.f32 0.0, %v6846
        %v6973 = vsub.f32 0.0, %v6849
        %v6974 = vsub.f32 0.0, %v6854
        %v6975 = vsub.f32 0.0, %v6857
        %v6976 = vsub.f32 0.0, %v6862
        %v6977 = vsub.f32 0.0, %v6865
        %v6978 = vsub.f32 0.0, %v6870
        %v6979 = vsub.f32 0.0, %v6873
        %v6980 = vsub.f32 0.0, %v6878
        %v6981 = vsub.f32 0.0, %v6881
        %v6982 = vsub.f32 0.0, %v6886
        %v6983 = vsub.f32 0.0, %v6889
        %v6984 = vsub.f32 0.0, %v6894
        %v6985 = vsub.f32 0.0, %v6897
        %v6986 = vsub.f32 0.0, %v6902
        %v6987 = vsub.f32 0.0, %v6905
        %v6988 = vsub.f32 0.0, %v6910
        %v6989 = vsub.f32 0.0, %v6913
        %v6990 = vsub.f32 0.0, %v6918
        %v6991 = vsub.f32 0.0, %v6921
        %v6992 = vsub.f32 0.0, %v6926
        %v6993 = vsub.f32 0.0, %v6929
        %v6994 = vsub.f32 0.0, %v6934
        %v6995 = vsub.f32 0.0, %v6937
        %v6996 = vsub.f32 0.0, %v6942
        %v6997 = vsub.f32 0.0, %v6945
        %v6998 = vsub.f32 0.0, %v6950
        %v6999 = vsub.f32 0.0, %v6953
        %v7000 = vsub.f32 0.0, %v6958
        %v7001 = vsub.f32 0.0, %v6961
        %v7002 = vsub.f32 0.0, %v6966
        %v7003 = vsub.f32 0.0, %v6969
        %v7004 = vmul.f32 %v6972, 1.442695
        %v7005 = vpow.pop %v7004
        %v7006 = vmul.f32 %v6973, 1.442695
        %v7007 = vpow.pop %v7006
        %v7008 = vmul.f32 %v6974, 1.442695
        %v7009 = vpow.pop %v7008
        %v7010 = vmul.f32 %v6975, 1.442695
        %v7011 = vpow.pop %v7010
        %v7012 = vmul.f32 %v6976, 1.442695
        %v7013 = vpow.pop %v7012
        %v7014 = vmul.f32 %v6977, 1.442695
        %v7015 = vpow.pop %v7014
        %v7016 = vmul.f32 %v6978, 1.442695
        %v7017 = vpow.pop %v7016
        %v7018 = vmul.f32 %v6979, 1.442695
        %v7019 = vpow.pop %v7018
        %v7020 = vmul.f32 %v6980, 1.442695
        %v7021 = vpow.pop %v7020
        %v7022 = vmul.f32 %v6981, 1.442695
        %v7023 = vpow.pop %v7022
        %v7024 = vmul.f32 %v6982, 1.442695
        %v7025 = vpow.pop %v7024
        %v7026 = vmul.f32 %v6983, 1.442695
        %v7027 = vpow.pop %v7026
        %v7028 = vmul.f32 %v6984, 1.442695
        %v7029 = vpow.pop %v7028
        %v7030 = vmul.f32 %v6985, 1.442695
        %v7031 = vpow.pop %v7030
        %v7032 = vmul.f32 %v6986, 1.442695
        %v7033 = vpow.pop %v7032
        %v7034 = vmul.f32 %v6987, 1.442695
        %v7035 = vpow.pop %v7034
        %v7036 = vmul.f32 %v6988, 1.442695
        %v7037 = vpow.pop %v7036
        %v7038 = vmul.f32 %v6989, 1.442695
        %v7039 = vpow.pop %v7038
        %v7040 = vmul.f32 %v6990, 1.442695
        %v7041 = vpow.pop %v7040
        %v7042 = vmul.f32 %v6991, 1.442695
        %v7043 = vpow.pop %v7042
        %v7044 = vmul.f32 %v6992, 1.442695
        %v7045 = vpow.pop %v7044
        %v7046 = vmul.f32 %v6993, 1.442695
        %v7047 = vpow.pop %v7046
        %v7048 = vmul.f32 %v6994, 1.442695
        %v7049 = vpow.pop %v7048
        %v7050 = vmul.f32 %v6995, 1.442695
        %v7051 = vpow.pop %v7050
        %v7052 = vmul.f32 %v6996, 1.442695
        %v7053 = vpow.pop %v7052
        %v7054 = vmul.f32 %v6997, 1.442695
        %v7055 = vpow.pop %v7054
        %v7056 = vmul.f32 %v6998, 1.442695
        %v7057 = vpow.pop %v7056
        %v7058 = vmul.f32 %v6999, 1.442695
        %v7059 = vpow.pop %v7058
        %v7060 = vmul.f32 %v7000, 1.442695
        %v7061 = vpow.pop %v7060
        %v7062 = vmul.f32 %v7001, 1.442695
        %v7063 = vpow.pop %v7062
        %v7064 = vmul.f32 %v7002, 1.442695
        %v7065 = vpow.pop %v7064
        %v7066 = vmul.f32 %v7003, 1.442695
        %v7067 = vpow.pop %v7066
        %v7068 = vadd.f32 %v7005, 1.0
        %v7069 = vadd.f32 %v7007, 1.0
        %v7070 = vadd.f32 %v7009, 1.0
        %v7071 = vadd.f32 %v7011, 1.0
        %v7072 = vadd.f32 %v7013, 1.0
        %v7073 = vadd.f32 %v7015, 1.0
        %v7074 = vadd.f32 %v7017, 1.0
        %v7075 = vadd.f32 %v7019, 1.0
        %v7076 = vadd.f32 %v7021, 1.0
        %v7077 = vadd.f32 %v7023, 1.0
        %v7078 = vadd.f32 %v7025, 1.0
        %v7079 = vadd.f32 %v7027, 1.0
        %v7080 = vadd.f32 %v7029, 1.0
        %v7081 = vadd.f32 %v7031, 1.0
        %v7082 = vadd.f32 %v7033, 1.0
        %v7083 = vadd.f32 %v7035, 1.0
        %v7084 = vadd.f32 %v7037, 1.0
        %v7085 = vadd.f32 %v7039, 1.0
        %v7086 = vadd.f32 %v7041, 1.0
        %v7087 = vadd.f32 %v7043, 1.0
        %v7088 = vadd.f32 %v7045, 1.0
        %v7089 = vadd.f32 %v7047, 1.0
        %v7090 = vadd.f32 %v7049, 1.0
        %v7091 = vadd.f32 %v7051, 1.0
        %v7092 = vadd.f32 %v7053, 1.0
        %v7093 = vadd.f32 %v7055, 1.0
        %v7094 = vadd.f32 %v7057, 1.0
        %v7095 = vadd.f32 %v7059, 1.0
        %v7096 = vadd.f32 %v7061, 1.0
        %v7097 = vadd.f32 %v7063, 1.0
        %v7098 = vadd.f32 %v7065, 1.0
        %v7099 = vadd.f32 %v7067, 1.0
        %v7100 = vrcp.pop %v7068
        %v7101 = vrcp.pop %v7069
        %v7102 = vrcp.pop %v7070
        %v7103 = vrcp.pop %v7071
        %v7104 = vrcp.pop %v7072
        %v7105 = vrcp.pop %v7073
        %v7106 = vrcp.pop %v7074
        %v7107 = vrcp.pop %v7075
        %v7108 = vrcp.pop %v7076
        %v7109 = vrcp.pop %v7077
        %v7110 = vrcp.pop %v7078
        %v7111 = vrcp.pop %v7079
        %v7112 = vrcp.pop %v7080
        %v7113 = vrcp.pop %v7081
        %v7114 = vrcp.pop %v7082
        %v7115 = vrcp.pop %v7083
        %v7116 = vrcp.pop %v7084
        %v7117 = vrcp.pop %v7085
        %v7118 = vrcp.pop %v7086
        %v7119 = vrcp.pop %v7087
        %v7120 = vrcp.pop %v7088
        %v7121 = vrcp.pop %v7089
        %v7122 = vrcp.pop %v7090
        %v7123 = vrcp.pop %v7091
        %v7124 = vrcp.pop %v7092
        %v7125 = vrcp.pop %v7093
        %v7126 = vrcp.pop %v7094
        %v7127 = vrcp.pop %v7095
        %v7128 = vrcp.pop %v7096
        %v7129 = vrcp.pop %v7097
        %v7130 = vrcp.pop %v7098
        %v7131 = vrcp.pop %v7099
        %v7132 = vmul.f32 %v6846, %v7100
        %v7133 = vmul.f32 %v6849, %v7101
        %v7134 = vmul.f32 %v6854, %v7102
        %v7135 = vmul.f32 %v6857, %v7103
        %v7136 = vmul.f32 %v6862, %v7104
        %v7137 = vmul.f32 %v6865, %v7105
        %v7138 = vmul.f32 %v6870, %v7106
        %v7139 = vmul.f32 %v6873, %v7107
        %v7140 = vmul.f32 %v6878, %v7108
        %v7141 = vmul.f32 %v6881, %v7109
        %v7142 = vmul.f32 %v6886, %v7110
        %v7143 = vmul.f32 %v6889, %v7111
        %v7144 = vmul.f32 %v6894, %v7112
        %v7145 = vmul.f32 %v6897, %v7113
        %v7146 = vmul.f32 %v6902, %v7114
        %v7147 = vmul.f32 %v6905, %v7115
        %v7148 = vmul.f32 %v6910, %v7116
        %v7149 = vmul.f32 %v6913, %v7117
        %v7150 = vmul.f32 %v6918, %v7118
        %v7151 = vmul.f32 %v6921, %v7119
        %v7152 = vmul.f32 %v6926, %v7120
        %v7153 = vmul.f32 %v6929, %v7121
        %v7154 = vmul.f32 %v6934, %v7122
        %v7155 = vmul.f32 %v6937, %v7123
        %v7156 = vmul.f32 %v6942, %v7124
        %v7157 = vmul.f32 %v6945, %v7125
        %v7158 = vmul.f32 %v6950, %v7126
        %v7159 = vmul.f32 %v6953, %v7127
        %v7160 = vmul.f32 %v6958, %v7128
        %v7161 = vmul.f32 %v6961, %v7129
        %v7162 = vmul.f32 %v6966, %v7130
        %v7163 = vmul.f32 %v6969, %v7131
        %v7164 = vadd.f32 %v7132, %v7133
        %v7165 = vrot.slane %v7164, 4
        %v7166 = vadd.f32 %v7164, %v7165
        %v7167 = vrot.slane %v7166, 2
        %v7168 = vadd.f32 %v7166, %v7167
        %v7169 = vrot.slane %v7168, 1
        %v7170 = vadd.f32 %v7168, %v7169
        %v7171 = vadd.f32 %v7134, %v7135
        %v7172 = vrot.slane %v7171, 4
        %v7173 = vadd.f32 %v7171, %v7172
        %v7174 = vrot.slane %v7173, 2
        %v7175 = vadd.f32 %v7173, %v7174
        %v7176 = vrot.slane %v7175, 1
        %v7177 = vadd.f32 %v7175, %v7176
        %v7178 = vadd.f32 %v7136, %v7137
        %v7179 = vrot.slane %v7178, 4
        %v7180 = vadd.f32 %v7178, %v7179
        %v7181 = vrot.slane %v7180, 2
        %v7182 = vadd.f32 %v7180, %v7181
        %v7183 = vrot.slane %v7182, 1
        %v7184 = vadd.f32 %v7182, %v7183
        %v7185 = vadd.f32 %v7138, %v7139
        %v7186 = vrot.slane %v7185, 4
        %v7187 = vadd.f32 %v7185, %v7186
        %v7188 = vrot.slane %v7187, 2
        %v7189 = vadd.f32 %v7187, %v7188
        %v7190 = vrot.slane %v7189, 1
        %v7191 = vadd.f32 %v7189, %v7190
        %v7192 = vadd.f32 %v7140, %v7141
        %v7193 = vrot.slane %v7192, 4
        %v7194 = vadd.f32 %v7192, %v7193
        %v7195 = vrot.slane %v7194, 2
        %v7196 = vadd.f32 %v7194, %v7195
        %v7197 = vrot.slane %v7196, 1
        %v7198 = vadd.f32 %v7196, %v7197
        %v7199 = vadd.f32 %v7142, %v7143
        %v7200 = vrot.slane %v7199, 4
        %v7201 = vadd.f32 %v7199, %v7200
        %v7202 = vrot.slane %v7201, 2
        %v7203 = vadd.f32 %v7201, %v7202
        %v7204 = vrot.slane %v7203, 1
        %v7205 = vadd.f32 %v7203, %v7204
        %v7206 = vadd.f32 %v7144, %v7145
        %v7207 = vrot.slane %v7206, 4
        %v7208 = vadd.f32 %v7206, %v7207
        %v7209 = vrot.slane %v7208, 2
        %v7210 = vadd.f32 %v7208, %v7209
        %v7211 = vrot.slane %v7210, 1
        %v7212 = vadd.f32 %v7210, %v7211
        %v7213 = vadd.f32 %v7146, %v7147
        %v7214 = vrot.slane %v7213, 4
        %v7215 = vadd.f32 %v7213, %v7214
        %v7216 = vrot.slane %v7215, 2
        %v7217 = vadd.f32 %v7215, %v7216
        %v7218 = vrot.slane %v7217, 1
        %v7219 = vadd.f32 %v7217, %v7218
        %v7220 = vadd.f32 %v7148, %v7149
        %v7221 = vrot.slane %v7220, 4
        %v7222 = vadd.f32 %v7220, %v7221
        %v7223 = vrot.slane %v7222, 2
        %v7224 = vadd.f32 %v7222, %v7223
        %v7225 = vrot.slane %v7224, 1
        %v7226 = vadd.f32 %v7224, %v7225
        %v7227 = vadd.f32 %v7150, %v7151
        %v7228 = vrot.slane %v7227, 4
        %v7229 = vadd.f32 %v7227, %v7228
        %v7230 = vrot.slane %v7229, 2
        %v7231 = vadd.f32 %v7229, %v7230
        %v7232 = vrot.slane %v7231, 1
        %v7233 = vadd.f32 %v7231, %v7232
        %v7234 = vadd.f32 %v7152, %v7153
        %v7235 = vrot.slane %v7234, 4
        %v7236 = vadd.f32 %v7234, %v7235
        %v7237 = vrot.slane %v7236, 2
        %v7238 = vadd.f32 %v7236, %v7237
        %v7239 = vrot.slane %v7238, 1
        %v7240 = vadd.f32 %v7238, %v7239
        %v7241 = vadd.f32 %v7154, %v7155
        %v7242 = vrot.slane %v7241, 4
        %v7243 = vadd.f32 %v7241, %v7242
        %v7244 = vrot.slane %v7243, 2
        %v7245 = vadd.f32 %v7243, %v7244
        %v7246 = vrot.slane %v7245, 1
        %v7247 = vadd.f32 %v7245, %v7246
        %v7248 = vadd.f32 %v7156, %v7157
        %v7249 = vrot.slane %v7248, 4
        %v7250 = vadd.f32 %v7248, %v7249
        %v7251 = vrot.slane %v7250, 2
        %v7252 = vadd.f32 %v7250, %v7251
        %v7253 = vrot.slane %v7252, 1
        %v7254 = vadd.f32 %v7252, %v7253
        %v7255 = vadd.f32 %v7158, %v7159
        %v7256 = vrot.slane %v7255, 4
        %v7257 = vadd.f32 %v7255, %v7256
        %v7258 = vrot.slane %v7257, 2
        %v7259 = vadd.f32 %v7257, %v7258
        %v7260 = vrot.slane %v7259, 1
        %v7261 = vadd.f32 %v7259, %v7260
        %v7262 = vadd.f32 %v7160, %v7161
        %v7263 = vrot.slane %v7262, 4
        %v7264 = vadd.f32 %v7262, %v7263
        %v7265 = vrot.slane %v7264, 2
        %v7266 = vadd.f32 %v7264, %v7265
        %v7267 = vrot.slane %v7266, 1
        %v7268 = vadd.f32 %v7266, %v7267
        %v7269 = vadd.f32 %v7162, %v7163
        %v7270 = vrot.slane %v7269, 4
        %v7271 = vadd.f32 %v7269, %v7270
        %v7272 = vrot.slane %v7271, 2
        %v7273 = vadd.f32 %v7271, %v7272
        %v7274 = vrot.slane %v7273, 1
        %v7275 = vadd.f32 %v7273, %v7274
        %v7276 = vrcp.pop 16.0
        %v7277 = vmul.f32 %v7170, %v7276
        %v7278 = vmul.f32 %v7177, %v7276
        %v7279 = vmul.f32 %v7184, %v7276
        %v7280 = vmul.f32 %v7191, %v7276
        %v7281 = vmul.f32 %v7198, %v7276
        %v7282 = vmul.f32 %v7205, %v7276
        %v7283 = vmul.f32 %v7212, %v7276
        %v7284 = vmul.f32 %v7219, %v7276
        %v7285 = vmul.f32 %v7226, %v7276
        %v7286 = vmul.f32 %v7233, %v7276
        %v7287 = vmul.f32 %v7240, %v7276
        %v7288 = vmul.f32 %v7247, %v7276
        %v7289 = vmul.f32 %v7254, %v7276
        %v7290 = vmul.f32 %v7261, %v7276
        %v7291 = vmul.f32 %v7268, %v7276
        %v7292 = vmul.f32 %v7275, %v7276
        %v7293 = vpack.c.bf16 %v7277, %v7277
        %v7294 = vpack.c.bf16 %v7278, %v7278
        %v7295 = vpack.c.bf16 %v7279, %v7279
        %v7296 = vpack.c.bf16 %v7280, %v7280
        %v7297 = vpack.c.bf16 %v7281, %v7281
        %v7298 = vpack.c.bf16 %v7282, %v7282
        %v7299 = vpack.c.bf16 %v7283, %v7283
        %v7300 = vpack.c.bf16 %v7284, %v7284
        %v7301 = vpack.c.bf16 %v7285, %v7285
        %v7302 = vpack.c.bf16 %v7286, %v7286
        %v7303 = vpack.c.bf16 %v7287, %v7287
        %v7304 = vpack.c.bf16 %v7288, %v7288
        %v7305 = vpack.c.bf16 %v7289, %v7289
        %v7306 = vpack.c.bf16 %v7290, %v7290
        %v7307 = vpack.c.bf16 %v7291, %v7291
        %v7308 = vpack.c.bf16 %v7292, %v7292
        %v7309 = vadd.f32 %v7132, %v7134
        %v7310 = vadd.f32 %v7309, %v7136
        %v7311 = vadd.f32 %v7310, %v7138
        %v7312 = vadd.f32 %v7311, %v7140
        %v7313 = vadd.f32 %v7312, %v7142
        %v7314 = vadd.f32 %v7313, %v7144
        %v7315 = vadd.f32 %v7314, %v7146
        %v7316 = vadd.f32 %v7315, %v7148
        %v7317 = vadd.f32 %v7316, %v7150
        %v7318 = vadd.f32 %v7317, %v7152
        %v7319 = vadd.f32 %v7318, %v7154
        %v7320 = vadd.f32 %v7319, %v7156
        %v7321 = vadd.f32 %v7320, %v7158
        %v7322 = vadd.f32 %v7321, %v7160
        %v7323 = vadd.f32 %v7322, %v7162
        %v7324 = vadd.f32 %v7133, %v7135
        %v7325 = vadd.f32 %v7324, %v7137
        %v7326 = vadd.f32 %v7325, %v7139
        %v7327 = vadd.f32 %v7326, %v7141
        %v7328 = vadd.f32 %v7327, %v7143
        %v7329 = vadd.f32 %v7328, %v7145
        %v7330 = vadd.f32 %v7329, %v7147
        %v7331 = vadd.f32 %v7330, %v7149
        %v7332 = vadd.f32 %v7331, %v7151
        %v7333 = vadd.f32 %v7332, %v7153
        %v7334 = vadd.f32 %v7333, %v7155
        %v7335 = vadd.f32 %v7334, %v7157
        %v7336 = vadd.f32 %v7335, %v7159
        %v7337 = vadd.f32 %v7336, %v7161
        %v7338 = vadd.f32 %v7337, %v7163
        %v7339 = vmul.f32 %v7323, %v7276
        %v7340 = vmul.f32 %v7338, %v7276
        %v7341 = vpack.c.bf16 %v7340, %v7339
        %v7343 = vlaneseq
        %v7344 = vshrl.u32 %v7343, 7
        %v7345 = vsub.s32 0, %v7344
        %v7346 = vrot.slane %v1755, %v7345
        %v7364 = vunpack.c.l.b16 %v7293
        %v7365 = vunpack.c.l.b16 %v7294
        %v7366 = vunpack.c.l.b16 %v7295
        %v7367 = vunpack.c.l.b16 %v7296
        %v7368 = vunpack.c.l.b16 %v7297
        %v7369 = vunpack.c.l.b16 %v7298
        %v7370 = vunpack.c.l.b16 %v7299
        %v7371 = vunpack.c.l.b16 %v7300
        %v7372 = vunpack.c.l.b16 %v7301
        %v7373 = vunpack.c.l.b16 %v7302
        %v7374 = vunpack.c.l.b16 %v7303
        %v7375 = vunpack.c.l.b16 %v7304
        %v7376 = vunpack.c.l.b16 %v7305
        %v7377 = vunpack.c.l.b16 %v7306
        %v7378 = vunpack.c.l.b16 %v7307
        %v7379 = vunpack.c.l.b16 %v7308
        %vm7380 = vcmask 1041409
        %v7381 = vsel %vm7380, %v7365, %v7364
        %vm7382 = vcmask 1042434
        %v7383 = vsel %vm7382, %v7366, %v7381
        %vm7384 = vcmask 1043459
        %v7385 = vsel %vm7384, %v7367, %v7383
        %vm7386 = vcmask 1044484
        %v7387 = vsel %vm7386, %v7368, %v7385
        %vm7388 = vcmask 1045509
        %v7389 = vsel %vm7388, %v7369, %v7387
        %vm7390 = vcmask 1046534
        %v7391 = vsel %vm7390, %v7370, %v7389
        %vm7392 = vcmask 1047559
        %v7393 = vsel %vm7392, %v7371, %v7391
        %v7394 = vsel %vm7380, %v7373, %v7372
        %v7395 = vsel %vm7382, %v7374, %v7394
        %v7396 = vsel %vm7384, %v7375, %v7395
        %v7397 = vsel %vm7386, %v7376, %v7396
        %v7398 = vsel %vm7388, %v7377, %v7397
        %v7399 = vsel %vm7390, %v7378, %v7398
        %v7400 = vsel %vm7392, %v7379, %v7399
        %v7401 = vpack.c.b16 %v7400, %v7393
        %v7419 = vunpack.c.l.b16 %v1739
        %v7420 = vunpack.c.l.b16 %v1740
        %v7421 = vunpack.c.l.b16 %v1741
        %v7422 = vunpack.c.l.b16 %v1742
        %v7423 = vunpack.c.l.b16 %v1743
        %v7424 = vunpack.c.l.b16 %v1744
        %v7425 = vunpack.c.l.b16 %v1745
        %v7426 = vunpack.c.l.b16 %v1746
        %v7427 = vunpack.c.l.b16 %v1747
        %v7428 = vunpack.c.l.b16 %v1748
        %v7429 = vunpack.c.l.b16 %v1749
        %v7430 = vunpack.c.l.b16 %v1750
        %v7431 = vunpack.c.l.b16 %v1751
        %v7432 = vunpack.c.l.b16 %v1752
        %v7433 = vunpack.c.l.b16 %v1753
        %v7434 = vunpack.c.l.b16 %v1754
        %v7435 = vpack.c.b16 %v7420, %v7419
        %v7436 = vpack.c.b16 %v7422, %v7421
        %v7437 = vpack.c.b16 %v7424, %v7423
        %v7438 = vpack.c.b16 %v7426, %v7425
        %v7439 = vpack.c.b16 %v7428, %v7427
        %v7440 = vpack.c.b16 %v7430, %v7429
        %v7441 = vpack.c.b16 %v7432, %v7431
        %v7442 = vpack.c.b16 %v7434, %v7433
        %7451 = vmatprep.subr.bf16.mxu0 0
        %7452 = vmatpush1.bf16.msra.mxu0 %v7435
        %7453 = vmatprep.subr.bf16.mxu0 0
        %7454 = vmatpush1.bf16.msra.mxu0 %v7436
        %7455 = vmatprep.subr.bf16.mxu0 0
        %7456 = vmatpush1.bf16.msra.mxu0 %v7437
        %7457 = vmatprep.subr.bf16.mxu0 0
        %7458 = vmatpush1.bf16.msra.mxu0 %v7438
        %7459 = vmatprep.subr.bf16.mxu0 0
        %7460 = vmatpush1.bf16.msra.mxu0 %v7439
        %7461 = vmatprep.subr.bf16.mxu0 0
        %7462 = vmatpush1.bf16.msra.mxu0 %v7440
        %7463 = vmatprep.subr.bf16.mxu0 0
        %7464 = vmatpush1.bf16.msra.mxu0 %v7441
        %7465 = vmatprep.subr.bf16.mxu0 0
        %7466 = vmatpush1.bf16.msra.mxu0 %v7442
        %7467 = vmatprep.subr.bf16.mxu0 0
        %7468 = vmatpush1.bf16.msra.mxu0 0
        %7469 = vmatprep.subr.bf16.mxu0 0
        %7470 = vmatpush1.bf16.msra.mxu0 0
        %7471 = vmatprep.subr.bf16.mxu0 0
        %7472 = vmatpush1.bf16.msra.mxu0 0
        %7473 = vmatprep.subr.bf16.mxu0 0
        %7474 = vmatpush1.bf16.msra.mxu0 0
        %7475 = vmatprep.subr.bf16.mxu0 0
        %7476 = vmatpush1.bf16.msra.mxu0 0
        %7477 = vmatprep.subr.bf16.mxu0 0
        %7478 = vmatpush1.bf16.msra.mxu0 0
        %7479 = vmatprep.subr.bf16.mxu0 0
        %7480 = vmatpush1.bf16.msra.mxu0 0
        %7481 = vmatprep.subr.bf16.mxu0 0
        %7482 = vmatpush1.bf16.msra.mxu0 0
        %7483 = vmatprep.mubr.bf16.mxu0 0
        %7484 = vmatmul.mubr.bf16.gmra.mrb[0].mxu0 %v7401
        %v7485 = vpop.f32.mrb[0].mxu0
        %v7486 = vadd.f32 %v7346, %v7485
        %v7487 = vpop.f32.mrb[0].mxu0
        %v7488 = vpop.f32.mrb[0].mxu0
        %v7489 = vadd.f32 %v7346, %v7488
        %v7490 = vpop.f32.mrb[0].mxu0
        %7491 = vdwg.mxu0
        %v7492 = vadd.f32 %v7486, 3.0
        %v7493 = vadd.f32 %v7489, 3.0
        %v7494 = vmax.f32 %v7492, 0.0
        %v7495 = vmax.f32 %v7493, 0.0
        %v7496 = vmin.f32 %v7494, 6.0
        %v7497 = vmin.f32 %v7495, 6.0
        %v7498 = vmul.f32 %v7486, %v7496
        %v7499 = vmul.f32 %v7489, %v7497
        %v7500 = vmul.f32 %v7498, 0.16666667
        %v7501 = vmul.f32 %v7499, 0.16666667
        %v7502 = vpack.c.bf16 %v7501, %v7500
        %7503 = vmatprep.subr.bf16.mxu0 0
        %7504 = vmatpush1.bf16.msra.mxu0 %v7435
        %7505 = vmatprep.subr.bf16.mxu0 0
        %7506 = vmatpush1.bf16.msra.mxu0 %v7436
        %7507 = vmatprep.subr.bf16.mxu0 0
        %7508 = vmatpush1.bf16.msra.mxu0 %v7437
        %7509 = vmatprep.subr.bf16.mxu0 0
        %7510 = vmatpush1.bf16.msra.mxu0 %v7438
        %7511 = vmatprep.subr.bf16.mxu0 0
        %7512 = vmatpush1.bf16.msra.mxu0 %v7439
        %7513 = vmatprep.subr.bf16.mxu0 0
        %7514 = vmatpush1.bf16.msra.mxu0 %v7440
        %7515 = vmatprep.subr.bf16.mxu0 0
        %7516 = vmatpush1.bf16.msra.mxu0 %v7441
        %7517 = vmatprep.subr.bf16.mxu0 0
        %7518 = vmatpush1.bf16.msra.mxu0 %v7442
        %7519 = vmatprep.subr.bf16.mxu0 0
        %7520 = vmatpush1.bf16.msra.mxu0 0
        %7521 = vmatprep.subr.bf16.mxu0 0
        %7522 = vmatpush1.bf16.msra.mxu0 0
        %7523 = vmatprep.subr.bf16.mxu0 0
        %7524 = vmatpush1.bf16.msra.mxu0 0
        %7525 = vmatprep.subr.bf16.mxu0 0
        %7526 = vmatpush1.bf16.msra.mxu0 0
        %7527 = vmatprep.subr.bf16.mxu0 0
        %7528 = vmatpush1.bf16.msra.mxu0 0
        %7529 = vmatprep.subr.bf16.mxu0 0
        %7530 = vmatpush1.bf16.msra.mxu0 0
        %7531 = vmatprep.subr.bf16.mxu0 0
        %7532 = vmatpush1.bf16.msra.mxu0 0
        %7533 = vmatprep.subr.bf16.mxu0 0
        %7534 = vmatpush1.bf16.msra.mxu0 0
        %7535 = vmatprep.mubr.bf16.mxu0 0
        %7536 = vmatmul.mubr.bf16.gmra.mrb[0].mxu0 %v7341
        %v7537 = vpop.f32.mrb[0].mxu0
        %v7538 = vadd.f32 %v7346, %v7537
        %v7539 = vpop.f32.mrb[0].mxu0
        %v7540 = vpop.f32.mrb[0].mxu0
        %v7541 = vadd.f32 %v7346, %v7540
        %v7542 = vpop.f32.mrb[0].mxu0
        %7543 = vdwg.mxu0
        %v7544 = vadd.f32 %v7538, 3.0
        %v7545 = vadd.f32 %v7541, 3.0
        %v7546 = vmax.f32 %v7544, 0.0
        %v7547 = vmax.f32 %v7545, 0.0
        %v7548 = vmin.f32 %v7546, 6.0
        %v7549 = vmin.f32 %v7547, 6.0
        %v7550 = vmul.f32 %v7538, %v7548
        %v7551 = vmul.f32 %v7541, %v7549
        %v7552 = vmul.f32 %v7550, 0.16666667
        %v7553 = vmul.f32 %v7551, 0.16666667
        %v7554 = vpack.c.bf16 %v7553, %v7552
        %v7556 = vlaneseq
        %v7557 = vshrl.u32 %v7556, 7
        %v7558 = vsub.s32 0, %v7557
        %v7559 = vrot.slane %v1772, %v7558
        %v7577 = vunpack.c.l.b16 %v1756
        %v7578 = vunpack.c.l.b16 %v1757
        %v7579 = vunpack.c.l.b16 %v1758
        %v7580 = vunpack.c.l.b16 %v1759
        %v7581 = vunpack.c.l.b16 %v1760
        %v7582 = vunpack.c.l.b16 %v1761
        %v7583 = vunpack.c.l.b16 %v1762
        %v7584 = vunpack.c.l.b16 %v1763
        %v7585 = vunpack.c.l.b16 %v1764
        %v7586 = vunpack.c.l.b16 %v1765
        %v7587 = vunpack.c.l.b16 %v1766
        %v7588 = vunpack.c.l.b16 %v1767
        %v7589 = vunpack.c.l.b16 %v1768
        %v7590 = vunpack.c.l.b16 %v1769
        %v7591 = vunpack.c.l.b16 %v1770
        %v7592 = vunpack.c.l.b16 %v1771
        %v7593 = vpack.c.b16 %v7578, %v7577
        %v7594 = vpack.c.b16 %v7580, %v7579
        %v7595 = vpack.c.b16 %v7582, %v7581
        %v7596 = vpack.c.b16 %v7584, %v7583
        %v7597 = vpack.c.b16 %v7586, %v7585
        %v7598 = vpack.c.b16 %v7588, %v7587
        %v7599 = vpack.c.b16 %v7590, %v7589
        %v7600 = vpack.c.b16 %v7592, %v7591
        %7609 = vmatprep.subr.bf16.mxu0 0
        %7610 = vmatpush1.bf16.msra.mxu0 %v7593
        %7611 = vmatprep.subr.bf16.mxu0 0
        %7612 = vmatpush1.bf16.msra.mxu0 %v7594
        %7613 = vmatprep.subr.bf16.mxu0 0
        %7614 = vmatpush1.bf16.msra.mxu0 %v7595
        %7615 = vmatprep.subr.bf16.mxu0 0
        %7616 = vmatpush1.bf16.msra.mxu0 %v7596
        %7617 = vmatprep.subr.bf16.mxu0 0
        %7618 = vmatpush1.bf16.msra.mxu0 %v7597
        %7619 = vmatprep.subr.bf16.mxu0 0
        %7620 = vmatpush1.bf16.msra.mxu0 %v7598
        %7621 = vmatprep.subr.bf16.mxu0 0
        %7622 = vmatpush1.bf16.msra.mxu0 %v7599
        %7623 = vmatprep.subr.bf16.mxu0 0
        %7624 = vmatpush1.bf16.msra.mxu0 %v7600
        %7625 = vmatprep.subr.bf16.mxu0 0
        %7626 = vmatpush1.bf16.msra.mxu0 0
        %7627 = vmatprep.subr.bf16.mxu0 0
        %7628 = vmatpush1.bf16.msra.mxu0 0
        %7629 = vmatprep.subr.bf16.mxu0 0
        %7630 = vmatpush1.bf16.msra.mxu0 0
        %7631 = vmatprep.subr.bf16.mxu0 0
        %7632 = vmatpush1.bf16.msra.mxu0 0
        %7633 = vmatprep.subr.bf16.mxu0 0
        %7634 = vmatpush1.bf16.msra.mxu0 0
        %7635 = vmatprep.subr.bf16.mxu0 0
        %7636 = vmatpush1.bf16.msra.mxu0 0
        %7637 = vmatprep.subr.bf16.mxu0 0
        %7638 = vmatpush1.bf16.msra.mxu0 0
        %7639 = vmatprep.subr.bf16.mxu0 0
        %7640 = vmatpush1.bf16.msra.mxu0 0
        %7641 = vmatprep.mubr.bf16.mxu0 0
        %7642 = vmatmul.mubr.bf16.gmra.mrb[0].mxu0 %v7502
        %v7643 = vpop.f32.mrb[0].mxu0
        %v7644 = vadd.f32 %v7559, %v7643
        %v7645 = vpop.f32.mrb[0].mxu0
        %v7646 = vpop.f32.mrb[0].mxu0
        %v7647 = vadd.f32 %v7559, %v7646
        %v7648 = vpop.f32.mrb[0].mxu0
        %7649 = vdwg.mxu0
        %v7650 = vsub.f32 0.0, %v7644
        %v7651 = vsub.f32 0.0, %v7647
        %v7652 = vmul.f32 %v7650, 1.442695
        %v7653 = vpow.pop %v7652
        %v7654 = vmul.f32 %v7651, 1.442695
        %v7655 = vpow.pop %v7654
        %v7656 = vadd.f32 %v7653, 1.0
        %v7657 = vadd.f32 %v7655, 1.0
        %v7658 = vrcp.pop %v7656
        %v7659 = vmul.f32 1.0, %v7658
        %v7660 = vrcp.pop %v7657
        %v7661 = vmul.f32 1.0, %v7660
        %v7663 = vlaneseq
        %v7664 = vshrl.u32 %v7663, 7
        %v7665 = vsub.s32 0, %v7664
        %v7666 = vrot.slane %v1789, %v7665
        %v7684 = vunpack.c.l.b16 %v1773
        %v7685 = vunpack.c.l.b16 %v1774
        %v7686 = vunpack.c.l.b16 %v1775
        %v7687 = vunpack.c.l.b16 %v1776
        %v7688 = vunpack.c.l.b16 %v1777
        %v7689 = vunpack.c.l.b16 %v1778
        %v7690 = vunpack.c.l.b16 %v1779
        %v7691 = vunpack.c.l.b16 %v1780
        %v7692 = vunpack.c.l.b16 %v1781
        %v7693 = vunpack.c.l.b16 %v1782
        %v7694 = vunpack.c.l.b16 %v1783
        %v7695 = vunpack.c.l.b16 %v1784
        %v7696 = vunpack.c.l.b16 %v1785
        %v7697 = vunpack.c.l.b16 %v1786
        %v7698 = vunpack.c.l.b16 %v1787
        %v7699 = vunpack.c.l.b16 %v1788
        %v7700 = vpack.c.b16 %v7685, %v7684
        %v7701 = vpack.c.b16 %v7687, %v7686
        %v7702 = vpack.c.b16 %v7689, %v7688
        %v7703 = vpack.c.b16 %v7691, %v7690
        %v7704 = vpack.c.b16 %v7693, %v7692
        %v7705 = vpack.c.b16 %v7695, %v7694
        %v7706 = vpack.c.b16 %v7697, %v7696
        %v7707 = vpack.c.b16 %v7699, %v7698
        %7716 = vmatprep.subr.bf16.mxu0 0
        %7717 = vmatpush1.bf16.msra.mxu0 %v7700
        %7718 = vmatprep.subr.bf16.mxu0 0
        %7719 = vmatpush1.bf16.msra.mxu0 %v7701
        %7720 = vmatprep.subr.bf16.mxu0 0
        %7721 = vmatpush1.bf16.msra.mxu0 %v7702
        %7722 = vmatprep.subr.bf16.mxu0 0
        %7723 = vmatpush1.bf16.msra.mxu0 %v7703
        %7724 = vmatprep.subr.bf16.mxu0 0
        %7725 = vmatpush1.bf16.msra.mxu0 %v7704
        %7726 = vmatprep.subr.bf16.mxu0 0
        %7727 = vmatpush1.bf16.msra.mxu0 %v7705
        %7728 = vmatprep.subr.bf16.mxu0 0
        %7729 = vmatpush1.bf16.msra.mxu0 %v7706
        %7730 = vmatprep.subr.bf16.mxu0 0
        %7731 = vmatpush1.bf16.msra.mxu0 %v7707
        %7732 = vmatprep.subr.bf16.mxu0 0
        %7733 = vmatpush1.bf16.msra.mxu0 0
        %7734 = vmatprep.subr.bf16.mxu0 0
        %7735 = vmatpush1.bf16.msra.mxu0 0
        %7736 = vmatprep.subr.bf16.mxu0 0
        %7737 = vmatpush1.bf16.msra.mxu0 0
        %7738 = vmatprep.subr.bf16.mxu0 0
        %7739 = vmatpush1.bf16.msra.mxu0 0
        %7740 = vmatprep.subr.bf16.mxu0 0
        %7741 = vmatpush1.bf16.msra.mxu0 0
        %7742 = vmatprep.subr.bf16.mxu0 0
        %7743 = vmatpush1.bf16.msra.mxu0 0
        %7744 = vmatprep.subr.bf16.mxu0 0
        %7745 = vmatpush1.bf16.msra.mxu0 0
        %7746 = vmatprep.subr.bf16.mxu0 0
        %7747 = vmatpush1.bf16.msra.mxu0 0
        %7748 = vmatprep.mubr.bf16.mxu0 0
        %7749 = vmatmul.mubr.bf16.gmra.mrb[0].mxu0 %v7554
        %v7750 = vpop.f32.mrb[0].mxu0
        %v7751 = vadd.f32 %v7666, %v7750
        %v7752 = vpop.f32.mrb[0].mxu0
        %v7753 = vpop.f32.mrb[0].mxu0
        %v7754 = vadd.f32 %v7666, %v7753
        %v7755 = vpop.f32.mrb[0].mxu0
        %7756 = vdwg.mxu0
        %v7757 = vsub.f32 0.0, %v7751
        %v7758 = vsub.f32 0.0, %v7754
        %v7759 = vmul.f32 %v7757, 1.442695
        %v7760 = vpow.pop %v7759
        %v7761 = vmul.f32 %v7758, 1.442695
        %v7762 = vpow.pop %v7761
        %v7763 = vadd.f32 %v7760, 1.0
        %v7764 = vadd.f32 %v7762, 1.0
        %v7765 = vrcp.pop %v7763
        %v7766 = vmul.f32 1.0, %v7765
        %v7767 = vrcp.pop %v7764
        %v7768 = vmul.f32 1.0, %v7767
        %v7771 = vcombine.high %v7659, %v7659
        %v7773 = vunpack.c.l.s4 1966171168
        %v7774 = vunpack.c.0.s8 %v7773
        %v7775 = vlaneseq
        %v7776 = vshrl.u32 %v7775, 7
        %v7777 = vsub.s32 %v7774, %v7776
        %v7778 = vrot.slane %v7659, %v7777
        %v7780 = vunpack.c.l.s4 1966171168
        %v7781 = vunpack.c.0.s8 %v7780
        %v7782 = vlaneseq
        %v7783 = vshrl.u32 %v7782, 7
        %v7784 = vsub.s32 %v7781, %v7783
        %v7785 = vrot.slane %v7771, %v7784
        %v7786 = vcombine.high %v7778, %v7778
        %v7787 = vcombine.high %v7785, %v7785
        %v7789 = vunpack.c.l.s4 1966171168
        %v7790 = vunpack.c.0.s8 %v7789
        %v7791 = vlaneseq
        %v7792 = vshrl.u32 %v7791, 7
        %v7793 = vsub.s32 %v7790, %v7792
        %v7794 = vrot.slane %v7778, %v7793
        %v7796 = vunpack.c.l.s4 1966171168
        %v7797 = vunpack.c.0.s8 %v7796
        %v7798 = vlaneseq
        %v7799 = vshrl.u32 %v7798, 7
        %v7800 = vsub.s32 %v7797, %v7799
        %v7801 = vrot.slane %v7785, %v7800
        %v7803 = vunpack.c.l.s4 1966171168
        %v7804 = vunpack.c.0.s8 %v7803
        %v7805 = vlaneseq
        %v7806 = vshrl.u32 %v7805, 7
        %v7807 = vsub.s32 %v7804, %v7806
        %v7808 = vrot.slane %v7786, %v7807
        %v7810 = vunpack.c.l.s4 1966171168
        %v7811 = vunpack.c.0.s8 %v7810
        %v7812 = vlaneseq
        %v7813 = vshrl.u32 %v7812, 7
        %v7814 = vsub.s32 %v7811, %v7813
        %v7815 = vrot.slane %v7787, %v7814
        %v7816 = vcombine.high %v7794, %v7794
        %v7817 = vcombine.high %v7801, %v7801
        %v7818 = vcombine.high %v7808, %v7808
        %v7819 = vcombine.high %v7815, %v7815
        %v7820 = vcombine.high %v7661, %v7661
        %v7822 = vunpack.c.l.s4 1966171168
        %v7823 = vunpack.c.0.s8 %v7822
        %v7824 = vlaneseq
        %v7825 = vshrl.u32 %v7824, 7
        %v7826 = vsub.s32 %v7823, %v7825
        %v7827 = vrot.slane %v7661, %v7826
        %v7829 = vunpack.c.l.s4 1966171168
        %v7830 = vunpack.c.0.s8 %v7829
        %v7831 = vlaneseq
        %v7832 = vshrl.u32 %v7831, 7
        %v7833 = vsub.s32 %v7830, %v7832
        %v7834 = vrot.slane %v7820, %v7833
        %v7835 = vcombine.high %v7827, %v7827
        %v7836 = vcombine.high %v7834, %v7834
        %v7838 = vunpack.c.l.s4 1966171168
        %v7839 = vunpack.c.0.s8 %v7838
        %v7840 = vlaneseq
        %v7841 = vshrl.u32 %v7840, 7
        %v7842 = vsub.s32 %v7839, %v7841
        %v7843 = vrot.slane %v7827, %v7842
        %v7845 = vunpack.c.l.s4 1966171168
        %v7846 = vunpack.c.0.s8 %v7845
        %v7847 = vlaneseq
        %v7848 = vshrl.u32 %v7847, 7
        %v7849 = vsub.s32 %v7846, %v7848
        %v7850 = vrot.slane %v7834, %v7849
        %v7852 = vunpack.c.l.s4 1966171168
        %v7853 = vunpack.c.0.s8 %v7852
        %v7854 = vlaneseq
        %v7855 = vshrl.u32 %v7854, 7
        %v7856 = vsub.s32 %v7853, %v7855
        %v7857 = vrot.slane %v7835, %v7856
        %v7859 = vunpack.c.l.s4 1966171168
        %v7860 = vunpack.c.0.s8 %v7859
        %v7861 = vlaneseq
        %v7862 = vshrl.u32 %v7861, 7
        %v7863 = vsub.s32 %v7860, %v7862
        %v7864 = vrot.slane %v7836, %v7863
        %v7865 = vcombine.high %v7843, %v7843
        %v7866 = vcombine.high %v7850, %v7850
        %v7867 = vcombine.high %v7857, %v7857
        %v7868 = vcombine.high %v7864, %v7864
        %v7869 = vlaneseq
        %v7870 = vshrl.u32 %v7869, 7
        %v7871 = vsub.s32 0, %v7870
        %v7872 = vrot.slane %v7794, %v7871
        %v7873 = vlaneseq
        %v7874 = vshrl.u32 %v7873, 7
        %v7875 = vsub.s32 0, %v7874
        %v7876 = vrot.slane %v7808, %v7875
        %v7877 = vlaneseq
        %v7878 = vshrl.u32 %v7877, 7
        %v7879 = vsub.s32 0, %v7878
        %v7880 = vrot.slane %v7816, %v7879
        %v7881 = vlaneseq
        %v7882 = vshrl.u32 %v7881, 7
        %v7883 = vsub.s32 0, %v7882
        %v7884 = vrot.slane %v7818, %v7883
        %v7885 = vlaneseq
        %v7886 = vshrl.u32 %v7885, 7
        %v7887 = vsub.s32 0, %v7886
        %v7888 = vrot.slane %v7801, %v7887
        %v7889 = vlaneseq
        %v7890 = vshrl.u32 %v7889, 7
        %v7891 = vsub.s32 0, %v7890
        %v7892 = vrot.slane %v7815, %v7891
        %v7893 = vlaneseq
        %v7894 = vshrl.u32 %v7893, 7
        %v7895 = vsub.s32 0, %v7894
        %v7896 = vrot.slane %v7817, %v7895
        %v7897 = vlaneseq
        %v7898 = vshrl.u32 %v7897, 7
        %v7899 = vsub.s32 0, %v7898
        %v7900 = vrot.slane %v7819, %v7899
        %v7901 = vlaneseq
        %v7902 = vshrl.u32 %v7901, 7
        %v7903 = vsub.s32 0, %v7902
        %v7904 = vrot.slane %v7843, %v7903
        %v7905 = vlaneseq
        %v7906 = vshrl.u32 %v7905, 7
        %v7907 = vsub.s32 0, %v7906
        %v7908 = vrot.slane %v7857, %v7907
        %v7909 = vlaneseq
        %v7910 = vshrl.u32 %v7909, 7
        %v7911 = vsub.s32 0, %v7910
        %v7912 = vrot.slane %v7865, %v7911
        %v7913 = vlaneseq
        %v7914 = vshrl.u32 %v7913, 7
        %v7915 = vsub.s32 0, %v7914
        %v7916 = vrot.slane %v7867, %v7915
        %v7917 = vlaneseq
        %v7918 = vshrl.u32 %v7917, 7
        %v7919 = vsub.s32 0, %v7918
        %v7920 = vrot.slane %v7850, %v7919
        %v7921 = vlaneseq
        %v7922 = vshrl.u32 %v7921, 7
        %v7923 = vsub.s32 0, %v7922
        %v7924 = vrot.slane %v7864, %v7923
        %v7925 = vlaneseq
        %v7926 = vshrl.u32 %v7925, 7
        %v7927 = vsub.s32 0, %v7926
        %v7928 = vrot.slane %v7866, %v7927
        %v7929 = vlaneseq
        %v7930 = vshrl.u32 %v7929, 7
        %v7931 = vsub.s32 0, %v7930
        %v7932 = vrot.slane %v7868, %v7931
        %v7949 = vmul.f32 %v7132, %v7872
        %v7950 = vmul.f32 %v7133, %v7872
        %v7951 = vmul.f32 %v7134, %v7876
        %v7952 = vmul.f32 %v7135, %v7876
        %v7953 = vmul.f32 %v7136, %v7880
        %v7954 = vmul.f32 %v7137, %v7880
        %v7955 = vmul.f32 %v7138, %v7884
        %v7956 = vmul.f32 %v7139, %v7884
        %v7957 = vmul.f32 %v7140, %v7888
        %v7958 = vmul.f32 %v7141, %v7888
        %v7959 = vmul.f32 %v7142, %v7892
        %v7960 = vmul.f32 %v7143, %v7892
        %v7961 = vmul.f32 %v7144, %v7896
        %v7962 = vmul.f32 %v7145, %v7896
        %v7963 = vmul.f32 %v7146, %v7900
        %v7964 = vmul.f32 %v7147, %v7900
        %v7965 = vmul.f32 %v7148, %v7904
        %v7966 = vmul.f32 %v7149, %v7904
        %v7967 = vmul.f32 %v7150, %v7908
        %v7968 = vmul.f32 %v7151, %v7908
        %v7969 = vmul.f32 %v7152, %v7912
        %v7970 = vmul.f32 %v7153, %v7912
        %v7971 = vmul.f32 %v7154, %v7916
        %v7972 = vmul.f32 %v7155, %v7916
        %v7973 = vmul.f32 %v7156, %v7920
        %v7974 = vmul.f32 %v7157, %v7920
        %v7975 = vmul.f32 %v7158, %v7924
        %v7976 = vmul.f32 %v7159, %v7924
        %v7977 = vmul.f32 %v7160, %v7928
        %v7978 = vmul.f32 %v7161, %v7928
        %v7979 = vmul.f32 %v7162, %v7932
        %v7980 = vmul.f32 %v7163, %v7932
        %v7981 = vmul.f32 %v7949, %v7766
        %v7982 = vmul.f32 %v7950, %v7768
        %v7983 = vmul.f32 %v7951, %v7766
        %v7984 = vmul.f32 %v7952, %v7768
        %v7985 = vmul.f32 %v7953, %v7766
        %v7986 = vmul.f32 %v7954, %v7768
        %v7987 = vmul.f32 %v7955, %v7766
        %v7988 = vmul.f32 %v7956, %v7768
        %v7989 = vmul.f32 %v7957, %v7766
        %v7990 = vmul.f32 %v7958, %v7768
        %v7991 = vmul.f32 %v7959, %v7766
        %v7992 = vmul.f32 %v7960, %v7768
        %v7993 = vmul.f32 %v7961, %v7766
        %v7994 = vmul.f32 %v7962, %v7768
        %v7995 = vmul.f32 %v7963, %v7766
        %v7996 = vmul.f32 %v7964, %v7768
        %v7997 = vmul.f32 %v7965, %v7766
        %v7998 = vmul.f32 %v7966, %v7768
        %v7999 = vmul.f32 %v7967, %v7766
        %v8000 = vmul.f32 %v7968, %v7768
        %v8001 = vmul.f32 %v7969, %v7766
        %v8002 = vmul.f32 %v7970, %v7768
        %v8003 = vmul.f32 %v7971, %v7766
        %v8004 = vmul.f32 %v7972, %v7768
        %v8005 = vmul.f32 %v7973, %v7766
        %v8006 = vmul.f32 %v7974, %v7768
        %v8007 = vmul.f32 %v7975, %v7766
        %v8008 = vmul.f32 %v7976, %v7768
        %v8009 = vmul.f32 %v7977, %v7766
        %v8010 = vmul.f32 %v7978, %v7768
        %v8011 = vmul.f32 %v7979, %v7766
        %v8012 = vmul.f32 %v7980, %v7768
        %v8013 = vadd.f32 %v1164, %v7981
        %v8014 = vadd.f32 %v1165, %v7982
        %v8015 = vadd.f32 %v1166, %v7983
        %v8016 = vadd.f32 %v1167, %v7984
        %v8017 = vadd.f32 %v1168, %v7985
        %v8018 = vadd.f32 %v1169, %v7986
        %v8019 = vadd.f32 %v1170, %v7987
        %v8020 = vadd.f32 %v1171, %v7988
        %v8021 = vadd.f32 %v1172, %v7989
        %v8022 = vadd.f32 %v1173, %v7990
        %v8023 = vadd.f32 %v1174, %v7991
        %v8024 = vadd.f32 %v1175, %v7992
        %v8025 = vadd.f32 %v1176, %v7993
        %v8026 = vadd.f32 %v1177, %v7994
        %v8027 = vadd.f32 %v1178, %v7995
        %v8028 = vadd.f32 %v1179, %v7996
        %v8029 = vadd.f32 %v1180, %v7997
        %v8030 = vadd.f32 %v1181, %v7998
        %v8031 = vadd.f32 %v1182, %v7999
        %v8032 = vadd.f32 %v1183, %v8000
        %v8033 = vadd.f32 %v1184, %v8001
        %v8034 = vadd.f32 %v1185, %v8002
        %v8035 = vadd.f32 %v1186, %v8003
        %v8036 = vadd.f32 %v1187, %v8004
        %v8037 = vadd.f32 %v1188, %v8005
        %v8038 = vadd.f32 %v1189, %v8006
        %v8039 = vadd.f32 %v1190, %v8007
        %v8040 = vadd.f32 %v1191, %v8008
        %v8041 = vadd.f32 %v1192, %v8009
        %v8042 = vadd.f32 %v1193, %v8010
        %v8043 = vadd.f32 %v1194, %v8011
        %v8044 = vadd.f32 %v1195, %v8012
        %v8045 = vpack.c.bf16 %v8014, %v8013
        %v8046 = vpack.c.bf16 %v8016, %v8015
        %v8047 = vpack.c.bf16 %v8018, %v8017
        %v8048 = vpack.c.bf16 %v8020, %v8019
        %v8049 = vpack.c.bf16 %v8022, %v8021
        %v8050 = vpack.c.bf16 %v8024, %v8023
        %v8051 = vpack.c.bf16 %v8026, %v8025
        %v8052 = vpack.c.bf16 %v8028, %v8027
        %v8053 = vpack.c.bf16 %v8030, %v8029
        %v8054 = vpack.c.bf16 %v8032, %v8031
        %v8055 = vpack.c.bf16 %v8034, %v8033
        %v8056 = vpack.c.bf16 %v8036, %v8035
        %v8057 = vpack.c.bf16 %v8038, %v8037
        %v8058 = vpack.c.bf16 %v8040, %v8039
        %v8059 = vpack.c.bf16 %v8042, %v8041
        %v8060 = vpack.c.bf16 %v8044, %v8043
        %v8077 = vunpack.c.l.b16 %v765
        %v8078 = vunpack.c.l.b16 %v766
        %v8079 = vunpack.c.l.b16 %v767
        %v8080 = vunpack.c.l.b16 %v768
        %v8081 = vunpack.c.l.b16 %v769
        %v8082 = vunpack.c.l.b16 %v770
        %v8083 = vunpack.c.l.b16 %v771
        %v8084 = vunpack.c.l.b16 %v772
        %v8085 = vunpack.c.l.b16 %v773
        %v8086 = vunpack.c.l.b16 %v774
        %v8087 = vunpack.c.l.b16 %v775
        %v8088 = vunpack.c.l.b16 %v776
        %v8089 = vunpack.c.l.b16 %v777
        %v8090 = vunpack.c.l.b16 %v778
        %v8091 = vunpack.c.l.b16 %v779
        %v8092 = vunpack.c.l.b16 %v780
        %v8093 = vpack.c.b16 %v8078, %v8077
        %v8094 = vpack.c.b16 %v8080, %v8079
        %v8095 = vpack.c.b16 %v8082, %v8081
        %v8096 = vpack.c.b16 %v8084, %v8083
        %v8097 = vpack.c.b16 %v8086, %v8085
        %v8098 = vpack.c.b16 %v8088, %v8087
        %v8099 = vpack.c.b16 %v8090, %v8089
        %v8100 = vpack.c.b16 %v8092, %v8091
        %8109 = vmatprep.subr.bf16.mxu0 0
        %8110 = vmatpush1.bf16.msra.mxu0 %v8093
        %8111 = vmatprep.subr.bf16.mxu0 0
        %8112 = vmatpush1.bf16.msra.mxu0 %v8094
        %8113 = vmatprep.subr.bf16.mxu0 0
        %8114 = vmatpush1.bf16.msra.mxu0 %v8095
        %8115 = vmatprep.subr.bf16.mxu0 0
        %8116 = vmatpush1.bf16.msra.mxu0 %v8096
        %8117 = vmatprep.subr.bf16.mxu0 0
        %8118 = vmatpush1.bf16.msra.mxu0 %v8097
        %8119 = vmatprep.subr.bf16.mxu0 0
        %8120 = vmatpush1.bf16.msra.mxu0 %v8098
        %8121 = vmatprep.subr.bf16.mxu0 0
        %8122 = vmatpush1.bf16.msra.mxu0 %v8099
        %8123 = vmatprep.subr.bf16.mxu0 0
        %8124 = vmatpush1.bf16.msra.mxu0 %v8100
        %8125 = vmatprep.subr.bf16.mxu0 0
        %8126 = vmatpush1.bf16.msra.mxu0 0
        %8127 = vmatprep.subr.bf16.mxu0 0
        %8128 = vmatpush1.bf16.msra.mxu0 0
        %8129 = vmatprep.subr.bf16.mxu0 0
        %8130 = vmatpush1.bf16.msra.mxu0 0
        %8131 = vmatprep.subr.bf16.mxu0 0
        %8132 = vmatpush1.bf16.msra.mxu0 0
        %8133 = vmatprep.subr.bf16.mxu0 0
        %8134 = vmatpush1.bf16.msra.mxu0 0
        %8135 = vmatprep.subr.bf16.mxu0 0
        %8136 = vmatpush1.bf16.msra.mxu0 0
        %8137 = vmatprep.subr.bf16.mxu0 0
        %8138 = vmatpush1.bf16.msra.mxu0 0
        %8139 = vmatprep.subr.bf16.mxu0 0
        %8140 = vmatpush1.bf16.msra.mxu0 0
        %8141 = vmatprep.mubr.bf16.mxu0 0
        %8142 = vmatmul.mubr.bf16.gmra.mrb[0].mxu0 %v1561
        %v8143 = vpop.f32.mrb[0].mxu0
        %v8144 = vadd.f32 0.0, %v8143
        %v8145 = vpop.f32.mrb[0].mxu0
        %v8146 = vpop.f32.mrb[0].mxu0
        %v8147 = vadd.f32 0.0, %v8146
        %v8148 = vpop.f32.mrb[0].mxu0
        %8149 = vmatprep.mubr.bf16.mxu0 0
        %8150 = vmatmul.mubr.bf16.gmra.mrb[0].mxu0 %v1562
        %v8151 = vpop.f32.mrb[0].mxu0
        %v8152 = vadd.f32 0.0, %v8151
        %v8153 = vpop.f32.mrb[0].mxu0
        %v8154 = vpop.f32.mrb[0].mxu0
        %v8155 = vadd.f32 0.0, %v8154
        %v8156 = vpop.f32.mrb[0].mxu0
        %8157 = vmatprep.mubr.bf16.mxu0 0
        %8158 = vmatmul.mubr.bf16.gmra.mrb[0].mxu0 %v1563
        %v8159 = vpop.f32.mrb[0].mxu0
        %v8160 = vadd.f32 0.0, %v8159
        %v8161 = vpop.f32.mrb[0].mxu0
        %v8162 = vpop.f32.mrb[0].mxu0
        %v8163 = vadd.f32 0.0, %v8162
        %v8164 = vpop.f32.mrb[0].mxu0
        %8165 = vmatprep.mubr.bf16.mxu0 0
        %8166 = vmatmul.mubr.bf16.gmra.mrb[0].mxu0 %v1564
        %v8167 = vpop.f32.mrb[0].mxu0
        %v8168 = vadd.f32 0.0, %v8167
        %v8169 = vpop.f32.mrb[0].mxu0
        %v8170 = vpop.f32.mrb[0].mxu0
        %v8171 = vadd.f32 0.0, %v8170
        %v8172 = vpop.f32.mrb[0].mxu0
        %8173 = vmatprep.mubr.bf16.mxu0 0
        %8174 = vmatmul.mubr.bf16.gmra.mrb[0].mxu0 %v1565
        %v8175 = vpop.f32.mrb[0].mxu0
        %v8176 = vadd.f32 0.0, %v8175
        %v8177 = vpop.f32.mrb[0].mxu0
        %v8178 = vpop.f32.mrb[0].mxu0
        %v8179 = vadd.f32 0.0, %v8178
        %v8180 = vpop.f32.mrb[0].mxu0
        %8181 = vmatprep.mubr.bf16.mxu0 0
        %8182 = vmatmul.mubr.bf16.gmra.mrb[0].mxu0 %v1566
        %v8183 = vpop.f32.mrb[0].mxu0
        %v8184 = vadd.f32 0.0, %v8183
        %v8185 = vpop.f32.mrb[0].mxu0
        %v8186 = vpop.f32.mrb[0].mxu0
        %v8187 = vadd.f32 0.0, %v8186
        %v8188 = vpop.f32.mrb[0].mxu0
        %8189 = vmatprep.mubr.bf16.mxu0 0
        %8190 = vmatmul.mubr.bf16.gmra.mrb[0].mxu0 %v1567
        %v8191 = vpop.f32.mrb[0].mxu0
        %v8192 = vadd.f32 0.0, %v8191
        %v8193 = vpop.f32.mrb[0].mxu0
        %v8194 = vpop.f32.mrb[0].mxu0
        %v8195 = vadd.f32 0.0, %v8194
        %v8196 = vpop.f32.mrb[0].mxu0
        %8197 = vmatprep.mubr.bf16.mxu0 0
        %8198 = vmatmul.mubr.bf16.gmra.mrb[0].mxu0 %v1568
        %v8199 = vpop.f32.mrb[0].mxu0
        %v8200 = vadd.f32 0.0, %v8199
        %v8201 = vpop.f32.mrb[0].mxu0
        %v8202 = vpop.f32.mrb[0].mxu0
        %v8203 = vadd.f32 0.0, %v8202
        %v8204 = vpop.f32.mrb[0].mxu0
        %8205 = vmatprep.mubr.bf16.mxu0 0
        %8206 = vmatmul.mubr.bf16.gmra.mrb[0].mxu0 %v1569
        %v8207 = vpop.f32.mrb[0].mxu0
        %v8208 = vadd.f32 0.0, %v8207
        %v8209 = vpop.f32.mrb[0].mxu0
        %v8210 = vpop.f32.mrb[0].mxu0
        %v8211 = vadd.f32 0.0, %v8210
        %v8212 = vpop.f32.mrb[0].mxu0
        %8213 = vmatprep.mubr.bf16.mxu0 0
        %8214 = vmatmul.mubr.bf16.gmra.mrb[0].mxu0 %v1570
        %v8215 = vpop.f32.mrb[0].mxu0
        %v8216 = vadd.f32 0.0, %v8215
        %v8217 = vpop.f32.mrb[0].mxu0
        %v8218 = vpop.f32.mrb[0].mxu0
        %v8219 = vadd.f32 0.0, %v8218
        %v8220 = vpop.f32.mrb[0].mxu0
        %8221 = vmatprep.mubr.bf16.mxu0 0
        %8222 = vmatmul.mubr.bf16.gmra.mrb[0].mxu0 %v1571
        %v8223 = vpop.f32.mrb[0].mxu0
        %v8224 = vadd.f32 0.0, %v8223
        %v8225 = vpop.f32.mrb[0].mxu0
        %v8226 = vpop.f32.mrb[0].mxu0
        %v8227 = vadd.f32 0.0, %v8226
        %v8228 = vpop.f32.mrb[0].mxu0
        %8229 = vmatprep.mubr.bf16.mxu0 0
        %8230 = vmatmul.mubr.bf16.gmra.mrb[0].mxu0 %v1572
        %v8231 = vpop.f32.mrb[0].mxu0
        %v8232 = vadd.f32 0.0, %v8231
        %v8233 = vpop.f32.mrb[0].mxu0
        %v8234 = vpop.f32.mrb[0].mxu0
        %v8235 = vadd.f32 0.0, %v8234
        %v8236 = vpop.f32.mrb[0].mxu0
        %8237 = vmatprep.mubr.bf16.mxu0 0
        %8238 = vmatmul.mubr.bf16.gmra.mrb[0].mxu0 %v1573
        %v8239 = vpop.f32.mrb[0].mxu0
        %v8240 = vadd.f32 0.0, %v8239
        %v8241 = vpop.f32.mrb[0].mxu0
        %v8242 = vpop.f32.mrb[0].mxu0
        %v8243 = vadd.f32 0.0, %v8242
        %v8244 = vpop.f32.mrb[0].mxu0
        %8245 = vmatprep.mubr.bf16.mxu0 0
        %8246 = vmatmul.mubr.bf16.gmra.mrb[0].mxu0 %v1574
        %v8247 = vpop.f32.mrb[0].mxu0
        %v8248 = vadd.f32 0.0, %v8247
        %v8249 = vpop.f32.mrb[0].mxu0
        %v8250 = vpop.f32.mrb[0].mxu0
        %v8251 = vadd.f32 0.0, %v8250
        %v8252 = vpop.f32.mrb[0].mxu0
        %8253 = vmatprep.mubr.bf16.mxu0 0
        %8254 = vmatmul.mubr.bf16.gmra.mrb[0].mxu0 %v1575
        %v8255 = vpop.f32.mrb[0].mxu0
        %v8256 = vadd.f32 0.0, %v8255
        %v8257 = vpop.f32.mrb[0].mxu0
        %v8258 = vpop.f32.mrb[0].mxu0
        %v8259 = vadd.f32 0.0, %v8258
        %v8260 = vpop.f32.mrb[0].mxu0
        %8261 = vmatprep.mubr.bf16.mxu0 0
        %8262 = vmatmul.mubr.bf16.gmra.mrb[0].mxu0 %v1576
        %v8263 = vpop.f32.mrb[0].mxu0
        %v8264 = vadd.f32 0.0, %v8263
        %v8265 = vpop.f32.mrb[0].mxu0
        %v8266 = vpop.f32.mrb[0].mxu0
        %v8267 = vadd.f32 0.0, %v8266
        %v8268 = vpop.f32.mrb[0].mxu0
        %8269 = vdwg.mxu0
        %v8286 = vunpack.c.l.b16 %v749
        %v8287 = vunpack.c.l.b16 %v750
        %v8288 = vunpack.c.l.b16 %v751
        %v8289 = vunpack.c.l.b16 %v752
        %v8290 = vunpack.c.l.b16 %v753
        %v8291 = vunpack.c.l.b16 %v754
        %v8292 = vunpack.c.l.b16 %v755
        %v8293 = vunpack.c.l.b16 %v756
        %v8294 = vunpack.c.l.b16 %v757
        %v8295 = vunpack.c.l.b16 %v758
        %v8296 = vunpack.c.l.b16 %v759
        %v8297 = vunpack.c.l.b16 %v760
        %v8298 = vunpack.c.l.b16 %v761
        %v8299 = vunpack.c.l.b16 %v762
        %v8300 = vunpack.c.l.b16 %v763
        %v8301 = vunpack.c.l.b16 %v764
        %v8302 = vpack.c.b16 %v8287, %v8286
        %v8303 = vpack.c.b16 %v8289, %v8288
        %v8304 = vpack.c.b16 %v8291, %v8290
        %v8305 = vpack.c.b16 %v8293, %v8292
        %v8306 = vpack.c.b16 %v8295, %v8294
        %v8307 = vpack.c.b16 %v8297, %v8296
        %v8308 = vpack.c.b16 %v8299, %v8298
        %v8309 = vpack.c.b16 %v8301, %v8300
        %8318 = vmatprep.subr.bf16.mxu0 0
        %8319 = vmatpush1.bf16.msra.mxu0 %v8302
        %8320 = vmatprep.subr.bf16.mxu0 0
        %8321 = vmatpush1.bf16.msra.mxu0 %v8303
        %8322 = vmatprep.subr.bf16.mxu0 0
        %8323 = vmatpush1.bf16.msra.mxu0 %v8304
        %8324 = vmatprep.subr.bf16.mxu0 0
        %8325 = vmatpush1.bf16.msra.mxu0 %v8305
        %8326 = vmatprep.subr.bf16.mxu0 0
        %8327 = vmatpush1.bf16.msra.mxu0 %v8306
        %8328 = vmatprep.subr.bf16.mxu0 0
        %8329 = vmatpush1.bf16.msra.mxu0 %v8307
        %8330 = vmatprep.subr.bf16.mxu0 0
        %8331 = vmatpush1.bf16.msra.mxu0 %v8308
        %8332 = vmatprep.subr.bf16.mxu0 0
        %8333 = vmatpush1.bf16.msra.mxu0 %v8309
        %8334 = vmatprep.subr.bf16.mxu0 0
        %8335 = vmatpush1.bf16.msra.mxu0 0
        %8336 = vmatprep.subr.bf16.mxu0 0
        %8337 = vmatpush1.bf16.msra.mxu0 0
        %8338 = vmatprep.subr.bf16.mxu0 0
        %8339 = vmatpush1.bf16.msra.mxu0 0
        %8340 = vmatprep.subr.bf16.mxu0 0
        %8341 = vmatpush1.bf16.msra.mxu0 0
        %8342 = vmatprep.subr.bf16.mxu0 0
        %8343 = vmatpush1.bf16.msra.mxu0 0
        %8344 = vmatprep.subr.bf16.mxu0 0
        %8345 = vmatpush1.bf16.msra.mxu0 0
        %8346 = vmatprep.subr.bf16.mxu0 0
        %8347 = vmatpush1.bf16.msra.mxu0 0
        %8348 = vmatprep.subr.bf16.mxu0 0
        %8349 = vmatpush1.bf16.msra.mxu0 0
        %8350 = vmatprep.mubr.bf16.mxu0 0
        %8351 = vmatmul.mubr.bf16.gmra.mrb[0].mxu0 %v8045
        %v8352 = vpop.f32.mrb[0].mxu0
        %v8353 = vadd.f32 %v8144, %v8352
        %v8354 = vpop.f32.mrb[0].mxu0
        %v8355 = vpop.f32.mrb[0].mxu0
        %v8356 = vadd.f32 %v8147, %v8355
        %v8357 = vpop.f32.mrb[0].mxu0
        %8358 = vmatprep.mubr.bf16.mxu0 0
        %8359 = vmatmul.mubr.bf16.gmra.mrb[0].mxu0 %v8046
        %v8360 = vpop.f32.mrb[0].mxu0
        %v8361 = vadd.f32 %v8152, %v8360
        %v8362 = vpop.f32.mrb[0].mxu0
        %v8363 = vpop.f32.mrb[0].mxu0
        %v8364 = vadd.f32 %v8155, %v8363
        %v8365 = vpop.f32.mrb[0].mxu0
        %8366 = vmatprep.mubr.bf16.mxu0 0
        %8367 = vmatmul.mubr.bf16.gmra.mrb[0].mxu0 %v8047
        %v8368 = vpop.f32.mrb[0].mxu0
        %v8369 = vadd.f32 %v8160, %v8368
        %v8370 = vpop.f32.mrb[0].mxu0
        %v8371 = vpop.f32.mrb[0].mxu0
        %v8372 = vadd.f32 %v8163, %v8371
        %v8373 = vpop.f32.mrb[0].mxu0
        %8374 = vmatprep.mubr.bf16.mxu0 0
        %8375 = vmatmul.mubr.bf16.gmra.mrb[0].mxu0 %v8048
        %v8376 = vpop.f32.mrb[0].mxu0
        %v8377 = vadd.f32 %v8168, %v8376
        %v8378 = vpop.f32.mrb[0].mxu0
        %v8379 = vpop.f32.mrb[0].mxu0
        %v8380 = vadd.f32 %v8171, %v8379
        %v8381 = vpop.f32.mrb[0].mxu0
        %8382 = vmatprep.mubr.bf16.mxu0 0
        %8383 = vmatmul.mubr.bf16.gmra.mrb[0].mxu0 %v8049
        %v8384 = vpop.f32.mrb[0].mxu0
        %v8385 = vadd.f32 %v8176, %v8384
        %v8386 = vpop.f32.mrb[0].mxu0
        %v8387 = vpop.f32.mrb[0].mxu0
        %v8388 = vadd.f32 %v8179, %v8387
        %v8389 = vpop.f32.mrb[0].mxu0
        %8390 = vmatprep.mubr.bf16.mxu0 0
        %8391 = vmatmul.mubr.bf16.gmra.mrb[0].mxu0 %v8050
        %v8392 = vpop.f32.mrb[0].mxu0
        %v8393 = vadd.f32 %v8184, %v8392
        %v8394 = vpop.f32.mrb[0].mxu0
        %v8395 = vpop.f32.mrb[0].mxu0
        %v8396 = vadd.f32 %v8187, %v8395
        %v8397 = vpop.f32.mrb[0].mxu0
        %8398 = vmatprep.mubr.bf16.mxu0 0
        %8399 = vmatmul.mubr.bf16.gmra.mrb[0].mxu0 %v8051
        %v8400 = vpop.f32.mrb[0].mxu0
        %v8401 = vadd.f32 %v8192, %v8400
        %v8402 = vpop.f32.mrb[0].mxu0
        %v8403 = vpop.f32.mrb[0].mxu0
        %v8404 = vadd.f32 %v8195, %v8403
        %v8405 = vpop.f32.mrb[0].mxu0
        %8406 = vmatprep.mubr.bf16.mxu0 0
        %8407 = vmatmul.mubr.bf16.gmra.mrb[0].mxu0 %v8052
        %v8408 = vpop.f32.mrb[0].mxu0
        %v8409 = vadd.f32 %v8200, %v8408
        %v8410 = vpop.f32.mrb[0].mxu0
        %v8411 = vpop.f32.mrb[0].mxu0
        %v8412 = vadd.f32 %v8203, %v8411
        %v8413 = vpop.f32.mrb[0].mxu0
        %8414 = vmatprep.mubr.bf16.mxu0 0
        %8415 = vmatmul.mubr.bf16.gmra.mrb[0].mxu0 %v8053
        %v8416 = vpop.f32.mrb[0].mxu0
        %v8417 = vadd.f32 %v8208, %v8416
        %v8418 = vpop.f32.mrb[0].mxu0
        %v8419 = vpop.f32.mrb[0].mxu0
        %v8420 = vadd.f32 %v8211, %v8419
        %v8421 = vpop.f32.mrb[0].mxu0
        %8422 = vmatprep.mubr.bf16.mxu0 0
        %8423 = vmatmul.mubr.bf16.gmra.mrb[0].mxu0 %v8054
        %v8424 = vpop.f32.mrb[0].mxu0
        %v8425 = vadd.f32 %v8216, %v8424
        %v8426 = vpop.f32.mrb[0].mxu0
        %v8427 = vpop.f32.mrb[0].mxu0
        %v8428 = vadd.f32 %v8219, %v8427
        %v8429 = vpop.f32.mrb[0].mxu0
        %8430 = vmatprep.mubr.bf16.mxu0 0
        %8431 = vmatmul.mubr.bf16.gmra.mrb[0].mxu0 %v8055
        %v8432 = vpop.f32.mrb[0].mxu0
        %v8433 = vadd.f32 %v8224, %v8432
        %v8434 = vpop.f32.mrb[0].mxu0
        %v8435 = vpop.f32.mrb[0].mxu0
        %v8436 = vadd.f32 %v8227, %v8435
        %v8437 = vpop.f32.mrb[0].mxu0
        %8438 = vmatprep.mubr.bf16.mxu0 0
        %8439 = vmatmul.mubr.bf16.gmra.mrb[0].mxu0 %v8056
        %v8440 = vpop.f32.mrb[0].mxu0
        %v8441 = vadd.f32 %v8232, %v8440
        %v8442 = vpop.f32.mrb[0].mxu0
        %v8443 = vpop.f32.mrb[0].mxu0
        %v8444 = vadd.f32 %v8235, %v8443
        %v8445 = vpop.f32.mrb[0].mxu0
        %8446 = vmatprep.mubr.bf16.mxu0 0
        %8447 = vmatmul.mubr.bf16.gmra.mrb[0].mxu0 %v8057
        %v8448 = vpop.f32.mrb[0].mxu0
        %v8449 = vadd.f32 %v8240, %v8448
        %v8450 = vpop.f32.mrb[0].mxu0
        %v8451 = vpop.f32.mrb[0].mxu0
        %v8452 = vadd.f32 %v8243, %v8451
        %v8453 = vpop.f32.mrb[0].mxu0
        %8454 = vmatprep.mubr.bf16.mxu0 0
        %8455 = vmatmul.mubr.bf16.gmra.mrb[0].mxu0 %v8058
        %v8456 = vpop.f32.mrb[0].mxu0
        %v8457 = vadd.f32 %v8248, %v8456
        %v8458 = vpop.f32.mrb[0].mxu0
        %v8459 = vpop.f32.mrb[0].mxu0
        %v8460 = vadd.f32 %v8251, %v8459
        %v8461 = vpop.f32.mrb[0].mxu0
        %8462 = vmatprep.mubr.bf16.mxu0 0
        %8463 = vmatmul.mubr.bf16.gmra.mrb[0].mxu0 %v8059
        %v8464 = vpop.f32.mrb[0].mxu0
        %v8465 = vadd.f32 %v8256, %v8464
        %v8466 = vpop.f32.mrb[0].mxu0
        %v8467 = vpop.f32.mrb[0].mxu0
        %v8468 = vadd.f32 %v8259, %v8467
        %v8469 = vpop.f32.mrb[0].mxu0
        %8470 = vmatprep.mubr.bf16.mxu0 0
        %8471 = vmatmul.mubr.bf16.gmra.mrb[0].mxu0 %v8060
        %v8472 = vpop.f32.mrb[0].mxu0
        %v8473 = vadd.f32 %v8264, %v8472
        %v8474 = vpop.f32.mrb[0].mxu0
        %v8475 = vpop.f32.mrb[0].mxu0
        %v8476 = vadd.f32 %v8267, %v8475
        %v8477 = vpop.f32.mrb[0].mxu0
        %8478 = vdwg.mxu0
        %v8480 = vlaneseq
        %v8481 = vshrl.u32 %v8480, 7
        %v8482 = vsub.s32 0, %v8481
        %v8483 = vrot.slane %v781, %v8482
        %v8485 = vadd.f32 %v8353, %v8483
        %v8486 = vadd.f32 %v8356, %v8483
        %v8487 = vadd.f32 %v8361, %v8483
        %v8488 = vadd.f32 %v8364, %v8483
        %v8489 = vadd.f32 %v8369, %v8483
        %v8490 = vadd.f32 %v8372, %v8483
        %v8491 = vadd.f32 %v8377, %v8483
        %v8492 = vadd.f32 %v8380, %v8483
        %v8493 = vadd.f32 %v8385, %v8483
        %v8494 = vadd.f32 %v8388, %v8483
        %v8495 = vadd.f32 %v8393, %v8483
        %v8496 = vadd.f32 %v8396, %v8483
        %v8497 = vadd.f32 %v8401, %v8483
        %v8498 = vadd.f32 %v8404, %v8483
        %v8499 = vadd.f32 %v8409, %v8483
        %v8500 = vadd.f32 %v8412, %v8483
        %v8501 = vadd.f32 %v8417, %v8483
        %v8502 = vadd.f32 %v8420, %v8483
        %v8503 = vadd.f32 %v8425, %v8483
        %v8504 = vadd.f32 %v8428, %v8483
        %v8505 = vadd.f32 %v8433, %v8483
        %v8506 = vadd.f32 %v8436, %v8483
        %v8507 = vadd.f32 %v8441, %v8483
        %v8508 = vadd.f32 %v8444, %v8483
        %v8509 = vadd.f32 %v8449, %v8483
        %v8510 = vadd.f32 %v8452, %v8483
        %v8511 = vadd.f32 %v8457, %v8483
        %v8512 = vadd.f32 %v8460, %v8483
        %v8513 = vadd.f32 %v8465, %v8483
        %v8514 = vadd.f32 %v8468, %v8483
        %v8515 = vadd.f32 %v8473, %v8483
        %v8516 = vadd.f32 %v8476, %v8483
        %v8517 = vsub.f32 0.0, %v8485
        %v8518 = vsub.f32 0.0, %v8486
        %v8519 = vsub.f32 0.0, %v8487
        %v8520 = vsub.f32 0.0, %v8488
        %v8521 = vsub.f32 0.0, %v8489
        %v8522 = vsub.f32 0.0, %v8490
        %v8523 = vsub.f32 0.0, %v8491
        %v8524 = vsub.f32 0.0, %v8492
        %v8525 = vsub.f32 0.0, %v8493
        %v8526 = vsub.f32 0.0, %v8494
        %v8527 = vsub.f32 0.0, %v8495
        %v8528 = vsub.f32 0.0, %v8496
        %v8529 = vsub.f32 0.0, %v8497
        %v8530 = vsub.f32 0.0, %v8498
        %v8531 = vsub.f32 0.0, %v8499
        %v8532 = vsub.f32 0.0, %v8500
        %v8533 = vsub.f32 0.0, %v8501
        %v8534 = vsub.f32 0.0, %v8502
        %v8535 = vsub.f32 0.0, %v8503
        %v8536 = vsub.f32 0.0, %v8504
        %v8537 = vsub.f32 0.0, %v8505
        %v8538 = vsub.f32 0.0, %v8506
        %v8539 = vsub.f32 0.0, %v8507
        %v8540 = vsub.f32 0.0, %v8508
        %v8541 = vsub.f32 0.0, %v8509
        %v8542 = vsub.f32 0.0, %v8510
        %v8543 = vsub.f32 0.0, %v8511
        %v8544 = vsub.f32 0.0, %v8512
        %v8545 = vsub.f32 0.0, %v8513
        %v8546 = vsub.f32 0.0, %v8514
        %v8547 = vsub.f32 0.0, %v8515
        %v8548 = vsub.f32 0.0, %v8516
        %v8549 = vmul.f32 %v8517, 1.442695
        %v8550 = vpow.pop %v8549
        %v8551 = vmul.f32 %v8518, 1.442695
        %v8552 = vpow.pop %v8551
        %v8553 = vmul.f32 %v8519, 1.442695
        %v8554 = vpow.pop %v8553
        %v8555 = vmul.f32 %v8520, 1.442695
        %v8556 = vpow.pop %v8555
        %v8557 = vmul.f32 %v8521, 1.442695
        %v8558 = vpow.pop %v8557
        %v8559 = vmul.f32 %v8522, 1.442695
        %v8560 = vpow.pop %v8559
        %v8561 = vmul.f32 %v8523, 1.442695
        %v8562 = vpow.pop %v8561
        %v8563 = vmul.f32 %v8524, 1.442695
        %v8564 = vpow.pop %v8563
        %v8565 = vmul.f32 %v8525, 1.442695
        %v8566 = vpow.pop %v8565
        %v8567 = vmul.f32 %v8526, 1.442695
        %v8568 = vpow.pop %v8567
        %v8569 = vmul.f32 %v8527, 1.442695
        %v8570 = vpow.pop %v8569
        %v8571 = vmul.f32 %v8528, 1.442695
        %v8572 = vpow.pop %v8571
        %v8573 = vmul.f32 %v8529, 1.442695
        %v8574 = vpow.pop %v8573
        %v8575 = vmul.f32 %v8530, 1.442695
        %v8576 = vpow.pop %v8575
        %v8577 = vmul.f32 %v8531, 1.442695
        %v8578 = vpow.pop %v8577
        %v8579 = vmul.f32 %v8532, 1.442695
        %v8580 = vpow.pop %v8579
        %v8581 = vmul.f32 %v8533, 1.442695
        %v8582 = vpow.pop %v8581
        %v8583 = vmul.f32 %v8534, 1.442695
        %v8584 = vpow.pop %v8583
        %v8585 = vmul.f32 %v8535, 1.442695
        %v8586 = vpow.pop %v8585
        %v8587 = vmul.f32 %v8536, 1.442695
        %v8588 = vpow.pop %v8587
        %v8589 = vmul.f32 %v8537, 1.442695
        %v8590 = vpow.pop %v8589
        %v8591 = vmul.f32 %v8538, 1.442695
        %v8592 = vpow.pop %v8591
        %v8593 = vmul.f32 %v8539, 1.442695
        %v8594 = vpow.pop %v8593
        %v8595 = vmul.f32 %v8540, 1.442695
        %v8596 = vpow.pop %v8595
        %v8597 = vmul.f32 %v8541, 1.442695
        %v8598 = vpow.pop %v8597
        %v8599 = vmul.f32 %v8542, 1.442695
        %v8600 = vpow.pop %v8599
        %v8601 = vmul.f32 %v8543, 1.442695
        %v8602 = vpow.pop %v8601
        %v8603 = vmul.f32 %v8544, 1.442695
        %v8604 = vpow.pop %v8603
        %v8605 = vmul.f32 %v8545, 1.442695
        %v8606 = vpow.pop %v8605
        %v8607 = vmul.f32 %v8546, 1.442695
        %v8608 = vpow.pop %v8607
        %v8609 = vmul.f32 %v8547, 1.442695
        %v8610 = vpow.pop %v8609
        %v8611 = vmul.f32 %v8548, 1.442695
        %v8612 = vpow.pop %v8611
        %v8613 = vadd.f32 %v8550, 1.0
        %v8614 = vadd.f32 %v8552, 1.0
        %v8615 = vadd.f32 %v8554, 1.0
        %v8616 = vadd.f32 %v8556, 1.0
        %v8617 = vadd.f32 %v8558, 1.0
        %v8618 = vadd.f32 %v8560, 1.0
        %v8619 = vadd.f32 %v8562, 1.0
        %v8620 = vadd.f32 %v8564, 1.0
        %v8621 = vadd.f32 %v8566, 1.0
        %v8622 = vadd.f32 %v8568, 1.0
        %v8623 = vadd.f32 %v8570, 1.0
        %v8624 = vadd.f32 %v8572, 1.0
        %v8625 = vadd.f32 %v8574, 1.0
        %v8626 = vadd.f32 %v8576, 1.0
        %v8627 = vadd.f32 %v8578, 1.0
        %v8628 = vadd.f32 %v8580, 1.0
        %v8629 = vadd.f32 %v8582, 1.0
        %v8630 = vadd.f32 %v8584, 1.0
        %v8631 = vadd.f32 %v8586, 1.0
        %v8632 = vadd.f32 %v8588, 1.0
        %v8633 = vadd.f32 %v8590, 1.0
        %v8634 = vadd.f32 %v8592, 1.0
        %v8635 = vadd.f32 %v8594, 1.0
        %v8636 = vadd.f32 %v8596, 1.0
        %v8637 = vadd.f32 %v8598, 1.0
        %v8638 = vadd.f32 %v8600, 1.0
        %v8639 = vadd.f32 %v8602, 1.0
        %v8640 = vadd.f32 %v8604, 1.0
        %v8641 = vadd.f32 %v8606, 1.0
        %v8642 = vadd.f32 %v8608, 1.0
        %v8643 = vadd.f32 %v8610, 1.0
        %v8644 = vadd.f32 %v8612, 1.0
        %v8645 = vrcp.pop %v8613
        %v8646 = vrcp.pop %v8614
        %v8647 = vrcp.pop %v8615
        %v8648 = vrcp.pop %v8616
        %v8649 = vrcp.pop %v8617
        %v8650 = vrcp.pop %v8618
        %v8651 = vrcp.pop %v8619
        %v8652 = vrcp.pop %v8620
        %v8653 = vrcp.pop %v8621
        %v8654 = vrcp.pop %v8622
        %v8655 = vrcp.pop %v8623
        %v8656 = vrcp.pop %v8624
        %v8657 = vrcp.pop %v8625
        %v8658 = vrcp.pop %v8626
        %v8659 = vrcp.pop %v8627
        %v8660 = vrcp.pop %v8628
        %v8661 = vrcp.pop %v8629
        %v8662 = vrcp.pop %v8630
        %v8663 = vrcp.pop %v8631
        %v8664 = vrcp.pop %v8632
        %v8665 = vrcp.pop %v8633
        %v8666 = vrcp.pop %v8634
        %v8667 = vrcp.pop %v8635
        %v8668 = vrcp.pop %v8636
        %v8669 = vrcp.pop %v8637
        %v8670 = vrcp.pop %v8638
        %v8671 = vrcp.pop %v8639
        %v8672 = vrcp.pop %v8640
        %v8673 = vrcp.pop %v8641
        %v8674 = vrcp.pop %v8642
        %v8675 = vrcp.pop %v8643
        %v8676 = vrcp.pop %v8644
        %v8677 = vmul.f32 %v8485, %v8645
        %v8678 = vmul.f32 %v8486, %v8646
        %v8679 = vmul.f32 %v8487, %v8647
        %v8680 = vmul.f32 %v8488, %v8648
        %v8681 = vmul.f32 %v8489, %v8649
        %v8682 = vmul.f32 %v8490, %v8650
        %v8683 = vmul.f32 %v8491, %v8651
        %v8684 = vmul.f32 %v8492, %v8652
        %v8685 = vmul.f32 %v8493, %v8653
        %v8686 = vmul.f32 %v8494, %v8654
        %v8687 = vmul.f32 %v8495, %v8655
        %v8688 = vmul.f32 %v8496, %v8656
        %v8689 = vmul.f32 %v8497, %v8657
        %v8690 = vmul.f32 %v8498, %v8658
        %v8691 = vmul.f32 %v8499, %v8659
        %v8692 = vmul.f32 %v8500, %v8660
        %v8693 = vmul.f32 %v8501, %v8661
        %v8694 = vmul.f32 %v8502, %v8662
        %v8695 = vmul.f32 %v8503, %v8663
        %v8696 = vmul.f32 %v8504, %v8664
        %v8697 = vmul.f32 %v8505, %v8665
        %v8698 = vmul.f32 %v8506, %v8666
        %v8699 = vmul.f32 %v8507, %v8667
        %v8700 = vmul.f32 %v8508, %v8668
        %v8701 = vmul.f32 %v8509, %v8669
        %v8702 = vmul.f32 %v8510, %v8670
        %v8703 = vmul.f32 %v8511, %v8671
        %v8704 = vmul.f32 %v8512, %v8672
        %v8705 = vmul.f32 %v8513, %v8673
        %v8706 = vmul.f32 %v8514, %v8674
        %v8707 = vmul.f32 %v8515, %v8675
        %v8708 = vmul.f32 %v8516, %v8676
        %8709 = vst.msk [vmem:[%s568] sm:$0xff] %vm794, %v8677
        %8710 = vst.msk [vmem:[%s568 + $0x8] sm:$0xff] %vm794, %v8678
        %8711 = vst.msk [vmem:[%s568 + $0x10] sm:$0xff] %vm794, %v8679
        %8712 = vst.msk [vmem:[%s568 + $0x18] sm:$0xff] %vm794, %v8680
        %8713 = vst.msk [vmem:[%s568 + $0x20] sm:$0xff] %vm794, %v8681
        %8714 = vst.msk [vmem:[%s568 + $0x28] sm:$0xff] %vm794, %v8682
        %8715 = vst.msk [vmem:[%s568 + $0x30] sm:$0xff] %vm794, %v8683
        %8716 = vst.msk [vmem:[%s568 + $0x38] sm:$0xff] %vm794, %v8684
        %8717 = vst.msk [vmem:[%s568 + $0x40] sm:$0xff] %vm794, %v8685
        %8718 = vst.msk [vmem:[%s568 + $0x48] sm:$0xff] %vm794, %v8686
        %8719 = vst.msk [vmem:[%s568 + $0x50] sm:$0xff] %vm794, %v8687
        %8720 = vst.msk [vmem:[%s568 + $0x58] sm:$0xff] %vm794, %v8688
        %8721 = vst.msk [vmem:[%s568 + $0x60] sm:$0xff] %vm794, %v8689
        %8722 = vst.msk [vmem:[%s568 + $0x68] sm:$0xff] %vm794, %v8690
        %8723 = vst.msk [vmem:[%s568 + $0x70] sm:$0xff] %vm794, %v8691
        %8724 = vst.msk [vmem:[%s568 + $0x78] sm:$0xff] %vm794, %v8692
        %8725 = vst.msk [vmem:[%s568 + $0x80] sm:$0xff] %vm794, %v8693
        %8726 = vst.msk [vmem:[%s568 + $0x88] sm:$0xff] %vm794, %v8694
        %8727 = vst.msk [vmem:[%s568 + $0x90] sm:$0xff] %vm794, %v8695
        %8728 = vst.msk [vmem:[%s568 + $0x98] sm:$0xff] %vm794, %v8696
        %8729 = vst.msk [vmem:[%s568 + $0xa0] sm:$0xff] %vm794, %v8697
        %8730 = vst.msk [vmem:[%s568 + $0xa8] sm:$0xff] %vm794, %v8698
        %8731 = vst.msk [vmem:[%s568 + $0xb0] sm:$0xff] %vm794, %v8699
        %8732 = vst.msk [vmem:[%s568 + $0xb8] sm:$0xff] %vm794, %v8700
        %8733 = vst.msk [vmem:[%s568 + $0xc0] sm:$0xff] %vm794, %v8701
        %8734 = vst.msk [vmem:[%s568 + $0xc8] sm:$0xff] %vm794, %v8702
        %8735 = vst.msk [vmem:[%s568 + $0xd0] sm:$0xff] %vm794, %v8703
        %8736 = vst.msk [vmem:[%s568 + $0xd8] sm:$0xff] %vm794, %v8704
        %8737 = vst.msk [vmem:[%s568 + $0xe0] sm:$0xff] %vm794, %v8705
        %8738 = vst.msk [vmem:[%s568 + $0xe8] sm:$0xff] %vm794, %v8706
        %8739 = vst.msk [vmem:[%s568 + $0xf0] sm:$0xff] %vm794, %v8707
        %8740 = vst.msk [vmem:[%s568 + $0xf8] sm:$0xff] %vm794, %v8708
        %s8741 = sand.u32 %s423, 1
        %s8742 = scalar_lea.sflag [#allocation5], %s8741
        %s8743 = sand.u32 %s423, 1
        %s8744 = smul.addr %s8743, 256
        %s8745 = scalar_lea.vmem [#allocation4], %s8744
        // Predicated region
        $region93: #{c3_bottle_ca_forward.1} parent=91 // pred_check
          %p8746 = pneg %p433
        $region94: #{c3_bottle_ca_forward.1} parent=91 // pred_check_branch
          %8748 = sbr.rel (%p8746) target = $region96
        $region95: #{c3_bottle_ca_forward.1} parent=91 // pred_region
          %s8750 = ssub.s32 4096, 4096
          %8751 = vsyncadd %s8742, %s8750
          %s8752 = smul.addr %s32, 32
          %s8753 = smul.addr %s8752, 128
          %s8754 = scalar_lea.hbm %s18, %s8753
          %s8755 = sshll.u32 %s8745, 4
          %s8756 = int_to_ptr.vmem [resolvable:$true] %s8755
          %8761 = dma.vmem_to_hbm [thread:$0]  %s8756, 4096, %s8754, %s8742, 128, 128, 8
        $region96: #{c3_bottle_ca_forward.1} parent=91 // pred_fallthru
          _
      $region92: #{c3_bottle_ca_forward.1} parent=5 // pred_fallthru
        _
      %p8762 = scmp.le.s32.totalorder 2, %s27
      // Predicated region
      $region97: #{c3_bottle_ca_forward.1} parent=5 // pred_check
        %p8763 = pneg %p8762
      $region98: #{c3_bottle_ca_forward.1} parent=5 // pred_check_branch
        %8765 = sbr.rel (%p8763) target = $region100
      $region99: #{c3_bottle_ca_forward.1} parent=5 // pred_region
        %s8766 = ssub.s32 %s27, 2
        // Predicated region
        $region101: #{c3_bottle_ca_forward.1} parent=99 // pred_check
          %p8767 = pneg %p439
        $region102: #{c3_bottle_ca_forward.1} parent=99 // pred_check_branch
          %8769 = sbr.rel (%p8767) target = $region104
        $region103: #{c3_bottle_ca_forward.1} parent=99 // pred_region
          %s8770 = sand.u32 %s424, 1
          %s8771 = scalar_lea.sflag [#allocation5], %s8770
          %s8772 = sand.u32 %s424, 1
          %s8773 = smul.addr %s8772, 256
          %s8774 = scalar_lea.vmem [#allocation4], %s8773
          %8775 = dma.done %s8771, 4096
        $region104: #{c3_bottle_ca_forward.1} parent=99 // pred_fallthru
          _
      $region100: #{c3_bottle_ca_forward.1} parent=5 // pred_fallthru
        _
    $region6: #{c3_bottle_ca_forward.1} parent=1 // loop_footer
      %s31 = sadd.s32 1, %s27
    $region7: #{c3_bottle_ca_forward.1} parent=1 // loop_footer_branch
      %26 = sbr.rel target = $region3
    $region8: #{c3_bottle_ca_forward.1} parent=1 // loop_exit
      _
    %8776 = vsyncpa [#allocation5], 1
    %s8777 = scalar_lea.sflag [#allocation5], 1
    %8778 = vsyncpa %s8777, 1

</llo_original>
